<compile_context>
chip_gen: v6e
topology: v6e:2x2x1
jax: 0.10.0
libtpu: 0.0.40
codegen_flags: <defaults>
</compile_context>

<pallas_src>
import functools

import numpy as np
import jax
import jax.numpy as jnp
from jax.experimental import pallas as pl
from jax.experimental.pallas import tpu as pltpu

K = 5                      # conv kernel size
PAD = (K - 1) // 2
BN_EPS = 1e-5


def _vmem_spec():
    return pl.BlockSpec(memory_space=pltpu.MemorySpace.VMEM)


# ---------------------------------------------------------------------------
# The single fused Pallas kernel (built as a closure over the static config)
# ---------------------------------------------------------------------------
def make_kernel(cfg, batch, s_final, out_channel):
    """cfg: list of dicts with static per-block dims (H, W, Cin, Cout, Ho, Wo)."""

    def kernel(*refs):
        x_ref = refs[0]
        o_ref = refs[-1]
        pos = 1

        # activation slab: rows = (b, h), cols = (c, w)  (channel-major)
        act = x_ref[...].astype(jnp.bfloat16)

        for c in cfg:
            (d_ref, a_ref, g_ref, s_ref, gpk_ref, bpk_ref,
             pe_ref, po_ref, qe_ref, qo_ref) = refs[pos:pos + 10]
            pos += 10
            H, W, Cout = c["H"], c["W"], c["Cout"]
            n_elems = float(batch * H * W)

            # ---- Conv2d(5x5, stride 1, 'same'):  sum_dy (D_dy @ x) @ A_dy ----
            acc = jnp.zeros((batch * H, Cout * W), jnp.float32)
            for dy in range(K):
                xs = jnp.dot(d_ref[dy], act,
                             preferred_element_type=jnp.float32
                             ).astype(jnp.bfloat16)          # vertical shift
                acc = acc + jnp.dot(xs, a_ref[dy],
                                    preferred_element_type=jnp.float32)

            # ---- BatchNorm2d (training-mode batch stats), folded affine ----
            colsum = jnp.sum(acc, axis=0, keepdims=True)          # (1, Cout*W)
            colsq = jnp.sum(acc * acc, axis=0, keepdims=True)
            ch_sum = jnp.dot(colsum, g_ref[...],
                             preferred_element_type=jnp.float32)  # (1, Cout)
            ch_sq = jnp.dot(colsq, g_ref[...],
                            preferred_element_type=jnp.float32)
            mean = ch_sum * (1.0 / n_elems)
            var = jnp.maximum(ch_sq * (1.0 / n_elems) - mean * mean, 0.0)
            rs = jax.lax.rsqrt(var + BN_EPS)
            mean_pk = jnp.dot(mean, s_ref[...],
                              preferred_element_type=jnp.float32)  # broadcast
            rs_pk = jnp.dot(rs, s_ref[...],
                            preferred_element_type=jnp.float32)
            scale = gpk_ref[...] * rs_pk
            shift = bpk_ref[...] - mean_pk * scale

            # ---- affine + ReLU ----
            y = jnp.maximum(acc * scale + shift, 0.0).astype(jnp.bfloat16)

            # ---- MaxPool2d(2, 2): even/odd column select, then rows ----
            wp = jnp.maximum(
                jnp.dot(y, pe_ref[...], preferred_element_type=jnp.float32),
                jnp.dot(y, po_ref[...], preferred_element_type=jnp.float32),
            ).astype(jnp.bfloat16)
            act = jnp.maximum(
                jnp.dot(qe_ref[...], wp, preferred_element_type=jnp.float32),
                jnp.dot(qo_ref[...], wp, preferred_element_type=jnp.float32),
            ).astype(jnp.bfloat16)

        # ---- head: Conv2d(kernel == spatial size) + log_softmax ----
        wh_ref, r_ref, bh_ref = refs[pos:pos + 3]
        logits = jnp.zeros((batch, out_channel), jnp.float32)
        for kh in range(s_final):
            rows = jnp.dot(r_ref[kh], act,
                           preferred_element_type=jnp.float32
                           ).astype(jnp.bfloat16)               # (B, C*S)
            logits = logits + jnp.dot(rows, wh_ref[kh],
                                      preferred_element_type=jnp.float32)
        logits = logits + bh_ref[...]
        mx = jnp.max(logits, axis=-1, keepdims=True)
        z = logits - mx
        lse = jnp.log(jnp.sum(jnp.exp(z), axis=-1, keepdims=True))
        o_ref[...] = z - lse

    return kernel


# ---------------------------------------------------------------------------
# Host-side one-time packing of the torch-style parameters
# ---------------------------------------------------------------------------
def pack_operands(params, cfg, batch, s_final, c_last, out_channel):
    ops = []
    for blk, c in zip(params["blocks"], cfg):
        H, W = c["H"], c["W"]
        Cin, Cout, Ho, Wo = c["Cin"], c["Cout"], c["Ho"], c["Wo"]
        wt = np.asarray(blk["w"], np.float32)          # (K, K, Cin, Cout) HWIO
        gamma = np.asarray(blk["gamma"], np.float32)
        beta = np.asarray(blk["beta"], np.float32)

        # D_dy: vertical shift (+ zero pad) within each batch row-block.
        D = np.zeros((K, batch * H, batch * H), np.float32)
        for dy in range(K):
            for b in range(batch):
                for h in range(H):
                    hs = h + dy - PAD
                    if 0 <= hs < H:
                        D[dy, b * H + h, b * H + hs] = 1.0

        # A_dy: banded weight matrix, cols/rows channel-major (c, w).
        A5 = np.zeros((K, Cin, W, Cout, W), np.float32)
        for dy in range(K):
            for dx in range(K):
                for wo in range(W):
                    wi = wo + dx - PAD
                    if 0 <= wi < W:
                        A5[dy, :, wi, :, wo] = wt[dy, dx]
        A = A5.reshape(K, Cin * W, Cout * W)

        # per-channel reduce / broadcast matrices for the packed layout
        G = np.kron(np.eye(Cout, dtype=np.float32),
                    np.ones((W, 1), np.float32))          # (Cout*W, Cout)
        S = np.ascontiguousarray(G.T)                      # (Cout, Cout*W)
        gpk = np.repeat(gamma, W)[None, :]                 # packed gamma
        bpk = np.repeat(beta, W)[None, :]                  # packed beta

        # max-pool selection matrices (even/odd columns, even/odd rows)
        Ee = np.zeros((W, Wo), np.float32)
        Ee[np.arange(0, W, 2), np.arange(Wo)] = 1.0
        Eo = np.zeros((W, Wo), np.float32)
        Eo[np.arange(1, W, 2), np.arange(Wo)] = 1.0
        Pe = np.kron(np.eye(Cout, dtype=np.float32), Ee)   # (Cout*W, Cout*Wo)
        Po = np.kron(np.eye(Cout, dtype=np.float32), Eo)
        Fe = np.zeros((Ho, H), np.float32)
        Fe[np.arange(Ho), np.arange(0, H, 2)] = 1.0
        Fo = np.zeros((Ho, H), np.float32)
        Fo[np.arange(Ho), np.arange(1, H, 2)] = 1.0
        Qe = np.kron(np.eye(batch, dtype=np.float32), Fe)  # (B*Ho, B*H)
        Qo = np.kron(np.eye(batch, dtype=np.float32), Fo)

        ops += [jnp.asarray(D, jnp.bfloat16), jnp.asarray(A, jnp.bfloat16),
                jnp.asarray(G, jnp.float32), jnp.asarray(S, jnp.float32),
                jnp.asarray(gpk, jnp.float32), jnp.asarray(bpk, jnp.float32),
                jnp.asarray(Pe, jnp.bfloat16), jnp.asarray(Po, jnp.bfloat16),
                jnp.asarray(Qe, jnp.bfloat16), jnp.asarray(Qo, jnp.bfloat16)]

    # head: act rows=(b,kh), cols=(c,kw);  Wh[kh, c*S+kw, o] = w[kh,kw,c,o]
    w_head = np.asarray(params["head"]["w"], np.float32)   # (S, S, C, OUT)
    b_head = np.asarray(params["head"]["b"], np.float32)
    Wh = np.transpose(w_head, (0, 2, 1, 3)).reshape(
        s_final, c_last * s_final, out_channel)
    R = np.zeros((s_final, batch, batch * s_final), np.float32)
    for kh in range(s_final):
        for b in range(batch):
            R[kh, b, b * s_final + kh] = 1.0
    ops += [jnp.asarray(Wh, jnp.bfloat16), jnp.asarray(R, jnp.bfloat16),
            jnp.asarray(b_head[None, :], jnp.float32)]
    return tuple(ops)


# ---------------------------------------------------------------------------
# Wrapper: builds the fused forward for a fixed (batch, arch) configuration
# ---------------------------------------------------------------------------
def build_forward(params, batch, image_size, in_channel, hidden_channels,
                  output_channel):
    cfg = []
    prev, size = in_channel, image_size
    for ch in hidden_channels:
        cfg.append(dict(H=size, W=size, Cin=prev, Cout=ch,
                        Ho=size // 2, Wo=size // 2))
        prev, size = ch, size // 2
    s_final = size
    operands = pack_operands(params, cfg, batch, s_final, prev, output_channel)
    kernel = make_kernel(cfg, batch, s_final, output_channel)
    H0, C0 = cfg[0]["H"], cfg[0]["Cin"]

    @jax.jit
    def forward(x_nchw, ops):
        # NCHW -> rows (b, h), channel-major cols (c, w)
        x2d = jnp.transpose(x_nchw.astype(jnp.float32), (0, 2, 1, 3)).reshape(
            batch * H0, C0 * H0)
        out = pl.pallas_call(
            kernel,
            out_shape=jax.ShapeDtypeStruct((batch, output_channel),
                                           jnp.float32),
            in_specs=[_vmem_spec() for _ in range(1 + len(ops))],
            out_specs=_vmem_spec(),
        )(x2d, *ops)
        # PyTorch output is (B, Cout, 1, 1), log_softmax over dim=1
        return out.reshape(batch, output_channel, 1, 1)

    return forward, operands


# ---------------------------------------------------------------------------
# Deterministic parameter init (shapes follow ModelB.__init__)
# ---------------------------------------------------------------------------
def make_params(key, in_channel, hidden_channels, output_channel, image_size):
    params = {"blocks": [], "head": {}}
    prev = in_channel
    for ch in hidden_channels:
        key, k1, k2, k3, k4 = jax.random.split(key, 5)
        params["blocks"].append(dict(
            # stored HWIO (== PyTorch OIHW weight transposed to (2,3,1,0))
            w=0.05 * jax.random.normal(k1, (K, K, prev, ch), jnp.float32),
            b=0.05 * jax.random.normal(k2, (ch,), jnp.float32),
            gamma=1.0 + 0.1 * jax.random.normal(k3, (ch,), jnp.float32),
            beta=0.1 * jax.random.normal(k4, (ch,), jnp.float32),
        ))
        prev = ch
    s = image_size // (2 ** len(hidden_channels))
    key, k1, k2 = jax.random.split(key, 3)
    params["head"] = dict(
        w=0.05 * jax.random.normal(k1, (s, s, prev, output_channel),
                                   jnp.float32),
        b=0.05 * jax.random.normal(k2, (output_channel,), jnp.float32),
    )
    return params


# ---------------------------------------------------------------------------
# Pure-JAX reference (numerical sanity check of the fused kernel)
# ---------------------------------------------------------------------------
def reference_forward(x_nchw, params):
    x = jnp.transpose(x_nchw, (0, 2, 3, 1)).astype(jnp.float32)
    for blk in params["blocks"]:
        y = jax.lax.conv_general_dilated(
            x, blk["w"], window_strides=(1, 1), padding="SAME",
            dimension_numbers=("NHWC", "HWIO", "NHWC"),
            precision=jax.lax.Precision.HIGHEST) + blk["b"]
        mean = jnp.mean(y, axis=(0, 1, 2), keepdims=True)
        var = jnp.mean((y - mean) ** 2, axis=(0, 1, 2), keepdims=True)
        y = (y - mean) * jax.lax.rsqrt(var + BN_EPS) * blk["gamma"] + blk["beta"]
        y = jnp.maximum(y, 0.0)
        x = jax.lax.reduce_window(y, -jnp.inf, jax.lax.max,
                                  (1, 2, 2, 1), (1, 2, 2, 1), "VALID")
    B, S, _, C = x.shape
    logits = jnp.dot(x.reshape(B, S * S * C),
                     params["head"]["w"].reshape(S * S * C, -1),
                     precision=jax.lax.Precision.HIGHEST) + params["head"]["b"]
    return jax.nn.log_softmax(logits, axis=-1).reshape(B, -1, 1, 1)


if __name__ == "__main__":
    BATCH, IN_CH, IMG = 2, 3, 32
    HIDDEN = [8, 16, 16, 8]
    OUT_CH = 6

    key = jax.random.PRNGKey(0)
    kp, kx = jax.random.split(key)
    params = make_params(kp, IN_CH, HIDDEN, OUT_CH, IMG)
    x = jax.random.normal(kx, (BATCH, IN_CH, IMG, IMG), jnp.float32)

    forward, operands = build_forward(params, BATCH, IMG, IN_CH, HIDDEN, OUT_CH)
    out = jax.block_until_ready(forward(x, operands))

    assert out.shape == (BATCH, OUT_CH, 1, 1), out.shape
    ref = reference_forward(x, params)
    max_err = float(jnp.max(jnp.abs(out - ref)))
    assert max_err < 5e-2, f"mismatch vs reference: {max_err}"
    # log_softmax sanity: probabilities sum to 1
    assert float(jnp.max(jnp.abs(jnp.sum(jnp.exp(out), axis=1) - 1.0))) < 1e-4

    print("KERNEL_OK")
</pallas_src>

<mosaic_0001>
module attributes {stable_mosaic.version = 11 : i64} {
  func.func @kernel(%arg0: memref<64x96xf32, #tpu.memory_space<vmem>>, %arg1: memref<5x64x64xbf16, #tpu.memory_space<vmem>>, %arg2: memref<5x96x256xbf16, #tpu.memory_space<vmem>>, %arg3: memref<256x8xf32, #tpu.memory_space<vmem>>, %arg4: memref<8x256xf32, #tpu.memory_space<vmem>>, %arg5: memref<1x256xf32, #tpu.memory_space<vmem>>, %arg6: memref<1x256xf32, #tpu.memory_space<vmem>>, %arg7: memref<256x128xbf16, #tpu.memory_space<vmem>>, %arg8: memref<256x128xbf16, #tpu.memory_space<vmem>>, %arg9: memref<32x64xbf16, #tpu.memory_space<vmem>>, %arg10: memref<32x64xbf16, #tpu.memory_space<vmem>>, %arg11: memref<5x32x32xbf16, #tpu.memory_space<vmem>>, %arg12: memref<5x128x256xbf16, #tpu.memory_space<vmem>>, %arg13: memref<256x16xf32, #tpu.memory_space<vmem>>, %arg14: memref<16x256xf32, #tpu.memory_space<vmem>>, %arg15: memref<1x256xf32, #tpu.memory_space<vmem>>, %arg16: memref<1x256xf32, #tpu.memory_space<vmem>>, %arg17: memref<256x128xbf16, #tpu.memory_space<vmem>>, %arg18: memref<256x128xbf16, #tpu.memory_space<vmem>>, %arg19: memref<16x32xbf16, #tpu.memory_space<vmem>>, %arg20: memref<16x32xbf16, #tpu.memory_space<vmem>>, %arg21: memref<5x16x16xbf16, #tpu.memory_space<vmem>>, %arg22: memref<5x128x128xbf16, #tpu.memory_space<vmem>>, %arg23: memref<128x16xf32, #tpu.memory_space<vmem>>, %arg24: memref<16x128xf32, #tpu.memory_space<vmem>>, %arg25: memref<1x128xf32, #tpu.memory_space<vmem>>, %arg26: memref<1x128xf32, #tpu.memory_space<vmem>>, %arg27: memref<128x64xbf16, #tpu.memory_space<vmem>>, %arg28: memref<128x64xbf16, #tpu.memory_space<vmem>>, %arg29: memref<8x16xbf16, #tpu.memory_space<vmem>>, %arg30: memref<8x16xbf16, #tpu.memory_space<vmem>>, %arg31: memref<5x8x8xbf16, #tpu.memory_space<vmem>>, %arg32: memref<5x64x32xbf16, #tpu.memory_space<vmem>>, %arg33: memref<32x8xf32, #tpu.memory_space<vmem>>, %arg34: memref<8x32xf32, #tpu.memory_space<vmem>>, %arg35: memref<1x32xf32, #tpu.memory_space<vmem>>, %arg36: memref<1x32xf32, #tpu.memory_space<vmem>>, %arg37: memref<32x16xbf16, #tpu.memory_space<vmem>>, %arg38: memref<32x16xbf16, #tpu.memory_space<vmem>>, %arg39: memref<4x8xbf16, #tpu.memory_space<vmem>>, %arg40: memref<4x8xbf16, #tpu.memory_space<vmem>>, %arg41: memref<2x16x6xbf16, #tpu.memory_space<vmem>>, %arg42: memref<2x2x4xbf16, #tpu.memory_space<vmem>>, %arg43: memref<1x6xf32, #tpu.memory_space<vmem>>, %arg44: memref<2x6xf32, #tpu.memory_space<vmem>>) attributes {dimension_semantics = [], scalar_prefetch = 0 : i64, scratch_operands = 0 : i64, tpu.core_type = #tpu.core_type<tc>} {
    %c0 = arith.constant 0 : index
    %c0_0 = arith.constant 0 : index
    %0 = vector.load %arg0[%c0, %c0_0] : memref<64x96xf32, #tpu.memory_space<vmem>>, vector<64x96xf32>
    %1 = arith.truncf %0 : vector<64x96xf32> to vector<64x96xbf16>
    %cst = arith.constant 0.000000e+00 : f32
    %2 = vector.broadcast %cst : f32 to vector<64x256xf32>
    %c0_1 = arith.constant 0 : index
    %c0_2 = arith.constant 0 : index
    %c0_3 = arith.constant 0 : index
    %3 = vector.load %arg1[%c0_1, %c0_2, %c0_3] : memref<5x64x64xbf16, #tpu.memory_space<vmem>>, vector<1x64x64xbf16>
    %4 = vector.shape_cast %3 : vector<1x64x64xbf16> to vector<64x64xbf16>
    %cst_4 = arith.constant dense<0.000000e+00> : vector<64x96xf32>
    %5 = tpu.matmul %4, %1, %cst_4 {dimension_numbers = #tpu.dot_dimension_numbers<[1], [0], [0], [1], [0, 0, 1, 1], [], []>} : vector<64x64xbf16>, vector<64x96xbf16>, vector<64x96xf32> -> vector<64x96xf32>
    %6 = arith.truncf %5 : vector<64x96xf32> to vector<64x96xbf16>
    %c0_5 = arith.constant 0 : index
    %c0_6 = arith.constant 0 : index
    %c0_7 = arith.constant 0 : index
    %7 = vector.load %arg2[%c0_5, %c0_6, %c0_7] : memref<5x96x256xbf16, #tpu.memory_space<vmem>>, vector<1x96x256xbf16>
    %8 = vector.shape_cast %7 : vector<1x96x256xbf16> to vector<96x256xbf16>
    %cst_8 = arith.constant dense<0.000000e+00> : vector<64x256xf32>
    %9 = tpu.matmul %6, %8, %cst_8 {dimension_numbers = #tpu.dot_dimension_numbers<[1], [0], [0], [1], [0, 0, 1, 1], [], []>} : vector<64x96xbf16>, vector<96x256xbf16>, vector<64x256xf32> -> vector<64x256xf32>
    %10 = arith.addf %2, %9 : vector<64x256xf32>
    %c1 = arith.constant 1 : index
    %c0_9 = arith.constant 0 : index
    %c0_10 = arith.constant 0 : index
    %11 = vector.load %arg1[%c1, %c0_9, %c0_10] : memref<5x64x64xbf16, #tpu.memory_space<vmem>>, vector<1x64x64xbf16>
    %12 = vector.shape_cast %11 : vector<1x64x64xbf16> to vector<64x64xbf16>
    %cst_11 = arith.constant dense<0.000000e+00> : vector<64x96xf32>
    %13 = tpu.matmul %12, %1, %cst_11 {dimension_numbers = #tpu.dot_dimension_numbers<[1], [0], [0], [1], [0, 0, 1, 1], [], []>} : vector<64x64xbf16>, vector<64x96xbf16>, vector<64x96xf32> -> vector<64x96xf32>
    %14 = arith.truncf %13 : vector<64x96xf32> to vector<64x96xbf16>
    %c1_12 = arith.constant 1 : index
    %c0_13 = arith.constant 0 : index
    %c0_14 = arith.constant 0 : index
    %15 = vector.load %arg2[%c1_12, %c0_13, %c0_14] : memref<5x96x256xbf16, #tpu.memory_space<vmem>>, vector<1x96x256xbf16>
    %16 = vector.shape_cast %15 : vector<1x96x256xbf16> to vector<96x256xbf16>
    %cst_15 = arith.constant dense<0.000000e+00> : vector<64x256xf32>
    %17 = tpu.matmul %14, %16, %cst_15 {dimension_numbers = #tpu.dot_dimension_numbers<[1], [0], [0], [1], [0, 0, 1, 1], [], []>} : vector<64x96xbf16>, vector<96x256xbf16>, vector<64x256xf32> -> vector<64x256xf32>
    %18 = arith.addf %10, %17 : vector<64x256xf32>
    %c2 = arith.constant 2 : index
    %c0_16 = arith.constant 0 : index
    %c0_17 = arith.constant 0 : index
    %19 = vector.load %arg1[%c2, %c0_16, %c0_17] : memref<5x64x64xbf16, #tpu.memory_space<vmem>>, vector<1x64x64xbf16>
    %20 = vector.shape_cast %19 : vector<1x64x64xbf16> to vector<64x64xbf16>
    %cst_18 = arith.constant dense<0.000000e+00> : vector<64x96xf32>
    %21 = tpu.matmul %20, %1, %cst_18 {dimension_numbers = #tpu.dot_dimension_numbers<[1], [0], [0], [1], [0, 0, 1, 1], [], []>} : vector<64x64xbf16>, vector<64x96xbf16>, vector<64x96xf32> -> vector<64x96xf32>
    %22 = arith.truncf %21 : vector<64x96xf32> to vector<64x96xbf16>
    %c2_19 = arith.constant 2 : index
    %c0_20 = arith.constant 0 : index
    %c0_21 = arith.constant 0 : index
    %23 = vector.load %arg2[%c2_19, %c0_20, %c0_21] : memref<5x96x256xbf16, #tpu.memory_space<vmem>>, vector<1x96x256xbf16>
    %24 = vector.shape_cast %23 : vector<1x96x256xbf16> to vector<96x256xbf16>
    %cst_22 = arith.constant dense<0.000000e+00> : vector<64x256xf32>
    %25 = tpu.matmul %22, %24, %cst_22 {dimension_numbers = #tpu.dot_dimension_numbers<[1], [0], [0], [1], [0, 0, 1, 1], [], []>} : vector<64x96xbf16>, vector<96x256xbf16>, vector<64x256xf32> -> vector<64x256xf32>
    %26 = arith.addf %18, %25 : vector<64x256xf32>
    %c3 = arith.constant 3 : index
    %c0_23 = arith.constant 0 : index
    %c0_24 = arith.constant 0 : index
    %27 = vector.load %arg1[%c3, %c0_23, %c0_24] : memref<5x64x64xbf16, #tpu.memory_space<vmem>>, vector<1x64x64xbf16>
    %28 = vector.shape_cast %27 : vector<1x64x64xbf16> to vector<64x64xbf16>
    %cst_25 = arith.constant dense<0.000000e+00> : vector<64x96xf32>
    %29 = tpu.matmul %28, %1, %cst_25 {dimension_numbers = #tpu.dot_dimension_numbers<[1], [0], [0], [1], [0, 0, 1, 1], [], []>} : vector<64x64xbf16>, vector<64x96xbf16>, vector<64x96xf32> -> vector<64x96xf32>
    %30 = arith.truncf %29 : vector<64x96xf32> to vector<64x96xbf16>
    %c3_26 = arith.constant 3 : index
    %c0_27 = arith.constant 0 : index
    %c0_28 = arith.constant 0 : index
    %31 = vector.load %arg2[%c3_26, %c0_27, %c0_28] : memref<5x96x256xbf16, #tpu.memory_space<vmem>>, vector<1x96x256xbf16>
    %32 = vector.shape_cast %31 : vector<1x96x256xbf16> to vector<96x256xbf16>
    %cst_29 = arith.constant dense<0.000000e+00> : vector<64x256xf32>
    %33 = tpu.matmul %30, %32, %cst_29 {dimension_numbers = #tpu.dot_dimension_numbers<[1], [0], [0], [1], [0, 0, 1, 1], [], []>} : vector<64x96xbf16>, vector<96x256xbf16>, vector<64x256xf32> -> vector<64x256xf32>
    %34 = arith.addf %26, %33 : vector<64x256xf32>
    %c4 = arith.constant 4 : index
    %c0_30 = arith.constant 0 : index
    %c0_31 = arith.constant 0 : index
    %35 = vector.load %arg1[%c4, %c0_30, %c0_31] : memref<5x64x64xbf16, #tpu.memory_space<vmem>>, vector<1x64x64xbf16>
    %36 = vector.shape_cast %35 : vector<1x64x64xbf16> to vector<64x64xbf16>
    %cst_32 = arith.constant dense<0.000000e+00> : vector<64x96xf32>
    %37 = tpu.matmul %36, %1, %cst_32 {dimension_numbers = #tpu.dot_dimension_numbers<[1], [0], [0], [1], [0, 0, 1, 1], [], []>} : vector<64x64xbf16>, vector<64x96xbf16>, vector<64x96xf32> -> vector<64x96xf32>
    %38 = arith.truncf %37 : vector<64x96xf32> to vector<64x96xbf16>
    %c4_33 = arith.constant 4 : index
    %c0_34 = arith.constant 0 : index
    %c0_35 = arith.constant 0 : index
    %39 = vector.load %arg2[%c4_33, %c0_34, %c0_35] : memref<5x96x256xbf16, #tpu.memory_space<vmem>>, vector<1x96x256xbf16>
    %40 = vector.shape_cast %39 : vector<1x96x256xbf16> to vector<96x256xbf16>
    %cst_36 = arith.constant dense<0.000000e+00> : vector<64x256xf32>
    %41 = tpu.matmul %38, %40, %cst_36 {dimension_numbers = #tpu.dot_dimension_numbers<[1], [0], [0], [1], [0, 0, 1, 1], [], []>} : vector<64x96xbf16>, vector<96x256xbf16>, vector<64x256xf32> -> vector<64x256xf32>
    %42 = arith.addf %34, %41 : vector<64x256xf32>
    %cst_37 = arith.constant dense<0.000000e+00> : vector<256xf32>
    %43 = vector.multi_reduction <add>, %42, %cst_37 [0] : vector<64x256xf32> to vector<256xf32>
    %44 = vector.shape_cast %43 : vector<256xf32> to vector<1x256xf32>
    %45 = arith.mulf %42, %42 : vector<64x256xf32>
    %cst_38 = arith.constant dense<0.000000e+00> : vector<256xf32>
    %46 = vector.multi_reduction <add>, %45, %cst_38 [0] : vector<64x256xf32> to vector<256xf32>
    %47 = vector.shape_cast %46 : vector<256xf32> to vector<1x256xf32>
    %c0_39 = arith.constant 0 : index
    %c0_40 = arith.constant 0 : index
    %48 = vector.load %arg3[%c0_39, %c0_40] : memref<256x8xf32, #tpu.memory_space<vmem>>, vector<256x8xf32>
    %cst_41 = arith.constant dense<0.000000e+00> : vector<1x8xf32>
    %49 = tpu.matmul %44, %48, %cst_41 {dimension_numbers = #tpu.dot_dimension_numbers<[1], [0], [0], [1], [0, 0, 1, 1], [], []>} : vector<1x256xf32>, vector<256x8xf32>, vector<1x8xf32> -> vector<1x8xf32>
    %c0_42 = arith.constant 0 : index
    %c0_43 = arith.constant 0 : index
    %50 = vector.load %arg3[%c0_42, %c0_43] : memref<256x8xf32, #tpu.memory_space<vmem>>, vector<256x8xf32>
    %cst_44 = arith.constant dense<0.000000e+00> : vector<1x8xf32>
    %51 = tpu.matmul %47, %50, %cst_44 {dimension_numbers = #tpu.dot_dimension_numbers<[1], [0], [0], [1], [0, 0, 1, 1], [], []>} : vector<1x256xf32>, vector<256x8xf32>, vector<1x8xf32> -> vector<1x8xf32>
    %cst_45 = arith.constant 4.8828125E-4 : f32
    %52 = vector.broadcast %cst_45 : f32 to vector<1x8xf32>
    %53 = arith.mulf %49, %52 : vector<1x8xf32>
    %cst_46 = arith.constant 4.8828125E-4 : f32
    %54 = vector.broadcast %cst_46 : f32 to vector<1x8xf32>
    %55 = arith.mulf %51, %54 : vector<1x8xf32>
    %56 = arith.mulf %53, %53 : vector<1x8xf32>
    %57 = arith.subf %55, %56 : vector<1x8xf32>
    %cst_47 = arith.constant 0.000000e+00 : f32
    %58 = vector.broadcast %cst_47 : f32 to vector<1x8xf32>
    %59 = arith.maximumf %57, %58 : vector<1x8xf32>
    %cst_48 = arith.constant 9.99999974E-6 : f32
    %60 = vector.broadcast %cst_48 : f32 to vector<1x8xf32>
    %61 = arith.addf %59, %60 : vector<1x8xf32>
    %62 = math.rsqrt %61 : vector<1x8xf32>
    %c0_49 = arith.constant 0 : index
    %c0_50 = arith.constant 0 : index
    %63 = vector.load %arg4[%c0_49, %c0_50] : memref<8x256xf32, #tpu.memory_space<vmem>>, vector<8x256xf32>
    %cst_51 = arith.constant dense<0.000000e+00> : vector<1x256xf32>
    %64 = tpu.matmul %53, %63, %cst_51 {dimension_numbers = #tpu.dot_dimension_numbers<[1], [0], [0], [1], [0, 0, 1, 1], [], []>} : vector<1x8xf32>, vector<8x256xf32>, vector<1x256xf32> -> vector<1x256xf32>
    %c0_52 = arith.constant 0 : index
    %c0_53 = arith.constant 0 : index
    %65 = vector.load %arg4[%c0_52, %c0_53] : memref<8x256xf32, #tpu.memory_space<vmem>>, vector<8x256xf32>
    %cst_54 = arith.constant dense<0.000000e+00> : vector<1x256xf32>
    %66 = tpu.matmul %62, %65, %cst_54 {dimension_numbers = #tpu.dot_dimension_numbers<[1], [0], [0], [1], [0, 0, 1, 1], [], []>} : vector<1x8xf32>, vector<8x256xf32>, vector<1x256xf32> -> vector<1x256xf32>
    %c0_55 = arith.constant 0 : index
    %c0_56 = arith.constant 0 : index
    %67 = vector.load %arg5[%c0_55, %c0_56] : memref<1x256xf32, #tpu.memory_space<vmem>>, vector<1x256xf32>
    %68 = arith.mulf %67, %66 : vector<1x256xf32>
    %c0_57 = arith.constant 0 : index
    %c0_58 = arith.constant 0 : index
    %69 = vector.load %arg6[%c0_57, %c0_58] : memref<1x256xf32, #tpu.memory_space<vmem>>, vector<1x256xf32>
    %70 = arith.mulf %64, %68 : vector<1x256xf32>
    %71 = arith.subf %69, %70 : vector<1x256xf32>
    %72 = vector.broadcast %68 : vector<1x256xf32> to vector<64x256xf32>
    %73 = arith.mulf %42, %72 : vector<64x256xf32>
    %74 = vector.broadcast %71 : vector<1x256xf32> to vector<64x256xf32>
    %75 = arith.addf %73, %74 : vector<64x256xf32>
    %cst_59 = arith.constant 0.000000e+00 : f32
    %76 = vector.broadcast %cst_59 : f32 to vector<64x256xf32>
    %77 = arith.maximumf %75, %76 : vector<64x256xf32>
    %78 = arith.truncf %77 : vector<64x256xf32> to vector<64x256xbf16>
    %c0_60 = arith.constant 0 : index
    %c0_61 = arith.constant 0 : index
    %79 = vector.load %arg7[%c0_60, %c0_61] : memref<256x128xbf16, #tpu.memory_space<vmem>>, vector<256x128xbf16>
    %cst_62 = arith.constant dense<0.000000e+00> : vector<64x128xf32>
    %80 = tpu.matmul %78, %79, %cst_62 {dimension_numbers = #tpu.dot_dimension_numbers<[1], [0], [0], [1], [0, 0, 1, 1], [], []>} : vector<64x256xbf16>, vector<256x128xbf16>, vector<64x128xf32> -> vector<64x128xf32>
    %c0_63 = arith.constant 0 : index
    %c0_64 = arith.constant 0 : index
    %81 = vector.load %arg8[%c0_63, %c0_64] : memref<256x128xbf16, #tpu.memory_space<vmem>>, vector<256x128xbf16>
    %cst_65 = arith.constant dense<0.000000e+00> : vector<64x128xf32>
    %82 = tpu.matmul %78, %81, %cst_65 {dimension_numbers = #tpu.dot_dimension_numbers<[1], [0], [0], [1], [0, 0, 1, 1], [], []>} : vector<64x256xbf16>, vector<256x128xbf16>, vector<64x128xf32> -> vector<64x128xf32>
    %83 = arith.maximumf %80, %82 : vector<64x128xf32>
    %84 = arith.truncf %83 : vector<64x128xf32> to vector<64x128xbf16>
    %c0_66 = arith.constant 0 : index
    %c0_67 = arith.constant 0 : index
    %85 = vector.load %arg9[%c0_66, %c0_67] : memref<32x64xbf16, #tpu.memory_space<vmem>>, vector<32x64xbf16>
    %cst_68 = arith.constant dense<0.000000e+00> : vector<32x128xf32>
    %86 = tpu.matmul %85, %84, %cst_68 {dimension_numbers = #tpu.dot_dimension_numbers<[1], [0], [0], [1], [0, 0, 1, 1], [], []>} : vector<32x64xbf16>, vector<64x128xbf16>, vector<32x128xf32> -> vector<32x128xf32>
    %c0_69 = arith.constant 0 : index
    %c0_70 = arith.constant 0 : index
    %87 = vector.load %arg10[%c0_69, %c0_70] : memref<32x64xbf16, #tpu.memory_space<vmem>>, vector<32x64xbf16>
    %cst_71 = arith.constant dense<0.000000e+00> : vector<32x128xf32>
    %88 = tpu.matmul %87, %84, %cst_71 {dimension_numbers = #tpu.dot_dimension_numbers<[1], [0], [0], [1], [0, 0, 1, 1], [], []>} : vector<32x64xbf16>, vector<64x128xbf16>, vector<32x128xf32> -> vector<32x128xf32>
    %89 = arith.maximumf %86, %88 : vector<32x128xf32>
    %90 = arith.truncf %89 : vector<32x128xf32> to vector<32x128xbf16>
    %cst_72 = arith.constant 0.000000e+00 : f32
    %91 = vector.broadcast %cst_72 : f32 to vector<32x256xf32>
    %c0_73 = arith.constant 0 : index
    %c0_74 = arith.constant 0 : index
    %c0_75 = arith.constant 0 : index
    %92 = vector.load %arg11[%c0_73, %c0_74, %c0_75] : memref<5x32x32xbf16, #tpu.memory_space<vmem>>, vector<1x32x32xbf16>
    %93 = vector.shape_cast %92 : vector<1x32x32xbf16> to vector<32x32xbf16>
    %cst_76 = arith.constant dense<0.000000e+00> : vector<32x128xf32>
    %94 = tpu.matmul %93, %90, %cst_76 {dimension_numbers = #tpu.dot_dimension_numbers<[1], [0], [0], [1], [0, 0, 1, 1], [], []>} : vector<32x32xbf16>, vector<32x128xbf16>, vector<32x128xf32> -> vector<32x128xf32>
    %95 = arith.truncf %94 : vector<32x128xf32> to vector<32x128xbf16>
    %c0_77 = arith.constant 0 : index
    %c0_78 = arith.constant 0 : index
    %c0_79 = arith.constant 0 : index
    %96 = vector.load %arg12[%c0_77, %c0_78, %c0_79] : memref<5x128x256xbf16, #tpu.memory_space<vmem>>, vector<1x128x256xbf16>
    %97 = vector.shape_cast %96 : vector<1x128x256xbf16> to vector<128x256xbf16>
    %cst_80 = arith.constant dense<0.000000e+00> : vector<32x256xf32>
    %98 = tpu.matmul %95, %97, %cst_80 {dimension_numbers = #tpu.dot_dimension_numbers<[1], [0], [0], [1], [0, 0, 1, 1], [], []>} : vector<32x128xbf16>, vector<128x256xbf16>, vector<32x256xf32> -> vector<32x256xf32>
    %99 = arith.addf %91, %98 : vector<32x256xf32>
    %c1_81 = arith.constant 1 : index
    %c0_82 = arith.constant 0 : index
    %c0_83 = arith.constant 0 : index
    %100 = vector.load %arg11[%c1_81, %c0_82, %c0_83] : memref<5x32x32xbf16, #tpu.memory_space<vmem>>, vector<1x32x32xbf16>
    %101 = vector.shape_cast %100 : vector<1x32x32xbf16> to vector<32x32xbf16>
    %cst_84 = arith.constant dense<0.000000e+00> : vector<32x128xf32>
    %102 = tpu.matmul %101, %90, %cst_84 {dimension_numbers = #tpu.dot_dimension_numbers<[1], [0], [0], [1], [0, 0, 1, 1], [], []>} : vector<32x32xbf16>, vector<32x128xbf16>, vector<32x128xf32> -> vector<32x128xf32>
    %103 = arith.truncf %102 : vector<32x128xf32> to vector<32x128xbf16>
    %c1_85 = arith.constant 1 : index
    %c0_86 = arith.constant 0 : index
    %c0_87 = arith.constant 0 : index
    %104 = vector.load %arg12[%c1_85, %c0_86, %c0_87] : memref<5x128x256xbf16, #tpu.memory_space<vmem>>, vector<1x128x256xbf16>
    %105 = vector.shape_cast %104 : vector<1x128x256xbf16> to vector<128x256xbf16>
    %cst_88 = arith.constant dense<0.000000e+00> : vector<32x256xf32>
    %106 = tpu.matmul %103, %105, %cst_88 {dimension_numbers = #tpu.dot_dimension_numbers<[1], [0], [0], [1], [0, 0, 1, 1], [], []>} : vector<32x128xbf16>, vector<128x256xbf16>, vector<32x256xf32> -> vector<32x256xf32>
    %107 = arith.addf %99, %106 : vector<32x256xf32>
    %c2_89 = arith.constant 2 : index
    %c0_90 = arith.constant 0 : index
    %c0_91 = arith.constant 0 : index
    %108 = vector.load %arg11[%c2_89, %c0_90, %c0_91] : memref<5x32x32xbf16, #tpu.memory_space<vmem>>, vector<1x32x32xbf16>
    %109 = vector.shape_cast %108 : vector<1x32x32xbf16> to vector<32x32xbf16>
    %cst_92 = arith.constant dense<0.000000e+00> : vector<32x128xf32>
    %110 = tpu.matmul %109, %90, %cst_92 {dimension_numbers = #tpu.dot_dimension_numbers<[1], [0], [0], [1], [0, 0, 1, 1], [], []>} : vector<32x32xbf16>, vector<32x128xbf16>, vector<32x128xf32> -> vector<32x128xf32>
    %111 = arith.truncf %110 : vector<32x128xf32> to vector<32x128xbf16>
    %c2_93 = arith.constant 2 : index
    %c0_94 = arith.constant 0 : index
    %c0_95 = arith.constant 0 : index
    %112 = vector.load %arg12[%c2_93, %c0_94, %c0_95] : memref<5x128x256xbf16, #tpu.memory_space<vmem>>, vector<1x128x256xbf16>
    %113 = vector.shape_cast %112 : vector<1x128x256xbf16> to vector<128x256xbf16>
    %cst_96 = arith.constant dense<0.000000e+00> : vector<32x256xf32>
    %114 = tpu.matmul %111, %113, %cst_96 {dimension_numbers = #tpu.dot_dimension_numbers<[1], [0], [0], [1], [0, 0, 1, 1], [], []>} : vector<32x128xbf16>, vector<128x256xbf16>, vector<32x256xf32> -> vector<32x256xf32>
    %115 = arith.addf %107, %114 : vector<32x256xf32>
    %c3_97 = arith.constant 3 : index
    %c0_98 = arith.constant 0 : index
    %c0_99 = arith.constant 0 : index
    %116 = vector.load %arg11[%c3_97, %c0_98, %c0_99] : memref<5x32x32xbf16, #tpu.memory_space<vmem>>, vector<1x32x32xbf16>
    %117 = vector.shape_cast %116 : vector<1x32x32xbf16> to vector<32x32xbf16>
    %cst_100 = arith.constant dense<0.000000e+00> : vector<32x128xf32>
    %118 = tpu.matmul %117, %90, %cst_100 {dimension_numbers = #tpu.dot_dimension_numbers<[1], [0], [0], [1], [0, 0, 1, 1], [], []>} : vector<32x32xbf16>, vector<32x128xbf16>, vector<32x128xf32> -> vector<32x128xf32>
    %119 = arith.truncf %118 : vector<32x128xf32> to vector<32x128xbf16>
    %c3_101 = arith.constant 3 : index
    %c0_102 = arith.constant 0 : index
    %c0_103 = arith.constant 0 : index
    %120 = vector.load %arg12[%c3_101, %c0_102, %c0_103] : memref<5x128x256xbf16, #tpu.memory_space<vmem>>, vector<1x128x256xbf16>
    %121 = vector.shape_cast %120 : vector<1x128x256xbf16> to vector<128x256xbf16>
    %cst_104 = arith.constant dense<0.000000e+00> : vector<32x256xf32>
    %122 = tpu.matmul %119, %121, %cst_104 {dimension_numbers = #tpu.dot_dimension_numbers<[1], [0], [0], [1], [0, 0, 1, 1], [], []>} : vector<32x128xbf16>, vector<128x256xbf16>, vector<32x256xf32> -> vector<32x256xf32>
    %123 = arith.addf %115, %122 : vector<32x256xf32>
    %c4_105 = arith.constant 4 : index
    %c0_106 = arith.constant 0 : index
    %c0_107 = arith.constant 0 : index
    %124 = vector.load %arg11[%c4_105, %c0_106, %c0_107] : memref<5x32x32xbf16, #tpu.memory_space<vmem>>, vector<1x32x32xbf16>
    %125 = vector.shape_cast %124 : vector<1x32x32xbf16> to vector<32x32xbf16>
    %cst_108 = arith.constant dense<0.000000e+00> : vector<32x128xf32>
    %126 = tpu.matmul %125, %90, %cst_108 {dimension_numbers = #tpu.dot_dimension_numbers<[1], [0], [0], [1], [0, 0, 1, 1], [], []>} : vector<32x32xbf16>, vector<32x128xbf16>, vector<32x128xf32> -> vector<32x128xf32>
    %127 = arith.truncf %126 : vector<32x128xf32> to vector<32x128xbf16>
    %c4_109 = arith.constant 4 : index
    %c0_110 = arith.constant 0 : index
    %c0_111 = arith.constant 0 : index
    %128 = vector.load %arg12[%c4_109, %c0_110, %c0_111] : memref<5x128x256xbf16, #tpu.memory_space<vmem>>, vector<1x128x256xbf16>
    %129 = vector.shape_cast %128 : vector<1x128x256xbf16> to vector<128x256xbf16>
    %cst_112 = arith.constant dense<0.000000e+00> : vector<32x256xf32>
    %130 = tpu.matmul %127, %129, %cst_112 {dimension_numbers = #tpu.dot_dimension_numbers<[1], [0], [0], [1], [0, 0, 1, 1], [], []>} : vector<32x128xbf16>, vector<128x256xbf16>, vector<32x256xf32> -> vector<32x256xf32>
    %131 = arith.addf %123, %130 : vector<32x256xf32>
    %cst_113 = arith.constant dense<0.000000e+00> : vector<256xf32>
    %132 = vector.multi_reduction <add>, %131, %cst_113 [0] : vector<32x256xf32> to vector<256xf32>
    %133 = vector.shape_cast %132 : vector<256xf32> to vector<1x256xf32>
    %134 = arith.mulf %131, %131 : vector<32x256xf32>
    %cst_114 = arith.constant dense<0.000000e+00> : vector<256xf32>
    %135 = vector.multi_reduction <add>, %134, %cst_114 [0] : vector<32x256xf32> to vector<256xf32>
    %136 = vector.shape_cast %135 : vector<256xf32> to vector<1x256xf32>
    %c0_115 = arith.constant 0 : index
    %c0_116 = arith.constant 0 : index
    %137 = vector.load %arg13[%c0_115, %c0_116] : memref<256x16xf32, #tpu.memory_space<vmem>>, vector<256x16xf32>
    %cst_117 = arith.constant dense<0.000000e+00> : vector<1x16xf32>
    %138 = tpu.matmul %133, %137, %cst_117 {dimension_numbers = #tpu.dot_dimension_numbers<[1], [0], [0], [1], [0, 0, 1, 1], [], []>} : vector<1x256xf32>, vector<256x16xf32>, vector<1x16xf32> -> vector<1x16xf32>
    %c0_118 = arith.constant 0 : index
    %c0_119 = arith.constant 0 : index
    %139 = vector.load %arg13[%c0_118, %c0_119] : memref<256x16xf32, #tpu.memory_space<vmem>>, vector<256x16xf32>
    %cst_120 = arith.constant dense<0.000000e+00> : vector<1x16xf32>
    %140 = tpu.matmul %136, %139, %cst_120 {dimension_numbers = #tpu.dot_dimension_numbers<[1], [0], [0], [1], [0, 0, 1, 1], [], []>} : vector<1x256xf32>, vector<256x16xf32>, vector<1x16xf32> -> vector<1x16xf32>
    %cst_121 = arith.constant 0.001953125 : f32
    %141 = vector.broadcast %cst_121 : f32 to vector<1x16xf32>
    %142 = arith.mulf %138, %141 : vector<1x16xf32>
    %cst_122 = arith.constant 0.001953125 : f32
    %143 = vector.broadcast %cst_122 : f32 to vector<1x16xf32>
    %144 = arith.mulf %140, %143 : vector<1x16xf32>
    %145 = arith.mulf %142, %142 : vector<1x16xf32>
    %146 = arith.subf %144, %145 : vector<1x16xf32>
    %cst_123 = arith.constant 0.000000e+00 : f32
    %147 = vector.broadcast %cst_123 : f32 to vector<1x16xf32>
    %148 = arith.maximumf %146, %147 : vector<1x16xf32>
    %cst_124 = arith.constant 9.99999974E-6 : f32
    %149 = vector.broadcast %cst_124 : f32 to vector<1x16xf32>
    %150 = arith.addf %148, %149 : vector<1x16xf32>
    %151 = math.rsqrt %150 : vector<1x16xf32>
    %c0_125 = arith.constant 0 : index
    %c0_126 = arith.constant 0 : index
    %152 = vector.load %arg14[%c0_125, %c0_126] : memref<16x256xf32, #tpu.memory_space<vmem>>, vector<16x256xf32>
    %cst_127 = arith.constant dense<0.000000e+00> : vector<1x256xf32>
    %153 = tpu.matmul %142, %152, %cst_127 {dimension_numbers = #tpu.dot_dimension_numbers<[1], [0], [0], [1], [0, 0, 1, 1], [], []>} : vector<1x16xf32>, vector<16x256xf32>, vector<1x256xf32> -> vector<1x256xf32>
    %c0_128 = arith.constant 0 : index
    %c0_129 = arith.constant 0 : index
    %154 = vector.load %arg14[%c0_128, %c0_129] : memref<16x256xf32, #tpu.memory_space<vmem>>, vector<16x256xf32>
    %cst_130 = arith.constant dense<0.000000e+00> : vector<1x256xf32>
    %155 = tpu.matmul %151, %154, %cst_130 {dimension_numbers = #tpu.dot_dimension_numbers<[1], [0], [0], [1], [0, 0, 1, 1], [], []>} : vector<1x16xf32>, vector<16x256xf32>, vector<1x256xf32> -> vector<1x256xf32>
    %c0_131 = arith.constant 0 : index
    %c0_132 = arith.constant 0 : index
    %156 = vector.load %arg15[%c0_131, %c0_132] : memref<1x256xf32, #tpu.memory_space<vmem>>, vector<1x256xf32>
    %157 = arith.mulf %156, %155 : vector<1x256xf32>
    %c0_133 = arith.constant 0 : index
    %c0_134 = arith.constant 0 : index
    %158 = vector.load %arg16[%c0_133, %c0_134] : memref<1x256xf32, #tpu.memory_space<vmem>>, vector<1x256xf32>
    %159 = arith.mulf %153, %157 : vector<1x256xf32>
    %160 = arith.subf %158, %159 : vector<1x256xf32>
    %161 = vector.broadcast %157 : vector<1x256xf32> to vector<32x256xf32>
    %162 = arith.mulf %131, %161 : vector<32x256xf32>
    %163 = vector.broadcast %160 : vector<1x256xf32> to vector<32x256xf32>
    %164 = arith.addf %162, %163 : vector<32x256xf32>
    %cst_135 = arith.constant 0.000000e+00 : f32
    %165 = vector.broadcast %cst_135 : f32 to vector<32x256xf32>
    %166 = arith.maximumf %164, %165 : vector<32x256xf32>
    %167 = arith.truncf %166 : vector<32x256xf32> to vector<32x256xbf16>
    %c0_136 = arith.constant 0 : index
    %c0_137 = arith.constant 0 : index
    %168 = vector.load %arg17[%c0_136, %c0_137] : memref<256x128xbf16, #tpu.memory_space<vmem>>, vector<256x128xbf16>
    %cst_138 = arith.constant dense<0.000000e+00> : vector<32x128xf32>
    %169 = tpu.matmul %167, %168, %cst_138 {dimension_numbers = #tpu.dot_dimension_numbers<[1], [0], [0], [1], [0, 0, 1, 1], [], []>} : vector<32x256xbf16>, vector<256x128xbf16>, vector<32x128xf32> -> vector<32x128xf32>
    %c0_139 = arith.constant 0 : index
    %c0_140 = arith.constant 0 : index
    %170 = vector.load %arg18[%c0_139, %c0_140] : memref<256x128xbf16, #tpu.memory_space<vmem>>, vector<256x128xbf16>
    %cst_141 = arith.constant dense<0.000000e+00> : vector<32x128xf32>
    %171 = tpu.matmul %167, %170, %cst_141 {dimension_numbers = #tpu.dot_dimension_numbers<[1], [0], [0], [1], [0, 0, 1, 1], [], []>} : vector<32x256xbf16>, vector<256x128xbf16>, vector<32x128xf32> -> vector<32x128xf32>
    %172 = arith.maximumf %169, %171 : vector<32x128xf32>
    %173 = arith.truncf %172 : vector<32x128xf32> to vector<32x128xbf16>
    %c0_142 = arith.constant 0 : index
    %c0_143 = arith.constant 0 : index
    %174 = vector.load %arg19[%c0_142, %c0_143] : memref<16x32xbf16, #tpu.memory_space<vmem>>, vector<16x32xbf16>
    %cst_144 = arith.constant dense<0.000000e+00> : vector<16x128xf32>
    %175 = tpu.matmul %174, %173, %cst_144 {dimension_numbers = #tpu.dot_dimension_numbers<[1], [0], [0], [1], [0, 0, 1, 1], [], []>} : vector<16x32xbf16>, vector<32x128xbf16>, vector<16x128xf32> -> vector<16x128xf32>
    %c0_145 = arith.constant 0 : index
    %c0_146 = arith.constant 0 : index
    %176 = vector.load %arg20[%c0_145, %c0_146] : memref<16x32xbf16, #tpu.memory_space<vmem>>, vector<16x32xbf16>
    %cst_147 = arith.constant dense<0.000000e+00> : vector<16x128xf32>
    %177 = tpu.matmul %176, %173, %cst_147 {dimension_numbers = #tpu.dot_dimension_numbers<[1], [0], [0], [1], [0, 0, 1, 1], [], []>} : vector<16x32xbf16>, vector<32x128xbf16>, vector<16x128xf32> -> vector<16x128xf32>
    %178 = arith.maximumf %175, %177 : vector<16x128xf32>
    %179 = arith.truncf %178 : vector<16x128xf32> to vector<16x128xbf16>
    %cst_148 = arith.constant 0.000000e+00 : f32
    %180 = vector.broadcast %cst_148 : f32 to vector<16x128xf32>
    %c0_149 = arith.constant 0 : index
    %c0_150 = arith.constant 0 : index
    %c0_151 = arith.constant 0 : index
    %181 = vector.load %arg21[%c0_149, %c0_150, %c0_151] : memref<5x16x16xbf16, #tpu.memory_space<vmem>>, vector<1x16x16xbf16>
    %182 = vector.shape_cast %181 : vector<1x16x16xbf16> to vector<16x16xbf16>
    %cst_152 = arith.constant dense<0.000000e+00> : vector<16x128xf32>
    %183 = tpu.matmul %182, %179, %cst_152 {dimension_numbers = #tpu.dot_dimension_numbers<[1], [0], [0], [1], [0, 0, 1, 1], [], []>} : vector<16x16xbf16>, vector<16x128xbf16>, vector<16x128xf32> -> vector<16x128xf32>
    %184 = arith.truncf %183 : vector<16x128xf32> to vector<16x128xbf16>
    %c0_153 = arith.constant 0 : index
    %c0_154 = arith.constant 0 : index
    %c0_155 = arith.constant 0 : index
    %185 = vector.load %arg22[%c0_153, %c0_154, %c0_155] : memref<5x128x128xbf16, #tpu.memory_space<vmem>>, vector<1x128x128xbf16>
    %186 = vector.shape_cast %185 : vector<1x128x128xbf16> to vector<128x128xbf16>
    %cst_156 = arith.constant dense<0.000000e+00> : vector<16x128xf32>
    %187 = tpu.matmul %184, %186, %cst_156 {dimension_numbers = #tpu.dot_dimension_numbers<[1], [0], [0], [1], [0, 0, 1, 1], [], []>} : vector<16x128xbf16>, vector<128x128xbf16>, vector<16x128xf32> -> vector<16x128xf32>
    %188 = arith.addf %180, %187 : vector<16x128xf32>
    %c1_157 = arith.constant 1 : index
    %c0_158 = arith.constant 0 : index
    %c0_159 = arith.constant 0 : index
    %189 = vector.load %arg21[%c1_157, %c0_158, %c0_159] : memref<5x16x16xbf16, #tpu.memory_space<vmem>>, vector<1x16x16xbf16>
    %190 = vector.shape_cast %189 : vector<1x16x16xbf16> to vector<16x16xbf16>
    %cst_160 = arith.constant dense<0.000000e+00> : vector<16x128xf32>
    %191 = tpu.matmul %190, %179, %cst_160 {dimension_numbers = #tpu.dot_dimension_numbers<[1], [0], [0], [1], [0, 0, 1, 1], [], []>} : vector<16x16xbf16>, vector<16x128xbf16>, vector<16x128xf32> -> vector<16x128xf32>
    %192 = arith.truncf %191 : vector<16x128xf32> to vector<16x128xbf16>
    %c1_161 = arith.constant 1 : index
    %c0_162 = arith.constant 0 : index
    %c0_163 = arith.constant 0 : index
    %193 = vector.load %arg22[%c1_161, %c0_162, %c0_163] : memref<5x128x128xbf16, #tpu.memory_space<vmem>>, vector<1x128x128xbf16>
    %194 = vector.shape_cast %193 : vector<1x128x128xbf16> to vector<128x128xbf16>
    %cst_164 = arith.constant dense<0.000000e+00> : vector<16x128xf32>
    %195 = tpu.matmul %192, %194, %cst_164 {dimension_numbers = #tpu.dot_dimension_numbers<[1], [0], [0], [1], [0, 0, 1, 1], [], []>} : vector<16x128xbf16>, vector<128x128xbf16>, vector<16x128xf32> -> vector<16x128xf32>
    %196 = arith.addf %188, %195 : vector<16x128xf32>
    %c2_165 = arith.constant 2 : index
    %c0_166 = arith.constant 0 : index
    %c0_167 = arith.constant 0 : index
    %197 = vector.load %arg21[%c2_165, %c0_166, %c0_167] : memref<5x16x16xbf16, #tpu.memory_space<vmem>>, vector<1x16x16xbf16>
    %198 = vector.shape_cast %197 : vector<1x16x16xbf16> to vector<16x16xbf16>
    %cst_168 = arith.constant dense<0.000000e+00> : vector<16x128xf32>
    %199 = tpu.matmul %198, %179, %cst_168 {dimension_numbers = #tpu.dot_dimension_numbers<[1], [0], [0], [1], [0, 0, 1, 1], [], []>} : vector<16x16xbf16>, vector<16x128xbf16>, vector<16x128xf32> -> vector<16x128xf32>
    %200 = arith.truncf %199 : vector<16x128xf32> to vector<16x128xbf16>
    %c2_169 = arith.constant 2 : index
    %c0_170 = arith.constant 0 : index
    %c0_171 = arith.constant 0 : index
    %201 = vector.load %arg22[%c2_169, %c0_170, %c0_171] : memref<5x128x128xbf16, #tpu.memory_space<vmem>>, vector<1x128x128xbf16>
    %202 = vector.shape_cast %201 : vector<1x128x128xbf16> to vector<128x128xbf16>
    %cst_172 = arith.constant dense<0.000000e+00> : vector<16x128xf32>
    %203 = tpu.matmul %200, %202, %cst_172 {dimension_numbers = #tpu.dot_dimension_numbers<[1], [0], [0], [1], [0, 0, 1, 1], [], []>} : vector<16x128xbf16>, vector<128x128xbf16>, vector<16x128xf32> -> vector<16x128xf32>
    %204 = arith.addf %196, %203 : vector<16x128xf32>
    %c3_173 = arith.constant 3 : index
    %c0_174 = arith.constant 0 : index
    %c0_175 = arith.constant 0 : index
    %205 = vector.load %arg21[%c3_173, %c0_174, %c0_175] : memref<5x16x16xbf16, #tpu.memory_space<vmem>>, vector<1x16x16xbf16>
    %206 = vector.shape_cast %205 : vector<1x16x16xbf16> to vector<16x16xbf16>
    %cst_176 = arith.constant dense<0.000000e+00> : vector<16x128xf32>
    %207 = tpu.matmul %206, %179, %cst_176 {dimension_numbers = #tpu.dot_dimension_numbers<[1], [0], [0], [1], [0, 0, 1, 1], [], []>} : vector<16x16xbf16>, vector<16x128xbf16>, vector<16x128xf32> -> vector<16x128xf32>
    %208 = arith.truncf %207 : vector<16x128xf32> to vector<16x128xbf16>
    %c3_177 = arith.constant 3 : index
    %c0_178 = arith.constant 0 : index
    %c0_179 = arith.constant 0 : index
    %209 = vector.load %arg22[%c3_177, %c0_178, %c0_179] : memref<5x128x128xbf16, #tpu.memory_space<vmem>>, vector<1x128x128xbf16>
    %210 = vector.shape_cast %209 : vector<1x128x128xbf16> to vector<128x128xbf16>
    %cst_180 = arith.constant dense<0.000000e+00> : vector<16x128xf32>
    %211 = tpu.matmul %208, %210, %cst_180 {dimension_numbers = #tpu.dot_dimension_numbers<[1], [0], [0], [1], [0, 0, 1, 1], [], []>} : vector<16x128xbf16>, vector<128x128xbf16>, vector<16x128xf32> -> vector<16x128xf32>
    %212 = arith.addf %204, %211 : vector<16x128xf32>
    %c4_181 = arith.constant 4 : index
    %c0_182 = arith.constant 0 : index
    %c0_183 = arith.constant 0 : index
    %213 = vector.load %arg21[%c4_181, %c0_182, %c0_183] : memref<5x16x16xbf16, #tpu.memory_space<vmem>>, vector<1x16x16xbf16>
    %214 = vector.shape_cast %213 : vector<1x16x16xbf16> to vector<16x16xbf16>
    %cst_184 = arith.constant dense<0.000000e+00> : vector<16x128xf32>
    %215 = tpu.matmul %214, %179, %cst_184 {dimension_numbers = #tpu.dot_dimension_numbers<[1], [0], [0], [1], [0, 0, 1, 1], [], []>} : vector<16x16xbf16>, vector<16x128xbf16>, vector<16x128xf32> -> vector<16x128xf32>
    %216 = arith.truncf %215 : vector<16x128xf32> to vector<16x128xbf16>
    %c4_185 = arith.constant 4 : index
    %c0_186 = arith.constant 0 : index
    %c0_187 = arith.constant 0 : index
    %217 = vector.load %arg22[%c4_185, %c0_186, %c0_187] : memref<5x128x128xbf16, #tpu.memory_space<vmem>>, vector<1x128x128xbf16>
    %218 = vector.shape_cast %217 : vector<1x128x128xbf16> to vector<128x128xbf16>
    %cst_188 = arith.constant dense<0.000000e+00> : vector<16x128xf32>
    %219 = tpu.matmul %216, %218, %cst_188 {dimension_numbers = #tpu.dot_dimension_numbers<[1], [0], [0], [1], [0, 0, 1, 1], [], []>} : vector<16x128xbf16>, vector<128x128xbf16>, vector<16x128xf32> -> vector<16x128xf32>
    %220 = arith.addf %212, %219 : vector<16x128xf32>
    %cst_189 = arith.constant dense<0.000000e+00> : vector<128xf32>
    %221 = vector.multi_reduction <add>, %220, %cst_189 [0] : vector<16x128xf32> to vector<128xf32>
    %222 = vector.shape_cast %221 : vector<128xf32> to vector<1x128xf32>
    %223 = arith.mulf %220, %220 : vector<16x128xf32>
    %cst_190 = arith.constant dense<0.000000e+00> : vector<128xf32>
    %224 = vector.multi_reduction <add>, %223, %cst_190 [0] : vector<16x128xf32> to vector<128xf32>
    %225 = vector.shape_cast %224 : vector<128xf32> to vector<1x128xf32>
    %c0_191 = arith.constant 0 : index
    %c0_192 = arith.constant 0 : index
    %226 = vector.load %arg23[%c0_191, %c0_192] : memref<128x16xf32, #tpu.memory_space<vmem>>, vector<128x16xf32>
    %cst_193 = arith.constant dense<0.000000e+00> : vector<1x16xf32>
    %227 = tpu.matmul %222, %226, %cst_193 {dimension_numbers = #tpu.dot_dimension_numbers<[1], [0], [0], [1], [0, 0, 1, 1], [], []>} : vector<1x128xf32>, vector<128x16xf32>, vector<1x16xf32> -> vector<1x16xf32>
    %c0_194 = arith.constant 0 : index
    %c0_195 = arith.constant 0 : index
    %228 = vector.load %arg23[%c0_194, %c0_195] : memref<128x16xf32, #tpu.memory_space<vmem>>, vector<128x16xf32>
    %cst_196 = arith.constant dense<0.000000e+00> : vector<1x16xf32>
    %229 = tpu.matmul %225, %228, %cst_196 {dimension_numbers = #tpu.dot_dimension_numbers<[1], [0], [0], [1], [0, 0, 1, 1], [], []>} : vector<1x128xf32>, vector<128x16xf32>, vector<1x16xf32> -> vector<1x16xf32>
    %cst_197 = arith.constant 7.812500e-03 : f32
    %230 = vector.broadcast %cst_197 : f32 to vector<1x16xf32>
    %231 = arith.mulf %227, %230 : vector<1x16xf32>
    %cst_198 = arith.constant 7.812500e-03 : f32
    %232 = vector.broadcast %cst_198 : f32 to vector<1x16xf32>
    %233 = arith.mulf %229, %232 : vector<1x16xf32>
    %234 = arith.mulf %231, %231 : vector<1x16xf32>
    %235 = arith.subf %233, %234 : vector<1x16xf32>
    %cst_199 = arith.constant 0.000000e+00 : f32
    %236 = vector.broadcast %cst_199 : f32 to vector<1x16xf32>
    %237 = arith.maximumf %235, %236 : vector<1x16xf32>
    %cst_200 = arith.constant 9.99999974E-6 : f32
    %238 = vector.broadcast %cst_200 : f32 to vector<1x16xf32>
    %239 = arith.addf %237, %238 : vector<1x16xf32>
    %240 = math.rsqrt %239 : vector<1x16xf32>
    %c0_201 = arith.constant 0 : index
    %c0_202 = arith.constant 0 : index
    %241 = vector.load %arg24[%c0_201, %c0_202] : memref<16x128xf32, #tpu.memory_space<vmem>>, vector<16x128xf32>
    %cst_203 = arith.constant dense<0.000000e+00> : vector<1x128xf32>
    %242 = tpu.matmul %231, %241, %cst_203 {dimension_numbers = #tpu.dot_dimension_numbers<[1], [0], [0], [1], [0, 0, 1, 1], [], []>} : vector<1x16xf32>, vector<16x128xf32>, vector<1x128xf32> -> vector<1x128xf32>
    %c0_204 = arith.constant 0 : index
    %c0_205 = arith.constant 0 : index
    %243 = vector.load %arg24[%c0_204, %c0_205] : memref<16x128xf32, #tpu.memory_space<vmem>>, vector<16x128xf32>
    %cst_206 = arith.constant dense<0.000000e+00> : vector<1x128xf32>
    %244 = tpu.matmul %240, %243, %cst_206 {dimension_numbers = #tpu.dot_dimension_numbers<[1], [0], [0], [1], [0, 0, 1, 1], [], []>} : vector<1x16xf32>, vector<16x128xf32>, vector<1x128xf32> -> vector<1x128xf32>
    %c0_207 = arith.constant 0 : index
    %c0_208 = arith.constant 0 : index
    %245 = vector.load %arg25[%c0_207, %c0_208] : memref<1x128xf32, #tpu.memory_space<vmem>>, vector<1x128xf32>
    %246 = arith.mulf %245, %244 : vector<1x128xf32>
    %c0_209 = arith.constant 0 : index
    %c0_210 = arith.constant 0 : index
    %247 = vector.load %arg26[%c0_209, %c0_210] : memref<1x128xf32, #tpu.memory_space<vmem>>, vector<1x128xf32>
    %248 = arith.mulf %242, %246 : vector<1x128xf32>
    %249 = arith.subf %247, %248 : vector<1x128xf32>
    %250 = vector.broadcast %246 : vector<1x128xf32> to vector<16x128xf32>
    %251 = arith.mulf %220, %250 : vector<16x128xf32>
    %252 = vector.broadcast %249 : vector<1x128xf32> to vector<16x128xf32>
    %253 = arith.addf %251, %252 : vector<16x128xf32>
    %cst_211 = arith.constant 0.000000e+00 : f32
    %254 = vector.broadcast %cst_211 : f32 to vector<16x128xf32>
    %255 = arith.maximumf %253, %254 : vector<16x128xf32>
    %256 = arith.truncf %255 : vector<16x128xf32> to vector<16x128xbf16>
    %c0_212 = arith.constant 0 : index
    %c0_213 = arith.constant 0 : index
    %257 = vector.load %arg27[%c0_212, %c0_213] : memref<128x64xbf16, #tpu.memory_space<vmem>>, vector<128x64xbf16>
    %cst_214 = arith.constant dense<0.000000e+00> : vector<16x64xf32>
    %258 = tpu.matmul %256, %257, %cst_214 {dimension_numbers = #tpu.dot_dimension_numbers<[1], [0], [0], [1], [0, 0, 1, 1], [], []>} : vector<16x128xbf16>, vector<128x64xbf16>, vector<16x64xf32> -> vector<16x64xf32>
    %c0_215 = arith.constant 0 : index
    %c0_216 = arith.constant 0 : index
    %259 = vector.load %arg28[%c0_215, %c0_216] : memref<128x64xbf16, #tpu.memory_space<vmem>>, vector<128x64xbf16>
    %cst_217 = arith.constant dense<0.000000e+00> : vector<16x64xf32>
    %260 = tpu.matmul %256, %259, %cst_217 {dimension_numbers = #tpu.dot_dimension_numbers<[1], [0], [0], [1], [0, 0, 1, 1], [], []>} : vector<16x128xbf16>, vector<128x64xbf16>, vector<16x64xf32> -> vector<16x64xf32>
    %261 = arith.maximumf %258, %260 : vector<16x64xf32>
    %262 = arith.truncf %261 : vector<16x64xf32> to vector<16x64xbf16>
    %c0_218 = arith.constant 0 : index
    %c0_219 = arith.constant 0 : index
    %263 = vector.load %arg29[%c0_218, %c0_219] : memref<8x16xbf16, #tpu.memory_space<vmem>>, vector<8x16xbf16>
    %cst_220 = arith.constant dense<0.000000e+00> : vector<8x64xf32>
    %264 = tpu.matmul %263, %262, %cst_220 {dimension_numbers = #tpu.dot_dimension_numbers<[1], [0], [0], [1], [0, 0, 1, 1], [], []>} : vector<8x16xbf16>, vector<16x64xbf16>, vector<8x64xf32> -> vector<8x64xf32>
    %c0_221 = arith.constant 0 : index
    %c0_222 = arith.constant 0 : index
    %265 = vector.load %arg30[%c0_221, %c0_222] : memref<8x16xbf16, #tpu.memory_space<vmem>>, vector<8x16xbf16>
    %cst_223 = arith.constant dense<0.000000e+00> : vector<8x64xf32>
    %266 = tpu.matmul %265, %262, %cst_223 {dimension_numbers = #tpu.dot_dimension_numbers<[1], [0], [0], [1], [0, 0, 1, 1], [], []>} : vector<8x16xbf16>, vector<16x64xbf16>, vector<8x64xf32> -> vector<8x64xf32>
    %267 = arith.maximumf %264, %266 : vector<8x64xf32>
    %268 = arith.truncf %267 : vector<8x64xf32> to vector<8x64xbf16>
    %cst_224 = arith.constant 0.000000e+00 : f32
    %269 = vector.broadcast %cst_224 : f32 to vector<8x32xf32>
    %c0_225 = arith.constant 0 : index
    %c0_226 = arith.constant 0 : index
    %c0_227 = arith.constant 0 : index
    %270 = vector.load %arg31[%c0_225, %c0_226, %c0_227] : memref<5x8x8xbf16, #tpu.memory_space<vmem>>, vector<1x8x8xbf16>
    %271 = vector.shape_cast %270 : vector<1x8x8xbf16> to vector<8x8xbf16>
    %cst_228 = arith.constant dense<0.000000e+00> : vector<8x64xf32>
    %272 = tpu.matmul %271, %268, %cst_228 {dimension_numbers = #tpu.dot_dimension_numbers<[1], [0], [0], [1], [0, 0, 1, 1], [], []>} : vector<8x8xbf16>, vector<8x64xbf16>, vector<8x64xf32> -> vector<8x64xf32>
    %273 = arith.truncf %272 : vector<8x64xf32> to vector<8x64xbf16>
    %c0_229 = arith.constant 0 : index
    %c0_230 = arith.constant 0 : index
    %c0_231 = arith.constant 0 : index
    %274 = vector.load %arg32[%c0_229, %c0_230, %c0_231] : memref<5x64x32xbf16, #tpu.memory_space<vmem>>, vector<1x64x32xbf16>
    %275 = vector.shape_cast %274 : vector<1x64x32xbf16> to vector<64x32xbf16>
    %cst_232 = arith.constant dense<0.000000e+00> : vector<8x32xf32>
    %276 = tpu.matmul %273, %275, %cst_232 {dimension_numbers = #tpu.dot_dimension_numbers<[1], [0], [0], [1], [0, 0, 1, 1], [], []>} : vector<8x64xbf16>, vector<64x32xbf16>, vector<8x32xf32> -> vector<8x32xf32>
    %277 = arith.addf %269, %276 : vector<8x32xf32>
    %c1_233 = arith.constant 1 : index
    %c0_234 = arith.constant 0 : index
    %c0_235 = arith.constant 0 : index
    %278 = vector.load %arg31[%c1_233, %c0_234, %c0_235] : memref<5x8x8xbf16, #tpu.memory_space<vmem>>, vector<1x8x8xbf16>
    %279 = vector.shape_cast %278 : vector<1x8x8xbf16> to vector<8x8xbf16>
    %cst_236 = arith.constant dense<0.000000e+00> : vector<8x64xf32>
    %280 = tpu.matmul %279, %268, %cst_236 {dimension_numbers = #tpu.dot_dimension_numbers<[1], [0], [0], [1], [0, 0, 1, 1], [], []>} : vector<8x8xbf16>, vector<8x64xbf16>, vector<8x64xf32> -> vector<8x64xf32>
    %281 = arith.truncf %280 : vector<8x64xf32> to vector<8x64xbf16>
    %c1_237 = arith.constant 1 : index
    %c0_238 = arith.constant 0 : index
    %c0_239 = arith.constant 0 : index
    %282 = vector.load %arg32[%c1_237, %c0_238, %c0_239] : memref<5x64x32xbf16, #tpu.memory_space<vmem>>, vector<1x64x32xbf16>
    %283 = vector.shape_cast %282 : vector<1x64x32xbf16> to vector<64x32xbf16>
    %cst_240 = arith.constant dense<0.000000e+00> : vector<8x32xf32>
    %284 = tpu.matmul %281, %283, %cst_240 {dimension_numbers = #tpu.dot_dimension_numbers<[1], [0], [0], [1], [0, 0, 1, 1], [], []>} : vector<8x64xbf16>, vector<64x32xbf16>, vector<8x32xf32> -> vector<8x32xf32>
    %285 = arith.addf %277, %284 : vector<8x32xf32>
    %c2_241 = arith.constant 2 : index
    %c0_242 = arith.constant 0 : index
    %c0_243 = arith.constant 0 : index
    %286 = vector.load %arg31[%c2_241, %c0_242, %c0_243] : memref<5x8x8xbf16, #tpu.memory_space<vmem>>, vector<1x8x8xbf16>
    %287 = vector.shape_cast %286 : vector<1x8x8xbf16> to vector<8x8xbf16>
    %cst_244 = arith.constant dense<0.000000e+00> : vector<8x64xf32>
    %288 = tpu.matmul %287, %268, %cst_244 {dimension_numbers = #tpu.dot_dimension_numbers<[1], [0], [0], [1], [0, 0, 1, 1], [], []>} : vector<8x8xbf16>, vector<8x64xbf16>, vector<8x64xf32> -> vector<8x64xf32>
    %289 = arith.truncf %288 : vector<8x64xf32> to vector<8x64xbf16>
    %c2_245 = arith.constant 2 : index
    %c0_246 = arith.constant 0 : index
    %c0_247 = arith.constant 0 : index
    %290 = vector.load %arg32[%c2_245, %c0_246, %c0_247] : memref<5x64x32xbf16, #tpu.memory_space<vmem>>, vector<1x64x32xbf16>
    %291 = vector.shape_cast %290 : vector<1x64x32xbf16> to vector<64x32xbf16>
    %cst_248 = arith.constant dense<0.000000e+00> : vector<8x32xf32>
    %292 = tpu.matmul %289, %291, %cst_248 {dimension_numbers = #tpu.dot_dimension_numbers<[1], [0], [0], [1], [0, 0, 1, 1], [], []>} : vector<8x64xbf16>, vector<64x32xbf16>, vector<8x32xf32> -> vector<8x32xf32>
    %293 = arith.addf %285, %292 : vector<8x32xf32>
    %c3_249 = arith.constant 3 : index
    %c0_250 = arith.constant 0 : index
    %c0_251 = arith.constant 0 : index
    %294 = vector.load %arg31[%c3_249, %c0_250, %c0_251] : memref<5x8x8xbf16, #tpu.memory_space<vmem>>, vector<1x8x8xbf16>
    %295 = vector.shape_cast %294 : vector<1x8x8xbf16> to vector<8x8xbf16>
    %cst_252 = arith.constant dense<0.000000e+00> : vector<8x64xf32>
    %296 = tpu.matmul %295, %268, %cst_252 {dimension_numbers = #tpu.dot_dimension_numbers<[1], [0], [0], [1], [0, 0, 1, 1], [], []>} : vector<8x8xbf16>, vector<8x64xbf16>, vector<8x64xf32> -> vector<8x64xf32>
    %297 = arith.truncf %296 : vector<8x64xf32> to vector<8x64xbf16>
    %c3_253 = arith.constant 3 : index
    %c0_254 = arith.constant 0 : index
    %c0_255 = arith.constant 0 : index
    %298 = vector.load %arg32[%c3_253, %c0_254, %c0_255] : memref<5x64x32xbf16, #tpu.memory_space<vmem>>, vector<1x64x32xbf16>
    %299 = vector.shape_cast %298 : vector<1x64x32xbf16> to vector<64x32xbf16>
    %cst_256 = arith.constant dense<0.000000e+00> : vector<8x32xf32>
    %300 = tpu.matmul %297, %299, %cst_256 {dimension_numbers = #tpu.dot_dimension_numbers<[1], [0], [0], [1], [0, 0, 1, 1], [], []>} : vector<8x64xbf16>, vector<64x32xbf16>, vector<8x32xf32> -> vector<8x32xf32>
    %301 = arith.addf %293, %300 : vector<8x32xf32>
    %c4_257 = arith.constant 4 : index
    %c0_258 = arith.constant 0 : index
    %c0_259 = arith.constant 0 : index
    %302 = vector.load %arg31[%c4_257, %c0_258, %c0_259] : memref<5x8x8xbf16, #tpu.memory_space<vmem>>, vector<1x8x8xbf16>
    %303 = vector.shape_cast %302 : vector<1x8x8xbf16> to vector<8x8xbf16>
    %cst_260 = arith.constant dense<0.000000e+00> : vector<8x64xf32>
    %304 = tpu.matmul %303, %268, %cst_260 {dimension_numbers = #tpu.dot_dimension_numbers<[1], [0], [0], [1], [0, 0, 1, 1], [], []>} : vector<8x8xbf16>, vector<8x64xbf16>, vector<8x64xf32> -> vector<8x64xf32>
    %305 = arith.truncf %304 : vector<8x64xf32> to vector<8x64xbf16>
    %c4_261 = arith.constant 4 : index
    %c0_262 = arith.constant 0 : index
    %c0_263 = arith.constant 0 : index
    %306 = vector.load %arg32[%c4_261, %c0_262, %c0_263] : memref<5x64x32xbf16, #tpu.memory_space<vmem>>, vector<1x64x32xbf16>
    %307 = vector.shape_cast %306 : vector<1x64x32xbf16> to vector<64x32xbf16>
    %cst_264 = arith.constant dense<0.000000e+00> : vector<8x32xf32>
    %308 = tpu.matmul %305, %307, %cst_264 {dimension_numbers = #tpu.dot_dimension_numbers<[1], [0], [0], [1], [0, 0, 1, 1], [], []>} : vector<8x64xbf16>, vector<64x32xbf16>, vector<8x32xf32> -> vector<8x32xf32>
    %309 = arith.addf %301, %308 : vector<8x32xf32>
    %cst_265 = arith.constant dense<0.000000e+00> : vector<32xf32>
    %310 = vector.multi_reduction <add>, %309, %cst_265 [0] : vector<8x32xf32> to vector<32xf32>
    %311 = vector.shape_cast %310 : vector<32xf32> to vector<1x32xf32>
    %312 = arith.mulf %309, %309 : vector<8x32xf32>
    %cst_266 = arith.constant dense<0.000000e+00> : vector<32xf32>
    %313 = vector.multi_reduction <add>, %312, %cst_266 [0] : vector<8x32xf32> to vector<32xf32>
    %314 = vector.shape_cast %313 : vector<32xf32> to vector<1x32xf32>
    %c0_267 = arith.constant 0 : index
    %c0_268 = arith.constant 0 : index
    %315 = vector.load %arg33[%c0_267, %c0_268] : memref<32x8xf32, #tpu.memory_space<vmem>>, vector<32x8xf32>
    %cst_269 = arith.constant dense<0.000000e+00> : vector<1x8xf32>
    %316 = tpu.matmul %311, %315, %cst_269 {dimension_numbers = #tpu.dot_dimension_numbers<[1], [0], [0], [1], [0, 0, 1, 1], [], []>} : vector<1x32xf32>, vector<32x8xf32>, vector<1x8xf32> -> vector<1x8xf32>
    %c0_270 = arith.constant 0 : index
    %c0_271 = arith.constant 0 : index
    %317 = vector.load %arg33[%c0_270, %c0_271] : memref<32x8xf32, #tpu.memory_space<vmem>>, vector<32x8xf32>
    %cst_272 = arith.constant dense<0.000000e+00> : vector<1x8xf32>
    %318 = tpu.matmul %314, %317, %cst_272 {dimension_numbers = #tpu.dot_dimension_numbers<[1], [0], [0], [1], [0, 0, 1, 1], [], []>} : vector<1x32xf32>, vector<32x8xf32>, vector<1x8xf32> -> vector<1x8xf32>
    %cst_273 = arith.constant 3.125000e-02 : f32
    %319 = vector.broadcast %cst_273 : f32 to vector<1x8xf32>
    %320 = arith.mulf %316, %319 : vector<1x8xf32>
    %cst_274 = arith.constant 3.125000e-02 : f32
    %321 = vector.broadcast %cst_274 : f32 to vector<1x8xf32>
    %322 = arith.mulf %318, %321 : vector<1x8xf32>
    %323 = arith.mulf %320, %320 : vector<1x8xf32>
    %324 = arith.subf %322, %323 : vector<1x8xf32>
    %cst_275 = arith.constant 0.000000e+00 : f32
    %325 = vector.broadcast %cst_275 : f32 to vector<1x8xf32>
    %326 = arith.maximumf %324, %325 : vector<1x8xf32>
    %cst_276 = arith.constant 9.99999974E-6 : f32
    %327 = vector.broadcast %cst_276 : f32 to vector<1x8xf32>
    %328 = arith.addf %326, %327 : vector<1x8xf32>
    %329 = math.rsqrt %328 : vector<1x8xf32>
    %c0_277 = arith.constant 0 : index
    %c0_278 = arith.constant 0 : index
    %330 = vector.load %arg34[%c0_277, %c0_278] : memref<8x32xf32, #tpu.memory_space<vmem>>, vector<8x32xf32>
    %cst_279 = arith.constant dense<0.000000e+00> : vector<1x32xf32>
    %331 = tpu.matmul %320, %330, %cst_279 {dimension_numbers = #tpu.dot_dimension_numbers<[1], [0], [0], [1], [0, 0, 1, 1], [], []>} : vector<1x8xf32>, vector<8x32xf32>, vector<1x32xf32> -> vector<1x32xf32>
    %c0_280 = arith.constant 0 : index
    %c0_281 = arith.constant 0 : index
    %332 = vector.load %arg34[%c0_280, %c0_281] : memref<8x32xf32, #tpu.memory_space<vmem>>, vector<8x32xf32>
    %cst_282 = arith.constant dense<0.000000e+00> : vector<1x32xf32>
    %333 = tpu.matmul %329, %332, %cst_282 {dimension_numbers = #tpu.dot_dimension_numbers<[1], [0], [0], [1], [0, 0, 1, 1], [], []>} : vector<1x8xf32>, vector<8x32xf32>, vector<1x32xf32> -> vector<1x32xf32>
    %c0_283 = arith.constant 0 : index
    %c0_284 = arith.constant 0 : index
    %334 = vector.load %arg35[%c0_283, %c0_284] : memref<1x32xf32, #tpu.memory_space<vmem>>, vector<1x32xf32>
    %335 = arith.mulf %334, %333 : vector<1x32xf32>
    %c0_285 = arith.constant 0 : index
    %c0_286 = arith.constant 0 : index
    %336 = vector.load %arg36[%c0_285, %c0_286] : memref<1x32xf32, #tpu.memory_space<vmem>>, vector<1x32xf32>
    %337 = arith.mulf %331, %335 : vector<1x32xf32>
    %338 = arith.subf %336, %337 : vector<1x32xf32>
    %339 = vector.broadcast %335 : vector<1x32xf32> to vector<8x32xf32>
    %340 = arith.mulf %309, %339 : vector<8x32xf32>
    %341 = vector.broadcast %338 : vector<1x32xf32> to vector<8x32xf32>
    %342 = arith.addf %340, %341 : vector<8x32xf32>
    %cst_287 = arith.constant 0.000000e+00 : f32
    %343 = vector.broadcast %cst_287 : f32 to vector<8x32xf32>
    %344 = arith.maximumf %342, %343 : vector<8x32xf32>
    %345 = arith.truncf %344 : vector<8x32xf32> to vector<8x32xbf16>
    %c0_288 = arith.constant 0 : index
    %c0_289 = arith.constant 0 : index
    %346 = vector.load %arg37[%c0_288, %c0_289] : memref<32x16xbf16, #tpu.memory_space<vmem>>, vector<32x16xbf16>
    %cst_290 = arith.constant dense<0.000000e+00> : vector<8x16xf32>
    %347 = tpu.matmul %345, %346, %cst_290 {dimension_numbers = #tpu.dot_dimension_numbers<[1], [0], [0], [1], [0, 0, 1, 1], [], []>} : vector<8x32xbf16>, vector<32x16xbf16>, vector<8x16xf32> -> vector<8x16xf32>
    %c0_291 = arith.constant 0 : index
    %c0_292 = arith.constant 0 : index
    %348 = vector.load %arg38[%c0_291, %c0_292] : memref<32x16xbf16, #tpu.memory_space<vmem>>, vector<32x16xbf16>
    %cst_293 = arith.constant dense<0.000000e+00> : vector<8x16xf32>
    %349 = tpu.matmul %345, %348, %cst_293 {dimension_numbers = #tpu.dot_dimension_numbers<[1], [0], [0], [1], [0, 0, 1, 1], [], []>} : vector<8x32xbf16>, vector<32x16xbf16>, vector<8x16xf32> -> vector<8x16xf32>
    %350 = arith.maximumf %347, %349 : vector<8x16xf32>
    %351 = arith.truncf %350 : vector<8x16xf32> to vector<8x16xbf16>
    %c0_294 = arith.constant 0 : index
    %c0_295 = arith.constant 0 : index
    %352 = vector.load %arg39[%c0_294, %c0_295] : memref<4x8xbf16, #tpu.memory_space<vmem>>, vector<4x8xbf16>
    %cst_296 = arith.constant dense<0.000000e+00> : vector<4x16xf32>
    %353 = tpu.matmul %352, %351, %cst_296 {dimension_numbers = #tpu.dot_dimension_numbers<[1], [0], [0], [1], [0, 0, 1, 1], [], []>} : vector<4x8xbf16>, vector<8x16xbf16>, vector<4x16xf32> -> vector<4x16xf32>
    %c0_297 = arith.constant 0 : index
    %c0_298 = arith.constant 0 : index
    %354 = vector.load %arg40[%c0_297, %c0_298] : memref<4x8xbf16, #tpu.memory_space<vmem>>, vector<4x8xbf16>
    %cst_299 = arith.constant dense<0.000000e+00> : vector<4x16xf32>
    %355 = tpu.matmul %354, %351, %cst_299 {dimension_numbers = #tpu.dot_dimension_numbers<[1], [0], [0], [1], [0, 0, 1, 1], [], []>} : vector<4x8xbf16>, vector<8x16xbf16>, vector<4x16xf32> -> vector<4x16xf32>
    %356 = arith.maximumf %353, %355 : vector<4x16xf32>
    %357 = arith.truncf %356 : vector<4x16xf32> to vector<4x16xbf16>
    %cst_300 = arith.constant 0.000000e+00 : f32
    %358 = vector.broadcast %cst_300 : f32 to vector<2x6xf32>
    %c0_301 = arith.constant 0 : index
    %c0_302 = arith.constant 0 : index
    %c0_303 = arith.constant 0 : index
    %359 = vector.load %arg42[%c0_301, %c0_302, %c0_303] : memref<2x2x4xbf16, #tpu.memory_space<vmem>>, vector<1x2x4xbf16>
    %360 = vector.shape_cast %359 : vector<1x2x4xbf16> to vector<2x4xbf16>
    %cst_304 = arith.constant dense<0.000000e+00> : vector<2x16xf32>
    %361 = tpu.matmul %360, %357, %cst_304 {dimension_numbers = #tpu.dot_dimension_numbers<[1], [0], [0], [1], [0, 0, 1, 1], [], []>} : vector<2x4xbf16>, vector<4x16xbf16>, vector<2x16xf32> -> vector<2x16xf32>
    %362 = arith.truncf %361 : vector<2x16xf32> to vector<2x16xbf16>
    %c0_305 = arith.constant 0 : index
    %c0_306 = arith.constant 0 : index
    %c0_307 = arith.constant 0 : index
    %363 = vector.load %arg41[%c0_305, %c0_306, %c0_307] : memref<2x16x6xbf16, #tpu.memory_space<vmem>>, vector<1x16x6xbf16>
    %364 = vector.shape_cast %363 : vector<1x16x6xbf16> to vector<16x6xbf16>
    %cst_308 = arith.constant dense<0.000000e+00> : vector<2x6xf32>
    %365 = tpu.matmul %362, %364, %cst_308 {dimension_numbers = #tpu.dot_dimension_numbers<[1], [0], [0], [1], [0, 0, 1, 1], [], []>} : vector<2x16xbf16>, vector<16x6xbf16>, vector<2x6xf32> -> vector<2x6xf32>
    %366 = arith.addf %358, %365 : vector<2x6xf32>
    %c1_309 = arith.constant 1 : index
    %c0_310 = arith.constant 0 : index
    %c0_311 = arith.constant 0 : index
    %367 = vector.load %arg42[%c1_309, %c0_310, %c0_311] : memref<2x2x4xbf16, #tpu.memory_space<vmem>>, vector<1x2x4xbf16>
    %368 = vector.shape_cast %367 : vector<1x2x4xbf16> to vector<2x4xbf16>
    %cst_312 = arith.constant dense<0.000000e+00> : vector<2x16xf32>
    %369 = tpu.matmul %368, %357, %cst_312 {dimension_numbers = #tpu.dot_dimension_numbers<[1], [0], [0], [1], [0, 0, 1, 1], [], []>} : vector<2x4xbf16>, vector<4x16xbf16>, vector<2x16xf32> -> vector<2x16xf32>
    %370 = arith.truncf %369 : vector<2x16xf32> to vector<2x16xbf16>
    %c1_313 = arith.constant 1 : index
    %c0_314 = arith.constant 0 : index
    %c0_315 = arith.constant 0 : index
    %371 = vector.load %arg41[%c1_313, %c0_314, %c0_315] : memref<2x16x6xbf16, #tpu.memory_space<vmem>>, vector<1x16x6xbf16>
    %372 = vector.shape_cast %371 : vector<1x16x6xbf16> to vector<16x6xbf16>
    %cst_316 = arith.constant dense<0.000000e+00> : vector<2x6xf32>
    %373 = tpu.matmul %370, %372, %cst_316 {dimension_numbers = #tpu.dot_dimension_numbers<[1], [0], [0], [1], [0, 0, 1, 1], [], []>} : vector<2x16xbf16>, vector<16x6xbf16>, vector<2x6xf32> -> vector<2x6xf32>
    %374 = arith.addf %366, %373 : vector<2x6xf32>
    %c0_317 = arith.constant 0 : index
    %c0_318 = arith.constant 0 : index
    %375 = vector.load %arg43[%c0_317, %c0_318] : memref<1x6xf32, #tpu.memory_space<vmem>>, vector<1x6xf32>
    %376 = vector.broadcast %375 : vector<1x6xf32> to vector<2x6xf32>
    %377 = arith.addf %374, %376 : vector<2x6xf32>
    %cst_319 = arith.constant dense<0xFF800000> : vector<2xf32>
    %378 = vector.multi_reduction <maximumf>, %377, %cst_319 [1] : vector<2x6xf32> to vector<2xf32>
    %379 = vector.shape_cast %378 : vector<2xf32> to vector<2x1xf32>
    %380 = vector.broadcast %379 : vector<2x1xf32> to vector<2x6xf32>
    %381 = arith.subf %377, %380 : vector<2x6xf32>
    %382 = math.exp %381 : vector<2x6xf32>
    %cst_320 = arith.constant dense<0.000000e+00> : vector<2xf32>
    %383 = vector.multi_reduction <add>, %382, %cst_320 [1] : vector<2x6xf32> to vector<2xf32>
    %384 = vector.shape_cast %383 : vector<2xf32> to vector<2x1xf32>
    %385 = math.log %384 : vector<2x1xf32>
    %386 = vector.broadcast %385 : vector<2x1xf32> to vector<2x6xf32>
    %387 = arith.subf %381, %386 : vector<2x6xf32>
    %c0_321 = arith.constant 0 : index
    %c0_322 = arith.constant 0 : index
    %388 = vector.load %arg44[%c0_321, %c0_322] : memref<2x6xf32, #tpu.memory_space<vmem>>, vector<2x6xf32>
    tpu.vector_store %arg44[%c0_321, %c0_322], %387 {strides = array<i32>} : memref<2x6xf32, #tpu.memory_space<vmem>>, vector<2x6xf32>,
    return
  }
}

</mosaic_0001>

<llo_original>
// kernel: forward.1
$region0: #{forward.1}
  #allocation0 [shape = 'u32[]', space=smem, size = 0x4, offset = 0x4, fixed_abs, tag = 'smem constant byte address 0x4 - core index']
  #allocation1 [shape = 'u32[144,128]{1,0:T(1,128)}', space=vmem, size = 0x12000, scoped, tag = 'internal scratch']
  %s0 = inlined_call_operand.smem [shape: u32[45], index: -1, kind: input, shape index: {}]
  %s1 = sld [smem:[%s0]]
  %s2 = scalar_lea.smem %s0, 1
  %s3 = sld [smem:[%s2]]
  %s4 = scalar_lea.smem %s0, 2
  %s5 = sld [smem:[%s4]]
  %s6 = scalar_lea.smem %s0, 3
  %s7 = sld [smem:[%s6]]
  %s8 = scalar_lea.smem %s0, 4
  %s9 = sld [smem:[%s8]]
  %s10 = scalar_lea.smem %s0, 5
  %s11 = sld [smem:[%s10]]
  %s12 = scalar_lea.smem %s0, 6
  %s13 = sld [smem:[%s12]]
  %s14 = scalar_lea.smem %s0, 7
  %s15 = sld [smem:[%s14]]
  %s16 = scalar_lea.smem %s0, 8
  %s17 = sld [smem:[%s16]]
  %s18 = scalar_lea.smem %s0, 9
  %s19 = sld [smem:[%s18]]
  %s20 = scalar_lea.smem %s0, 10
  %s21 = sld [smem:[%s20]]
  %s22 = scalar_lea.smem %s0, 11
  %s23 = sld [smem:[%s22]]
  %s24 = scalar_lea.smem %s0, 12
  %s25 = sld [smem:[%s24]]
  %s26 = scalar_lea.smem %s0, 13
  %s27 = sld [smem:[%s26]]
  %s28 = scalar_lea.smem %s0, 14
  %s29 = sld [smem:[%s28]]
  %s30 = scalar_lea.smem %s0, 15
  %s31 = sld [smem:[%s30]]
  %s32 = scalar_lea.smem %s0, 16
  %s33 = sld [smem:[%s32]]
  %s34 = scalar_lea.smem %s0, 17
  %s35 = sld [smem:[%s34]]
  %s36 = scalar_lea.smem %s0, 18
  %s37 = sld [smem:[%s36]]
  %s38 = scalar_lea.smem %s0, 19
  %s39 = sld [smem:[%s38]]
  %s40 = scalar_lea.smem %s0, 20
  %s41 = sld [smem:[%s40]]
  %s42 = scalar_lea.smem %s0, 21
  %s43 = sld [smem:[%s42]]
  %s44 = scalar_lea.smem %s0, 22
  %s45 = sld [smem:[%s44]]
  %s46 = scalar_lea.smem %s0, 23
  %s47 = sld [smem:[%s46]]
  %s48 = scalar_lea.smem %s0, 24
  %s49 = sld [smem:[%s48]]
  %s50 = scalar_lea.smem %s0, 25
  %s51 = sld [smem:[%s50]]
  %s52 = scalar_lea.smem %s0, 26
  %s53 = sld [smem:[%s52]]
  %s54 = scalar_lea.smem %s0, 27
  %s55 = sld [smem:[%s54]]
  %s56 = scalar_lea.smem %s0, 28
  %s57 = sld [smem:[%s56]]
  %s58 = scalar_lea.smem %s0, 29
  %s59 = sld [smem:[%s58]]
  %s60 = scalar_lea.smem %s0, 30
  %s61 = sld [smem:[%s60]]
  %s62 = scalar_lea.smem %s0, 31
  %s63 = sld [smem:[%s62]]
  %s64 = scalar_lea.smem %s0, 32
  %s65 = sld [smem:[%s64]]
  %s66 = scalar_lea.smem %s0, 33
  %s67 = sld [smem:[%s66]]
  %s68 = scalar_lea.smem %s0, 34
  %s69 = sld [smem:[%s68]]
  %s70 = scalar_lea.smem %s0, 35
  %s71 = sld [smem:[%s70]]
  %s72 = scalar_lea.smem %s0, 36
  %s73 = sld [smem:[%s72]]
  %s74 = scalar_lea.smem %s0, 37
  %s75 = sld [smem:[%s74]]
  %s76 = scalar_lea.smem %s0, 38
  %s77 = sld [smem:[%s76]]
  %s78 = scalar_lea.smem %s0, 39
  %s79 = sld [smem:[%s78]]
  %s80 = scalar_lea.smem %s0, 40
  %s81 = sld [smem:[%s80]]
  %s82 = scalar_lea.smem %s0, 41
  %s83 = sld [smem:[%s82]]
  %s84 = scalar_lea.smem %s0, 42
  %s85 = sld [smem:[%s84]]
  %s86 = scalar_lea.smem %s0, 43
  %s87 = sld [smem:[%s86]]
  %s88 = scalar_lea.smem %s0, 44
  %s89 = sld [smem:[%s88]]
  %s90 = sld [smem:[#allocation0]]
  $region294: #{forward.1} parent=0
    _
  %s92 = ssub.s32 1, %s90
  %s93 = scalar_select 0, %s92, %s90
  $region1: #{forward.1} parent=0
    #allocation2 [shape = 'u8[8192]{0}', space=vmem, size = 0x2000, scoped, tag = 'input window, operand 4, single buffered']
    #allocation3 [shape = 's32[1]{0}', space=sflag, size = 0x4, scoped, tag = 'scoped memory for forward.1']
    #allocation4 [shape = 's32[1]{0}', space=sflag, size = 0x4, scoped, tag = 'scoped memory for forward.1']
    #allocation5 [shape = 'u8[1024]{0}', space=vmem, size = 0x400, scoped, tag = 'input window, operand 5, single buffered']
    #allocation6 [shape = 's32[1]{0}', space=sflag, size = 0x4, scoped, tag = 'scoped memory for forward.1']
    #allocation7 [shape = 'u8[1024]{0}', space=vmem, size = 0x400, scoped, tag = 'input window, operand 6, single buffered']
    #allocation8 [shape = 'u8[65536]{0}', space=vmem, size = 0x10000, scoped, tag = 'input window, operand 8, single buffered']
    #allocation9 [shape = 's32[1]{0}', space=sflag, size = 0x4, scoped, tag = 'scoped memory for forward.1']
    #allocation10 [shape = 'u8[8192]{0}', space=vmem, size = 0x2000, scoped, tag = 'input window, operand 9, single buffered']
    #allocation11 [shape = 'u8[8192]{0}', space=vmem, size = 0x2000, scoped, tag = 'input window, operand 10, single buffered']
    #allocation12 [shape = 's32[1]{0}', space=sflag, size = 0x4, scoped, tag = 'scoped memory for forward.1']
    #allocation13 [shape = 'u8[40960]{0}', space=vmem, size = 0xa000, scoped, tag = 'input window, operand 11, single buffered']
    #allocation14 [shape = 'u8[16384]{0}', space=vmem, size = 0x4000, scoped, tag = 'input window, operand 14, single buffered']
    #allocation15 [shape = 's32[1]{0}', space=sflag, size = 0x4, scoped, tag = 'scoped memory for forward.1']
    #allocation16 [shape = 'u8[1024]{0}', space=vmem, size = 0x400, scoped, tag = 'input window, operand 15, single buffered']
    #allocation17 [shape = 'u8[1024]{0}', space=vmem, size = 0x400, scoped, tag = 'input window, operand 16, single buffered']
    #allocation18 [shape = 's32[1]{0}', space=sflag, size = 0x4, scoped, tag = 'scoped memory for forward.1']
    #allocation19 [shape = 'u8[65536]{0}', space=vmem, size = 0x10000, scoped, tag = 'input window, operand 17, single buffered']
    #allocation20 [shape = 'u8[65536]{0}', space=vmem, size = 0x10000, scoped, tag = 'input window, operand 18, single buffered']
    #allocation21 [shape = 's32[1]{0}', space=sflag, size = 0x4, scoped, tag = 'scoped memory for forward.1']
    #allocation22 [shape = 'u8[4096]{0}', space=vmem, size = 0x1000, scoped, tag = 'input window, operand 19, single buffered']
    #allocation23 [shape = 'u8[4096]{0}', space=vmem, size = 0x1000, scoped, tag = 'input window, operand 20, single buffered']
    #allocation24 [shape = 's32[1]{0}', space=sflag, size = 0x4, scoped, tag = 'scoped memory for forward.1']
    #allocation25 [shape = 'u8[20480]{0}', space=vmem, size = 0x5000, scoped, tag = 'input window, operand 21, single buffered']
    #allocation26 [shape = 'u8[8192]{0}', space=vmem, size = 0x2000, scoped, tag = 'input window, operand 24, single buffered']
    #allocation27 [shape = 's32[1]{0}', space=sflag, size = 0x4, scoped, tag = 'scoped memory for forward.1']
    #allocation28 [shape = 'u8[512]{0}', space=vmem, size = 0x400, scoped, tag = 'input window, operand 25, single buffered']
    #allocation29 [shape = 'u8[512]{0}', space=vmem, size = 0x400, scoped, tag = 'input window, operand 26, single buffered']
    #allocation30 [shape = 's32[1]{0}', space=sflag, size = 0x4, scoped, tag = 'scoped memory for forward.1']
    #allocation31 [shape = 'u8[2048]{0}', space=vmem, size = 0x800, scoped, tag = 'input window, operand 29, single buffered']
    #allocation32 [shape = 'u8[2048]{0}', space=vmem, size = 0x800, scoped, tag = 'input window, operand 30, single buffered']
    #allocation33 [shape = 's32[1]{0}', space=sflag, size = 0x4, scoped, tag = 'scoped memory for forward.1']
    #allocation34 [shape = 'u8[10240]{0}', space=vmem, size = 0x2800, scoped, tag = 'input window, operand 31, single buffered']
    #allocation35 [shape = 'u8[4096]{0}', space=vmem, size = 0x1000, scoped, tag = 'input window, operand 34, single buffered']
    #allocation36 [shape = 's32[1]{0}', space=sflag, size = 0x4, scoped, tag = 'scoped memory for forward.1']
    #allocation37 [shape = 'u8[512]{0}', space=vmem, size = 0x400, scoped, tag = 'input window, operand 36, single buffered']
    #allocation38 [shape = 'u8[1024]{0}', space=vmem, size = 0x400, scoped, tag = 'input window, operand 39, single buffered']
    #allocation39 [shape = 's32[1]{0}', space=sflag, size = 0x4, scoped, tag = 'scoped memory for forward.1']
    #allocation40 [shape = 'u8[1024]{0}', space=vmem, size = 0x400, scoped, tag = 'input window, operand 40, single buffered']
    #allocation41 [shape = 'u8[1024]{0}', space=vmem, size = 0x400, scoped, tag = 'input window, operand 42, single buffered']
    #allocation42 [shape = 's32[1]{0}', space=sflag, size = 0x4, scoped, tag = 'scoped memory for forward.1']
    #allocation43 [shape = 'u8[512]{0}', space=vmem, size = 0x400, scoped, tag = 'input window, operand 43, single buffered']
    #allocation44 [shape = 'u8[1024]{0}', space=vmem, size = 0x400, scoped, tag = 'output window, operand 0, single buffered']
    %94 = vsyncpa [#allocation3], 0
    %95 = vsyncpa [#allocation6], 0
    %96 = vsyncpa [#allocation9], 0
    %97 = vsyncpa [#allocation12], 0
    %98 = vsyncpa [#allocation15], 0
    %99 = vsyncpa [#allocation18], 0
    %100 = vsyncpa [#allocation21], 0
    %101 = vsyncpa [#allocation24], 0
    %102 = vsyncpa [#allocation27], 0
    %103 = vsyncpa [#allocation30], 0
    %104 = vsyncpa [#allocation33], 0
    %105 = vsyncpa [#allocation36], 0
    %106 = vsyncpa [#allocation39], 0
    %107 = vsyncpa [#allocation42], 0
    %108 = vsyncpa [#allocation4], 0
    // Predicated region
    $region2: #{forward.1} parent=1 // pred_check
      _
    $region3: #{forward.1} parent=1 // pred_check_branch
      %110 = sbr.rel (0) target = $region5
    $region4: #{forward.1} parent=1 // pred_region
      _
    $region5: #{forward.1} parent=1 // pred_fallthru
      _
    // Predicated region
    $region6: #{forward.1} parent=1 // pred_check
      _
    $region7: #{forward.1} parent=1 // pred_check_branch
      %112 = sbr.rel (0) target = $region9
    $region8: #{forward.1} parent=1 // pred_region
      _
    $region9: #{forward.1} parent=1 // pred_fallthru
      _
    // Predicated region
    $region10: #{forward.1} parent=1 // pred_check
      _
    $region11: #{forward.1} parent=1 // pred_check_branch
      %114 = sbr.rel (0) target = $region13
    $region12: #{forward.1} parent=1 // pred_region
      _
    $region13: #{forward.1} parent=1 // pred_fallthru
      _
    // Predicated region
    $region14: #{forward.1} parent=1 // pred_check
      _
    $region15: #{forward.1} parent=1 // pred_check_branch
      %116 = sbr.rel (0) target = $region17
    $region16: #{forward.1} parent=1 // pred_region
      _
    $region17: #{forward.1} parent=1 // pred_fallthru
      _
    // Predicated region
    $region18: #{forward.1} parent=1 // pred_check
      _
    $region19: #{forward.1} parent=1 // pred_check_branch
      %118 = sbr.rel (0) target = $region21
    $region20: #{forward.1} parent=1 // pred_region
      %s120 = ssub.s32 256, 256
      %121 = vsyncadd [#allocation3], %s120
      %s123 = sshll.u32 [#allocation2], 4
      %s124 = int_to_ptr.vmem [resolvable:$true] %s123
      %126 = dma.hbm_to_vmem [thread:$0]  %s9, 256, %s124, [#allocation3]
    $region21: #{forward.1} parent=1 // pred_fallthru
      _
    // Predicated region
    $region22: #{forward.1} parent=1 // pred_check
      _
    $region23: #{forward.1} parent=1 // pred_check_branch
      %128 = sbr.rel (0) target = $region25
    $region24: #{forward.1} parent=1 // pred_region
      %s130 = ssub.s32 32, 32
      %131 = vsyncadd [#allocation6], %s130
      %s133 = sshll.u32 [#allocation5], 4
      %s134 = int_to_ptr.vmem [resolvable:$true] %s133
      %136 = dma.hbm_to_vmem [thread:$0]  %s11, 32, %s134, [#allocation6]
    $region25: #{forward.1} parent=1 // pred_fallthru
      _
    // Predicated region
    $region26: #{forward.1} parent=1 // pred_check
      _
    $region27: #{forward.1} parent=1 // pred_check_branch
      %138 = sbr.rel (0) target = $region29
    $region28: #{forward.1} parent=1 // pred_region
      %s140 = ssub.s32 32, 32
      %141 = vsyncadd [#allocation6], %s140
      %s143 = sshll.u32 [#allocation7], 4
      %s144 = int_to_ptr.vmem [resolvable:$true] %s143
      %146 = dma.hbm_to_vmem [thread:$0]  %s13, 32, %s144, [#allocation6]
    $region29: #{forward.1} parent=1 // pred_fallthru
      _
    // Predicated region
    $region30: #{forward.1} parent=1 // pred_check
      _
    $region31: #{forward.1} parent=1 // pred_check_branch
      %148 = sbr.rel (0) target = $region33
    $region32: #{forward.1} parent=1 // pred_region
      _
    $region33: #{forward.1} parent=1 // pred_fallthru
      _
    // Predicated region
    $region34: #{forward.1} parent=1 // pred_check
      _
    $region35: #{forward.1} parent=1 // pred_check_branch
      %150 = sbr.rel (0) target = $region37
    $region36: #{forward.1} parent=1 // pred_region
      %s152 = ssub.s32 2048, 2048
      %153 = vsyncadd [#allocation9], %s152
      %s154 = sshll.u32 [#allocation8], 4
      %s155 = int_to_ptr.vmem [resolvable:$true] %s154
      %160 = dma.hbm_to_vmem [thread:$0]  %s17, 2048, %s155, [#allocation9], 64, 64, 4
    $region37: #{forward.1} parent=1 // pred_fallthru
      _
    // Predicated region
    $region38: #{forward.1} parent=1 // pred_check
      _
    $region39: #{forward.1} parent=1 // pred_check_branch
      %162 = sbr.rel (0) target = $region41
    $region40: #{forward.1} parent=1 // pred_region
      %s164 = ssub.s32 256, 256
      %165 = vsyncadd [#allocation9], %s164
      %s166 = sshll.u32 [#allocation10], 4
      %s167 = int_to_ptr.vmem [resolvable:$true] %s166
      %172 = dma.hbm_to_vmem [thread:$0]  %s19, 256, %s167, [#allocation9], 64, 64, 4
    $region41: #{forward.1} parent=1 // pred_fallthru
      _
    // Predicated region
    $region42: #{forward.1} parent=1 // pred_check
      _
    $region43: #{forward.1} parent=1 // pred_check_branch
      %174 = sbr.rel (0) target = $region45
    $region44: #{forward.1} parent=1 // pred_region
      %s176 = ssub.s32 256, 256
      %177 = vsyncadd [#allocation12], %s176
      %s178 = sshll.u32 [#allocation11], 4
      %s179 = int_to_ptr.vmem [resolvable:$true] %s178
      %184 = dma.hbm_to_vmem [thread:$0]  %s21, 256, %s179, [#allocation12], 64, 64, 4
    $region45: #{forward.1} parent=1 // pred_fallthru
      _
    // Predicated region
    $region46: #{forward.1} parent=1 // pred_check
      _
    $region47: #{forward.1} parent=1 // pred_check_branch
      %186 = sbr.rel (0) target = $region49
    $region48: #{forward.1} parent=1 // pred_region
      %s188 = ssub.s32 1280, 1280
      %189 = vsyncadd [#allocation12], %s188
      %s190 = sshll.u32 [#allocation13], 4
      %s191 = int_to_ptr.vmem [resolvable:$true] %s190
      %196 = dma.hbm_to_vmem [thread:$0]  %s23, 1280, %s191, [#allocation12], 64, 64, 4
    $region49: #{forward.1} parent=1 // pred_fallthru
      _
    // Predicated region
    $region50: #{forward.1} parent=1 // pred_check
      _
    $region51: #{forward.1} parent=1 // pred_check_branch
      %198 = sbr.rel (0) target = $region53
    $region52: #{forward.1} parent=1 // pred_region
      _
    $region53: #{forward.1} parent=1 // pred_fallthru
      _
    // Predicated region
    $region54: #{forward.1} parent=1 // pred_check
      _
    $region55: #{forward.1} parent=1 // pred_check_branch
      %200 = sbr.rel (0) target = $region57
    $region56: #{forward.1} parent=1 // pred_region
      _
    $region57: #{forward.1} parent=1 // pred_fallthru
      _
    // Predicated region
    $region58: #{forward.1} parent=1 // pred_check
      _
    $region59: #{forward.1} parent=1 // pred_check_branch
      %202 = sbr.rel (0) target = $region61
    $region60: #{forward.1} parent=1 // pred_region
      %s204 = ssub.s32 512, 512
      %205 = vsyncadd [#allocation15], %s204
      %s206 = sshll.u32 [#allocation14], 4
      %s207 = int_to_ptr.vmem [resolvable:$true] %s206
      %212 = dma.hbm_to_vmem [thread:$0]  %s29, 512, %s207, [#allocation15], 256, 256, 16
    $region61: #{forward.1} parent=1 // pred_fallthru
      _
    // Predicated region
    $region62: #{forward.1} parent=1 // pred_check
      _
    $region63: #{forward.1} parent=1 // pred_check_branch
      %214 = sbr.rel (0) target = $region65
    $region64: #{forward.1} parent=1 // pred_region
      %s216 = ssub.s32 32, 32
      %217 = vsyncadd [#allocation15], %s216
      %s219 = sshll.u32 [#allocation16], 4
      %s220 = int_to_ptr.vmem [resolvable:$true] %s219
      %222 = dma.hbm_to_vmem [thread:$0]  %s31, 32, %s220, [#allocation15]
    $region65: #{forward.1} parent=1 // pred_fallthru
      _
    // Predicated region
    $region66: #{forward.1} parent=1 // pred_check
      _
    $region67: #{forward.1} parent=1 // pred_check_branch
      %224 = sbr.rel (0) target = $region69
    $region68: #{forward.1} parent=1 // pred_region
      %s226 = ssub.s32 32, 32
      %227 = vsyncadd [#allocation18], %s226
      %s229 = sshll.u32 [#allocation17], 4
      %s230 = int_to_ptr.vmem [resolvable:$true] %s229
      %232 = dma.hbm_to_vmem [thread:$0]  %s33, 32, %s230, [#allocation18]
    $region69: #{forward.1} parent=1 // pred_fallthru
      _
    // Predicated region
    $region70: #{forward.1} parent=1 // pred_check
      _
    $region71: #{forward.1} parent=1 // pred_check_branch
      %234 = sbr.rel (0) target = $region73
    $region72: #{forward.1} parent=1 // pred_region
      %s236 = ssub.s32 2048, 2048
      %237 = vsyncadd [#allocation18], %s236
      %s238 = sshll.u32 [#allocation19], 4
      %s239 = int_to_ptr.vmem [resolvable:$true] %s238
      %244 = dma.hbm_to_vmem [thread:$0]  %s35, 2048, %s239, [#allocation18], 64, 64, 4
    $region73: #{forward.1} parent=1 // pred_fallthru
      _
    // Predicated region
    $region74: #{forward.1} parent=1 // pred_check
      _
    $region75: #{forward.1} parent=1 // pred_check_branch
      %246 = sbr.rel (0) target = $region77
    $region76: #{forward.1} parent=1 // pred_region
      %s248 = ssub.s32 2048, 2048
      %249 = vsyncadd [#allocation21], %s248
      %s250 = sshll.u32 [#allocation20], 4
      %s251 = int_to_ptr.vmem [resolvable:$true] %s250
      %256 = dma.hbm_to_vmem [thread:$0]  %s37, 2048, %s251, [#allocation21], 64, 64, 4
    $region77: #{forward.1} parent=1 // pred_fallthru
      _
    // Predicated region
    $region78: #{forward.1} parent=1 // pred_check
      _
    $region79: #{forward.1} parent=1 // pred_check_branch
      %258 = sbr.rel (0) target = $region81
    $region80: #{forward.1} parent=1 // pred_region
      %s260 = ssub.s32 128, 128
      %261 = vsyncadd [#allocation21], %s260
      %s262 = sshll.u32 [#allocation22], 4
      %s263 = int_to_ptr.vmem [resolvable:$true] %s262
      %268 = dma.hbm_to_vmem [thread:$0]  %s39, 128, %s263, [#allocation21], 64, 64, 4
    $region81: #{forward.1} parent=1 // pred_fallthru
      _
    // Predicated region
    $region82: #{forward.1} parent=1 // pred_check
      _
    $region83: #{forward.1} parent=1 // pred_check_branch
      %270 = sbr.rel (0) target = $region85
    $region84: #{forward.1} parent=1 // pred_region
      %s272 = ssub.s32 128, 128
      %273 = vsyncadd [#allocation24], %s272
      %s274 = sshll.u32 [#allocation23], 4
      %s275 = int_to_ptr.vmem [resolvable:$true] %s274
      %280 = dma.hbm_to_vmem [thread:$0]  %s41, 128, %s275, [#allocation24], 64, 64, 4
    $region85: #{forward.1} parent=1 // pred_fallthru
      _
    // Predicated region
    $region86: #{forward.1} parent=1 // pred_check
      _
    $region87: #{forward.1} parent=1 // pred_check_branch
      %282 = sbr.rel (0) target = $region89
    $region88: #{forward.1} parent=1 // pred_region
      %s284 = ssub.s32 640, 640
      %285 = vsyncadd [#allocation24], %s284
      %s286 = sshll.u32 [#allocation25], 4
      %s287 = int_to_ptr.vmem [resolvable:$true] %s286
      %292 = dma.hbm_to_vmem [thread:$0]  %s43, 640, %s287, [#allocation24], 64, 64, 4
    $region89: #{forward.1} parent=1 // pred_fallthru
      _
    // Predicated region
    $region90: #{forward.1} parent=1 // pred_check
      _
    $region91: #{forward.1} parent=1 // pred_check_branch
      %294 = sbr.rel (0) target = $region93
    $region92: #{forward.1} parent=1 // pred_region
      _
    $region93: #{forward.1} parent=1 // pred_fallthru
      _
    // Predicated region
    $region94: #{forward.1} parent=1 // pred_check
      _
    $region95: #{forward.1} parent=1 // pred_check_branch
      %296 = sbr.rel (0) target = $region97
    $region96: #{forward.1} parent=1 // pred_region
      _
    $region97: #{forward.1} parent=1 // pred_fallthru
      _
    // Predicated region
    $region98: #{forward.1} parent=1 // pred_check
      _
    $region99: #{forward.1} parent=1 // pred_check_branch
      %298 = sbr.rel (0) target = $region101
    $region100: #{forward.1} parent=1 // pred_region
      %s300 = ssub.s32 256, 256
      %301 = vsyncadd [#allocation27], %s300
      %s302 = sshll.u32 [#allocation26], 4
      %s303 = int_to_ptr.vmem [resolvable:$true] %s302
      %308 = dma.hbm_to_vmem [thread:$0]  %s49, 256, %s303, [#allocation27], 128, 128, 8
    $region101: #{forward.1} parent=1 // pred_fallthru
      _
    // Predicated region
    $region102: #{forward.1} parent=1 // pred_check
      _
    $region103: #{forward.1} parent=1 // pred_check_branch
      %310 = sbr.rel (0) target = $region105
    $region104: #{forward.1} parent=1 // pred_region
      %s312 = ssub.s32 16, 16
      %313 = vsyncadd [#allocation27], %s312
      %s315 = sshll.u32 [#allocation28], 4
      %s316 = int_to_ptr.vmem [resolvable:$true] %s315
      %318 = dma.hbm_to_vmem [thread:$0]  %s51, 16, %s316, [#allocation27]
    $region105: #{forward.1} parent=1 // pred_fallthru
      _
    // Predicated region
    $region106: #{forward.1} parent=1 // pred_check
      _
    $region107: #{forward.1} parent=1 // pred_check_branch
      %320 = sbr.rel (0) target = $region109
    $region108: #{forward.1} parent=1 // pred_region
      %s322 = ssub.s32 16, 16
      %323 = vsyncadd [#allocation30], %s322
      %s325 = sshll.u32 [#allocation29], 4
      %s326 = int_to_ptr.vmem [resolvable:$true] %s325
      %328 = dma.hbm_to_vmem [thread:$0]  %s53, 16, %s326, [#allocation30]
    $region109: #{forward.1} parent=1 // pred_fallthru
      _
    // Predicated region
    $region110: #{forward.1} parent=1 // pred_check
      _
    $region111: #{forward.1} parent=1 // pred_check_branch
      %330 = sbr.rel (0) target = $region113
    $region112: #{forward.1} parent=1 // pred_region
      _
    $region113: #{forward.1} parent=1 // pred_fallthru
      _
    // Predicated region
    $region114: #{forward.1} parent=1 // pred_check
      _
    $region115: #{forward.1} parent=1 // pred_check_branch
      %332 = sbr.rel (0) target = $region117
    $region116: #{forward.1} parent=1 // pred_region
      _
    $region117: #{forward.1} parent=1 // pred_fallthru
      _
    // Predicated region
    $region118: #{forward.1} parent=1 // pred_check
      _
    $region119: #{forward.1} parent=1 // pred_check_branch
      %334 = sbr.rel (0) target = $region121
    $region120: #{forward.1} parent=1 // pred_region
      %s336 = ssub.s32 64, 64
      %337 = vsyncadd [#allocation30], %s336
      %s339 = sshll.u32 [#allocation31], 4
      %s340 = int_to_ptr.vmem [resolvable:$true] %s339
      %342 = dma.hbm_to_vmem [thread:$0]  %s59, 64, %s340, [#allocation30]
    $region121: #{forward.1} parent=1 // pred_fallthru
      _
    // Predicated region
    $region122: #{forward.1} parent=1 // pred_check
      _
    $region123: #{forward.1} parent=1 // pred_check_branch
      %344 = sbr.rel (0) target = $region125
    $region124: #{forward.1} parent=1 // pred_region
      %s346 = ssub.s32 64, 64
      %347 = vsyncadd [#allocation33], %s346
      %s349 = sshll.u32 [#allocation32], 4
      %s350 = int_to_ptr.vmem [resolvable:$true] %s349
      %352 = dma.hbm_to_vmem [thread:$0]  %s61, 64, %s350, [#allocation33]
    $region125: #{forward.1} parent=1 // pred_fallthru
      _
    // Predicated region
    $region126: #{forward.1} parent=1 // pred_check
      _
    $region127: #{forward.1} parent=1 // pred_check_branch
      %354 = sbr.rel (0) target = $region129
    $region128: #{forward.1} parent=1 // pred_region
      %s356 = ssub.s32 320, 320
      %357 = vsyncadd [#allocation33], %s356
      %s358 = sshll.u32 [#allocation34], 4
      %s359 = int_to_ptr.vmem [resolvable:$true] %s358
      %364 = dma.hbm_to_vmem [thread:$0]  %s63, 320, %s359, [#allocation33], 64, 64, 4
    $region129: #{forward.1} parent=1 // pred_fallthru
      _
    // Predicated region
    $region130: #{forward.1} parent=1 // pred_check
      _
    $region131: #{forward.1} parent=1 // pred_check_branch
      %366 = sbr.rel (0) target = $region133
    $region132: #{forward.1} parent=1 // pred_region
      _
    $region133: #{forward.1} parent=1 // pred_fallthru
      _
    // Predicated region
    $region134: #{forward.1} parent=1 // pred_check
      _
    $region135: #{forward.1} parent=1 // pred_check_branch
      %368 = sbr.rel (0) target = $region137
    $region136: #{forward.1} parent=1 // pred_region
      _
    $region137: #{forward.1} parent=1 // pred_fallthru
      _
    // Predicated region
    $region138: #{forward.1} parent=1 // pred_check
      _
    $region139: #{forward.1} parent=1 // pred_check_branch
      %370 = sbr.rel (0) target = $region141
    $region140: #{forward.1} parent=1 // pred_region
      %s372 = ssub.s32 128, 128
      %373 = vsyncadd [#allocation36], %s372
      %s375 = sshll.u32 [#allocation35], 4
      %s376 = int_to_ptr.vmem [resolvable:$true] %s375
      %378 = dma.hbm_to_vmem [thread:$0]  %s69, 128, %s376, [#allocation36]
    $region141: #{forward.1} parent=1 // pred_fallthru
      _
    // Predicated region
    $region142: #{forward.1} parent=1 // pred_check
      _
    $region143: #{forward.1} parent=1 // pred_check_branch
      %380 = sbr.rel (0) target = $region145
    $region144: #{forward.1} parent=1 // pred_region
      _
    $region145: #{forward.1} parent=1 // pred_fallthru
      _
    // Predicated region
    $region146: #{forward.1} parent=1 // pred_check
      _
    $region147: #{forward.1} parent=1 // pred_check_branch
      %382 = sbr.rel (0) target = $region149
    $region148: #{forward.1} parent=1 // pred_region
      %s384 = ssub.s32 16, 16
      %385 = vsyncadd [#allocation36], %s384
      %s387 = sshll.u32 [#allocation37], 4
      %s388 = int_to_ptr.vmem [resolvable:$true] %s387
      %390 = dma.hbm_to_vmem [thread:$0]  %s73, 16, %s388, [#allocation36]
    $region149: #{forward.1} parent=1 // pred_fallthru
      _
    // Predicated region
    $region150: #{forward.1} parent=1 // pred_check
      _
    $region151: #{forward.1} parent=1 // pred_check_branch
      %392 = sbr.rel (0) target = $region153
    $region152: #{forward.1} parent=1 // pred_region
      _
    $region153: #{forward.1} parent=1 // pred_fallthru
      _
    // Predicated region
    $region154: #{forward.1} parent=1 // pred_check
      _
    $region155: #{forward.1} parent=1 // pred_check_branch
      %394 = sbr.rel (0) target = $region157
    $region156: #{forward.1} parent=1 // pred_region
      _
    $region157: #{forward.1} parent=1 // pred_fallthru
      _
    // Predicated region
    $region158: #{forward.1} parent=1 // pred_check
      _
    $region159: #{forward.1} parent=1 // pred_check_branch
      %396 = sbr.rel (0) target = $region161
    $region160: #{forward.1} parent=1 // pred_region
      %s398 = ssub.s32 32, 32
      %399 = vsyncadd [#allocation39], %s398
      %s401 = sshll.u32 [#allocation38], 4
      %s402 = int_to_ptr.vmem [resolvable:$true] %s401
      %404 = dma.hbm_to_vmem [thread:$0]  %s79, 32, %s402, [#allocation39]
    $region161: #{forward.1} parent=1 // pred_fallthru
      _
    // Predicated region
    $region162: #{forward.1} parent=1 // pred_check
      _
    $region163: #{forward.1} parent=1 // pred_check_branch
      %406 = sbr.rel (0) target = $region165
    $region164: #{forward.1} parent=1 // pred_region
      %s408 = ssub.s32 32, 32
      %409 = vsyncadd [#allocation39], %s408
      %s411 = sshll.u32 [#allocation40], 4
      %s412 = int_to_ptr.vmem [resolvable:$true] %s411
      %414 = dma.hbm_to_vmem [thread:$0]  %s81, 32, %s412, [#allocation39]
    $region165: #{forward.1} parent=1 // pred_fallthru
      _
    // Predicated region
    $region166: #{forward.1} parent=1 // pred_check
      _
    $region167: #{forward.1} parent=1 // pred_check_branch
      %416 = sbr.rel (0) target = $region169
    $region168: #{forward.1} parent=1 // pred_region
      _
    $region169: #{forward.1} parent=1 // pred_fallthru
      _
    // Predicated region
    $region170: #{forward.1} parent=1 // pred_check
      _
    $region171: #{forward.1} parent=1 // pred_check_branch
      %418 = sbr.rel (0) target = $region173
    $region172: #{forward.1} parent=1 // pred_region
      %s420 = ssub.s32 32, 32
      %421 = vsyncadd [#allocation42], %s420
      %s422 = sshll.u32 [#allocation41], 4
      %s423 = int_to_ptr.vmem [resolvable:$true] %s422
      %428 = dma.hbm_to_vmem [thread:$0]  %s85, 32, %s423, [#allocation42], 16, 16, 1
    $region173: #{forward.1} parent=1 // pred_fallthru
      _
    // Predicated region
    $region174: #{forward.1} parent=1 // pred_check
      _
    $region175: #{forward.1} parent=1 // pred_check_branch
      %430 = sbr.rel (0) target = $region177
    $region176: #{forward.1} parent=1 // pred_region
      %s432 = ssub.s32 16, 16
      %433 = vsyncadd [#allocation42], %s432
      %s435 = sshll.u32 [#allocation43], 4
      %s436 = int_to_ptr.vmem [resolvable:$true] %s435
      %438 = dma.hbm_to_vmem [thread:$0]  %s87, 16, %s436, [#allocation42]
    $region177: #{forward.1} parent=1 // pred_fallthru
      _
    // Predicated region
    $region178: #{forward.1} parent=1 // pred_check
      _
    $region179: #{forward.1} parent=1 // pred_check_branch
      %440 = sbr.rel (0) target = $region181
    $region180: #{forward.1} parent=1 // pred_region
      %441 = dma.done [#allocation3], 256
    $region181: #{forward.1} parent=1 // pred_fallthru
      _
    // Predicated region
    $region182: #{forward.1} parent=1 // pred_check
      _
    $region183: #{forward.1} parent=1 // pred_check_branch
      %443 = sbr.rel (0) target = $region185
    $region184: #{forward.1} parent=1 // pred_region
      %444 = dma.done [#allocation6], 32
    $region185: #{forward.1} parent=1 // pred_fallthru
      _
    // Predicated region
    $region186: #{forward.1} parent=1 // pred_check
      _
    $region187: #{forward.1} parent=1 // pred_check_branch
      %446 = sbr.rel (0) target = $region189
    $region188: #{forward.1} parent=1 // pred_region
      %447 = dma.done [#allocation6], 32
    $region189: #{forward.1} parent=1 // pred_fallthru
      _
    // Predicated region
    $region190: #{forward.1} parent=1 // pred_check
      _
    $region191: #{forward.1} parent=1 // pred_check_branch
      %449 = sbr.rel (0) target = $region193
    $region192: #{forward.1} parent=1 // pred_region
      %450 = dma.done [#allocation9], 2048
    $region193: #{forward.1} parent=1 // pred_fallthru
      _
    // Predicated region
    $region194: #{forward.1} parent=1 // pred_check
      _
    $region195: #{forward.1} parent=1 // pred_check_branch
      %452 = sbr.rel (0) target = $region197
    $region196: #{forward.1} parent=1 // pred_region
      %453 = dma.done [#allocation9], 256
    $region197: #{forward.1} parent=1 // pred_fallthru
      _
    // Predicated region
    $region198: #{forward.1} parent=1 // pred_check
      _
    $region199: #{forward.1} parent=1 // pred_check_branch
      %455 = sbr.rel (0) target = $region201
    $region200: #{forward.1} parent=1 // pred_region
      %456 = dma.done [#allocation12], 256
    $region201: #{forward.1} parent=1 // pred_fallthru
      _
    // Predicated region
    $region202: #{forward.1} parent=1 // pred_check
      _
    $region203: #{forward.1} parent=1 // pred_check_branch
      %458 = sbr.rel (0) target = $region205
    $region204: #{forward.1} parent=1 // pred_region
      %459 = dma.done [#allocation12], 1280
    $region205: #{forward.1} parent=1 // pred_fallthru
      _
    // Predicated region
    $region206: #{forward.1} parent=1 // pred_check
      _
    $region207: #{forward.1} parent=1 // pred_check_branch
      %461 = sbr.rel (0) target = $region209
    $region208: #{forward.1} parent=1 // pred_region
      %462 = dma.done [#allocation15], 512
    $region209: #{forward.1} parent=1 // pred_fallthru
      _
    // Predicated region
    $region210: #{forward.1} parent=1 // pred_check
      _
    $region211: #{forward.1} parent=1 // pred_check_branch
      %464 = sbr.rel (0) target = $region213
    $region212: #{forward.1} parent=1 // pred_region
      %465 = dma.done [#allocation15], 32
    $region213: #{forward.1} parent=1 // pred_fallthru
      _
    // Predicated region
    $region214: #{forward.1} parent=1 // pred_check
      _
    $region215: #{forward.1} parent=1 // pred_check_branch
      %467 = sbr.rel (0) target = $region217
    $region216: #{forward.1} parent=1 // pred_region
      %468 = dma.done [#allocation18], 32
    $region217: #{forward.1} parent=1 // pred_fallthru
      _
    // Predicated region
    $region218: #{forward.1} parent=1 // pred_check
      _
    $region219: #{forward.1} parent=1 // pred_check_branch
      %470 = sbr.rel (0) target = $region221
    $region220: #{forward.1} parent=1 // pred_region
      %471 = dma.done [#allocation18], 2048
    $region221: #{forward.1} parent=1 // pred_fallthru
      _
    // Predicated region
    $region222: #{forward.1} parent=1 // pred_check
      _
    $region223: #{forward.1} parent=1 // pred_check_branch
      %473 = sbr.rel (0) target = $region225
    $region224: #{forward.1} parent=1 // pred_region
      %474 = dma.done [#allocation21], 2048
    $region225: #{forward.1} parent=1 // pred_fallthru
      _
    // Predicated region
    $region226: #{forward.1} parent=1 // pred_check
      _
    $region227: #{forward.1} parent=1 // pred_check_branch
      %476 = sbr.rel (0) target = $region229
    $region228: #{forward.1} parent=1 // pred_region
      %477 = dma.done [#allocation21], 128
    $region229: #{forward.1} parent=1 // pred_fallthru
      _
    // Predicated region
    $region230: #{forward.1} parent=1 // pred_check
      _
    $region231: #{forward.1} parent=1 // pred_check_branch
      %479 = sbr.rel (0) target = $region233
    $region232: #{forward.1} parent=1 // pred_region
      %480 = dma.done [#allocation24], 128
    $region233: #{forward.1} parent=1 // pred_fallthru
      _
    // Predicated region
    $region234: #{forward.1} parent=1 // pred_check
      _
    $region235: #{forward.1} parent=1 // pred_check_branch
      %482 = sbr.rel (0) target = $region237
    $region236: #{forward.1} parent=1 // pred_region
      %483 = dma.done [#allocation24], 640
    $region237: #{forward.1} parent=1 // pred_fallthru
      _
    // Predicated region
    $region238: #{forward.1} parent=1 // pred_check
      _
    $region239: #{forward.1} parent=1 // pred_check_branch
      %485 = sbr.rel (0) target = $region241
    $region240: #{forward.1} parent=1 // pred_region
      %486 = dma.done [#allocation27], 256
    $region241: #{forward.1} parent=1 // pred_fallthru
      _
    // Predicated region
    $region242: #{forward.1} parent=1 // pred_check
      _
    $region243: #{forward.1} parent=1 // pred_check_branch
      %488 = sbr.rel (0) target = $region245
    $region244: #{forward.1} parent=1 // pred_region
      %489 = dma.done [#allocation27], 16
    $region245: #{forward.1} parent=1 // pred_fallthru
      _
    // Predicated region
    $region246: #{forward.1} parent=1 // pred_check
      _
    $region247: #{forward.1} parent=1 // pred_check_branch
      %491 = sbr.rel (0) target = $region249
    $region248: #{forward.1} parent=1 // pred_region
      %492 = dma.done [#allocation30], 16
    $region249: #{forward.1} parent=1 // pred_fallthru
      _
    // Predicated region
    $region250: #{forward.1} parent=1 // pred_check
      _
    $region251: #{forward.1} parent=1 // pred_check_branch
      %494 = sbr.rel (0) target = $region253
    $region252: #{forward.1} parent=1 // pred_region
      %495 = dma.done [#allocation30], 64
    $region253: #{forward.1} parent=1 // pred_fallthru
      _
    // Predicated region
    $region254: #{forward.1} parent=1 // pred_check
      _
    $region255: #{forward.1} parent=1 // pred_check_branch
      %497 = sbr.rel (0) target = $region257
    $region256: #{forward.1} parent=1 // pred_region
      %498 = dma.done [#allocation33], 64
    $region257: #{forward.1} parent=1 // pred_fallthru
      _
    // Predicated region
    $region258: #{forward.1} parent=1 // pred_check
      _
    $region259: #{forward.1} parent=1 // pred_check_branch
      %500 = sbr.rel (0) target = $region261
    $region260: #{forward.1} parent=1 // pred_region
      %501 = dma.done [#allocation33], 320
    $region261: #{forward.1} parent=1 // pred_fallthru
      _
    // Predicated region
    $region262: #{forward.1} parent=1 // pred_check
      _
    $region263: #{forward.1} parent=1 // pred_check_branch
      %503 = sbr.rel (0) target = $region265
    $region264: #{forward.1} parent=1 // pred_region
      %504 = dma.done [#allocation36], 128
    $region265: #{forward.1} parent=1 // pred_fallthru
      _
    // Predicated region
    $region266: #{forward.1} parent=1 // pred_check
      _
    $region267: #{forward.1} parent=1 // pred_check_branch
      %506 = sbr.rel (0) target = $region269
    $region268: #{forward.1} parent=1 // pred_region
      %507 = dma.done [#allocation36], 16
    $region269: #{forward.1} parent=1 // pred_fallthru
      _
    // Predicated region
    $region270: #{forward.1} parent=1 // pred_check
      _
    $region271: #{forward.1} parent=1 // pred_check_branch
      %509 = sbr.rel (0) target = $region273
    $region272: #{forward.1} parent=1 // pred_region
      %510 = dma.done [#allocation39], 32
    $region273: #{forward.1} parent=1 // pred_fallthru
      _
    // Predicated region
    $region274: #{forward.1} parent=1 // pred_check
      _
    $region275: #{forward.1} parent=1 // pred_check_branch
      %512 = sbr.rel (0) target = $region277
    $region276: #{forward.1} parent=1 // pred_region
      %513 = dma.done [#allocation39], 32
    $region277: #{forward.1} parent=1 // pred_fallthru
      _
    // Predicated region
    $region278: #{forward.1} parent=1 // pred_check
      _
    $region279: #{forward.1} parent=1 // pred_check_branch
      %515 = sbr.rel (0) target = $region281
    $region280: #{forward.1} parent=1 // pred_region
      %516 = dma.done [#allocation42], 32
    $region281: #{forward.1} parent=1 // pred_fallthru
      _
    // Predicated region
    $region282: #{forward.1} parent=1 // pred_check
      _
    $region283: #{forward.1} parent=1 // pred_check_branch
      %518 = sbr.rel (0) target = $region285
    $region284: #{forward.1} parent=1 // pred_region
      %519 = dma.done [#allocation42], 16
    $region285: #{forward.1} parent=1 // pred_fallthru
      _
    %v521 = vld [vmem:[%s1] sm:$0xff]
    %v522 = vld [vmem:[%s1 + $0x8] sm:$0xff]
    %v523 = vld [vmem:[%s1 + $0x10] sm:$0xff]
    %v524 = vld [vmem:[%s1 + $0x18] sm:$0xff]
    %v525 = vld [vmem:[%s1 + $0x20] sm:$0xff]
    %v526 = vld [vmem:[%s1 + $0x28] sm:$0xff]
    %v527 = vld [vmem:[%s1 + $0x30] sm:$0xff]
    %v528 = vld [vmem:[%s1 + $0x38] sm:$0xff]
    %v529 = vpack.c.bf16 %v522, %v521
    %v530 = vpack.c.bf16 %v524, %v523
    %v531 = vpack.c.bf16 %v526, %v525
    %v532 = vpack.c.bf16 %v528, %v527
    %v533 = vld [vmem:[%s3] sm:$0xf]
    %v534 = vld [vmem:[%s3 + $0x4] sm:$0xf]
    %v535 = vld [vmem:[%s3 + $0x8] sm:$0xf]
    %v536 = vld [vmem:[%s3 + $0xc] sm:$0xf]
    %v537 = vld [vmem:[%s3 + $0x10] sm:$0xf]
    %v538 = vld [vmem:[%s3 + $0x14] sm:$0xf]
    %v539 = vld [vmem:[%s3 + $0x18] sm:$0xf]
    %v540 = vld [vmem:[%s3 + $0x1c] sm:$0xf]
    %v549 = vunpack.c.l.b16 %v533
    %v550 = vunpack.c.l.b16 %v534
    %v551 = vunpack.c.l.b16 %v535
    %v552 = vunpack.c.l.b16 %v536
    %v553 = vunpack.c.l.b16 %v537
    %v554 = vunpack.c.l.b16 %v538
    %v555 = vunpack.c.l.b16 %v539
    %v556 = vunpack.c.l.b16 %v540
    %v557 = vpack.c.b16 %v550, %v549
    %v558 = vpack.c.b16 %v552, %v551
    %v559 = vpack.c.b16 %v554, %v553
    %v560 = vpack.c.b16 %v556, %v555
    %vm561 = vcmask 523264
    %v563 = vsel %vm561, %v557, 0
    %v566 = vsel %vm561, %v558, 0
    %v569 = vsel %vm561, %v559, 0
    %v572 = vsel %vm561, %v560, 0
    %574 = vmatprep.subr.bf16.mxu0 0
    %575 = vmatpush1.bf16.msra.mxu0 0
    %576 = vmatprep.subr.bf16.mxu0 0
    %577 = vmatpush1.bf16.msra.mxu0 0
    %578 = vmatprep.subr.bf16.mxu0 0
    %579 = vmatpush1.bf16.msra.mxu0 0
    %580 = vmatprep.subr.bf16.mxu0 0
    %581 = vmatpush1.bf16.msra.mxu0 0
    %582 = vmatprep.subr.bf16.mxu0 0
    %583 = vmatpush1.bf16.msra.mxu0 %v532
    %584 = vmatprep.subr.bf16.mxu0 0
    %585 = vmatpush1.bf16.msra.mxu0 %v531
    %586 = vmatprep.subr.bf16.mxu0 0
    %587 = vmatpush1.bf16.msra.mxu0 %v530
    %588 = vmatprep.subr.bf16.mxu0 0
    %589 = vmatpush1.bf16.msra.mxu0 %v529
    %590 = vmatprep.subr.bf16.mxu0 0
    %591 = vmatpush2.bf16.msra.mxu0 0
    %592 = vmatprep.subr.bf16.mxu0 0
    %593 = vmatpush2.bf16.msra.mxu0 0
    %594 = vmatprep.subr.bf16.mxu0 0
    %595 = vmatpush2.bf16.msra.mxu0 0
    %596 = vmatprep.subr.bf16.mxu0 0
    %597 = vmatpush2.bf16.msra.mxu0 0
    %598 = vmatprep.subr.bf16.mxu0 0
    %599 = vmatpush2.bf16.msra.mxu0 0
    %600 = vmatprep.subr.bf16.mxu0 0
    %601 = vmatpush2.bf16.msra.mxu0 0
    %602 = vmatprep.subr.bf16.mxu0 0
    %603 = vmatpush2.bf16.msra.mxu0 0
    %604 = vmatprep.subr.bf16.mxu0 0
    %605 = vmatpush2.bf16.msra.mxu0 0
    %606 = vmatprep.mubr.bf16.mxu0 0
    %607 = vmatmul.mubr.bf16.gmra.mxu0 %v563
    %v608 = vpop.f32.mrf.mxu0
    %v609 = vadd.f32 0.0, %v608
    %v610 = vpop.f32.mrf.mxu0
    %v611 = vpop.f32.mrf.mxu0
    %v612 = vadd.f32 0.0, %v611
    %v613 = vpop.f32.mrf.mxu0
    %614 = vmatprep.mubr.bf16.mxu0 0
    %615 = vmatmul.mubr.bf16.gmra.mxu0 %v566
    %v616 = vpop.f32.mrf.mxu0
    %v617 = vadd.f32 0.0, %v616
    %v618 = vpop.f32.mrf.mxu0
    %v619 = vpop.f32.mrf.mxu0
    %v620 = vadd.f32 0.0, %v619
    %v621 = vpop.f32.mrf.mxu0
    %622 = vmatprep.mubr.bf16.mxu0 0
    %623 = vmatmul.mubr.bf16.gmra.mxu0 %v569
    %v624 = vpop.f32.mrf.mxu0
    %v625 = vadd.f32 0.0, %v624
    %v626 = vpop.f32.mrf.mxu0
    %v627 = vpop.f32.mrf.mxu0
    %v628 = vadd.f32 0.0, %v627
    %v629 = vpop.f32.mrf.mxu0
    %630 = vmatprep.mubr.bf16.mxu0 0
    %631 = vmatmul.mubr.bf16.gmra.mxu0 %v572
    %v632 = vpop.f32.mrf.mxu0
    %v633 = vadd.f32 0.0, %v632
    %v634 = vpop.f32.mrf.mxu0
    %v635 = vpop.f32.mrf.mxu0
    %v636 = vadd.f32 0.0, %v635
    %v637 = vpop.f32.mrf.mxu0
    %638 = vdwg.mxu0
    %v639 = vpack.c.bf16 %v612, %v609
    %v640 = vpack.c.bf16 %v620, %v617
    %v641 = vpack.c.bf16 %v628, %v625
    %v642 = vpack.c.bf16 %v636, %v633
    %v643 = vld [vmem:[%s5] sm:$0xff]
    %v644 = vld [vmem:[%s5 + $0x8] sm:$0xff]
    %v645 = vld [vmem:[%s5 + $0x10] sm:$0xff]
    %v646 = vld [vmem:[%s5 + $0x18] sm:$0xff]
    %v647 = vld [vmem:[%s5 + $0x20] sm:$0xff]
    %v648 = vld [vmem:[%s5 + $0x28] sm:$0xff]
    %v649 = vld [vmem:[%s5 + $0x30] sm:$0xff]
    %v650 = vld [vmem:[%s5 + $0x38] sm:$0xff]
    %v651 = vld [vmem:[%s5 + $0x40] sm:$0xff]
    %v652 = vld [vmem:[%s5 + $0x48] sm:$0xff]
    %v653 = vld [vmem:[%s5 + $0x50] sm:$0xff]
    %v654 = vld [vmem:[%s5 + $0x58] sm:$0xff]
    %s655 = scalar_lea.vmem %s3, 32
    %v656 = vld [vmem:[%s655] sm:$0xf]
    %v657 = vld [vmem:[%s655 + $0x4] sm:$0xf]
    %v658 = vld [vmem:[%s655 + $0x8] sm:$0xf]
    %v659 = vld [vmem:[%s655 + $0xc] sm:$0xf]
    %v660 = vld [vmem:[%s655 + $0x10] sm:$0xf]
    %v661 = vld [vmem:[%s655 + $0x14] sm:$0xf]
    %v662 = vld [vmem:[%s655 + $0x18] sm:$0xf]
    %v663 = vld [vmem:[%s655 + $0x1c] sm:$0xf]
    %v672 = vunpack.c.l.b16 %v656
    %v673 = vunpack.c.l.b16 %v657
    %v674 = vunpack.c.l.b16 %v658
    %v675 = vunpack.c.l.b16 %v659
    %v676 = vunpack.c.l.b16 %v660
    %v677 = vunpack.c.l.b16 %v661
    %v678 = vunpack.c.l.b16 %v662
    %v679 = vunpack.c.l.b16 %v663
    %v680 = vpack.c.b16 %v673, %v672
    %v681 = vpack.c.b16 %v675, %v674
    %v682 = vpack.c.b16 %v677, %v676
    %v683 = vpack.c.b16 %v679, %v678
    %v685 = vsel %vm561, %v680, 0
    %v688 = vsel %vm561, %v681, 0
    %v691 = vsel %vm561, %v682, 0
    %v694 = vsel %vm561, %v683, 0
    %696 = vmatprep.subr.bf16.mxu0 0
    %697 = vmatpush1.bf16.msra.mxu0 0
    %698 = vmatprep.subr.bf16.mxu0 0
    %699 = vmatpush1.bf16.msra.mxu0 0
    %700 = vmatprep.subr.bf16.mxu0 0
    %701 = vmatpush1.bf16.msra.mxu0 0
    %702 = vmatprep.subr.bf16.mxu0 0
    %703 = vmatpush1.bf16.msra.mxu0 0
    %704 = vmatprep.subr.bf16.mxu0 0
    %705 = vmatpush1.bf16.msra.mxu0 %v532
    %706 = vmatprep.subr.bf16.mxu0 0
    %707 = vmatpush1.bf16.msra.mxu0 %v531
    %708 = vmatprep.subr.bf16.mxu0 0
    %709 = vmatpush1.bf16.msra.mxu0 %v530
    %710 = vmatprep.subr.bf16.mxu0 0
    %711 = vmatpush1.bf16.msra.mxu0 %v529
    %712 = vmatprep.subr.bf16.mxu0 0
    %713 = vmatpush2.bf16.msra.mxu0 0
    %714 = vmatprep.subr.bf16.mxu0 0
    %715 = vmatpush2.bf16.msra.mxu0 0
    %716 = vmatprep.subr.bf16.mxu0 0
    %717 = vmatpush2.bf16.msra.mxu0 0
    %718 = vmatprep.subr.bf16.mxu0 0
    %719 = vmatpush2.bf16.msra.mxu0 0
    %720 = vmatprep.subr.bf16.mxu0 0
    %721 = vmatpush2.bf16.msra.mxu0 0
    %722 = vmatprep.subr.bf16.mxu0 0
    %723 = vmatpush2.bf16.msra.mxu0 0
    %724 = vmatprep.subr.bf16.mxu0 0
    %725 = vmatpush2.bf16.msra.mxu0 0
    %726 = vmatprep.subr.bf16.mxu0 0
    %727 = vmatpush2.bf16.msra.mxu0 0
    %728 = vmatprep.mubr.bf16.mxu0 0
    %729 = vmatmul.mubr.bf16.gmra.mxu0 %v685
    %v730 = vpop.f32.mrf.mxu0
    %v731 = vadd.f32 0.0, %v730
    %v732 = vpop.f32.mrf.mxu0
    %v733 = vpop.f32.mrf.mxu0
    %v734 = vadd.f32 0.0, %v733
    %v735 = vpop.f32.mrf.mxu0
    %736 = vmatprep.mubr.bf16.mxu0 0
    %737 = vmatmul.mubr.bf16.gmra.mxu0 %v688
    %v738 = vpop.f32.mrf.mxu0
    %v739 = vadd.f32 0.0, %v738
    %v740 = vpop.f32.mrf.mxu0
    %v741 = vpop.f32.mrf.mxu0
    %v742 = vadd.f32 0.0, %v741
    %v743 = vpop.f32.mrf.mxu0
    %744 = vmatprep.mubr.bf16.mxu0 0
    %745 = vmatmul.mubr.bf16.gmra.mxu0 %v691
    %v746 = vpop.f32.mrf.mxu0
    %v747 = vadd.f32 0.0, %v746
    %v748 = vpop.f32.mrf.mxu0
    %v749 = vpop.f32.mrf.mxu0
    %v750 = vadd.f32 0.0, %v749
    %v751 = vpop.f32.mrf.mxu0
    %752 = vmatprep.mubr.bf16.mxu0 0
    %753 = vmatmul.mubr.bf16.gmra.mxu0 %v694
    %v754 = vpop.f32.mrf.mxu0
    %v755 = vadd.f32 0.0, %v754
    %v756 = vpop.f32.mrf.mxu0
    %v757 = vpop.f32.mrf.mxu0
    %v758 = vadd.f32 0.0, %v757
    %v759 = vpop.f32.mrf.mxu0
    %760 = vdwg.mxu0
    %v761 = vpack.c.bf16 %v734, %v731
    %v762 = vpack.c.bf16 %v742, %v739
    %v763 = vpack.c.bf16 %v750, %v747
    %v764 = vpack.c.bf16 %v758, %v755
    %s765 = scalar_lea.vmem %s5, 96
    %v766 = vld [vmem:[%s765] sm:$0xff]
    %v767 = vld [vmem:[%s765 + $0x8] sm:$0xff]
    %v768 = vld [vmem:[%s765 + $0x10] sm:$0xff]
    %v769 = vld [vmem:[%s765 + $0x18] sm:$0xff]
    %v770 = vld [vmem:[%s765 + $0x20] sm:$0xff]
    %v771 = vld [vmem:[%s765 + $0x28] sm:$0xff]
    %v772 = vld [vmem:[%s765 + $0x30] sm:$0xff]
    %v773 = vld [vmem:[%s765 + $0x38] sm:$0xff]
    %v774 = vld [vmem:[%s765 + $0x40] sm:$0xff]
    %v775 = vld [vmem:[%s765 + $0x48] sm:$0xff]
    %v776 = vld [vmem:[%s765 + $0x50] sm:$0xff]
    %v777 = vld [vmem:[%s765 + $0x58] sm:$0xff]
    %v790 = vunpack.c.l.b16 %v766
    %v791 = vunpack.c.h.b16 %v766
    %v792 = vunpack.c.l.b16 %v767
    %v793 = vunpack.c.h.b16 %v767
    %v794 = vunpack.c.l.b16 %v768
    %v795 = vunpack.c.h.b16 %v768
    %v796 = vunpack.c.l.b16 %v769
    %v797 = vunpack.c.h.b16 %v769
    %v798 = vunpack.c.l.b16 %v770
    %v799 = vunpack.c.h.b16 %v770
    %v800 = vunpack.c.l.b16 %v771
    %v801 = vunpack.c.h.b16 %v771
    %v802 = vunpack.c.l.b16 %v772
    %v803 = vunpack.c.h.b16 %v772
    %v804 = vunpack.c.l.b16 %v773
    %v805 = vunpack.c.h.b16 %v773
    %v806 = vunpack.c.l.b16 %v774
    %v807 = vunpack.c.h.b16 %v774
    %v808 = vunpack.c.l.b16 %v775
    %v809 = vunpack.c.h.b16 %v775
    %v810 = vunpack.c.l.b16 %v776
    %v811 = vunpack.c.h.b16 %v776
    %v812 = vunpack.c.l.b16 %v777
    %v813 = vunpack.c.h.b16 %v777
    %v814 = vpack.c.b16 %v792, %v790
    %v815 = vpack.c.b16 %v793, %v791
    %v816 = vpack.c.b16 %v796, %v794
    %v817 = vpack.c.b16 %v797, %v795
    %v818 = vpack.c.b16 %v800, %v798
    %v819 = vpack.c.b16 %v801, %v799
    %v820 = vpack.c.b16 %v804, %v802
    %v821 = vpack.c.b16 %v805, %v803
    %v822 = vpack.c.b16 %v808, %v806
    %v823 = vpack.c.b16 %v809, %v807
    %v824 = vpack.c.b16 %v812, %v810
    %v825 = vpack.c.b16 %v813, %v811
    %vm838 = vcmask 785408
    %v840 = vsel %vm838, %v761, 0
    %v843 = vsel %vm838, %v762, 0
    %v846 = vsel %vm838, %v763, 0
    %v849 = vsel %vm838, %v764, 0
    %851 = vmatprep.subr.bf16.mxu0 0
    %852 = vmatpush1.bf16.msra.mxu0 0
    %853 = vmatprep.subr.bf16.mxu0 0
    %854 = vmatpush1.bf16.msra.mxu0 0
    %855 = vmatprep.subr.bf16.mxu0 %v825
    %856 = vmatpush1.bf16.msra.mxu0 %v824
    %857 = vmatprep.subr.bf16.mxu0 %v823
    %858 = vmatpush1.bf16.msra.mxu0 %v822
    %859 = vmatprep.subr.bf16.mxu0 %v821
    %860 = vmatpush1.bf16.msra.mxu0 %v820
    %861 = vmatprep.subr.bf16.mxu0 %v819
    %862 = vmatpush1.bf16.msra.mxu0 %v818
    %863 = vmatprep.subr.bf16.mxu0 %v817
    %864 = vmatpush1.bf16.msra.mxu0 %v816
    %865 = vmatprep.subr.bf16.mxu0 %v815
    %866 = vmatpush1.bf16.msra.mxu0 %v814
    %867 = vmatprep.subr.bf16.mxu0 0
    %868 = vmatpush2.bf16.msra.mxu0 0
    %869 = vmatprep.subr.bf16.mxu0 0
    %870 = vmatpush2.bf16.msra.mxu0 0
    %871 = vmatprep.subr.bf16.mxu0 0
    %872 = vmatpush2.bf16.msra.mxu0 0
    %873 = vmatprep.subr.bf16.mxu0 0
    %874 = vmatpush2.bf16.msra.mxu0 0
    %875 = vmatprep.subr.bf16.mxu0 0
    %876 = vmatpush2.bf16.msra.mxu0 0
    %877 = vmatprep.subr.bf16.mxu0 0
    %878 = vmatpush2.bf16.msra.mxu0 0
    %879 = vmatprep.subr.bf16.mxu0 0
    %880 = vmatpush2.bf16.msra.mxu0 0
    %881 = vmatprep.subr.bf16.mxu0 0
    %882 = vmatpush2.bf16.msra.mxu0 0
    %883 = vmatprep.mubr.bf16.mxu0 0
    %884 = vmatmul.mubr.bf16.gmra.mxu0 %v840
    %v885 = vpop.f32.mrf.mxu0
    %v886 = vadd.f32 0.0, %v885
    %v887 = vpop.f32.mrf.mxu0
    %v888 = vadd.f32 0.0, %v887
    %v889 = vpop.f32.mrf.mxu0
    %v890 = vadd.f32 0.0, %v889
    %v891 = vpop.f32.mrf.mxu0
    %v892 = vadd.f32 0.0, %v891
    %893 = vmatprep.mubr.bf16.mxu0 0
    %894 = vmatmul.mubr.bf16.gmra.mxu0 %v843
    %v895 = vpop.f32.mrf.mxu0
    %v896 = vadd.f32 0.0, %v895
    %v897 = vpop.f32.mrf.mxu0
    %v898 = vadd.f32 0.0, %v897
    %v899 = vpop.f32.mrf.mxu0
    %v900 = vadd.f32 0.0, %v899
    %v901 = vpop.f32.mrf.mxu0
    %v902 = vadd.f32 0.0, %v901
    %903 = vmatprep.mubr.bf16.mxu0 0
    %904 = vmatmul.mubr.bf16.gmra.mxu0 %v846
    %v905 = vpop.f32.mrf.mxu0
    %v906 = vadd.f32 0.0, %v905
    %v907 = vpop.f32.mrf.mxu0
    %v908 = vadd.f32 0.0, %v907
    %v909 = vpop.f32.mrf.mxu0
    %v910 = vadd.f32 0.0, %v909
    %v911 = vpop.f32.mrf.mxu0
    %v912 = vadd.f32 0.0, %v911
    %913 = vmatprep.mubr.bf16.mxu0 0
    %914 = vmatmul.mubr.bf16.gmra.mxu0 %v849
    %v915 = vpop.f32.mrf.mxu0
    %v916 = vadd.f32 0.0, %v915
    %v917 = vpop.f32.mrf.mxu0
    %v918 = vadd.f32 0.0, %v917
    %v919 = vpop.f32.mrf.mxu0
    %v920 = vadd.f32 0.0, %v919
    %v921 = vpop.f32.mrf.mxu0
    %v922 = vadd.f32 0.0, %v921
    %923 = vdwg.mxu0
    %v936 = vunpack.c.l.b16 %v643
    %v937 = vunpack.c.h.b16 %v643
    %v938 = vunpack.c.l.b16 %v644
    %v939 = vunpack.c.h.b16 %v644
    %v940 = vunpack.c.l.b16 %v645
    %v941 = vunpack.c.h.b16 %v645
    %v942 = vunpack.c.l.b16 %v646
    %v943 = vunpack.c.h.b16 %v646
    %v944 = vunpack.c.l.b16 %v647
    %v945 = vunpack.c.h.b16 %v647
    %v946 = vunpack.c.l.b16 %v648
    %v947 = vunpack.c.h.b16 %v648
    %v948 = vunpack.c.l.b16 %v649
    %v949 = vunpack.c.h.b16 %v649
    %v950 = vunpack.c.l.b16 %v650
    %v951 = vunpack.c.h.b16 %v650
    %v952 = vunpack.c.l.b16 %v651
    %v953 = vunpack.c.h.b16 %v651
    %v954 = vunpack.c.l.b16 %v652
    %v955 = vunpack.c.h.b16 %v652
    %v956 = vunpack.c.l.b16 %v653
    %v957 = vunpack.c.h.b16 %v653
    %v958 = vunpack.c.l.b16 %v654
    %v959 = vunpack.c.h.b16 %v654
    %v960 = vpack.c.b16 %v938, %v936
    %v961 = vpack.c.b16 %v939, %v937
    %v962 = vpack.c.b16 %v942, %v940
    %v963 = vpack.c.b16 %v943, %v941
    %v964 = vpack.c.b16 %v946, %v944
    %v965 = vpack.c.b16 %v947, %v945
    %v966 = vpack.c.b16 %v950, %v948
    %v967 = vpack.c.b16 %v951, %v949
    %v968 = vpack.c.b16 %v954, %v952
    %v969 = vpack.c.b16 %v955, %v953
    %v970 = vpack.c.b16 %v958, %v956
    %v971 = vpack.c.b16 %v959, %v957
    %v985 = vsel %vm838, %v639, 0
    %v988 = vsel %vm838, %v640, 0
    %v991 = vsel %vm838, %v641, 0
    %v994 = vsel %vm838, %v642, 0
    %996 = vmatprep.subr.bf16.mxu0 0
    %997 = vmatpush1.bf16.msra.mxu0 0
    %998 = vmatprep.subr.bf16.mxu0 0
    %999 = vmatpush1.bf16.msra.mxu0 0
    %1000 = vmatprep.subr.bf16.mxu0 %v971
    %1001 = vmatpush1.bf16.msra.mxu0 %v970
    %1002 = vmatprep.subr.bf16.mxu0 %v969
    %1003 = vmatpush1.bf16.msra.mxu0 %v968
    %1004 = vmatprep.subr.bf16.mxu0 %v967
    %1005 = vmatpush1.bf16.msra.mxu0 %v966
    %1006 = vmatprep.subr.bf16.mxu0 %v965
    %1007 = vmatpush1.bf16.msra.mxu0 %v964
    %1008 = vmatprep.subr.bf16.mxu0 %v963
    %1009 = vmatpush1.bf16.msra.mxu0 %v962
    %1010 = vmatprep.subr.bf16.mxu0 %v961
    %1011 = vmatpush1.bf16.msra.mxu0 %v960
    %1012 = vmatprep.subr.bf16.mxu0 0
    %1013 = vmatpush2.bf16.msra.mxu0 0
    %1014 = vmatprep.subr.bf16.mxu0 0
    %1015 = vmatpush2.bf16.msra.mxu0 0
    %1016 = vmatprep.subr.bf16.mxu0 0
    %1017 = vmatpush2.bf16.msra.mxu0 0
    %1018 = vmatprep.subr.bf16.mxu0 0
    %1019 = vmatpush2.bf16.msra.mxu0 0
    %1020 = vmatprep.subr.bf16.mxu0 0
    %1021 = vmatpush2.bf16.msra.mxu0 0
    %1022 = vmatprep.subr.bf16.mxu0 0
    %1023 = vmatpush2.bf16.msra.mxu0 0
    %1024 = vmatprep.subr.bf16.mxu0 0
    %1025 = vmatpush2.bf16.msra.mxu0 0
    %1026 = vmatprep.subr.bf16.mxu0 0
    %1027 = vmatpush2.bf16.msra.mxu0 0
    %1028 = vmatprep.mubr.bf16.mxu0 0
    %1029 = vmatmul.mubr.bf16.gmra.mxu0 %v985
    %v1030 = vpop.f32.mrf.mxu0
    %v1031 = vadd.f32 %v886, %v1030
    %v1032 = vpop.f32.mrf.mxu0
    %v1033 = vadd.f32 %v888, %v1032
    %v1034 = vpop.f32.mrf.mxu0
    %v1035 = vadd.f32 %v890, %v1034
    %v1036 = vpop.f32.mrf.mxu0
    %v1037 = vadd.f32 %v892, %v1036
    %1038 = vmatprep.mubr.bf16.mxu0 0
    %1039 = vmatmul.mubr.bf16.gmra.mxu0 %v988
    %v1040 = vpop.f32.mrf.mxu0
    %v1041 = vadd.f32 %v896, %v1040
    %v1042 = vpop.f32.mrf.mxu0
    %v1043 = vadd.f32 %v898, %v1042
    %v1044 = vpop.f32.mrf.mxu0
    %v1045 = vadd.f32 %v900, %v1044
    %v1046 = vpop.f32.mrf.mxu0
    %v1047 = vadd.f32 %v902, %v1046
    %1048 = vmatprep.mubr.bf16.mxu0 0
    %1049 = vmatmul.mubr.bf16.gmra.mxu0 %v991
    %v1050 = vpop.f32.mrf.mxu0
    %v1051 = vadd.f32 %v906, %v1050
    %v1052 = vpop.f32.mrf.mxu0
    %v1053 = vadd.f32 %v908, %v1052
    %v1054 = vpop.f32.mrf.mxu0
    %v1055 = vadd.f32 %v910, %v1054
    %v1056 = vpop.f32.mrf.mxu0
    %v1057 = vadd.f32 %v912, %v1056
    %1058 = vmatprep.mubr.bf16.mxu0 0
    %1059 = vmatmul.mubr.bf16.gmra.mxu0 %v994
    %v1060 = vpop.f32.mrf.mxu0
    %v1061 = vadd.f32 %v916, %v1060
    %v1062 = vpop.f32.mrf.mxu0
    %v1063 = vadd.f32 %v918, %v1062
    %v1064 = vpop.f32.mrf.mxu0
    %v1065 = vadd.f32 %v920, %v1064
    %v1066 = vpop.f32.mrf.mxu0
    %v1067 = vadd.f32 %v922, %v1066
    %1068 = vdwg.mxu0
    %s1069 = scalar_lea.vmem %s3, 64
    %v1070 = vld [vmem:[%s1069] sm:$0xf]
    %v1071 = vld [vmem:[%s1069 + $0x4] sm:$0xf]
    %v1072 = vld [vmem:[%s1069 + $0x8] sm:$0xf]
    %v1073 = vld [vmem:[%s1069 + $0xc] sm:$0xf]
    %v1074 = vld [vmem:[%s1069 + $0x10] sm:$0xf]
    %v1075 = vld [vmem:[%s1069 + $0x14] sm:$0xf]
    %v1076 = vld [vmem:[%s1069 + $0x18] sm:$0xf]
    %v1077 = vld [vmem:[%s1069 + $0x1c] sm:$0xf]
    %v1086 = vunpack.c.l.b16 %v1070
    %v1087 = vunpack.c.l.b16 %v1071
    %v1088 = vunpack.c.l.b16 %v1072
    %v1089 = vunpack.c.l.b16 %v1073
    %v1090 = vunpack.c.l.b16 %v1074
    %v1091 = vunpack.c.l.b16 %v1075
    %v1092 = vunpack.c.l.b16 %v1076
    %v1093 = vunpack.c.l.b16 %v1077
    %v1094 = vpack.c.b16 %v1087, %v1086
    %v1095 = vpack.c.b16 %v1089, %v1088
    %v1096 = vpack.c.b16 %v1091, %v1090
    %v1097 = vpack.c.b16 %v1093, %v1092
    %v1099 = vsel %vm561, %v1094, 0
    %v1102 = vsel %vm561, %v1095, 0
    %v1105 = vsel %vm561, %v1096, 0
    %v1108 = vsel %vm561, %v1097, 0
    %1110 = vmatprep.subr.bf16.mxu0 0
    %1111 = vmatpush1.bf16.msra.mxu0 0
    %1112 = vmatprep.subr.bf16.mxu0 0
    %1113 = vmatpush1.bf16.msra.mxu0 0
    %1114 = vmatprep.subr.bf16.mxu0 0
    %1115 = vmatpush1.bf16.msra.mxu0 0
    %1116 = vmatprep.subr.bf16.mxu0 0
    %1117 = vmatpush1.bf16.msra.mxu0 0
    %1118 = vmatprep.subr.bf16.mxu0 0
    %1119 = vmatpush1.bf16.msra.mxu0 %v532
    %1120 = vmatprep.subr.bf16.mxu0 0
    %1121 = vmatpush1.bf16.msra.mxu0 %v531
    %1122 = vmatprep.subr.bf16.mxu0 0
    %1123 = vmatpush1.bf16.msra.mxu0 %v530
    %1124 = vmatprep.subr.bf16.mxu0 0
    %1125 = vmatpush1.bf16.msra.mxu0 %v529
    %1126 = vmatprep.subr.bf16.mxu0 0
    %1127 = vmatpush2.bf16.msra.mxu0 0
    %1128 = vmatprep.subr.bf16.mxu0 0
    %1129 = vmatpush2.bf16.msra.mxu0 0
    %1130 = vmatprep.subr.bf16.mxu0 0
    %1131 = vmatpush2.bf16.msra.mxu0 0
    %1132 = vmatprep.subr.bf16.mxu0 0
    %1133 = vmatpush2.bf16.msra.mxu0 0
    %1134 = vmatprep.subr.bf16.mxu0 0
    %1135 = vmatpush2.bf16.msra.mxu0 0
    %1136 = vmatprep.subr.bf16.mxu0 0
    %1137 = vmatpush2.bf16.msra.mxu0 0
    %1138 = vmatprep.subr.bf16.mxu0 0
    %1139 = vmatpush2.bf16.msra.mxu0 0
    %1140 = vmatprep.subr.bf16.mxu0 0
    %1141 = vmatpush2.bf16.msra.mxu0 0
    %1142 = vmatprep.mubr.bf16.mxu0 0
    %1143 = vmatmul.mubr.bf16.gmra.mxu0 %v1099
    %v1144 = vpop.f32.mrf.mxu0
    %v1145 = vadd.f32 0.0, %v1144
    %v1146 = vpop.f32.mrf.mxu0
    %v1147 = vpop.f32.mrf.mxu0
    %v1148 = vadd.f32 0.0, %v1147
    %v1149 = vpop.f32.mrf.mxu0
    %1150 = vmatprep.mubr.bf16.mxu0 0
    %1151 = vmatmul.mubr.bf16.gmra.mxu0 %v1102
    %v1152 = vpop.f32.mrf.mxu0
    %v1153 = vadd.f32 0.0, %v1152
    %v1154 = vpop.f32.mrf.mxu0
    %v1155 = vpop.f32.mrf.mxu0
    %v1156 = vadd.f32 0.0, %v1155
    %v1157 = vpop.f32.mrf.mxu0
    %1158 = vmatprep.mubr.bf16.mxu0 0
    %1159 = vmatmul.mubr.bf16.gmra.mxu0 %v1105
    %v1160 = vpop.f32.mrf.mxu0
    %v1161 = vadd.f32 0.0, %v1160
    %v1162 = vpop.f32.mrf.mxu0
    %v1163 = vpop.f32.mrf.mxu0
    %v1164 = vadd.f32 0.0, %v1163
    %v1165 = vpop.f32.mrf.mxu0
    %1166 = vmatprep.mubr.bf16.mxu0 0
    %1167 = vmatmul.mubr.bf16.gmra.mxu0 %v1108
    %v1168 = vpop.f32.mrf.mxu0
    %v1169 = vadd.f32 0.0, %v1168
    %v1170 = vpop.f32.mrf.mxu0
    %v1171 = vpop.f32.mrf.mxu0
    %v1172 = vadd.f32 0.0, %v1171
    %v1173 = vpop.f32.mrf.mxu0
    %1174 = vdwg.mxu0
    %v1175 = vpack.c.bf16 %v1148, %v1145
    %v1176 = vpack.c.bf16 %v1156, %v1153
    %v1177 = vpack.c.bf16 %v1164, %v1161
    %v1178 = vpack.c.bf16 %v1172, %v1169
    %s1179 = scalar_lea.vmem %s5, 192
    %v1180 = vld [vmem:[%s1179] sm:$0xff]
    %v1181 = vld [vmem:[%s1179 + $0x8] sm:$0xff]
    %v1182 = vld [vmem:[%s1179 + $0x10] sm:$0xff]
    %v1183 = vld [vmem:[%s1179 + $0x18] sm:$0xff]
    %v1184 = vld [vmem:[%s1179 + $0x20] sm:$0xff]
    %v1185 = vld [vmem:[%s1179 + $0x28] sm:$0xff]
    %v1186 = vld [vmem:[%s1179 + $0x30] sm:$0xff]
    %v1187 = vld [vmem:[%s1179 + $0x38] sm:$0xff]
    %v1188 = vld [vmem:[%s1179 + $0x40] sm:$0xff]
    %v1189 = vld [vmem:[%s1179 + $0x48] sm:$0xff]
    %v1190 = vld [vmem:[%s1179 + $0x50] sm:$0xff]
    %v1191 = vld [vmem:[%s1179 + $0x58] sm:$0xff]
    %v1204 = vunpack.c.l.b16 %v1180
    %v1205 = vunpack.c.h.b16 %v1180
    %v1206 = vunpack.c.l.b16 %v1181
    %v1207 = vunpack.c.h.b16 %v1181
    %v1208 = vunpack.c.l.b16 %v1182
    %v1209 = vunpack.c.h.b16 %v1182
    %v1210 = vunpack.c.l.b16 %v1183
    %v1211 = vunpack.c.h.b16 %v1183
    %v1212 = vunpack.c.l.b16 %v1184
    %v1213 = vunpack.c.h.b16 %v1184
    %v1214 = vunpack.c.l.b16 %v1185
    %v1215 = vunpack.c.h.b16 %v1185
    %v1216 = vunpack.c.l.b16 %v1186
    %v1217 = vunpack.c.h.b16 %v1186
    %v1218 = vunpack.c.l.b16 %v1187
    %v1219 = vunpack.c.h.b16 %v1187
    %v1220 = vunpack.c.l.b16 %v1188
    %v1221 = vunpack.c.h.b16 %v1188
    %v1222 = vunpack.c.l.b16 %v1189
    %v1223 = vunpack.c.h.b16 %v1189
    %v1224 = vunpack.c.l.b16 %v1190
    %v1225 = vunpack.c.h.b16 %v1190
    %v1226 = vunpack.c.l.b16 %v1191
    %v1227 = vunpack.c.h.b16 %v1191
    %v1228 = vpack.c.b16 %v1206, %v1204
    %v1229 = vpack.c.b16 %v1207, %v1205
    %v1230 = vpack.c.b16 %v1210, %v1208
    %v1231 = vpack.c.b16 %v1211, %v1209
    %v1232 = vpack.c.b16 %v1214, %v1212
    %v1233 = vpack.c.b16 %v1215, %v1213
    %v1234 = vpack.c.b16 %v1218, %v1216
    %v1235 = vpack.c.b16 %v1219, %v1217
    %v1236 = vpack.c.b16 %v1222, %v1220
    %v1237 = vpack.c.b16 %v1223, %v1221
    %v1238 = vpack.c.b16 %v1226, %v1224
    %v1239 = vpack.c.b16 %v1227, %v1225
    %v1253 = vsel %vm838, %v1175, 0
    %v1256 = vsel %vm838, %v1176, 0
    %v1259 = vsel %vm838, %v1177, 0
    %v1262 = vsel %vm838, %v1178, 0
    %1264 = vmatprep.subr.bf16.mxu0 0
    %1265 = vmatpush1.bf16.msra.mxu0 0
    %1266 = vmatprep.subr.bf16.mxu0 0
    %1267 = vmatpush1.bf16.msra.mxu0 0
    %1268 = vmatprep.subr.bf16.mxu0 %v1239
    %1269 = vmatpush1.bf16.msra.mxu0 %v1238
    %1270 = vmatprep.subr.bf16.mxu0 %v1237
    %1271 = vmatpush1.bf16.msra.mxu0 %v1236
    %1272 = vmatprep.subr.bf16.mxu0 %v1235
    %1273 = vmatpush1.bf16.msra.mxu0 %v1234
    %1274 = vmatprep.subr.bf16.mxu0 %v1233
    %1275 = vmatpush1.bf16.msra.mxu0 %v1232
    %1276 = vmatprep.subr.bf16.mxu0 %v1231
    %1277 = vmatpush1.bf16.msra.mxu0 %v1230
    %1278 = vmatprep.subr.bf16.mxu0 %v1229
    %1279 = vmatpush1.bf16.msra.mxu0 %v1228
    %1280 = vmatprep.subr.bf16.mxu0 0
    %1281 = vmatpush2.bf16.msra.mxu0 0
    %1282 = vmatprep.subr.bf16.mxu0 0
    %1283 = vmatpush2.bf16.msra.mxu0 0
    %1284 = vmatprep.subr.bf16.mxu0 0
    %1285 = vmatpush2.bf16.msra.mxu0 0
    %1286 = vmatprep.subr.bf16.mxu0 0
    %1287 = vmatpush2.bf16.msra.mxu0 0
    %1288 = vmatprep.subr.bf16.mxu0 0
    %1289 = vmatpush2.bf16.msra.mxu0 0
    %1290 = vmatprep.subr.bf16.mxu0 0
    %1291 = vmatpush2.bf16.msra.mxu0 0
    %1292 = vmatprep.subr.bf16.mxu0 0
    %1293 = vmatpush2.bf16.msra.mxu0 0
    %1294 = vmatprep.subr.bf16.mxu0 0
    %1295 = vmatpush2.bf16.msra.mxu0 0
    %1296 = vmatprep.mubr.bf16.mxu0 0
    %1297 = vmatmul.mubr.bf16.gmra.mxu0 %v1253
    %v1298 = vpop.f32.mrf.mxu0
    %v1299 = vadd.f32 0.0, %v1298
    %v1300 = vpop.f32.mrf.mxu0
    %v1301 = vadd.f32 0.0, %v1300
    %v1302 = vpop.f32.mrf.mxu0
    %v1303 = vadd.f32 0.0, %v1302
    %v1304 = vpop.f32.mrf.mxu0
    %v1305 = vadd.f32 0.0, %v1304
    %1306 = vmatprep.mubr.bf16.mxu0 0
    %1307 = vmatmul.mubr.bf16.gmra.mxu0 %v1256
    %v1308 = vpop.f32.mrf.mxu0
    %v1309 = vadd.f32 0.0, %v1308
    %v1310 = vpop.f32.mrf.mxu0
    %v1311 = vadd.f32 0.0, %v1310
    %v1312 = vpop.f32.mrf.mxu0
    %v1313 = vadd.f32 0.0, %v1312
    %v1314 = vpop.f32.mrf.mxu0
    %v1315 = vadd.f32 0.0, %v1314
    %1316 = vmatprep.mubr.bf16.mxu0 0
    %1317 = vmatmul.mubr.bf16.gmra.mxu0 %v1259
    %v1318 = vpop.f32.mrf.mxu0
    %v1319 = vadd.f32 0.0, %v1318
    %v1320 = vpop.f32.mrf.mxu0
    %v1321 = vadd.f32 0.0, %v1320
    %v1322 = vpop.f32.mrf.mxu0
    %v1323 = vadd.f32 0.0, %v1322
    %v1324 = vpop.f32.mrf.mxu0
    %v1325 = vadd.f32 0.0, %v1324
    %1326 = vmatprep.mubr.bf16.mxu0 0
    %1327 = vmatmul.mubr.bf16.gmra.mxu0 %v1262
    %v1328 = vpop.f32.mrf.mxu0
    %v1329 = vadd.f32 0.0, %v1328
    %v1330 = vpop.f32.mrf.mxu0
    %v1331 = vadd.f32 0.0, %v1330
    %v1332 = vpop.f32.mrf.mxu0
    %v1333 = vadd.f32 0.0, %v1332
    %v1334 = vpop.f32.mrf.mxu0
    %v1335 = vadd.f32 0.0, %v1334
    %1336 = vdwg.mxu0
    %v1337 = vadd.f32 %v1031, %v1299
    %v1338 = vadd.f32 %v1033, %v1301
    %v1339 = vadd.f32 %v1035, %v1303
    %v1340 = vadd.f32 %v1037, %v1305
    %v1341 = vadd.f32 %v1041, %v1309
    %v1342 = vadd.f32 %v1043, %v1311
    %v1343 = vadd.f32 %v1045, %v1313
    %v1344 = vadd.f32 %v1047, %v1315
    %v1345 = vadd.f32 %v1051, %v1319
    %v1346 = vadd.f32 %v1053, %v1321
    %v1347 = vadd.f32 %v1055, %v1323
    %v1348 = vadd.f32 %v1057, %v1325
    %v1349 = vadd.f32 %v1061, %v1329
    %v1350 = vadd.f32 %v1063, %v1331
    %v1351 = vadd.f32 %v1065, %v1333
    %v1352 = vadd.f32 %v1067, %v1335
    %s1353 = scalar_lea.vmem %s3, 96
    %v1354 = vld [vmem:[%s1353] sm:$0xf]
    %v1355 = vld [vmem:[%s1353 + $0x4] sm:$0xf]
    %v1356 = vld [vmem:[%s1353 + $0x8] sm:$0xf]
    %v1357 = vld [vmem:[%s1353 + $0xc] sm:$0xf]
    %v1358 = vld [vmem:[%s1353 + $0x10] sm:$0xf]
    %v1359 = vld [vmem:[%s1353 + $0x14] sm:$0xf]
    %v1360 = vld [vmem:[%s1353 + $0x18] sm:$0xf]
    %v1361 = vld [vmem:[%s1353 + $0x1c] sm:$0xf]
    %v1370 = vunpack.c.l.b16 %v1354
    %v1371 = vunpack.c.l.b16 %v1355
    %v1372 = vunpack.c.l.b16 %v1356
    %v1373 = vunpack.c.l.b16 %v1357
    %v1374 = vunpack.c.l.b16 %v1358
    %v1375 = vunpack.c.l.b16 %v1359
    %v1376 = vunpack.c.l.b16 %v1360
    %v1377 = vunpack.c.l.b16 %v1361
    %v1378 = vpack.c.b16 %v1371, %v1370
    %v1379 = vpack.c.b16 %v1373, %v1372
    %v1380 = vpack.c.b16 %v1375, %v1374
    %v1381 = vpack.c.b16 %v1377, %v1376
    %v1383 = vsel %vm561, %v1378, 0
    %v1386 = vsel %vm561, %v1379, 0
    %v1389 = vsel %vm561, %v1380, 0
    %v1392 = vsel %vm561, %v1381, 0
    %1394 = vmatprep.subr.bf16.mxu0 0
    %1395 = vmatpush1.bf16.msra.mxu0 0
    %1396 = vmatprep.subr.bf16.mxu0 0
    %1397 = vmatpush1.bf16.msra.mxu0 0
    %1398 = vmatprep.subr.bf16.mxu0 0
    %1399 = vmatpush1.bf16.msra.mxu0 0
    %1400 = vmatprep.subr.bf16.mxu0 0
    %1401 = vmatpush1.bf16.msra.mxu0 0
    %1402 = vmatprep.subr.bf16.mxu0 0
    %1403 = vmatpush1.bf16.msra.mxu0 %v532
    %1404 = vmatprep.subr.bf16.mxu0 0
    %1405 = vmatpush1.bf16.msra.mxu0 %v531
    %1406 = vmatprep.subr.bf16.mxu0 0
    %1407 = vmatpush1.bf16.msra.mxu0 %v530
    %1408 = vmatprep.subr.bf16.mxu0 0
    %1409 = vmatpush1.bf16.msra.mxu0 %v529
    %1410 = vmatprep.subr.bf16.mxu0 0
    %1411 = vmatpush2.bf16.msra.mxu0 0
    %1412 = vmatprep.subr.bf16.mxu0 0
    %1413 = vmatpush2.bf16.msra.mxu0 0
    %1414 = vmatprep.subr.bf16.mxu0 0
    %1415 = vmatpush2.bf16.msra.mxu0 0
    %1416 = vmatprep.subr.bf16.mxu0 0
    %1417 = vmatpush2.bf16.msra.mxu0 0
    %1418 = vmatprep.subr.bf16.mxu0 0
    %1419 = vmatpush2.bf16.msra.mxu0 0
    %1420 = vmatprep.subr.bf16.mxu0 0
    %1421 = vmatpush2.bf16.msra.mxu0 0
    %1422 = vmatprep.subr.bf16.mxu0 0
    %1423 = vmatpush2.bf16.msra.mxu0 0
    %1424 = vmatprep.subr.bf16.mxu0 0
    %1425 = vmatpush2.bf16.msra.mxu0 0
    %1426 = vmatprep.mubr.bf16.mxu0 0
    %1427 = vmatmul.mubr.bf16.gmra.mxu0 %v1383
    %v1428 = vpop.f32.mrf.mxu0
    %v1429 = vadd.f32 0.0, %v1428
    %v1430 = vpop.f32.mrf.mxu0
    %v1431 = vpop.f32.mrf.mxu0
    %v1432 = vadd.f32 0.0, %v1431
    %v1433 = vpop.f32.mrf.mxu0
    %1434 = vmatprep.mubr.bf16.mxu0 0
    %1435 = vmatmul.mubr.bf16.gmra.mxu0 %v1386
    %v1436 = vpop.f32.mrf.mxu0
    %v1437 = vadd.f32 0.0, %v1436
    %v1438 = vpop.f32.mrf.mxu0
    %v1439 = vpop.f32.mrf.mxu0
    %v1440 = vadd.f32 0.0, %v1439
    %v1441 = vpop.f32.mrf.mxu0
    %1442 = vmatprep.mubr.bf16.mxu0 0
    %1443 = vmatmul.mubr.bf16.gmra.mxu0 %v1389
    %v1444 = vpop.f32.mrf.mxu0
    %v1445 = vadd.f32 0.0, %v1444
    %v1446 = vpop.f32.mrf.mxu0
    %v1447 = vpop.f32.mrf.mxu0
    %v1448 = vadd.f32 0.0, %v1447
    %v1449 = vpop.f32.mrf.mxu0
    %1450 = vmatprep.mubr.bf16.mxu0 0
    %1451 = vmatmul.mubr.bf16.gmra.mxu0 %v1392
    %v1452 = vpop.f32.mrf.mxu0
    %v1453 = vadd.f32 0.0, %v1452
    %v1454 = vpop.f32.mrf.mxu0
    %v1455 = vpop.f32.mrf.mxu0
    %v1456 = vadd.f32 0.0, %v1455
    %v1457 = vpop.f32.mrf.mxu0
    %1458 = vdwg.mxu0
    %v1459 = vpack.c.bf16 %v1432, %v1429
    %v1460 = vpack.c.bf16 %v1440, %v1437
    %v1461 = vpack.c.bf16 %v1448, %v1445
    %v1462 = vpack.c.bf16 %v1456, %v1453
    %s1463 = scalar_lea.vmem %s5, 288
    %v1464 = vld [vmem:[%s1463] sm:$0xff]
    %v1465 = vld [vmem:[%s1463 + $0x8] sm:$0xff]
    %v1466 = vld [vmem:[%s1463 + $0x10] sm:$0xff]
    %v1467 = vld [vmem:[%s1463 + $0x18] sm:$0xff]
    %v1468 = vld [vmem:[%s1463 + $0x20] sm:$0xff]
    %v1469 = vld [vmem:[%s1463 + $0x28] sm:$0xff]
    %v1470 = vld [vmem:[%s1463 + $0x30] sm:$0xff]
    %v1471 = vld [vmem:[%s1463 + $0x38] sm:$0xff]
    %v1472 = vld [vmem:[%s1463 + $0x40] sm:$0xff]
    %v1473 = vld [vmem:[%s1463 + $0x48] sm:$0xff]
    %v1474 = vld [vmem:[%s1463 + $0x50] sm:$0xff]
    %v1475 = vld [vmem:[%s1463 + $0x58] sm:$0xff]
    %v1488 = vunpack.c.l.b16 %v1464
    %v1489 = vunpack.c.h.b16 %v1464
    %v1490 = vunpack.c.l.b16 %v1465
    %v1491 = vunpack.c.h.b16 %v1465
    %v1492 = vunpack.c.l.b16 %v1466
    %v1493 = vunpack.c.h.b16 %v1466
    %v1494 = vunpack.c.l.b16 %v1467
    %v1495 = vunpack.c.h.b16 %v1467
    %v1496 = vunpack.c.l.b16 %v1468
    %v1497 = vunpack.c.h.b16 %v1468
    %v1498 = vunpack.c.l.b16 %v1469
    %v1499 = vunpack.c.h.b16 %v1469
    %v1500 = vunpack.c.l.b16 %v1470
    %v1501 = vunpack.c.h.b16 %v1470
    %v1502 = vunpack.c.l.b16 %v1471
    %v1503 = vunpack.c.h.b16 %v1471
    %v1504 = vunpack.c.l.b16 %v1472
    %v1505 = vunpack.c.h.b16 %v1472
    %v1506 = vunpack.c.l.b16 %v1473
    %v1507 = vunpack.c.h.b16 %v1473
    %v1508 = vunpack.c.l.b16 %v1474
    %v1509 = vunpack.c.h.b16 %v1474
    %v1510 = vunpack.c.l.b16 %v1475
    %v1511 = vunpack.c.h.b16 %v1475
    %v1512 = vpack.c.b16 %v1490, %v1488
    %v1513 = vpack.c.b16 %v1491, %v1489
    %v1514 = vpack.c.b16 %v1494, %v1492
    %v1515 = vpack.c.b16 %v1495, %v1493
    %v1516 = vpack.c.b16 %v1498, %v1496
    %v1517 = vpack.c.b16 %v1499, %v1497
    %v1518 = vpack.c.b16 %v1502, %v1500
    %v1519 = vpack.c.b16 %v1503, %v1501
    %v1520 = vpack.c.b16 %v1506, %v1504
    %v1521 = vpack.c.b16 %v1507, %v1505
    %v1522 = vpack.c.b16 %v1510, %v1508
    %v1523 = vpack.c.b16 %v1511, %v1509
    %v1537 = vsel %vm838, %v1459, 0
    %v1540 = vsel %vm838, %v1460, 0
    %v1543 = vsel %vm838, %v1461, 0
    %v1546 = vsel %vm838, %v1462, 0
    %1548 = vmatprep.subr.bf16.mxu0 0
    %1549 = vmatpush1.bf16.msra.mxu0 0
    %1550 = vmatprep.subr.bf16.mxu0 0
    %1551 = vmatpush1.bf16.msra.mxu0 0
    %1552 = vmatprep.subr.bf16.mxu0 %v1523
    %1553 = vmatpush1.bf16.msra.mxu0 %v1522
    %1554 = vmatprep.subr.bf16.mxu0 %v1521
    %1555 = vmatpush1.bf16.msra.mxu0 %v1520
    %1556 = vmatprep.subr.bf16.mxu0 %v1519
    %1557 = vmatpush1.bf16.msra.mxu0 %v1518
    %1558 = vmatprep.subr.bf16.mxu0 %v1517
    %1559 = vmatpush1.bf16.msra.mxu0 %v1516
    %1560 = vmatprep.subr.bf16.mxu0 %v1515
    %1561 = vmatpush1.bf16.msra.mxu0 %v1514
    %1562 = vmatprep.subr.bf16.mxu0 %v1513
    %1563 = vmatpush1.bf16.msra.mxu0 %v1512
    %1564 = vmatprep.subr.bf16.mxu0 0
    %1565 = vmatpush2.bf16.msra.mxu0 0
    %1566 = vmatprep.subr.bf16.mxu0 0
    %1567 = vmatpush2.bf16.msra.mxu0 0
    %1568 = vmatprep.subr.bf16.mxu0 0
    %1569 = vmatpush2.bf16.msra.mxu0 0
    %1570 = vmatprep.subr.bf16.mxu0 0
    %1571 = vmatpush2.bf16.msra.mxu0 0
    %1572 = vmatprep.subr.bf16.mxu0 0
    %1573 = vmatpush2.bf16.msra.mxu0 0
    %1574 = vmatprep.subr.bf16.mxu0 0
    %1575 = vmatpush2.bf16.msra.mxu0 0
    %1576 = vmatprep.subr.bf16.mxu0 0
    %1577 = vmatpush2.bf16.msra.mxu0 0
    %1578 = vmatprep.subr.bf16.mxu0 0
    %1579 = vmatpush2.bf16.msra.mxu0 0
    %1580 = vmatprep.mubr.bf16.mxu0 0
    %1581 = vmatmul.mubr.bf16.gmra.mxu0 %v1537
    %v1582 = vpop.f32.mrf.mxu0
    %v1583 = vadd.f32 0.0, %v1582
    %v1584 = vpop.f32.mrf.mxu0
    %v1585 = vadd.f32 0.0, %v1584
    %v1586 = vpop.f32.mrf.mxu0
    %v1587 = vadd.f32 0.0, %v1586
    %v1588 = vpop.f32.mrf.mxu0
    %v1589 = vadd.f32 0.0, %v1588
    %1590 = vmatprep.mubr.bf16.mxu0 0
    %1591 = vmatmul.mubr.bf16.gmra.mxu0 %v1540
    %v1592 = vpop.f32.mrf.mxu0
    %v1593 = vadd.f32 0.0, %v1592
    %v1594 = vpop.f32.mrf.mxu0
    %v1595 = vadd.f32 0.0, %v1594
    %v1596 = vpop.f32.mrf.mxu0
    %v1597 = vadd.f32 0.0, %v1596
    %v1598 = vpop.f32.mrf.mxu0
    %v1599 = vadd.f32 0.0, %v1598
    %1600 = vmatprep.mubr.bf16.mxu0 0
    %1601 = vmatmul.mubr.bf16.gmra.mxu0 %v1543
    %v1602 = vpop.f32.mrf.mxu0
    %v1603 = vadd.f32 0.0, %v1602
    %v1604 = vpop.f32.mrf.mxu0
    %v1605 = vadd.f32 0.0, %v1604
    %v1606 = vpop.f32.mrf.mxu0
    %v1607 = vadd.f32 0.0, %v1606
    %v1608 = vpop.f32.mrf.mxu0
    %v1609 = vadd.f32 0.0, %v1608
    %1610 = vmatprep.mubr.bf16.mxu0 0
    %1611 = vmatmul.mubr.bf16.gmra.mxu0 %v1546
    %v1612 = vpop.f32.mrf.mxu0
    %v1613 = vadd.f32 0.0, %v1612
    %v1614 = vpop.f32.mrf.mxu0
    %v1615 = vadd.f32 0.0, %v1614
    %v1616 = vpop.f32.mrf.mxu0
    %v1617 = vadd.f32 0.0, %v1616
    %v1618 = vpop.f32.mrf.mxu0
    %v1619 = vadd.f32 0.0, %v1618
    %1620 = vdwg.mxu0
    %v1621 = vadd.f32 %v1337, %v1583
    %v1622 = vadd.f32 %v1338, %v1585
    %v1623 = vadd.f32 %v1339, %v1587
    %v1624 = vadd.f32 %v1340, %v1589
    %v1625 = vadd.f32 %v1341, %v1593
    %v1626 = vadd.f32 %v1342, %v1595
    %v1627 = vadd.f32 %v1343, %v1597
    %v1628 = vadd.f32 %v1344, %v1599
    %v1629 = vadd.f32 %v1345, %v1603
    %v1630 = vadd.f32 %v1346, %v1605
    %v1631 = vadd.f32 %v1347, %v1607
    %v1632 = vadd.f32 %v1348, %v1609
    %v1633 = vadd.f32 %v1349, %v1613
    %v1634 = vadd.f32 %v1350, %v1615
    %v1635 = vadd.f32 %v1351, %v1617
    %v1636 = vadd.f32 %v1352, %v1619
    %s1637 = scalar_lea.vmem %s3, 128
    %v1638 = vld [vmem:[%s1637] sm:$0xf]
    %v1639 = vld [vmem:[%s1637 + $0x4] sm:$0xf]
    %v1640 = vld [vmem:[%s1637 + $0x8] sm:$0xf]
    %v1641 = vld [vmem:[%s1637 + $0xc] sm:$0xf]
    %v1642 = vld [vmem:[%s1637 + $0x10] sm:$0xf]
    %v1643 = vld [vmem:[%s1637 + $0x14] sm:$0xf]
    %v1644 = vld [vmem:[%s1637 + $0x18] sm:$0xf]
    %v1645 = vld [vmem:[%s1637 + $0x1c] sm:$0xf]
    %v1654 = vunpack.c.l.b16 %v1638
    %v1655 = vunpack.c.l.b16 %v1639
    %v1656 = vunpack.c.l.b16 %v1640
    %v1657 = vunpack.c.l.b16 %v1641
    %v1658 = vunpack.c.l.b16 %v1642
    %v1659 = vunpack.c.l.b16 %v1643
    %v1660 = vunpack.c.l.b16 %v1644
    %v1661 = vunpack.c.l.b16 %v1645
    %v1662 = vpack.c.b16 %v1655, %v1654
    %v1663 = vpack.c.b16 %v1657, %v1656
    %v1664 = vpack.c.b16 %v1659, %v1658
    %v1665 = vpack.c.b16 %v1661, %v1660
    %v1667 = vsel %vm561, %v1662, 0
    %v1670 = vsel %vm561, %v1663, 0
    %v1673 = vsel %vm561, %v1664, 0
    %v1676 = vsel %vm561, %v1665, 0
    %1678 = vmatprep.subr.bf16.mxu0 0
    %1679 = vmatpush1.bf16.msra.mxu0 0
    %1680 = vmatprep.subr.bf16.mxu0 0
    %1681 = vmatpush1.bf16.msra.mxu0 0
    %1682 = vmatprep.subr.bf16.mxu0 0
    %1683 = vmatpush1.bf16.msra.mxu0 0
    %1684 = vmatprep.subr.bf16.mxu0 0
    %1685 = vmatpush1.bf16.msra.mxu0 0
    %1686 = vmatprep.subr.bf16.mxu0 0
    %1687 = vmatpush1.bf16.msra.mxu0 %v532
    %1688 = vmatprep.subr.bf16.mxu0 0
    %1689 = vmatpush1.bf16.msra.mxu0 %v531
    %1690 = vmatprep.subr.bf16.mxu0 0
    %1691 = vmatpush1.bf16.msra.mxu0 %v530
    %1692 = vmatprep.subr.bf16.mxu0 0
    %1693 = vmatpush1.bf16.msra.mxu0 %v529
    %1694 = vmatprep.subr.bf16.mxu0 0
    %1695 = vmatpush2.bf16.msra.mxu0 0
    %1696 = vmatprep.subr.bf16.mxu0 0
    %1697 = vmatpush2.bf16.msra.mxu0 0
    %1698 = vmatprep.subr.bf16.mxu0 0
    %1699 = vmatpush2.bf16.msra.mxu0 0
    %1700 = vmatprep.subr.bf16.mxu0 0
    %1701 = vmatpush2.bf16.msra.mxu0 0
    %1702 = vmatprep.subr.bf16.mxu0 0
    %1703 = vmatpush2.bf16.msra.mxu0 0
    %1704 = vmatprep.subr.bf16.mxu0 0
    %1705 = vmatpush2.bf16.msra.mxu0 0
    %1706 = vmatprep.subr.bf16.mxu0 0
    %1707 = vmatpush2.bf16.msra.mxu0 0
    %1708 = vmatprep.subr.bf16.mxu0 0
    %1709 = vmatpush2.bf16.msra.mxu0 0
    %1710 = vmatprep.mubr.bf16.mxu0 0
    %1711 = vmatmul.mubr.bf16.gmra.mxu0 %v1667
    %v1712 = vpop.f32.mrf.mxu0
    %v1713 = vadd.f32 0.0, %v1712
    %v1714 = vpop.f32.mrf.mxu0
    %v1715 = vpop.f32.mrf.mxu0
    %v1716 = vadd.f32 0.0, %v1715
    %v1717 = vpop.f32.mrf.mxu0
    %1718 = vmatprep.mubr.bf16.mxu0 0
    %1719 = vmatmul.mubr.bf16.gmra.mxu0 %v1670
    %v1720 = vpop.f32.mrf.mxu0
    %v1721 = vadd.f32 0.0, %v1720
    %v1722 = vpop.f32.mrf.mxu0
    %v1723 = vpop.f32.mrf.mxu0
    %v1724 = vadd.f32 0.0, %v1723
    %v1725 = vpop.f32.mrf.mxu0
    %1726 = vmatprep.mubr.bf16.mxu0 0
    %1727 = vmatmul.mubr.bf16.gmra.mxu0 %v1673
    %v1728 = vpop.f32.mrf.mxu0
    %v1729 = vadd.f32 0.0, %v1728
    %v1730 = vpop.f32.mrf.mxu0
    %v1731 = vpop.f32.mrf.mxu0
    %v1732 = vadd.f32 0.0, %v1731
    %v1733 = vpop.f32.mrf.mxu0
    %1734 = vmatprep.mubr.bf16.mxu0 0
    %1735 = vmatmul.mubr.bf16.gmra.mxu0 %v1676
    %v1736 = vpop.f32.mrf.mxu0
    %v1737 = vadd.f32 0.0, %v1736
    %v1738 = vpop.f32.mrf.mxu0
    %v1739 = vpop.f32.mrf.mxu0
    %v1740 = vadd.f32 0.0, %v1739
    %v1741 = vpop.f32.mrf.mxu0
    %1742 = vdwg.mxu0
    %v1743 = vpack.c.bf16 %v1716, %v1713
    %v1744 = vpack.c.bf16 %v1724, %v1721
    %v1745 = vpack.c.bf16 %v1732, %v1729
    %v1746 = vpack.c.bf16 %v1740, %v1737
    %s1747 = scalar_lea.vmem %s5, 384
    %v1748 = vld [vmem:[%s1747] sm:$0xff]
    %v1749 = vld [vmem:[%s1747 + $0x8] sm:$0xff]
    %v1750 = vld [vmem:[%s1747 + $0x10] sm:$0xff]
    %v1751 = vld [vmem:[%s1747 + $0x18] sm:$0xff]
    %v1752 = vld [vmem:[%s1747 + $0x20] sm:$0xff]
    %v1753 = vld [vmem:[%s1747 + $0x28] sm:$0xff]
    %v1754 = vld [vmem:[%s1747 + $0x30] sm:$0xff]
    %v1755 = vld [vmem:[%s1747 + $0x38] sm:$0xff]
    %v1756 = vld [vmem:[%s1747 + $0x40] sm:$0xff]
    %v1757 = vld [vmem:[%s1747 + $0x48] sm:$0xff]
    %v1758 = vld [vmem:[%s1747 + $0x50] sm:$0xff]
    %v1759 = vld [vmem:[%s1747 + $0x58] sm:$0xff]
    %v1772 = vunpack.c.l.b16 %v1748
    %v1773 = vunpack.c.h.b16 %v1748
    %v1774 = vunpack.c.l.b16 %v1749
    %v1775 = vunpack.c.h.b16 %v1749
    %v1776 = vunpack.c.l.b16 %v1750
    %v1777 = vunpack.c.h.b16 %v1750
    %v1778 = vunpack.c.l.b16 %v1751
    %v1779 = vunpack.c.h.b16 %v1751
    %v1780 = vunpack.c.l.b16 %v1752
    %v1781 = vunpack.c.h.b16 %v1752
    %v1782 = vunpack.c.l.b16 %v1753
    %v1783 = vunpack.c.h.b16 %v1753
    %v1784 = vunpack.c.l.b16 %v1754
    %v1785 = vunpack.c.h.b16 %v1754
    %v1786 = vunpack.c.l.b16 %v1755
    %v1787 = vunpack.c.h.b16 %v1755
    %v1788 = vunpack.c.l.b16 %v1756
    %v1789 = vunpack.c.h.b16 %v1756
    %v1790 = vunpack.c.l.b16 %v1757
    %v1791 = vunpack.c.h.b16 %v1757
    %v1792 = vunpack.c.l.b16 %v1758
    %v1793 = vunpack.c.h.b16 %v1758
    %v1794 = vunpack.c.l.b16 %v1759
    %v1795 = vunpack.c.h.b16 %v1759
    %v1796 = vpack.c.b16 %v1774, %v1772
    %v1797 = vpack.c.b16 %v1775, %v1773
    %v1798 = vpack.c.b16 %v1778, %v1776
    %v1799 = vpack.c.b16 %v1779, %v1777
    %v1800 = vpack.c.b16 %v1782, %v1780
    %v1801 = vpack.c.b16 %v1783, %v1781
    %v1802 = vpack.c.b16 %v1786, %v1784
    %v1803 = vpack.c.b16 %v1787, %v1785
    %v1804 = vpack.c.b16 %v1790, %v1788
    %v1805 = vpack.c.b16 %v1791, %v1789
    %v1806 = vpack.c.b16 %v1794, %v1792
    %v1807 = vpack.c.b16 %v1795, %v1793
    %v1821 = vsel %vm838, %v1743, 0
    %v1824 = vsel %vm838, %v1744, 0
    %v1827 = vsel %vm838, %v1745, 0
    %v1830 = vsel %vm838, %v1746, 0
    %1832 = vmatprep.subr.bf16.mxu0 0
    %1833 = vmatpush1.bf16.msra.mxu0 0
    %1834 = vmatprep.subr.bf16.mxu0 0
    %1835 = vmatpush1.bf16.msra.mxu0 0
    %1836 = vmatprep.subr.bf16.mxu0 %v1807
    %1837 = vmatpush1.bf16.msra.mxu0 %v1806
    %1838 = vmatprep.subr.bf16.mxu0 %v1805
    %1839 = vmatpush1.bf16.msra.mxu0 %v1804
    %1840 = vmatprep.subr.bf16.mxu0 %v1803
    %1841 = vmatpush1.bf16.msra.mxu0 %v1802
    %1842 = vmatprep.subr.bf16.mxu0 %v1801
    %1843 = vmatpush1.bf16.msra.mxu0 %v1800
    %1844 = vmatprep.subr.bf16.mxu0 %v1799
    %1845 = vmatpush1.bf16.msra.mxu0 %v1798
    %1846 = vmatprep.subr.bf16.mxu0 %v1797
    %1847 = vmatpush1.bf16.msra.mxu0 %v1796
    %1848 = vmatprep.subr.bf16.mxu0 0
    %1849 = vmatpush2.bf16.msra.mxu0 0
    %1850 = vmatprep.subr.bf16.mxu0 0
    %1851 = vmatpush2.bf16.msra.mxu0 0
    %1852 = vmatprep.subr.bf16.mxu0 0
    %1853 = vmatpush2.bf16.msra.mxu0 0
    %1854 = vmatprep.subr.bf16.mxu0 0
    %1855 = vmatpush2.bf16.msra.mxu0 0
    %1856 = vmatprep.subr.bf16.mxu0 0
    %1857 = vmatpush2.bf16.msra.mxu0 0
    %1858 = vmatprep.subr.bf16.mxu0 0
    %1859 = vmatpush2.bf16.msra.mxu0 0
    %1860 = vmatprep.subr.bf16.mxu0 0
    %1861 = vmatpush2.bf16.msra.mxu0 0
    %1862 = vmatprep.subr.bf16.mxu0 0
    %1863 = vmatpush2.bf16.msra.mxu0 0
    %1864 = vmatprep.mubr.bf16.mxu0 0
    %1865 = vmatmul.mubr.bf16.gmra.mxu0 %v1821
    %v1866 = vpop.f32.mrf.mxu0
    %v1867 = vadd.f32 0.0, %v1866
    %v1868 = vpop.f32.mrf.mxu0
    %v1869 = vadd.f32 0.0, %v1868
    %v1870 = vpop.f32.mrf.mxu0
    %v1871 = vadd.f32 0.0, %v1870
    %v1872 = vpop.f32.mrf.mxu0
    %v1873 = vadd.f32 0.0, %v1872
    %1874 = vmatprep.mubr.bf16.mxu0 0
    %1875 = vmatmul.mubr.bf16.gmra.mxu0 %v1824
    %v1876 = vpop.f32.mrf.mxu0
    %v1877 = vadd.f32 0.0, %v1876
    %v1878 = vpop.f32.mrf.mxu0
    %v1879 = vadd.f32 0.0, %v1878
    %v1880 = vpop.f32.mrf.mxu0
    %v1881 = vadd.f32 0.0, %v1880
    %v1882 = vpop.f32.mrf.mxu0
    %v1883 = vadd.f32 0.0, %v1882
    %1884 = vmatprep.mubr.bf16.mxu0 0
    %1885 = vmatmul.mubr.bf16.gmra.mxu0 %v1827
    %v1886 = vpop.f32.mrf.mxu0
    %v1887 = vadd.f32 0.0, %v1886
    %v1888 = vpop.f32.mrf.mxu0
    %v1889 = vadd.f32 0.0, %v1888
    %v1890 = vpop.f32.mrf.mxu0
    %v1891 = vadd.f32 0.0, %v1890
    %v1892 = vpop.f32.mrf.mxu0
    %v1893 = vadd.f32 0.0, %v1892
    %1894 = vmatprep.mubr.bf16.mxu0 0
    %1895 = vmatmul.mubr.bf16.gmra.mxu0 %v1830
    %v1896 = vpop.f32.mrf.mxu0
    %v1897 = vadd.f32 0.0, %v1896
    %v1898 = vpop.f32.mrf.mxu0
    %v1899 = vadd.f32 0.0, %v1898
    %v1900 = vpop.f32.mrf.mxu0
    %v1901 = vadd.f32 0.0, %v1900
    %v1902 = vpop.f32.mrf.mxu0
    %v1903 = vadd.f32 0.0, %v1902
    %1904 = vdwg.mxu0
    %v1905 = vadd.f32 %v1621, %v1867
    %v1906 = vadd.f32 %v1622, %v1869
    %v1907 = vadd.f32 %v1623, %v1871
    %v1908 = vadd.f32 %v1624, %v1873
    %v1909 = vadd.f32 %v1625, %v1877
    %v1910 = vadd.f32 %v1626, %v1879
    %v1911 = vadd.f32 %v1627, %v1881
    %v1912 = vadd.f32 %v1628, %v1883
    %v1913 = vadd.f32 %v1629, %v1887
    %v1914 = vadd.f32 %v1630, %v1889
    %v1915 = vadd.f32 %v1631, %v1891
    %v1916 = vadd.f32 %v1632, %v1893
    %v1917 = vadd.f32 %v1633, %v1897
    %v1918 = vadd.f32 %v1634, %v1899
    %v1919 = vadd.f32 %v1635, %v1901
    %v1920 = vadd.f32 %v1636, %v1903
    %v1921 = vadd.f32 %v1905, %v1907
    %v1922 = vadd.f32 %v1921, %v1909
    %v1923 = vadd.f32 %v1922, %v1911
    %v1924 = vadd.f32 %v1923, %v1913
    %v1925 = vadd.f32 %v1924, %v1915
    %v1926 = vadd.f32 %v1925, %v1917
    %v1927 = vadd.f32 %v1926, %v1919
    %v1928 = vrot.slane %v1927, 4
    %v1929 = vadd.f32 %v1927, %v1928
    %v1930 = vrot.slane %v1929, 2
    %v1931 = vadd.f32 %v1929, %v1930
    %v1932 = vrot.slane %v1931, 1
    %v1933 = vadd.f32 %v1931, %v1932
    %v1934 = vadd.f32 %v1906, %v1908
    %v1935 = vadd.f32 %v1934, %v1910
    %v1936 = vadd.f32 %v1935, %v1912
    %v1937 = vadd.f32 %v1936, %v1914
    %v1938 = vadd.f32 %v1937, %v1916
    %v1939 = vadd.f32 %v1938, %v1918
    %v1940 = vadd.f32 %v1939, %v1920
    %v1941 = vrot.slane %v1940, 4
    %v1942 = vadd.f32 %v1940, %v1941
    %v1943 = vrot.slane %v1942, 2
    %v1944 = vadd.f32 %v1942, %v1943
    %v1945 = vrot.slane %v1944, 1
    %v1946 = vadd.f32 %v1944, %v1945
    %v1947 = vmul.f32 %v1905, %v1905
    %v1948 = vmul.f32 %v1906, %v1906
    %v1949 = vmul.f32 %v1907, %v1907
    %v1950 = vmul.f32 %v1908, %v1908
    %v1951 = vmul.f32 %v1909, %v1909
    %v1952 = vmul.f32 %v1910, %v1910
    %v1953 = vmul.f32 %v1911, %v1911
    %v1954 = vmul.f32 %v1912, %v1912
    %v1955 = vmul.f32 %v1913, %v1913
    %v1956 = vmul.f32 %v1914, %v1914
    %v1957 = vmul.f32 %v1915, %v1915
    %v1958 = vmul.f32 %v1916, %v1916
    %v1959 = vmul.f32 %v1917, %v1917
    %v1960 = vmul.f32 %v1918, %v1918
    %v1961 = vmul.f32 %v1919, %v1919
    %v1962 = vmul.f32 %v1920, %v1920
    %v1963 = vadd.f32 %v1947, %v1949
    %v1964 = vadd.f32 %v1963, %v1951
    %v1965 = vadd.f32 %v1964, %v1953
    %v1966 = vadd.f32 %v1965, %v1955
    %v1967 = vadd.f32 %v1966, %v1957
    %v1968 = vadd.f32 %v1967, %v1959
    %v1969 = vadd.f32 %v1968, %v1961
    %v1970 = vrot.slane %v1969, 4
    %v1971 = vadd.f32 %v1969, %v1970
    %v1972 = vrot.slane %v1971, 2
    %v1973 = vadd.f32 %v1971, %v1972
    %v1974 = vrot.slane %v1973, 1
    %v1975 = vadd.f32 %v1973, %v1974
    %v1976 = vadd.f32 %v1948, %v1950
    %v1977 = vadd.f32 %v1976, %v1952
    %v1978 = vadd.f32 %v1977, %v1954
    %v1979 = vadd.f32 %v1978, %v1956
    %v1980 = vadd.f32 %v1979, %v1958
    %v1981 = vadd.f32 %v1980, %v1960
    %v1982 = vadd.f32 %v1981, %v1962
    %v1983 = vrot.slane %v1982, 4
    %v1984 = vadd.f32 %v1982, %v1983
    %v1985 = vrot.slane %v1984, 2
    %v1986 = vadd.f32 %v1984, %v1985
    %v1987 = vrot.slane %v1986, 1
    %v1988 = vadd.f32 %v1986, %v1987
    %v1989 = vld [vmem:[%s7] sm:$0xff]
    %v1990 = vld [vmem:[%s7 + $0x8] sm:$0xff]
    %v1991 = vld [vmem:[%s7 + $0x10] sm:$0xff]
    %v1992 = vld [vmem:[%s7 + $0x18] sm:$0xff]
    %v1993 = vld [vmem:[%s7 + $0x20] sm:$0xff]
    %v1994 = vld [vmem:[%s7 + $0x28] sm:$0xff]
    %v1995 = vld [vmem:[%s7 + $0x30] sm:$0xff]
    %v1996 = vld [vmem:[%s7 + $0x38] sm:$0xff]
    %v1997 = vld [vmem:[%s7 + $0x40] sm:$0xff]
    %v1998 = vld [vmem:[%s7 + $0x48] sm:$0xff]
    %v1999 = vld [vmem:[%s7 + $0x50] sm:$0xff]
    %v2000 = vld [vmem:[%s7 + $0x58] sm:$0xff]
    %v2001 = vld [vmem:[%s7 + $0x60] sm:$0xff]
    %v2002 = vld [vmem:[%s7 + $0x68] sm:$0xff]
    %v2003 = vld [vmem:[%s7 + $0x70] sm:$0xff]
    %v2004 = vld [vmem:[%s7 + $0x78] sm:$0xff]
    %v2005 = vld [vmem:[%s7 + $0x80] sm:$0xff]
    %v2006 = vld [vmem:[%s7 + $0x88] sm:$0xff]
    %v2007 = vld [vmem:[%s7 + $0x90] sm:$0xff]
    %v2008 = vld [vmem:[%s7 + $0x98] sm:$0xff]
    %v2009 = vld [vmem:[%s7 + $0xa0] sm:$0xff]
    %v2010 = vld [vmem:[%s7 + $0xa8] sm:$0xff]
    %v2011 = vld [vmem:[%s7 + $0xb0] sm:$0xff]
    %v2012 = vld [vmem:[%s7 + $0xb8] sm:$0xff]
    %v2013 = vld [vmem:[%s7 + $0xc0] sm:$0xff]
    %v2014 = vld [vmem:[%s7 + $0xc8] sm:$0xff]
    %v2015 = vld [vmem:[%s7 + $0xd0] sm:$0xff]
    %v2016 = vld [vmem:[%s7 + $0xd8] sm:$0xff]
    %v2017 = vld [vmem:[%s7 + $0xe0] sm:$0xff]
    %v2018 = vld [vmem:[%s7 + $0xe8] sm:$0xff]
    %v2019 = vld [vmem:[%s7 + $0xf0] sm:$0xff]
    %v2020 = vld [vmem:[%s7 + $0xf8] sm:$0xff]
    %2021 = vmatprep.subr.mxu0 0.0
    %2022 = vmatpush1.msra.mxu0 %v2004
    %2023 = vmatprep.subr.mxu0 0.0
    %2024 = vmatpush1.msra.mxu0 %v2003
    %2025 = vmatprep.subr.mxu0 0.0
    %2026 = vmatpush1.msra.mxu0 %v2002
    %2027 = vmatprep.subr.mxu0 0.0
    %2028 = vmatpush1.msra.mxu0 %v2001
    %2029 = vmatprep.subr.mxu0 0.0
    %2030 = vmatpush1.msra.mxu0 %v2000
    %2031 = vmatprep.subr.mxu0 0.0
    %2032 = vmatpush1.msra.mxu0 %v1999
    %2033 = vmatprep.subr.mxu0 0.0
    %2034 = vmatpush1.msra.mxu0 %v1998
    %2035 = vmatprep.subr.mxu0 0.0
    %2036 = vmatpush1.msra.mxu0 %v1997
    %2037 = vmatprep.subr.mxu0 0.0
    %2038 = vmatpush1.msra.mxu0 %v1996
    %2039 = vmatprep.subr.mxu0 0.0
    %2040 = vmatpush1.msra.mxu0 %v1995
    %2041 = vmatprep.subr.mxu0 0.0
    %2042 = vmatpush1.msra.mxu0 %v1994
    %2043 = vmatprep.subr.mxu0 0.0
    %2044 = vmatpush1.msra.mxu0 %v1993
    %2045 = vmatprep.subr.mxu0 0.0
    %2046 = vmatpush1.msra.mxu0 %v1992
    %2047 = vmatprep.subr.mxu0 0.0
    %2048 = vmatpush1.msra.mxu0 %v1991
    %2049 = vmatprep.subr.mxu0 0.0
    %2050 = vmatpush1.msra.mxu0 %v1990
    %2051 = vmatprep.subr.mxu0 0.0
    %2052 = vmatpush1.msra.mxu0 %v1989
    %2053 = vmatprep.subr.mxu0 0.0
    %2054 = vmatpush2.msra.mxu0 %v2020
    %2055 = vmatprep.subr.mxu0 0.0
    %2056 = vmatpush2.msra.mxu0 %v2019
    %2057 = vmatprep.subr.mxu0 0.0
    %2058 = vmatpush2.msra.mxu0 %v2018
    %2059 = vmatprep.subr.mxu0 0.0
    %2060 = vmatpush2.msra.mxu0 %v2017
    %2061 = vmatprep.subr.mxu0 0.0
    %2062 = vmatpush2.msra.mxu0 %v2016
    %2063 = vmatprep.subr.mxu0 0.0
    %2064 = vmatpush2.msra.mxu0 %v2015
    %2065 = vmatprep.subr.mxu0 0.0
    %2066 = vmatpush2.msra.mxu0 %v2014
    %2067 = vmatprep.subr.mxu0 0.0
    %2068 = vmatpush2.msra.mxu0 %v2013
    %2069 = vmatprep.subr.mxu0 0.0
    %2070 = vmatpush2.msra.mxu0 %v2012
    %2071 = vmatprep.subr.mxu0 0.0
    %2072 = vmatpush2.msra.mxu0 %v2011
    %2073 = vmatprep.subr.mxu0 0.0
    %2074 = vmatpush2.msra.mxu0 %v2010
    %2075 = vmatprep.subr.mxu0 0.0
    %2076 = vmatpush2.msra.mxu0 %v2009
    %2077 = vmatprep.subr.mxu0 0.0
    %2078 = vmatpush2.msra.mxu0 %v2008
    %2079 = vmatprep.subr.mxu0 0.0
    %2080 = vmatpush2.msra.mxu0 %v2007
    %2081 = vmatprep.subr.mxu0 0.0
    %2082 = vmatpush2.msra.mxu0 %v2006
    %2083 = vmatprep.subr.mxu0 0.0
    %2084 = vmatpush2.msra.mxu0 %v2005
    %2085 = vmatprep.mubr.f32.mxu0 %v1946
    %2086 = vmatmul.mubr.f32.gmra.mxu0 %v1933
    %v2087 = vpop.f32.mrf.mxu0
    %v2088 = vadd.f32 0.0, %v2087
    %v2089 = vpop.f32.mrf.mxu0
    %2090 = vdwg.mxu0
    %2091 = vmatprep.subr.mxu0 0.0
    %2092 = vmatpush1.msra.mxu0 %v2004
    %2093 = vmatprep.subr.mxu0 0.0
    %2094 = vmatpush1.msra.mxu0 %v2003
    %2095 = vmatprep.subr.mxu0 0.0
    %2096 = vmatpush1.msra.mxu0 %v2002
    %2097 = vmatprep.subr.mxu0 0.0
    %2098 = vmatpush1.msra.mxu0 %v2001
    %2099 = vmatprep.subr.mxu0 0.0
    %2100 = vmatpush1.msra.mxu0 %v2000
    %2101 = vmatprep.subr.mxu0 0.0
    %2102 = vmatpush1.msra.mxu0 %v1999
    %2103 = vmatprep.subr.mxu0 0.0
    %2104 = vmatpush1.msra.mxu0 %v1998
    %2105 = vmatprep.subr.mxu0 0.0
    %2106 = vmatpush1.msra.mxu0 %v1997
    %2107 = vmatprep.subr.mxu0 0.0
    %2108 = vmatpush1.msra.mxu0 %v1996
    %2109 = vmatprep.subr.mxu0 0.0
    %2110 = vmatpush1.msra.mxu0 %v1995
    %2111 = vmatprep.subr.mxu0 0.0
    %2112 = vmatpush1.msra.mxu0 %v1994
    %2113 = vmatprep.subr.mxu0 0.0
    %2114 = vmatpush1.msra.mxu0 %v1993
    %2115 = vmatprep.subr.mxu0 0.0
    %2116 = vmatpush1.msra.mxu0 %v1992
    %2117 = vmatprep.subr.mxu0 0.0
    %2118 = vmatpush1.msra.mxu0 %v1991
    %2119 = vmatprep.subr.mxu0 0.0
    %2120 = vmatpush1.msra.mxu0 %v1990
    %2121 = vmatprep.subr.mxu0 0.0
    %2122 = vmatpush1.msra.mxu0 %v1989
    %2123 = vmatprep.subr.mxu0 0.0
    %2124 = vmatpush2.msra.mxu0 %v2020
    %2125 = vmatprep.subr.mxu0 0.0
    %2126 = vmatpush2.msra.mxu0 %v2019
    %2127 = vmatprep.subr.mxu0 0.0
    %2128 = vmatpush2.msra.mxu0 %v2018
    %2129 = vmatprep.subr.mxu0 0.0
    %2130 = vmatpush2.msra.mxu0 %v2017
    %2131 = vmatprep.subr.mxu0 0.0
    %2132 = vmatpush2.msra.mxu0 %v2016
    %2133 = vmatprep.subr.mxu0 0.0
    %2134 = vmatpush2.msra.mxu0 %v2015
    %2135 = vmatprep.subr.mxu0 0.0
    %2136 = vmatpush2.msra.mxu0 %v2014
    %2137 = vmatprep.subr.mxu0 0.0
    %2138 = vmatpush2.msra.mxu0 %v2013
    %2139 = vmatprep.subr.mxu0 0.0
    %2140 = vmatpush2.msra.mxu0 %v2012
    %2141 = vmatprep.subr.mxu0 0.0
    %2142 = vmatpush2.msra.mxu0 %v2011
    %2143 = vmatprep.subr.mxu0 0.0
    %2144 = vmatpush2.msra.mxu0 %v2010
    %2145 = vmatprep.subr.mxu0 0.0
    %2146 = vmatpush2.msra.mxu0 %v2009
    %2147 = vmatprep.subr.mxu0 0.0
    %2148 = vmatpush2.msra.mxu0 %v2008
    %2149 = vmatprep.subr.mxu0 0.0
    %2150 = vmatpush2.msra.mxu0 %v2007
    %2151 = vmatprep.subr.mxu0 0.0
    %2152 = vmatpush2.msra.mxu0 %v2006
    %2153 = vmatprep.subr.mxu0 0.0
    %2154 = vmatpush2.msra.mxu0 %v2005
    %2155 = vmatprep.mubr.f32.mxu0 %v1988
    %2156 = vmatmul.mubr.f32.gmra.mxu0 %v1975
    %v2157 = vpop.f32.mrf.mxu0
    %v2158 = vadd.f32 0.0, %v2157
    %v2159 = vpop.f32.mrf.mxu0
    %2160 = vdwg.mxu0
    %v2161 = vmul.f32 %v2088, 0.00048828125
    %v2162 = vmul.f32 %v2158, 0.00048828125
    %v2163 = vmul.f32 %v2161, %v2161
    %v2164 = vsub.f32 %v2162, %v2163
    %v2165 = vmax.f32 %v2164, 0.0
    %v2166 = vadd.f32 %v2165, 1e-05
    %v2167 = vrsqrt.pop %v2166
    %v2168 = vld [vmem:[#allocation2] sm:$0xff]
    %v2169 = vld [vmem:[#allocation2 + $0x8] sm:$0xff]
    %vm2170 = vcmask 64512
    %v2172 = vsel %vm2170, %v2161, 0
    %2174 = vmatprep.subr.mxu0 0.0
    %2175 = vmatpush1.msra.mxu0 0.0
    %2176 = vmatprep.subr.mxu0 0.0
    %2177 = vmatpush1.msra.mxu0 0.0
    %2178 = vmatprep.subr.mxu0 0.0
    %2179 = vmatpush1.msra.mxu0 0.0
    %2180 = vmatprep.subr.mxu0 0.0
    %2181 = vmatpush1.msra.mxu0 0.0
    %2182 = vmatprep.subr.mxu0 0.0
    %2183 = vmatpush1.msra.mxu0 0.0
    %2184 = vmatprep.subr.mxu0 0.0
    %2185 = vmatpush1.msra.mxu0 0.0
    %2186 = vmatprep.subr.mxu0 0.0
    %2187 = vmatpush1.msra.mxu0 0.0
    %2188 = vmatprep.subr.mxu0 0.0
    %2189 = vmatpush1.msra.mxu0 0.0
    %2190 = vmatprep.subr.mxu0 0.0
    %2191 = vmatpush1.msra.mxu0 0.0
    %2192 = vmatprep.subr.mxu0 0.0
    %2193 = vmatpush1.msra.mxu0 0.0
    %2194 = vmatprep.subr.mxu0 0.0
    %2195 = vmatpush1.msra.mxu0 0.0
    %2196 = vmatprep.subr.mxu0 0.0
    %2197 = vmatpush1.msra.mxu0 0.0
    %2198 = vmatprep.subr.mxu0 0.0
    %2199 = vmatpush1.msra.mxu0 0.0
    %2200 = vmatprep.subr.mxu0 0.0
    %2201 = vmatpush1.msra.mxu0 0.0
    %2202 = vmatprep.subr.mxu0 0.0
    %2203 = vmatpush1.msra.mxu0 0.0
    %2204 = vmatprep.subr.mxu0 %v2169
    %2205 = vmatpush1.msra.mxu0 %v2168
    %2206 = vmatprep.subr.mxu0 0.0
    %2207 = vmatpush2.msra.mxu0 0.0
    %2208 = vmatprep.subr.mxu0 0.0
    %2209 = vmatpush2.msra.mxu0 0.0
    %2210 = vmatprep.subr.mxu0 0.0
    %2211 = vmatpush2.msra.mxu0 0.0
    %2212 = vmatprep.subr.mxu0 0.0
    %2213 = vmatpush2.msra.mxu0 0.0
    %2214 = vmatprep.subr.mxu0 0.0
    %2215 = vmatpush2.msra.mxu0 0.0
    %2216 = vmatprep.subr.mxu0 0.0
    %2217 = vmatpush2.msra.mxu0 0.0
    %2218 = vmatprep.subr.mxu0 0.0
    %2219 = vmatpush2.msra.mxu0 0.0
    %2220 = vmatprep.subr.mxu0 0.0
    %2221 = vmatpush2.msra.mxu0 0.0
    %2222 = vmatprep.subr.mxu0 0.0
    %2223 = vmatpush2.msra.mxu0 0.0
    %2224 = vmatprep.subr.mxu0 0.0
    %2225 = vmatpush2.msra.mxu0 0.0
    %2226 = vmatprep.subr.mxu0 0.0
    %2227 = vmatpush2.msra.mxu0 0.0
    %2228 = vmatprep.subr.mxu0 0.0
    %2229 = vmatpush2.msra.mxu0 0.0
    %2230 = vmatprep.subr.mxu0 0.0
    %2231 = vmatpush2.msra.mxu0 0.0
    %2232 = vmatprep.subr.mxu0 0.0
    %2233 = vmatpush2.msra.mxu0 0.0
    %2234 = vmatprep.subr.mxu0 0.0
    %2235 = vmatpush2.msra.mxu0 0.0
    %2236 = vmatprep.subr.mxu0 0.0
    %2237 = vmatpush2.msra.mxu0 0.0
    %2238 = vmatprep.mubr.f32.mxu0 0.0
    %2239 = vmatmul.mubr.f32.gmra.mxu0 %v2172
    %v2240 = vpop.f32.mrf.mxu0
    %v2241 = vadd.f32 0.0, %v2240
    %v2242 = vpop.f32.mrf.mxu0
    %v2243 = vadd.f32 0.0, %v2242
    %2244 = vdwg.mxu0
    %v2246 = vsel %vm2170, %v2167, 0
    %2248 = vmatprep.subr.mxu0 0.0
    %2249 = vmatpush1.msra.mxu0 0.0
    %2250 = vmatprep.subr.mxu0 0.0
    %2251 = vmatpush1.msra.mxu0 0.0
    %2252 = vmatprep.subr.mxu0 0.0
    %2253 = vmatpush1.msra.mxu0 0.0
    %2254 = vmatprep.subr.mxu0 0.0
    %2255 = vmatpush1.msra.mxu0 0.0
    %2256 = vmatprep.subr.mxu0 0.0
    %2257 = vmatpush1.msra.mxu0 0.0
    %2258 = vmatprep.subr.mxu0 0.0
    %2259 = vmatpush1.msra.mxu0 0.0
    %2260 = vmatprep.subr.mxu0 0.0
    %2261 = vmatpush1.msra.mxu0 0.0
    %2262 = vmatprep.subr.mxu0 0.0
    %2263 = vmatpush1.msra.mxu0 0.0
    %2264 = vmatprep.subr.mxu0 0.0
    %2265 = vmatpush1.msra.mxu0 0.0
    %2266 = vmatprep.subr.mxu0 0.0
    %2267 = vmatpush1.msra.mxu0 0.0
    %2268 = vmatprep.subr.mxu0 0.0
    %2269 = vmatpush1.msra.mxu0 0.0
    %2270 = vmatprep.subr.mxu0 0.0
    %2271 = vmatpush1.msra.mxu0 0.0
    %2272 = vmatprep.subr.mxu0 0.0
    %2273 = vmatpush1.msra.mxu0 0.0
    %2274 = vmatprep.subr.mxu0 0.0
    %2275 = vmatpush1.msra.mxu0 0.0
    %2276 = vmatprep.subr.mxu0 0.0
    %2277 = vmatpush1.msra.mxu0 0.0
    %2278 = vmatprep.subr.mxu0 %v2169
    %2279 = vmatpush1.msra.mxu0 %v2168
    %2280 = vmatprep.subr.mxu0 0.0
    %2281 = vmatpush2.msra.mxu0 0.0
    %2282 = vmatprep.subr.mxu0 0.0
    %2283 = vmatpush2.msra.mxu0 0.0
    %2284 = vmatprep.subr.mxu0 0.0
    %2285 = vmatpush2.msra.mxu0 0.0
    %2286 = vmatprep.subr.mxu0 0.0
    %2287 = vmatpush2.msra.mxu0 0.0
    %2288 = vmatprep.subr.mxu0 0.0
    %2289 = vmatpush2.msra.mxu0 0.0
    %2290 = vmatprep.subr.mxu0 0.0
    %2291 = vmatpush2.msra.mxu0 0.0
    %2292 = vmatprep.subr.mxu0 0.0
    %2293 = vmatpush2.msra.mxu0 0.0
    %2294 = vmatprep.subr.mxu0 0.0
    %2295 = vmatpush2.msra.mxu0 0.0
    %2296 = vmatprep.subr.mxu0 0.0
    %2297 = vmatpush2.msra.mxu0 0.0
    %2298 = vmatprep.subr.mxu0 0.0
    %2299 = vmatpush2.msra.mxu0 0.0
    %2300 = vmatprep.subr.mxu0 0.0
    %2301 = vmatpush2.msra.mxu0 0.0
    %2302 = vmatprep.subr.mxu0 0.0
    %2303 = vmatpush2.msra.mxu0 0.0
    %2304 = vmatprep.subr.mxu0 0.0
    %2305 = vmatpush2.msra.mxu0 0.0
    %2306 = vmatprep.subr.mxu0 0.0
    %2307 = vmatpush2.msra.mxu0 0.0
    %2308 = vmatprep.subr.mxu0 0.0
    %2309 = vmatpush2.msra.mxu0 0.0
    %2310 = vmatprep.subr.mxu0 0.0
    %2311 = vmatpush2.msra.mxu0 0.0
    %2312 = vmatprep.mubr.f32.mxu0 0.0
    %2313 = vmatmul.mubr.f32.gmra.mxu0 %v2246
    %v2314 = vpop.f32.mrf.mxu0
    %v2315 = vadd.f32 0.0, %v2314
    %v2316 = vpop.f32.mrf.mxu0
    %v2317 = vadd.f32 0.0, %v2316
    %2318 = vdwg.mxu0
    %v2319 = vld [vmem:[#allocation5] sm:$0x3]
    %v2322 = vcombine.low %v2315, %v2317
    %v2324 = vunpack.c.l.s4 1966171168
    %v2325 = vunpack.c.0.s8 %v2324
    %v2326 = vlaneseq
    %v2327 = vshrl.u32 %v2326, 7
    %v2328 = vsub.s32 %v2325, %v2327
    %v2329 = vrot.slane %v2322, %v2328
    %v2331 = vunpack.c.l.s4 1966171168
    %v2332 = vunpack.c.0.s8 %v2331
    %v2333 = vlaneseq
    %v2334 = vshrl.u32 %v2333, 7
    %v2335 = vsub.s32 %v2332, %v2334
    %v2336 = vrot.slane %v2329, %v2335
    %v2338 = vmul.f32 %v2319, %v2336
    %v2339 = vld [vmem:[#allocation7] sm:$0x3]
    %v2341 = vlaneseq
    %v2342 = vshrl.u32 %v2341, 7
    %v2343 = vsub.s32 0, %v2342
    %v2344 = vrot.slane %v2338, %v2343
    %v2345 = vlaneseq
    %v2346 = vshrl.u32 %v2345, 7
    %v2347 = vsub.s32 1, %v2346
    %v2348 = vrot.slane %v2338, %v2347
    %v2351 = vmul.f32 %v2241, %v2344
    %v2352 = vmul.f32 %v2243, %v2348
    %v2355 = vcombine.low %v2351, %v2352
    %v2357 = vunpack.c.l.s4 1966171168
    %v2358 = vunpack.c.0.s8 %v2357
    %v2359 = vlaneseq
    %v2360 = vshrl.u32 %v2359, 7
    %v2361 = vsub.s32 %v2358, %v2360
    %v2362 = vrot.slane %v2355, %v2361
    %v2364 = vunpack.c.l.s4 1966171168
    %v2365 = vunpack.c.0.s8 %v2364
    %v2366 = vlaneseq
    %v2367 = vshrl.u32 %v2366, 7
    %v2368 = vsub.s32 %v2365, %v2367
    %v2369 = vrot.slane %v2362, %v2368
    %v2371 = vsub.f32 %v2339, %v2369
    %v2372 = vmul.f32 %v1905, %v2344
    %v2373 = vmul.f32 %v1906, %v2348
    %v2374 = vmul.f32 %v1907, %v2344
    %v2375 = vmul.f32 %v1908, %v2348
    %v2376 = vmul.f32 %v1909, %v2344
    %v2377 = vmul.f32 %v1910, %v2348
    %v2378 = vmul.f32 %v1911, %v2344
    %v2379 = vmul.f32 %v1912, %v2348
    %v2380 = vmul.f32 %v1913, %v2344
    %v2381 = vmul.f32 %v1914, %v2348
    %v2382 = vmul.f32 %v1915, %v2344
    %v2383 = vmul.f32 %v1916, %v2348
    %v2384 = vmul.f32 %v1917, %v2344
    %v2385 = vmul.f32 %v1918, %v2348
    %v2386 = vmul.f32 %v1919, %v2344
    %v2387 = vmul.f32 %v1920, %v2348
    %v2389 = vlaneseq
    %v2390 = vshrl.u32 %v2389, 7
    %v2391 = vsub.s32 0, %v2390
    %v2392 = vrot.slane %v2371, %v2391
    %v2393 = vlaneseq
    %v2394 = vshrl.u32 %v2393, 7
    %v2395 = vsub.s32 1, %v2394
    %v2396 = vrot.slane %v2371, %v2395
    %v2399 = vadd.f32 %v2372, %v2392
    %v2400 = vadd.f32 %v2373, %v2396
    %v2401 = vadd.f32 %v2374, %v2392
    %v2402 = vadd.f32 %v2375, %v2396
    %v2403 = vadd.f32 %v2376, %v2392
    %v2404 = vadd.f32 %v2377, %v2396
    %v2405 = vadd.f32 %v2378, %v2392
    %v2406 = vadd.f32 %v2379, %v2396
    %v2407 = vadd.f32 %v2380, %v2392
    %v2408 = vadd.f32 %v2381, %v2396
    %v2409 = vadd.f32 %v2382, %v2392
    %v2410 = vadd.f32 %v2383, %v2396
    %v2411 = vadd.f32 %v2384, %v2392
    %v2412 = vadd.f32 %v2385, %v2396
    %v2413 = vadd.f32 %v2386, %v2392
    %v2414 = vadd.f32 %v2387, %v2396
    %v2415 = vmax.f32 %v2399, 0.0
    %v2416 = vmax.f32 %v2400, 0.0
    %v2417 = vmax.f32 %v2401, 0.0
    %v2418 = vmax.f32 %v2402, 0.0
    %v2419 = vmax.f32 %v2403, 0.0
    %v2420 = vmax.f32 %v2404, 0.0
    %v2421 = vmax.f32 %v2405, 0.0
    %v2422 = vmax.f32 %v2406, 0.0
    %v2423 = vmax.f32 %v2407, 0.0
    %v2424 = vmax.f32 %v2408, 0.0
    %v2425 = vmax.f32 %v2409, 0.0
    %v2426 = vmax.f32 %v2410, 0.0
    %v2427 = vmax.f32 %v2411, 0.0
    %v2428 = vmax.f32 %v2412, 0.0
    %v2429 = vmax.f32 %v2413, 0.0
    %v2430 = vmax.f32 %v2414, 0.0
    %v2431 = vpack.c.bf16 %v2417, %v2415
    %v2432 = vpack.c.bf16 %v2418, %v2416
    %v2433 = vpack.c.bf16 %v2421, %v2419
    %v2434 = vpack.c.bf16 %v2422, %v2420
    %v2435 = vpack.c.bf16 %v2425, %v2423
    %v2436 = vpack.c.bf16 %v2426, %v2424
    %v2437 = vpack.c.bf16 %v2429, %v2427
    %v2438 = vpack.c.bf16 %v2430, %v2428
    %v2439 = vld [vmem:[%s15] sm:$0xf]
    %v2440 = vld [vmem:[%s15 + $0x4] sm:$0xf]
    %v2441 = vld [vmem:[%s15 + $0x8] sm:$0xf]
    %v2442 = vld [vmem:[%s15 + $0xc] sm:$0xf]
    %v2443 = vld [vmem:[%s15 + $0x10] sm:$0xf]
    %v2444 = vld [vmem:[%s15 + $0x14] sm:$0xf]
    %v2445 = vld [vmem:[%s15 + $0x18] sm:$0xf]
    %v2446 = vld [vmem:[%s15 + $0x1c] sm:$0xf]
    %v2447 = vld [vmem:[%s15 + $0x20] sm:$0xf]
    %v2448 = vld [vmem:[%s15 + $0x24] sm:$0xf]
    %v2449 = vld [vmem:[%s15 + $0x28] sm:$0xf]
    %v2450 = vld [vmem:[%s15 + $0x2c] sm:$0xf]
    %v2451 = vld [vmem:[%s15 + $0x30] sm:$0xf]
    %v2452 = vld [vmem:[%s15 + $0x34] sm:$0xf]
    %v2453 = vld [vmem:[%s15 + $0x38] sm:$0xf]
    %v2454 = vld [vmem:[%s15 + $0x3c] sm:$0xf]
    %v2455 = vld [vmem:[%s15 + $0x40] sm:$0xf]
    %v2456 = vld [vmem:[%s15 + $0x44] sm:$0xf]
    %v2457 = vld [vmem:[%s15 + $0x48] sm:$0xf]
    %v2458 = vld [vmem:[%s15 + $0x4c] sm:$0xf]
    %v2459 = vld [vmem:[%s15 + $0x50] sm:$0xf]
    %v2460 = vld [vmem:[%s15 + $0x54] sm:$0xf]
    %v2461 = vld [vmem:[%s15 + $0x58] sm:$0xf]
    %v2462 = vld [vmem:[%s15 + $0x5c] sm:$0xf]
    %v2463 = vld [vmem:[%s15 + $0x60] sm:$0xf]
    %v2464 = vld [vmem:[%s15 + $0x64] sm:$0xf]
    %v2465 = vld [vmem:[%s15 + $0x68] sm:$0xf]
    %v2466 = vld [vmem:[%s15 + $0x6c] sm:$0xf]
    %v2467 = vld [vmem:[%s15 + $0x70] sm:$0xf]
    %v2468 = vld [vmem:[%s15 + $0x74] sm:$0xf]
    %v2469 = vld [vmem:[%s15 + $0x78] sm:$0xf]
    %v2470 = vld [vmem:[%s15 + $0x7c] sm:$0xf]
    %v2503 = vunpack.c.l.b16 %v2439
    %v2504 = vunpack.c.l.b16 %v2440
    %v2505 = vunpack.c.l.b16 %v2441
    %v2506 = vunpack.c.l.b16 %v2442
    %v2507 = vunpack.c.l.b16 %v2443
    %v2508 = vunpack.c.l.b16 %v2444
    %v2509 = vunpack.c.l.b16 %v2445
    %v2510 = vunpack.c.l.b16 %v2446
    %v2511 = vunpack.c.l.b16 %v2447
    %v2512 = vunpack.c.l.b16 %v2448
    %v2513 = vunpack.c.l.b16 %v2449
    %v2514 = vunpack.c.l.b16 %v2450
    %v2515 = vunpack.c.l.b16 %v2451
    %v2516 = vunpack.c.l.b16 %v2452
    %v2517 = vunpack.c.l.b16 %v2453
    %v2518 = vunpack.c.l.b16 %v2454
    %v2519 = vunpack.c.l.b16 %v2455
    %v2520 = vunpack.c.l.b16 %v2456
    %v2521 = vunpack.c.l.b16 %v2457
    %v2522 = vunpack.c.l.b16 %v2458
    %v2523 = vunpack.c.l.b16 %v2459
    %v2524 = vunpack.c.l.b16 %v2460
    %v2525 = vunpack.c.l.b16 %v2461
    %v2526 = vunpack.c.l.b16 %v2462
    %v2527 = vunpack.c.l.b16 %v2463
    %v2528 = vunpack.c.l.b16 %v2464
    %v2529 = vunpack.c.l.b16 %v2465
    %v2530 = vunpack.c.l.b16 %v2466
    %v2531 = vunpack.c.l.b16 %v2467
    %v2532 = vunpack.c.l.b16 %v2468
    %v2533 = vunpack.c.l.b16 %v2469
    %v2534 = vunpack.c.l.b16 %v2470
    %v2535 = vpack.c.b16 %v2504, %v2503
    %v2536 = vpack.c.b16 %v2506, %v2505
    %v2537 = vpack.c.b16 %v2508, %v2507
    %v2538 = vpack.c.b16 %v2510, %v2509
    %v2539 = vpack.c.b16 %v2512, %v2511
    %v2540 = vpack.c.b16 %v2514, %v2513
    %v2541 = vpack.c.b16 %v2516, %v2515
    %v2542 = vpack.c.b16 %v2518, %v2517
    %v2543 = vpack.c.b16 %v2520, %v2519
    %v2544 = vpack.c.b16 %v2522, %v2521
    %v2545 = vpack.c.b16 %v2524, %v2523
    %v2546 = vpack.c.b16 %v2526, %v2525
    %v2547 = vpack.c.b16 %v2528, %v2527
    %v2548 = vpack.c.b16 %v2530, %v2529
    %v2549 = vpack.c.b16 %v2532, %v2531
    %v2550 = vpack.c.b16 %v2534, %v2533
    %2567 = vmatprep.subr.bf16.mxu0 0
    %2568 = vmatpush1.bf16.msra.mxu0 %v2542
    %2569 = vmatprep.subr.bf16.mxu0 0
    %2570 = vmatpush1.bf16.msra.mxu0 %v2541
    %2571 = vmatprep.subr.bf16.mxu0 0
    %2572 = vmatpush1.bf16.msra.mxu0 %v2540
    %2573 = vmatprep.subr.bf16.mxu0 0
    %2574 = vmatpush1.bf16.msra.mxu0 %v2539
    %2575 = vmatprep.subr.bf16.mxu0 0
    %2576 = vmatpush1.bf16.msra.mxu0 %v2538
    %2577 = vmatprep.subr.bf16.mxu0 0
    %2578 = vmatpush1.bf16.msra.mxu0 %v2537
    %2579 = vmatprep.subr.bf16.mxu0 0
    %2580 = vmatpush1.bf16.msra.mxu0 %v2536
    %2581 = vmatprep.subr.bf16.mxu0 0
    %2582 = vmatpush1.bf16.msra.mxu0 %v2535
    %2583 = vmatprep.subr.bf16.mxu0 0
    %2584 = vmatpush2.bf16.msra.mxu0 %v2550
    %2585 = vmatprep.subr.bf16.mxu0 0
    %2586 = vmatpush2.bf16.msra.mxu0 %v2549
    %2587 = vmatprep.subr.bf16.mxu0 0
    %2588 = vmatpush2.bf16.msra.mxu0 %v2548
    %2589 = vmatprep.subr.bf16.mxu0 0
    %2590 = vmatpush2.bf16.msra.mxu0 %v2547
    %2591 = vmatprep.subr.bf16.mxu0 0
    %2592 = vmatpush2.bf16.msra.mxu0 %v2546
    %2593 = vmatprep.subr.bf16.mxu0 0
    %2594 = vmatpush2.bf16.msra.mxu0 %v2545
    %2595 = vmatprep.subr.bf16.mxu0 0
    %2596 = vmatpush2.bf16.msra.mxu0 %v2544
    %2597 = vmatprep.subr.bf16.mxu0 0
    %2598 = vmatpush2.bf16.msra.mxu0 %v2543
    %2599 = vmatprep.mubr.bf16.mxu0 %v2432
    %2600 = vmatmul.mubr.bf16.gmra.mxu0 %v2431
    %v2601 = vpop.f32.mrf.mxu0
    %v2602 = vadd.f32 0.0, %v2601
    %v2603 = vpop.f32.mrf.mxu0
    %v2604 = vpop.f32.mrf.mxu0
    %v2605 = vadd.f32 0.0, %v2604
    %v2606 = vpop.f32.mrf.mxu0
    %2607 = vmatprep.mubr.bf16.mxu0 %v2434
    %2608 = vmatmul.mubr.bf16.gmra.mxu0 %v2433
    %v2609 = vpop.f32.mrf.mxu0
    %v2610 = vadd.f32 0.0, %v2609
    %v2611 = vpop.f32.mrf.mxu0
    %v2612 = vpop.f32.mrf.mxu0
    %v2613 = vadd.f32 0.0, %v2612
    %v2614 = vpop.f32.mrf.mxu0
    %2615 = vmatprep.mubr.bf16.mxu0 %v2436
    %2616 = vmatmul.mubr.bf16.gmra.mxu0 %v2435
    %v2617 = vpop.f32.mrf.mxu0
    %v2618 = vadd.f32 0.0, %v2617
    %v2619 = vpop.f32.mrf.mxu0
    %v2620 = vpop.f32.mrf.mxu0
    %v2621 = vadd.f32 0.0, %v2620
    %v2622 = vpop.f32.mrf.mxu0
    %2623 = vmatprep.mubr.bf16.mxu0 %v2438
    %2624 = vmatmul.mubr.bf16.gmra.mxu0 %v2437
    %v2625 = vpop.f32.mrf.mxu0
    %v2626 = vadd.f32 0.0, %v2625
    %v2627 = vpop.f32.mrf.mxu0
    %v2628 = vpop.f32.mrf.mxu0
    %v2629 = vadd.f32 0.0, %v2628
    %v2630 = vpop.f32.mrf.mxu0
    %2631 = vdwg.mxu0
    %v2632 = vld [vmem:[#allocation8] sm:$0xf]
    %v2633 = vld [vmem:[#allocation8 + $0x4] sm:$0xf]
    %v2634 = vld [vmem:[#allocation8 + $0x8] sm:$0xf]
    %v2635 = vld [vmem:[#allocation8 + $0xc] sm:$0xf]
    %v2636 = vld [vmem:[#allocation8 + $0x10] sm:$0xf]
    %v2637 = vld [vmem:[#allocation8 + $0x14] sm:$0xf]
    %v2638 = vld [vmem:[#allocation8 + $0x18] sm:$0xf]
    %v2639 = vld [vmem:[#allocation8 + $0x1c] sm:$0xf]
    %v2640 = vld [vmem:[#allocation8 + $0x20] sm:$0xf]
    %v2641 = vld [vmem:[#allocation8 + $0x24] sm:$0xf]
    %v2642 = vld [vmem:[#allocation8 + $0x28] sm:$0xf]
    %v2643 = vld [vmem:[#allocation8 + $0x2c] sm:$0xf]
    %v2644 = vld [vmem:[#allocation8 + $0x30] sm:$0xf]
    %v2645 = vld [vmem:[#allocation8 + $0x34] sm:$0xf]
    %v2646 = vld [vmem:[#allocation8 + $0x38] sm:$0xf]
    %v2647 = vld [vmem:[#allocation8 + $0x3c] sm:$0xf]
    %v2648 = vld [vmem:[#allocation8 + $0x40] sm:$0xf]
    %v2649 = vld [vmem:[#allocation8 + $0x44] sm:$0xf]
    %v2650 = vld [vmem:[#allocation8 + $0x48] sm:$0xf]
    %v2651 = vld [vmem:[#allocation8 + $0x4c] sm:$0xf]
    %v2652 = vld [vmem:[#allocation8 + $0x50] sm:$0xf]
    %v2653 = vld [vmem:[#allocation8 + $0x54] sm:$0xf]
    %v2654 = vld [vmem:[#allocation8 + $0x58] sm:$0xf]
    %v2655 = vld [vmem:[#allocation8 + $0x5c] sm:$0xf]
    %v2656 = vld [vmem:[#allocation8 + $0x60] sm:$0xf]
    %v2657 = vld [vmem:[#allocation8 + $0x64] sm:$0xf]
    %v2658 = vld [vmem:[#allocation8 + $0x68] sm:$0xf]
    %v2659 = vld [vmem:[#allocation8 + $0x6c] sm:$0xf]
    %v2660 = vld [vmem:[#allocation8 + $0x70] sm:$0xf]
    %v2661 = vld [vmem:[#allocation8 + $0x74] sm:$0xf]
    %v2662 = vld [vmem:[#allocation8 + $0x78] sm:$0xf]
    %v2663 = vld [vmem:[#allocation8 + $0x7c] sm:$0xf]
    %v2696 = vunpack.c.l.b16 %v2632
    %v2697 = vunpack.c.l.b16 %v2633
    %v2698 = vunpack.c.l.b16 %v2634
    %v2699 = vunpack.c.l.b16 %v2635
    %v2700 = vunpack.c.l.b16 %v2636
    %v2701 = vunpack.c.l.b16 %v2637
    %v2702 = vunpack.c.l.b16 %v2638
    %v2703 = vunpack.c.l.b16 %v2639
    %v2704 = vunpack.c.l.b16 %v2640
    %v2705 = vunpack.c.l.b16 %v2641
    %v2706 = vunpack.c.l.b16 %v2642
    %v2707 = vunpack.c.l.b16 %v2643
    %v2708 = vunpack.c.l.b16 %v2644
    %v2709 = vunpack.c.l.b16 %v2645
    %v2710 = vunpack.c.l.b16 %v2646
    %v2711 = vunpack.c.l.b16 %v2647
    %v2712 = vunpack.c.l.b16 %v2648
    %v2713 = vunpack.c.l.b16 %v2649
    %v2714 = vunpack.c.l.b16 %v2650
    %v2715 = vunpack.c.l.b16 %v2651
    %v2716 = vunpack.c.l.b16 %v2652
    %v2717 = vunpack.c.l.b16 %v2653
    %v2718 = vunpack.c.l.b16 %v2654
    %v2719 = vunpack.c.l.b16 %v2655
    %v2720 = vunpack.c.l.b16 %v2656
    %v2721 = vunpack.c.l.b16 %v2657
    %v2722 = vunpack.c.l.b16 %v2658
    %v2723 = vunpack.c.l.b16 %v2659
    %v2724 = vunpack.c.l.b16 %v2660
    %v2725 = vunpack.c.l.b16 %v2661
    %v2726 = vunpack.c.l.b16 %v2662
    %v2727 = vunpack.c.l.b16 %v2663
    %v2728 = vpack.c.b16 %v2697, %v2696
    %v2729 = vpack.c.b16 %v2699, %v2698
    %v2730 = vpack.c.b16 %v2701, %v2700
    %v2731 = vpack.c.b16 %v2703, %v2702
    %v2732 = vpack.c.b16 %v2705, %v2704
    %v2733 = vpack.c.b16 %v2707, %v2706
    %v2734 = vpack.c.b16 %v2709, %v2708
    %v2735 = vpack.c.b16 %v2711, %v2710
    %v2736 = vpack.c.b16 %v2713, %v2712
    %v2737 = vpack.c.b16 %v2715, %v2714
    %v2738 = vpack.c.b16 %v2717, %v2716
    %v2739 = vpack.c.b16 %v2719, %v2718
    %v2740 = vpack.c.b16 %v2721, %v2720
    %v2741 = vpack.c.b16 %v2723, %v2722
    %v2742 = vpack.c.b16 %v2725, %v2724
    %v2743 = vpack.c.b16 %v2727, %v2726
    %2760 = vmatprep.subr.bf16.mxu0 0
    %2761 = vmatpush1.bf16.msra.mxu0 %v2735
    %2762 = vmatprep.subr.bf16.mxu0 0
    %2763 = vmatpush1.bf16.msra.mxu0 %v2734
    %2764 = vmatprep.subr.bf16.mxu0 0
    %2765 = vmatpush1.bf16.msra.mxu0 %v2733
    %2766 = vmatprep.subr.bf16.mxu0 0
    %2767 = vmatpush1.bf16.msra.mxu0 %v2732
    %2768 = vmatprep.subr.bf16.mxu0 0
    %2769 = vmatpush1.bf16.msra.mxu0 %v2731
    %2770 = vmatprep.subr.bf16.mxu0 0
    %2771 = vmatpush1.bf16.msra.mxu0 %v2730
    %2772 = vmatprep.subr.bf16.mxu0 0
    %2773 = vmatpush1.bf16.msra.mxu0 %v2729
    %2774 = vmatprep.subr.bf16.mxu0 0
    %2775 = vmatpush1.bf16.msra.mxu0 %v2728
    %2776 = vmatprep.subr.bf16.mxu0 0
    %2777 = vmatpush2.bf16.msra.mxu0 %v2743
    %2778 = vmatprep.subr.bf16.mxu0 0
    %2779 = vmatpush2.bf16.msra.mxu0 %v2742
    %2780 = vmatprep.subr.bf16.mxu0 0
    %2781 = vmatpush2.bf16.msra.mxu0 %v2741
    %2782 = vmatprep.subr.bf16.mxu0 0
    %2783 = vmatpush2.bf16.msra.mxu0 %v2740
    %2784 = vmatprep.subr.bf16.mxu0 0
    %2785 = vmatpush2.bf16.msra.mxu0 %v2739
    %2786 = vmatprep.subr.bf16.mxu0 0
    %2787 = vmatpush2.bf16.msra.mxu0 %v2738
    %2788 = vmatprep.subr.bf16.mxu0 0
    %2789 = vmatpush2.bf16.msra.mxu0 %v2737
    %2790 = vmatprep.subr.bf16.mxu0 0
    %2791 = vmatpush2.bf16.msra.mxu0 %v2736
    %2792 = vmatprep.mubr.bf16.mxu0 %v2432
    %2793 = vmatmul.mubr.bf16.gmra.mxu0 %v2431
    %v2794 = vpop.f32.mrf.mxu0
    %v2795 = vadd.f32 0.0, %v2794
    %v2796 = vpop.f32.mrf.mxu0
    %v2797 = vpop.f32.mrf.mxu0
    %v2798 = vadd.f32 0.0, %v2797
    %v2799 = vpop.f32.mrf.mxu0
    %2800 = vmatprep.mubr.bf16.mxu0 %v2434
    %2801 = vmatmul.mubr.bf16.gmra.mxu0 %v2433
    %v2802 = vpop.f32.mrf.mxu0
    %v2803 = vadd.f32 0.0, %v2802
    %v2804 = vpop.f32.mrf.mxu0
    %v2805 = vpop.f32.mrf.mxu0
    %v2806 = vadd.f32 0.0, %v2805
    %v2807 = vpop.f32.mrf.mxu0
    %2808 = vmatprep.mubr.bf16.mxu0 %v2436
    %2809 = vmatmul.mubr.bf16.gmra.mxu0 %v2435
    %v2810 = vpop.f32.mrf.mxu0
    %v2811 = vadd.f32 0.0, %v2810
    %v2812 = vpop.f32.mrf.mxu0
    %v2813 = vpop.f32.mrf.mxu0
    %v2814 = vadd.f32 0.0, %v2813
    %v2815 = vpop.f32.mrf.mxu0
    %2816 = vmatprep.mubr.bf16.mxu0 %v2438
    %2817 = vmatmul.mubr.bf16.gmra.mxu0 %v2437
    %v2818 = vpop.f32.mrf.mxu0
    %v2819 = vadd.f32 0.0, %v2818
    %v2820 = vpop.f32.mrf.mxu0
    %v2821 = vpop.f32.mrf.mxu0
    %v2822 = vadd.f32 0.0, %v2821
    %v2823 = vpop.f32.mrf.mxu0
    %2824 = vdwg.mxu0
    %v2825 = vmax.f32 %v2602, %v2795
    %v2826 = vmax.f32 %v2605, %v2798
    %v2827 = vmax.f32 %v2610, %v2803
    %v2828 = vmax.f32 %v2613, %v2806
    %v2829 = vmax.f32 %v2618, %v2811
    %v2830 = vmax.f32 %v2621, %v2814
    %v2831 = vmax.f32 %v2626, %v2819
    %v2832 = vmax.f32 %v2629, %v2822
    %v2833 = vpack.c.bf16 %v2826, %v2825
    %v2834 = vpack.c.bf16 %v2828, %v2827
    %v2835 = vpack.c.bf16 %v2830, %v2829
    %v2836 = vpack.c.bf16 %v2832, %v2831
    %v2837 = vld [vmem:[#allocation10] sm:$0xf]
    %v2838 = vld [vmem:[#allocation10 + $0x4] sm:$0xf]
    %v2839 = vld [vmem:[#allocation10 + $0x8] sm:$0xf]
    %v2840 = vld [vmem:[#allocation10 + $0xc] sm:$0xf]
    %v2845 = vunpack.c.l.b16 %v2837
    %v2846 = vunpack.c.l.b16 %v2838
    %v2847 = vunpack.c.l.b16 %v2839
    %v2848 = vunpack.c.l.b16 %v2840
    %v2849 = vpack.c.b16 %v2846, %v2845
    %v2850 = vpack.c.b16 %v2848, %v2847
    %v2852 = vsel %vm561, %v2849, 0
    %v2855 = vsel %vm561, %v2850, 0
    %2857 = vmatprep.subr.bf16.mxu0 0
    %2858 = vmatpush1.bf16.msra.mxu0 0
    %2859 = vmatprep.subr.bf16.mxu0 0
    %2860 = vmatpush1.bf16.msra.mxu0 0
    %2861 = vmatprep.subr.bf16.mxu0 0
    %2862 = vmatpush1.bf16.msra.mxu0 0
    %2863 = vmatprep.subr.bf16.mxu0 0
    %2864 = vmatpush1.bf16.msra.mxu0 0
    %2865 = vmatprep.subr.bf16.mxu0 0
    %2866 = vmatpush1.bf16.msra.mxu0 %v2836
    %2867 = vmatprep.subr.bf16.mxu0 0
    %2868 = vmatpush1.bf16.msra.mxu0 %v2835
    %2869 = vmatprep.subr.bf16.mxu0 0
    %2870 = vmatpush1.bf16.msra.mxu0 %v2834
    %2871 = vmatprep.subr.bf16.mxu0 0
    %2872 = vmatpush1.bf16.msra.mxu0 %v2833
    %2873 = vmatprep.subr.bf16.mxu0 0
    %2874 = vmatpush2.bf16.msra.mxu0 0
    %2875 = vmatprep.subr.bf16.mxu0 0
    %2876 = vmatpush2.bf16.msra.mxu0 0
    %2877 = vmatprep.subr.bf16.mxu0 0
    %2878 = vmatpush2.bf16.msra.mxu0 0
    %2879 = vmatprep.subr.bf16.mxu0 0
    %2880 = vmatpush2.bf16.msra.mxu0 0
    %2881 = vmatprep.subr.bf16.mxu0 0
    %2882 = vmatpush2.bf16.msra.mxu0 0
    %2883 = vmatprep.subr.bf16.mxu0 0
    %2884 = vmatpush2.bf16.msra.mxu0 0
    %2885 = vmatprep.subr.bf16.mxu0 0
    %2886 = vmatpush2.bf16.msra.mxu0 0
    %2887 = vmatprep.subr.bf16.mxu0 0
    %2888 = vmatpush2.bf16.msra.mxu0 0
    %2889 = vmatprep.mubr.bf16.mxu0 0
    %2890 = vmatmul.mubr.bf16.gmra.mxu0 %v2852
    %v2891 = vpop.f32.mrf.mxu0
    %v2892 = vadd.f32 0.0, %v2891
    %v2893 = vpop.f32.mrf.mxu0
    %v2894 = vpop.f32.mrf.mxu0
    %v2895 = vadd.f32 0.0, %v2894
    %v2896 = vpop.f32.mrf.mxu0
    %2897 = vmatprep.mubr.bf16.mxu0 0
    %2898 = vmatmul.mubr.bf16.gmra.mxu0 %v2855
    %v2899 = vpop.f32.mrf.mxu0
    %v2900 = vadd.f32 0.0, %v2899
    %v2901 = vpop.f32.mrf.mxu0
    %v2902 = vpop.f32.mrf.mxu0
    %v2903 = vadd.f32 0.0, %v2902
    %v2904 = vpop.f32.mrf.mxu0
    %2905 = vdwg.mxu0
    %v2906 = vld [vmem:[#allocation11] sm:$0xf]
    %v2907 = vld [vmem:[#allocation11 + $0x4] sm:$0xf]
    %v2908 = vld [vmem:[#allocation11 + $0x8] sm:$0xf]
    %v2909 = vld [vmem:[#allocation11 + $0xc] sm:$0xf]
    %v2914 = vunpack.c.l.b16 %v2906
    %v2915 = vunpack.c.l.b16 %v2907
    %v2916 = vunpack.c.l.b16 %v2908
    %v2917 = vunpack.c.l.b16 %v2909
    %v2918 = vpack.c.b16 %v2915, %v2914
    %v2919 = vpack.c.b16 %v2917, %v2916
    %v2921 = vsel %vm561, %v2918, 0
    %v2924 = vsel %vm561, %v2919, 0
    %2926 = vmatprep.subr.bf16.mxu0 0
    %2927 = vmatpush1.bf16.msra.mxu0 0
    %2928 = vmatprep.subr.bf16.mxu0 0
    %2929 = vmatpush1.bf16.msra.mxu0 0
    %2930 = vmatprep.subr.bf16.mxu0 0
    %2931 = vmatpush1.bf16.msra.mxu0 0
    %2932 = vmatprep.subr.bf16.mxu0 0
    %2933 = vmatpush1.bf16.msra.mxu0 0
    %2934 = vmatprep.subr.bf16.mxu0 0
    %2935 = vmatpush1.bf16.msra.mxu0 %v2836
    %2936 = vmatprep.subr.bf16.mxu0 0
    %2937 = vmatpush1.bf16.msra.mxu0 %v2835
    %2938 = vmatprep.subr.bf16.mxu0 0
    %2939 = vmatpush1.bf16.msra.mxu0 %v2834
    %2940 = vmatprep.subr.bf16.mxu0 0
    %2941 = vmatpush1.bf16.msra.mxu0 %v2833
    %2942 = vmatprep.subr.bf16.mxu0 0
    %2943 = vmatpush2.bf16.msra.mxu0 0
    %2944 = vmatprep.subr.bf16.mxu0 0
    %2945 = vmatpush2.bf16.msra.mxu0 0
    %2946 = vmatprep.subr.bf16.mxu0 0
    %2947 = vmatpush2.bf16.msra.mxu0 0
    %2948 = vmatprep.subr.bf16.mxu0 0
    %2949 = vmatpush2.bf16.msra.mxu0 0
    %2950 = vmatprep.subr.bf16.mxu0 0
    %2951 = vmatpush2.bf16.msra.mxu0 0
    %2952 = vmatprep.subr.bf16.mxu0 0
    %2953 = vmatpush2.bf16.msra.mxu0 0
    %2954 = vmatprep.subr.bf16.mxu0 0
    %2955 = vmatpush2.bf16.msra.mxu0 0
    %2956 = vmatprep.subr.bf16.mxu0 0
    %2957 = vmatpush2.bf16.msra.mxu0 0
    %2958 = vmatprep.mubr.bf16.mxu0 0
    %2959 = vmatmul.mubr.bf16.gmra.mxu0 %v2921
    %v2960 = vpop.f32.mrf.mxu0
    %v2961 = vadd.f32 0.0, %v2960
    %v2962 = vpop.f32.mrf.mxu0
    %v2963 = vpop.f32.mrf.mxu0
    %v2964 = vadd.f32 0.0, %v2963
    %v2965 = vpop.f32.mrf.mxu0
    %2966 = vmatprep.mubr.bf16.mxu0 0
    %2967 = vmatmul.mubr.bf16.gmra.mxu0 %v2924
    %v2968 = vpop.f32.mrf.mxu0
    %v2969 = vadd.f32 0.0, %v2968
    %v2970 = vpop.f32.mrf.mxu0
    %v2971 = vpop.f32.mrf.mxu0
    %v2972 = vadd.f32 0.0, %v2971
    %v2973 = vpop.f32.mrf.mxu0
    %2974 = vdwg.mxu0
    %v2975 = vmax.f32 %v2892, %v2961
    %v2976 = vmax.f32 %v2895, %v2964
    %v2977 = vmax.f32 %v2900, %v2969
    %v2978 = vmax.f32 %v2903, %v2972
    %v2979 = vpack.c.bf16 %v2976, %v2975
    %v2980 = vpack.c.bf16 %v2978, %v2977
    %v2981 = vld [vmem:[#allocation13] sm:$0xf]
    %v2982 = vld [vmem:[#allocation13 + $0x4] sm:$0xf]
    %v2983 = vld [vmem:[#allocation13 + $0x8] sm:$0xf]
    %v2984 = vld [vmem:[#allocation13 + $0xc] sm:$0xf]
    %v2989 = vunpack.c.l.b16 %v2981
    %v2990 = vunpack.c.l.b16 %v2982
    %v2991 = vunpack.c.l.b16 %v2983
    %v2992 = vunpack.c.l.b16 %v2984
    %v2993 = vpack.c.b16 %v2990, %v2989
    %v2994 = vpack.c.b16 %v2992, %v2991
    %vm2995 = vcmask 261120
    %v2997 = vsel %vm2995, %v2993, 0
    %v3000 = vsel %vm2995, %v2994, 0
    %3002 = vmatprep.subr.bf16.mxu0 0
    %3003 = vmatpush1.bf16.msra.mxu0 0
    %3004 = vmatprep.subr.bf16.mxu0 0
    %3005 = vmatpush1.bf16.msra.mxu0 0
    %3006 = vmatprep.subr.bf16.mxu0 0
    %3007 = vmatpush1.bf16.msra.mxu0 0
    %3008 = vmatprep.subr.bf16.mxu0 0
    %3009 = vmatpush1.bf16.msra.mxu0 0
    %3010 = vmatprep.subr.bf16.mxu0 0
    %3011 = vmatpush1.bf16.msra.mxu0 0
    %3012 = vmatprep.subr.bf16.mxu0 0
    %3013 = vmatpush1.bf16.msra.mxu0 0
    %3014 = vmatprep.subr.bf16.mxu0 0
    %3015 = vmatpush1.bf16.msra.mxu0 %v2980
    %3016 = vmatprep.subr.bf16.mxu0 0
    %3017 = vmatpush1.bf16.msra.mxu0 %v2979
    %3018 = vmatprep.subr.bf16.mxu0 0
    %3019 = vmatpush2.bf16.msra.mxu0 0
    %3020 = vmatprep.subr.bf16.mxu0 0
    %3021 = vmatpush2.bf16.msra.mxu0 0
    %3022 = vmatprep.subr.bf16.mxu0 0
    %3023 = vmatpush2.bf16.msra.mxu0 0
    %3024 = vmatprep.subr.bf16.mxu0 0
    %3025 = vmatpush2.bf16.msra.mxu0 0
    %3026 = vmatprep.subr.bf16.mxu0 0
    %3027 = vmatpush2.bf16.msra.mxu0 0
    %3028 = vmatprep.subr.bf16.mxu0 0
    %3029 = vmatpush2.bf16.msra.mxu0 0
    %3030 = vmatprep.subr.bf16.mxu0 0
    %3031 = vmatpush2.bf16.msra.mxu0 0
    %3032 = vmatprep.subr.bf16.mxu0 0
    %3033 = vmatpush2.bf16.msra.mxu0 0
    %3034 = vmatprep.mubr.bf16.mxu0 0
    %3035 = vmatmul.mubr.bf16.gmra.mxu0 %v2997
    %v3036 = vpop.f32.mrf.mxu0
    %v3037 = vadd.f32 0.0, %v3036
    %v3038 = vpop.f32.mrf.mxu0
    %v3039 = vpop.f32.mrf.mxu0
    %v3040 = vadd.f32 0.0, %v3039
    %v3041 = vpop.f32.mrf.mxu0
    %3042 = vmatprep.mubr.bf16.mxu0 0
    %3043 = vmatmul.mubr.bf16.gmra.mxu0 %v3000
    %v3044 = vpop.f32.mrf.mxu0
    %v3045 = vadd.f32 0.0, %v3044
    %v3046 = vpop.f32.mrf.mxu0
    %v3047 = vpop.f32.mrf.mxu0
    %v3048 = vadd.f32 0.0, %v3047
    %v3049 = vpop.f32.mrf.mxu0
    %3050 = vdwg.mxu0
    %v3051 = vpack.c.bf16 %v3040, %v3037
    %v3052 = vpack.c.bf16 %v3048, %v3045
    %v3053 = vld [vmem:[%s25] sm:$0xff]
    %v3054 = vld [vmem:[%s25 + $0x8] sm:$0xff]
    %v3055 = vld [vmem:[%s25 + $0x10] sm:$0xff]
    %v3056 = vld [vmem:[%s25 + $0x18] sm:$0xff]
    %v3057 = vld [vmem:[%s25 + $0x20] sm:$0xff]
    %v3058 = vld [vmem:[%s25 + $0x28] sm:$0xff]
    %v3059 = vld [vmem:[%s25 + $0x30] sm:$0xff]
    %v3060 = vld [vmem:[%s25 + $0x38] sm:$0xff]
    %v3061 = vld [vmem:[%s25 + $0x40] sm:$0xff]
    %v3062 = vld [vmem:[%s25 + $0x48] sm:$0xff]
    %v3063 = vld [vmem:[%s25 + $0x50] sm:$0xff]
    %v3064 = vld [vmem:[%s25 + $0x58] sm:$0xff]
    %v3065 = vld [vmem:[%s25 + $0x60] sm:$0xff]
    %v3066 = vld [vmem:[%s25 + $0x68] sm:$0xff]
    %v3067 = vld [vmem:[%s25 + $0x70] sm:$0xff]
    %v3068 = vld [vmem:[%s25 + $0x78] sm:$0xff]
    %s3069 = scalar_lea.vmem [#allocation13], 16
    %v3070 = vld [vmem:[%s3069] sm:$0xf]
    %v3071 = vld [vmem:[%s3069 + $0x4] sm:$0xf]
    %v3072 = vld [vmem:[%s3069 + $0x8] sm:$0xf]
    %v3073 = vld [vmem:[%s3069 + $0xc] sm:$0xf]
    %v3078 = vunpack.c.l.b16 %v3070
    %v3079 = vunpack.c.l.b16 %v3071
    %v3080 = vunpack.c.l.b16 %v3072
    %v3081 = vunpack.c.l.b16 %v3073
    %v3082 = vpack.c.b16 %v3079, %v3078
    %v3083 = vpack.c.b16 %v3081, %v3080
    %v3085 = vsel %vm2995, %v3082, 0
    %v3088 = vsel %vm2995, %v3083, 0
    %3090 = vmatprep.subr.bf16.mxu0 0
    %3091 = vmatpush1.bf16.msra.mxu0 0
    %3092 = vmatprep.subr.bf16.mxu0 0
    %3093 = vmatpush1.bf16.msra.mxu0 0
    %3094 = vmatprep.subr.bf16.mxu0 0
    %3095 = vmatpush1.bf16.msra.mxu0 0
    %3096 = vmatprep.subr.bf16.mxu0 0
    %3097 = vmatpush1.bf16.msra.mxu0 0
    %3098 = vmatprep.subr.bf16.mxu0 0
    %3099 = vmatpush1.bf16.msra.mxu0 0
    %3100 = vmatprep.subr.bf16.mxu0 0
    %3101 = vmatpush1.bf16.msra.mxu0 0
    %3102 = vmatprep.subr.bf16.mxu0 0
    %3103 = vmatpush1.bf16.msra.mxu0 %v2980
    %3104 = vmatprep.subr.bf16.mxu0 0
    %3105 = vmatpush1.bf16.msra.mxu0 %v2979
    %3106 = vmatprep.subr.bf16.mxu0 0
    %3107 = vmatpush2.bf16.msra.mxu0 0
    %3108 = vmatprep.subr.bf16.mxu0 0
    %3109 = vmatpush2.bf16.msra.mxu0 0
    %3110 = vmatprep.subr.bf16.mxu0 0
    %3111 = vmatpush2.bf16.msra.mxu0 0
    %3112 = vmatprep.subr.bf16.mxu0 0
    %3113 = vmatpush2.bf16.msra.mxu0 0
    %3114 = vmatprep.subr.bf16.mxu0 0
    %3115 = vmatpush2.bf16.msra.mxu0 0
    %3116 = vmatprep.subr.bf16.mxu0 0
    %3117 = vmatpush2.bf16.msra.mxu0 0
    %3118 = vmatprep.subr.bf16.mxu0 0
    %3119 = vmatpush2.bf16.msra.mxu0 0
    %3120 = vmatprep.subr.bf16.mxu0 0
    %3121 = vmatpush2.bf16.msra.mxu0 0
    %3122 = vmatprep.mubr.bf16.mxu0 0
    %3123 = vmatmul.mubr.bf16.gmra.mxu0 %v3085
    %v3124 = vpop.f32.mrf.mxu0
    %v3125 = vadd.f32 0.0, %v3124
    %v3126 = vpop.f32.mrf.mxu0
    %v3127 = vpop.f32.mrf.mxu0
    %v3128 = vadd.f32 0.0, %v3127
    %v3129 = vpop.f32.mrf.mxu0
    %3130 = vmatprep.mubr.bf16.mxu0 0
    %3131 = vmatmul.mubr.bf16.gmra.mxu0 %v3088
    %v3132 = vpop.f32.mrf.mxu0
    %v3133 = vadd.f32 0.0, %v3132
    %v3134 = vpop.f32.mrf.mxu0
    %v3135 = vpop.f32.mrf.mxu0
    %v3136 = vadd.f32 0.0, %v3135
    %v3137 = vpop.f32.mrf.mxu0
    %3138 = vdwg.mxu0
    %v3139 = vpack.c.bf16 %v3128, %v3125
    %v3140 = vpack.c.bf16 %v3136, %v3133
    %s3141 = scalar_lea.vmem %s25, 128
    %v3142 = vld [vmem:[%s3141] sm:$0xff]
    %v3143 = vld [vmem:[%s3141 + $0x8] sm:$0xff]
    %v3144 = vld [vmem:[%s3141 + $0x10] sm:$0xff]
    %v3145 = vld [vmem:[%s3141 + $0x18] sm:$0xff]
    %v3146 = vld [vmem:[%s3141 + $0x20] sm:$0xff]
    %v3147 = vld [vmem:[%s3141 + $0x28] sm:$0xff]
    %v3148 = vld [vmem:[%s3141 + $0x30] sm:$0xff]
    %v3149 = vld [vmem:[%s3141 + $0x38] sm:$0xff]
    %v3150 = vld [vmem:[%s3141 + $0x40] sm:$0xff]
    %v3151 = vld [vmem:[%s3141 + $0x48] sm:$0xff]
    %v3152 = vld [vmem:[%s3141 + $0x50] sm:$0xff]
    %v3153 = vld [vmem:[%s3141 + $0x58] sm:$0xff]
    %v3154 = vld [vmem:[%s3141 + $0x60] sm:$0xff]
    %v3155 = vld [vmem:[%s3141 + $0x68] sm:$0xff]
    %v3156 = vld [vmem:[%s3141 + $0x70] sm:$0xff]
    %v3157 = vld [vmem:[%s3141 + $0x78] sm:$0xff]
    %v3174 = vunpack.c.l.b16 %v3142
    %v3175 = vunpack.c.h.b16 %v3142
    %v3176 = vunpack.c.l.b16 %v3143
    %v3177 = vunpack.c.h.b16 %v3143
    %v3178 = vunpack.c.l.b16 %v3144
    %v3179 = vunpack.c.h.b16 %v3144
    %v3180 = vunpack.c.l.b16 %v3145
    %v3181 = vunpack.c.h.b16 %v3145
    %v3182 = vunpack.c.l.b16 %v3146
    %v3183 = vunpack.c.h.b16 %v3146
    %v3184 = vunpack.c.l.b16 %v3147
    %v3185 = vunpack.c.h.b16 %v3147
    %v3186 = vunpack.c.l.b16 %v3148
    %v3187 = vunpack.c.h.b16 %v3148
    %v3188 = vunpack.c.l.b16 %v3149
    %v3189 = vunpack.c.h.b16 %v3149
    %v3190 = vunpack.c.l.b16 %v3150
    %v3191 = vunpack.c.h.b16 %v3150
    %v3192 = vunpack.c.l.b16 %v3151
    %v3193 = vunpack.c.h.b16 %v3151
    %v3194 = vunpack.c.l.b16 %v3152
    %v3195 = vunpack.c.h.b16 %v3152
    %v3196 = vunpack.c.l.b16 %v3153
    %v3197 = vunpack.c.h.b16 %v3153
    %v3198 = vunpack.c.l.b16 %v3154
    %v3199 = vunpack.c.h.b16 %v3154
    %v3200 = vunpack.c.l.b16 %v3155
    %v3201 = vunpack.c.h.b16 %v3155
    %v3202 = vunpack.c.l.b16 %v3156
    %v3203 = vunpack.c.h.b16 %v3156
    %v3204 = vunpack.c.l.b16 %v3157
    %v3205 = vunpack.c.h.b16 %v3157
    %v3206 = vpack.c.b16 %v3176, %v3174
    %v3207 = vpack.c.b16 %v3177, %v3175
    %v3208 = vpack.c.b16 %v3180, %v3178
    %v3209 = vpack.c.b16 %v3181, %v3179
    %v3210 = vpack.c.b16 %v3184, %v3182
    %v3211 = vpack.c.b16 %v3185, %v3183
    %v3212 = vpack.c.b16 %v3188, %v3186
    %v3213 = vpack.c.b16 %v3189, %v3187
    %v3214 = vpack.c.b16 %v3192, %v3190
    %v3215 = vpack.c.b16 %v3193, %v3191
    %v3216 = vpack.c.b16 %v3196, %v3194
    %v3217 = vpack.c.b16 %v3197, %v3195
    %v3218 = vpack.c.b16 %v3200, %v3198
    %v3219 = vpack.c.b16 %v3201, %v3199
    %v3220 = vpack.c.b16 %v3204, %v3202
    %v3221 = vpack.c.b16 %v3205, %v3203
    %3238 = vmatprep.subr.bf16.mxu0 %v3221
    %3239 = vmatpush1.bf16.msra.mxu0 %v3220
    %3240 = vmatprep.subr.bf16.mxu0 %v3219
    %3241 = vmatpush1.bf16.msra.mxu0 %v3218
    %3242 = vmatprep.subr.bf16.mxu0 %v3217
    %3243 = vmatpush1.bf16.msra.mxu0 %v3216
    %3244 = vmatprep.subr.bf16.mxu0 %v3215
    %3245 = vmatpush1.bf16.msra.mxu0 %v3214
    %3246 = vmatprep.subr.bf16.mxu0 %v3213
    %3247 = vmatpush1.bf16.msra.mxu0 %v3212
    %3248 = vmatprep.subr.bf16.mxu0 %v3211
    %3249 = vmatpush1.bf16.msra.mxu0 %v3210
    %3250 = vmatprep.subr.bf16.mxu0 %v3209
    %3251 = vmatpush1.bf16.msra.mxu0 %v3208
    %3252 = vmatprep.subr.bf16.mxu0 %v3207
    %3253 = vmatpush1.bf16.msra.mxu0 %v3206
    %3254 = vmatprep.subr.bf16.mxu0 0
    %3255 = vmatpush2.bf16.msra.mxu0 0
    %3256 = vmatprep.subr.bf16.mxu0 0
    %3257 = vmatpush2.bf16.msra.mxu0 0
    %3258 = vmatprep.subr.bf16.mxu0 0
    %3259 = vmatpush2.bf16.msra.mxu0 0
    %3260 = vmatprep.subr.bf16.mxu0 0
    %3261 = vmatpush2.bf16.msra.mxu0 0
    %3262 = vmatprep.subr.bf16.mxu0 0
    %3263 = vmatpush2.bf16.msra.mxu0 0
    %3264 = vmatprep.subr.bf16.mxu0 0
    %3265 = vmatpush2.bf16.msra.mxu0 0
    %3266 = vmatprep.subr.bf16.mxu0 0
    %3267 = vmatpush2.bf16.msra.mxu0 0
    %3268 = vmatprep.subr.bf16.mxu0 0
    %3269 = vmatpush2.bf16.msra.mxu0 0
    %3270 = vmatprep.mubr.bf16.mxu0 0
    %3271 = vmatmul.mubr.bf16.gmra.mxu0 %v3139
    %v3272 = vpop.f32.mrf.mxu0
    %v3273 = vadd.f32 0.0, %v3272
    %v3274 = vpop.f32.mrf.mxu0
    %v3275 = vadd.f32 0.0, %v3274
    %v3276 = vpop.f32.mrf.mxu0
    %v3277 = vadd.f32 0.0, %v3276
    %v3278 = vpop.f32.mrf.mxu0
    %v3279 = vadd.f32 0.0, %v3278
    %3280 = vmatprep.mubr.bf16.mxu0 0
    %3281 = vmatmul.mubr.bf16.gmra.mxu0 %v3140
    %v3282 = vpop.f32.mrf.mxu0
    %v3283 = vadd.f32 0.0, %v3282
    %v3284 = vpop.f32.mrf.mxu0
    %v3285 = vadd.f32 0.0, %v3284
    %v3286 = vpop.f32.mrf.mxu0
    %v3287 = vadd.f32 0.0, %v3286
    %v3288 = vpop.f32.mrf.mxu0
    %v3289 = vadd.f32 0.0, %v3288
    %3290 = vdwg.mxu0
    %v3307 = vunpack.c.l.b16 %v3053
    %v3308 = vunpack.c.h.b16 %v3053
    %v3309 = vunpack.c.l.b16 %v3054
    %v3310 = vunpack.c.h.b16 %v3054
    %v3311 = vunpack.c.l.b16 %v3055
    %v3312 = vunpack.c.h.b16 %v3055
    %v3313 = vunpack.c.l.b16 %v3056
    %v3314 = vunpack.c.h.b16 %v3056
    %v3315 = vunpack.c.l.b16 %v3057
    %v3316 = vunpack.c.h.b16 %v3057
    %v3317 = vunpack.c.l.b16 %v3058
    %v3318 = vunpack.c.h.b16 %v3058
    %v3319 = vunpack.c.l.b16 %v3059
    %v3320 = vunpack.c.h.b16 %v3059
    %v3321 = vunpack.c.l.b16 %v3060
    %v3322 = vunpack.c.h.b16 %v3060
    %v3323 = vunpack.c.l.b16 %v3061
    %v3324 = vunpack.c.h.b16 %v3061
    %v3325 = vunpack.c.l.b16 %v3062
    %v3326 = vunpack.c.h.b16 %v3062
    %v3327 = vunpack.c.l.b16 %v3063
    %v3328 = vunpack.c.h.b16 %v3063
    %v3329 = vunpack.c.l.b16 %v3064
    %v3330 = vunpack.c.h.b16 %v3064
    %v3331 = vunpack.c.l.b16 %v3065
    %v3332 = vunpack.c.h.b16 %v3065
    %v3333 = vunpack.c.l.b16 %v3066
    %v3334 = vunpack.c.h.b16 %v3066
    %v3335 = vunpack.c.l.b16 %v3067
    %v3336 = vunpack.c.h.b16 %v3067
    %v3337 = vunpack.c.l.b16 %v3068
    %v3338 = vunpack.c.h.b16 %v3068
    %v3339 = vpack.c.b16 %v3309, %v3307
    %v3340 = vpack.c.b16 %v3310, %v3308
    %v3341 = vpack.c.b16 %v3313, %v3311
    %v3342 = vpack.c.b16 %v3314, %v3312
    %v3343 = vpack.c.b16 %v3317, %v3315
    %v3344 = vpack.c.b16 %v3318, %v3316
    %v3345 = vpack.c.b16 %v3321, %v3319
    %v3346 = vpack.c.b16 %v3322, %v3320
    %v3347 = vpack.c.b16 %v3325, %v3323
    %v3348 = vpack.c.b16 %v3326, %v3324
    %v3349 = vpack.c.b16 %v3329, %v3327
    %v3350 = vpack.c.b16 %v3330, %v3328
    %v3351 = vpack.c.b16 %v3333, %v3331
    %v3352 = vpack.c.b16 %v3334, %v3332
    %v3353 = vpack.c.b16 %v3337, %v3335
    %v3354 = vpack.c.b16 %v3338, %v3336
    %3371 = vmatprep.subr.bf16.mxu0 %v3354
    %3372 = vmatpush1.bf16.msra.mxu0 %v3353
    %3373 = vmatprep.subr.bf16.mxu0 %v3352
    %3374 = vmatpush1.bf16.msra.mxu0 %v3351
    %3375 = vmatprep.subr.bf16.mxu0 %v3350
    %3376 = vmatpush1.bf16.msra.mxu0 %v3349
    %3377 = vmatprep.subr.bf16.mxu0 %v3348
    %3378 = vmatpush1.bf16.msra.mxu0 %v3347
    %3379 = vmatprep.subr.bf16.mxu0 %v3346
    %3380 = vmatpush1.bf16.msra.mxu0 %v3345
    %3381 = vmatprep.subr.bf16.mxu0 %v3344
    %3382 = vmatpush1.bf16.msra.mxu0 %v3343
    %3383 = vmatprep.subr.bf16.mxu0 %v3342
    %3384 = vmatpush1.bf16.msra.mxu0 %v3341
    %3385 = vmatprep.subr.bf16.mxu0 %v3340
    %3386 = vmatpush1.bf16.msra.mxu0 %v3339
    %3387 = vmatprep.subr.bf16.mxu0 0
    %3388 = vmatpush2.bf16.msra.mxu0 0
    %3389 = vmatprep.subr.bf16.mxu0 0
    %3390 = vmatpush2.bf16.msra.mxu0 0
    %3391 = vmatprep.subr.bf16.mxu0 0
    %3392 = vmatpush2.bf16.msra.mxu0 0
    %3393 = vmatprep.subr.bf16.mxu0 0
    %3394 = vmatpush2.bf16.msra.mxu0 0
    %3395 = vmatprep.subr.bf16.mxu0 0
    %3396 = vmatpush2.bf16.msra.mxu0 0
    %3397 = vmatprep.subr.bf16.mxu0 0
    %3398 = vmatpush2.bf16.msra.mxu0 0
    %3399 = vmatprep.subr.bf16.mxu0 0
    %3400 = vmatpush2.bf16.msra.mxu0 0
    %3401 = vmatprep.subr.bf16.mxu0 0
    %3402 = vmatpush2.bf16.msra.mxu0 0
    %3403 = vmatprep.mubr.bf16.mxu0 0
    %3404 = vmatmul.mubr.bf16.gmra.mxu0 %v3051
    %v3405 = vpop.f32.mrf.mxu0
    %v3406 = vadd.f32 %v3273, %v3405
    %v3407 = vpop.f32.mrf.mxu0
    %v3408 = vadd.f32 %v3275, %v3407
    %v3409 = vpop.f32.mrf.mxu0
    %v3410 = vadd.f32 %v3277, %v3409
    %v3411 = vpop.f32.mrf.mxu0
    %v3412 = vadd.f32 %v3279, %v3411
    %3413 = vmatprep.mubr.bf16.mxu0 0
    %3414 = vmatmul.mubr.bf16.gmra.mxu0 %v3052
    %v3415 = vpop.f32.mrf.mxu0
    %v3416 = vadd.f32 %v3283, %v3415
    %v3417 = vpop.f32.mrf.mxu0
    %v3418 = vadd.f32 %v3285, %v3417
    %v3419 = vpop.f32.mrf.mxu0
    %v3420 = vadd.f32 %v3287, %v3419
    %v3421 = vpop.f32.mrf.mxu0
    %v3422 = vadd.f32 %v3289, %v3421
    %3423 = vdwg.mxu0
    %s3424 = scalar_lea.vmem [#allocation13], 32
    %v3425 = vld [vmem:[%s3424] sm:$0xf]
    %v3426 = vld [vmem:[%s3424 + $0x4] sm:$0xf]
    %v3427 = vld [vmem:[%s3424 + $0x8] sm:$0xf]
    %v3428 = vld [vmem:[%s3424 + $0xc] sm:$0xf]
    %v3433 = vunpack.c.l.b16 %v3425
    %v3434 = vunpack.c.l.b16 %v3426
    %v3435 = vunpack.c.l.b16 %v3427
    %v3436 = vunpack.c.l.b16 %v3428
    %v3437 = vpack.c.b16 %v3434, %v3433
    %v3438 = vpack.c.b16 %v3436, %v3435
    %v3440 = vsel %vm2995, %v3437, 0
    %v3443 = vsel %vm2995, %v3438, 0
    %3445 = vmatprep.subr.bf16.mxu0 0
    %3446 = vmatpush1.bf16.msra.mxu0 0
    %3447 = vmatprep.subr.bf16.mxu0 0
    %3448 = vmatpush1.bf16.msra.mxu0 0
    %3449 = vmatprep.subr.bf16.mxu0 0
    %3450 = vmatpush1.bf16.msra.mxu0 0
    %3451 = vmatprep.subr.bf16.mxu0 0
    %3452 = vmatpush1.bf16.msra.mxu0 0
    %3453 = vmatprep.subr.bf16.mxu0 0
    %3454 = vmatpush1.bf16.msra.mxu0 0
    %3455 = vmatprep.subr.bf16.mxu0 0
    %3456 = vmatpush1.bf16.msra.mxu0 0
    %3457 = vmatprep.subr.bf16.mxu0 0
    %3458 = vmatpush1.bf16.msra.mxu0 %v2980
    %3459 = vmatprep.subr.bf16.mxu0 0
    %3460 = vmatpush1.bf16.msra.mxu0 %v2979
    %3461 = vmatprep.subr.bf16.mxu0 0
    %3462 = vmatpush2.bf16.msra.mxu0 0
    %3463 = vmatprep.subr.bf16.mxu0 0
    %3464 = vmatpush2.bf16.msra.mxu0 0
    %3465 = vmatprep.subr.bf16.mxu0 0
    %3466 = vmatpush2.bf16.msra.mxu0 0
    %3467 = vmatprep.subr.bf16.mxu0 0
    %3468 = vmatpush2.bf16.msra.mxu0 0
    %3469 = vmatprep.subr.bf16.mxu0 0
    %3470 = vmatpush2.bf16.msra.mxu0 0
    %3471 = vmatprep.subr.bf16.mxu0 0
    %3472 = vmatpush2.bf16.msra.mxu0 0
    %3473 = vmatprep.subr.bf16.mxu0 0
    %3474 = vmatpush2.bf16.msra.mxu0 0
    %3475 = vmatprep.subr.bf16.mxu0 0
    %3476 = vmatpush2.bf16.msra.mxu0 0
    %3477 = vmatprep.mubr.bf16.mxu0 0
    %3478 = vmatmul.mubr.bf16.gmra.mxu0 %v3440
    %v3479 = vpop.f32.mrf.mxu0
    %v3480 = vadd.f32 0.0, %v3479
    %v3481 = vpop.f32.mrf.mxu0
    %v3482 = vpop.f32.mrf.mxu0
    %v3483 = vadd.f32 0.0, %v3482
    %v3484 = vpop.f32.mrf.mxu0
    %3485 = vmatprep.mubr.bf16.mxu0 0
    %3486 = vmatmul.mubr.bf16.gmra.mxu0 %v3443
    %v3487 = vpop.f32.mrf.mxu0
    %v3488 = vadd.f32 0.0, %v3487
    %v3489 = vpop.f32.mrf.mxu0
    %v3490 = vpop.f32.mrf.mxu0
    %v3491 = vadd.f32 0.0, %v3490
    %v3492 = vpop.f32.mrf.mxu0
    %3493 = vdwg.mxu0
    %v3494 = vpack.c.bf16 %v3483, %v3480
    %v3495 = vpack.c.bf16 %v3491, %v3488
    %s3496 = scalar_lea.vmem %s25, 256
    %v3497 = vld [vmem:[%s3496] sm:$0xff]
    %v3498 = vld [vmem:[%s3496 + $0x8] sm:$0xff]
    %v3499 = vld [vmem:[%s3496 + $0x10] sm:$0xff]
    %v3500 = vld [vmem:[%s3496 + $0x18] sm:$0xff]
    %v3501 = vld [vmem:[%s3496 + $0x20] sm:$0xff]
    %v3502 = vld [vmem:[%s3496 + $0x28] sm:$0xff]
    %v3503 = vld [vmem:[%s3496 + $0x30] sm:$0xff]
    %v3504 = vld [vmem:[%s3496 + $0x38] sm:$0xff]
    %v3505 = vld [vmem:[%s3496 + $0x40] sm:$0xff]
    %v3506 = vld [vmem:[%s3496 + $0x48] sm:$0xff]
    %v3507 = vld [vmem:[%s3496 + $0x50] sm:$0xff]
    %v3508 = vld [vmem:[%s3496 + $0x58] sm:$0xff]
    %v3509 = vld [vmem:[%s3496 + $0x60] sm:$0xff]
    %v3510 = vld [vmem:[%s3496 + $0x68] sm:$0xff]
    %v3511 = vld [vmem:[%s3496 + $0x70] sm:$0xff]
    %v3512 = vld [vmem:[%s3496 + $0x78] sm:$0xff]
    %v3529 = vunpack.c.l.b16 %v3497
    %v3530 = vunpack.c.h.b16 %v3497
    %v3531 = vunpack.c.l.b16 %v3498
    %v3532 = vunpack.c.h.b16 %v3498
    %v3533 = vunpack.c.l.b16 %v3499
    %v3534 = vunpack.c.h.b16 %v3499
    %v3535 = vunpack.c.l.b16 %v3500
    %v3536 = vunpack.c.h.b16 %v3500
    %v3537 = vunpack.c.l.b16 %v3501
    %v3538 = vunpack.c.h.b16 %v3501
    %v3539 = vunpack.c.l.b16 %v3502
    %v3540 = vunpack.c.h.b16 %v3502
    %v3541 = vunpack.c.l.b16 %v3503
    %v3542 = vunpack.c.h.b16 %v3503
    %v3543 = vunpack.c.l.b16 %v3504
    %v3544 = vunpack.c.h.b16 %v3504
    %v3545 = vunpack.c.l.b16 %v3505
    %v3546 = vunpack.c.h.b16 %v3505
    %v3547 = vunpack.c.l.b16 %v3506
    %v3548 = vunpack.c.h.b16 %v3506
    %v3549 = vunpack.c.l.b16 %v3507
    %v3550 = vunpack.c.h.b16 %v3507
    %v3551 = vunpack.c.l.b16 %v3508
    %v3552 = vunpack.c.h.b16 %v3508
    %v3553 = vunpack.c.l.b16 %v3509
    %v3554 = vunpack.c.h.b16 %v3509
    %v3555 = vunpack.c.l.b16 %v3510
    %v3556 = vunpack.c.h.b16 %v3510
    %v3557 = vunpack.c.l.b16 %v3511
    %v3558 = vunpack.c.h.b16 %v3511
    %v3559 = vunpack.c.l.b16 %v3512
    %v3560 = vunpack.c.h.b16 %v3512
    %v3561 = vpack.c.b16 %v3531, %v3529
    %v3562 = vpack.c.b16 %v3532, %v3530
    %v3563 = vpack.c.b16 %v3535, %v3533
    %v3564 = vpack.c.b16 %v3536, %v3534
    %v3565 = vpack.c.b16 %v3539, %v3537
    %v3566 = vpack.c.b16 %v3540, %v3538
    %v3567 = vpack.c.b16 %v3543, %v3541
    %v3568 = vpack.c.b16 %v3544, %v3542
    %v3569 = vpack.c.b16 %v3547, %v3545
    %v3570 = vpack.c.b16 %v3548, %v3546
    %v3571 = vpack.c.b16 %v3551, %v3549
    %v3572 = vpack.c.b16 %v3552, %v3550
    %v3573 = vpack.c.b16 %v3555, %v3553
    %v3574 = vpack.c.b16 %v3556, %v3554
    %v3575 = vpack.c.b16 %v3559, %v3557
    %v3576 = vpack.c.b16 %v3560, %v3558
    %3593 = vmatprep.subr.bf16.mxu0 %v3576
    %3594 = vmatpush1.bf16.msra.mxu0 %v3575
    %3595 = vmatprep.subr.bf16.mxu0 %v3574
    %3596 = vmatpush1.bf16.msra.mxu0 %v3573
    %3597 = vmatprep.subr.bf16.mxu0 %v3572
    %3598 = vmatpush1.bf16.msra.mxu0 %v3571
    %3599 = vmatprep.subr.bf16.mxu0 %v3570
    %3600 = vmatpush1.bf16.msra.mxu0 %v3569
    %3601 = vmatprep.subr.bf16.mxu0 %v3568
    %3602 = vmatpush1.bf16.msra.mxu0 %v3567
    %3603 = vmatprep.subr.bf16.mxu0 %v3566
    %3604 = vmatpush1.bf16.msra.mxu0 %v3565
    %3605 = vmatprep.subr.bf16.mxu0 %v3564
    %3606 = vmatpush1.bf16.msra.mxu0 %v3563
    %3607 = vmatprep.subr.bf16.mxu0 %v3562
    %3608 = vmatpush1.bf16.msra.mxu0 %v3561
    %3609 = vmatprep.subr.bf16.mxu0 0
    %3610 = vmatpush2.bf16.msra.mxu0 0
    %3611 = vmatprep.subr.bf16.mxu0 0
    %3612 = vmatpush2.bf16.msra.mxu0 0
    %3613 = vmatprep.subr.bf16.mxu0 0
    %3614 = vmatpush2.bf16.msra.mxu0 0
    %3615 = vmatprep.subr.bf16.mxu0 0
    %3616 = vmatpush2.bf16.msra.mxu0 0
    %3617 = vmatprep.subr.bf16.mxu0 0
    %3618 = vmatpush2.bf16.msra.mxu0 0
    %3619 = vmatprep.subr.bf16.mxu0 0
    %3620 = vmatpush2.bf16.msra.mxu0 0
    %3621 = vmatprep.subr.bf16.mxu0 0
    %3622 = vmatpush2.bf16.msra.mxu0 0
    %3623 = vmatprep.subr.bf16.mxu0 0
    %3624 = vmatpush2.bf16.msra.mxu0 0
    %3625 = vmatprep.mubr.bf16.mxu0 0
    %3626 = vmatmul.mubr.bf16.gmra.mxu0 %v3494
    %v3627 = vpop.f32.mrf.mxu0
    %v3628 = vadd.f32 0.0, %v3627
    %v3629 = vpop.f32.mrf.mxu0
    %v3630 = vadd.f32 0.0, %v3629
    %v3631 = vpop.f32.mrf.mxu0
    %v3632 = vadd.f32 0.0, %v3631
    %v3633 = vpop.f32.mrf.mxu0
    %v3634 = vadd.f32 0.0, %v3633
    %3635 = vmatprep.mubr.bf16.mxu0 0
    %3636 = vmatmul.mubr.bf16.gmra.mxu0 %v3495
    %v3637 = vpop.f32.mrf.mxu0
    %v3638 = vadd.f32 0.0, %v3637
    %v3639 = vpop.f32.mrf.mxu0
    %v3640 = vadd.f32 0.0, %v3639
    %v3641 = vpop.f32.mrf.mxu0
    %v3642 = vadd.f32 0.0, %v3641
    %v3643 = vpop.f32.mrf.mxu0
    %v3644 = vadd.f32 0.0, %v3643
    %3645 = vdwg.mxu0
    %v3646 = vadd.f32 %v3406, %v3628
    %v3647 = vadd.f32 %v3408, %v3630
    %v3648 = vadd.f32 %v3410, %v3632
    %v3649 = vadd.f32 %v3412, %v3634
    %v3650 = vadd.f32 %v3416, %v3638
    %v3651 = vadd.f32 %v3418, %v3640
    %v3652 = vadd.f32 %v3420, %v3642
    %v3653 = vadd.f32 %v3422, %v3644
    %s3654 = scalar_lea.vmem [#allocation13], 48
    %v3655 = vld [vmem:[%s3654] sm:$0xf]
    %v3656 = vld [vmem:[%s3654 + $0x4] sm:$0xf]
    %v3657 = vld [vmem:[%s3654 + $0x8] sm:$0xf]
    %v3658 = vld [vmem:[%s3654 + $0xc] sm:$0xf]
    %v3663 = vunpack.c.l.b16 %v3655
    %v3664 = vunpack.c.l.b16 %v3656
    %v3665 = vunpack.c.l.b16 %v3657
    %v3666 = vunpack.c.l.b16 %v3658
    %v3667 = vpack.c.b16 %v3664, %v3663
    %v3668 = vpack.c.b16 %v3666, %v3665
    %v3670 = vsel %vm2995, %v3667, 0
    %v3673 = vsel %vm2995, %v3668, 0
    %3675 = vmatprep.subr.bf16.mxu0 0
    %3676 = vmatpush1.bf16.msra.mxu0 0
    %3677 = vmatprep.subr.bf16.mxu0 0
    %3678 = vmatpush1.bf16.msra.mxu0 0
    %3679 = vmatprep.subr.bf16.mxu0 0
    %3680 = vmatpush1.bf16.msra.mxu0 0
    %3681 = vmatprep.subr.bf16.mxu0 0
    %3682 = vmatpush1.bf16.msra.mxu0 0
    %3683 = vmatprep.subr.bf16.mxu0 0
    %3684 = vmatpush1.bf16.msra.mxu0 0
    %3685 = vmatprep.subr.bf16.mxu0 0
    %3686 = vmatpush1.bf16.msra.mxu0 0
    %3687 = vmatprep.subr.bf16.mxu0 0
    %3688 = vmatpush1.bf16.msra.mxu0 %v2980
    %3689 = vmatprep.subr.bf16.mxu0 0
    %3690 = vmatpush1.bf16.msra.mxu0 %v2979
    %3691 = vmatprep.subr.bf16.mxu0 0
    %3692 = vmatpush2.bf16.msra.mxu0 0
    %3693 = vmatprep.subr.bf16.mxu0 0
    %3694 = vmatpush2.bf16.msra.mxu0 0
    %3695 = vmatprep.subr.bf16.mxu0 0
    %3696 = vmatpush2.bf16.msra.mxu0 0
    %3697 = vmatprep.subr.bf16.mxu0 0
    %3698 = vmatpush2.bf16.msra.mxu0 0
    %3699 = vmatprep.subr.bf16.mxu0 0
    %3700 = vmatpush2.bf16.msra.mxu0 0
    %3701 = vmatprep.subr.bf16.mxu0 0
    %3702 = vmatpush2.bf16.msra.mxu0 0
    %3703 = vmatprep.subr.bf16.mxu0 0
    %3704 = vmatpush2.bf16.msra.mxu0 0
    %3705 = vmatprep.subr.bf16.mxu0 0
    %3706 = vmatpush2.bf16.msra.mxu0 0
    %3707 = vmatprep.mubr.bf16.mxu0 0
    %3708 = vmatmul.mubr.bf16.gmra.mxu0 %v3670
    %v3709 = vpop.f32.mrf.mxu0
    %v3710 = vadd.f32 0.0, %v3709
    %v3711 = vpop.f32.mrf.mxu0
    %v3712 = vpop.f32.mrf.mxu0
    %v3713 = vadd.f32 0.0, %v3712
    %v3714 = vpop.f32.mrf.mxu0
    %3715 = vmatprep.mubr.bf16.mxu0 0
    %3716 = vmatmul.mubr.bf16.gmra.mxu0 %v3673
    %v3717 = vpop.f32.mrf.mxu0
    %v3718 = vadd.f32 0.0, %v3717
    %v3719 = vpop.f32.mrf.mxu0
    %v3720 = vpop.f32.mrf.mxu0
    %v3721 = vadd.f32 0.0, %v3720
    %v3722 = vpop.f32.mrf.mxu0
    %3723 = vdwg.mxu0
    %v3724 = vpack.c.bf16 %v3713, %v3710
    %v3725 = vpack.c.bf16 %v3721, %v3718
    %s3726 = scalar_lea.vmem %s25, 384
    %v3727 = vld [vmem:[%s3726] sm:$0xff]
    %v3728 = vld [vmem:[%s3726 + $0x8] sm:$0xff]
    %v3729 = vld [vmem:[%s3726 + $0x10] sm:$0xff]
    %v3730 = vld [vmem:[%s3726 + $0x18] sm:$0xff]
    %v3731 = vld [vmem:[%s3726 + $0x20] sm:$0xff]
    %v3732 = vld [vmem:[%s3726 + $0x28] sm:$0xff]
    %v3733 = vld [vmem:[%s3726 + $0x30] sm:$0xff]
    %v3734 = vld [vmem:[%s3726 + $0x38] sm:$0xff]
    %v3735 = vld [vmem:[%s3726 + $0x40] sm:$0xff]
    %v3736 = vld [vmem:[%s3726 + $0x48] sm:$0xff]
    %v3737 = vld [vmem:[%s3726 + $0x50] sm:$0xff]
    %v3738 = vld [vmem:[%s3726 + $0x58] sm:$0xff]
    %v3739 = vld [vmem:[%s3726 + $0x60] sm:$0xff]
    %v3740 = vld [vmem:[%s3726 + $0x68] sm:$0xff]
    %v3741 = vld [vmem:[%s3726 + $0x70] sm:$0xff]
    %v3742 = vld [vmem:[%s3726 + $0x78] sm:$0xff]
    %v3759 = vunpack.c.l.b16 %v3727
    %v3760 = vunpack.c.h.b16 %v3727
    %v3761 = vunpack.c.l.b16 %v3728
    %v3762 = vunpack.c.h.b16 %v3728
    %v3763 = vunpack.c.l.b16 %v3729
    %v3764 = vunpack.c.h.b16 %v3729
    %v3765 = vunpack.c.l.b16 %v3730
    %v3766 = vunpack.c.h.b16 %v3730
    %v3767 = vunpack.c.l.b16 %v3731
    %v3768 = vunpack.c.h.b16 %v3731
    %v3769 = vunpack.c.l.b16 %v3732
    %v3770 = vunpack.c.h.b16 %v3732
    %v3771 = vunpack.c.l.b16 %v3733
    %v3772 = vunpack.c.h.b16 %v3733
    %v3773 = vunpack.c.l.b16 %v3734
    %v3774 = vunpack.c.h.b16 %v3734
    %v3775 = vunpack.c.l.b16 %v3735
    %v3776 = vunpack.c.h.b16 %v3735
    %v3777 = vunpack.c.l.b16 %v3736
    %v3778 = vunpack.c.h.b16 %v3736
    %v3779 = vunpack.c.l.b16 %v3737
    %v3780 = vunpack.c.h.b16 %v3737
    %v3781 = vunpack.c.l.b16 %v3738
    %v3782 = vunpack.c.h.b16 %v3738
    %v3783 = vunpack.c.l.b16 %v3739
    %v3784 = vunpack.c.h.b16 %v3739
    %v3785 = vunpack.c.l.b16 %v3740
    %v3786 = vunpack.c.h.b16 %v3740
    %v3787 = vunpack.c.l.b16 %v3741
    %v3788 = vunpack.c.h.b16 %v3741
    %v3789 = vunpack.c.l.b16 %v3742
    %v3790 = vunpack.c.h.b16 %v3742
    %v3791 = vpack.c.b16 %v3761, %v3759
    %v3792 = vpack.c.b16 %v3762, %v3760
    %v3793 = vpack.c.b16 %v3765, %v3763
    %v3794 = vpack.c.b16 %v3766, %v3764
    %v3795 = vpack.c.b16 %v3769, %v3767
    %v3796 = vpack.c.b16 %v3770, %v3768
    %v3797 = vpack.c.b16 %v3773, %v3771
    %v3798 = vpack.c.b16 %v3774, %v3772
    %v3799 = vpack.c.b16 %v3777, %v3775
    %v3800 = vpack.c.b16 %v3778, %v3776
    %v3801 = vpack.c.b16 %v3781, %v3779
    %v3802 = vpack.c.b16 %v3782, %v3780
    %v3803 = vpack.c.b16 %v3785, %v3783
    %v3804 = vpack.c.b16 %v3786, %v3784
    %v3805 = vpack.c.b16 %v3789, %v3787
    %v3806 = vpack.c.b16 %v3790, %v3788
    %3823 = vmatprep.subr.bf16.mxu0 %v3806
    %3824 = vmatpush1.bf16.msra.mxu0 %v3805
    %3825 = vmatprep.subr.bf16.mxu0 %v3804
    %3826 = vmatpush1.bf16.msra.mxu0 %v3803
    %3827 = vmatprep.subr.bf16.mxu0 %v3802
    %3828 = vmatpush1.bf16.msra.mxu0 %v3801
    %3829 = vmatprep.subr.bf16.mxu0 %v3800
    %3830 = vmatpush1.bf16.msra.mxu0 %v3799
    %3831 = vmatprep.subr.bf16.mxu0 %v3798
    %3832 = vmatpush1.bf16.msra.mxu0 %v3797
    %3833 = vmatprep.subr.bf16.mxu0 %v3796
    %3834 = vmatpush1.bf16.msra.mxu0 %v3795
    %3835 = vmatprep.subr.bf16.mxu0 %v3794
    %3836 = vmatpush1.bf16.msra.mxu0 %v3793
    %3837 = vmatprep.subr.bf16.mxu0 %v3792
    %3838 = vmatpush1.bf16.msra.mxu0 %v3791
    %3839 = vmatprep.subr.bf16.mxu0 0
    %3840 = vmatpush2.bf16.msra.mxu0 0
    %3841 = vmatprep.subr.bf16.mxu0 0
    %3842 = vmatpush2.bf16.msra.mxu0 0
    %3843 = vmatprep.subr.bf16.mxu0 0
    %3844 = vmatpush2.bf16.msra.mxu0 0
    %3845 = vmatprep.subr.bf16.mxu0 0
    %3846 = vmatpush2.bf16.msra.mxu0 0
    %3847 = vmatprep.subr.bf16.mxu0 0
    %3848 = vmatpush2.bf16.msra.mxu0 0
    %3849 = vmatprep.subr.bf16.mxu0 0
    %3850 = vmatpush2.bf16.msra.mxu0 0
    %3851 = vmatprep.subr.bf16.mxu0 0
    %3852 = vmatpush2.bf16.msra.mxu0 0
    %3853 = vmatprep.subr.bf16.mxu0 0
    %3854 = vmatpush2.bf16.msra.mxu0 0
    %3855 = vmatprep.mubr.bf16.mxu0 0
    %3856 = vmatmul.mubr.bf16.gmra.mxu0 %v3724
    %v3857 = vpop.f32.mrf.mxu0
    %v3858 = vadd.f32 0.0, %v3857
    %v3859 = vpop.f32.mrf.mxu0
    %v3860 = vadd.f32 0.0, %v3859
    %v3861 = vpop.f32.mrf.mxu0
    %v3862 = vadd.f32 0.0, %v3861
    %v3863 = vpop.f32.mrf.mxu0
    %v3864 = vadd.f32 0.0, %v3863
    %3865 = vmatprep.mubr.bf16.mxu0 0
    %3866 = vmatmul.mubr.bf16.gmra.mxu0 %v3725
    %v3867 = vpop.f32.mrf.mxu0
    %v3868 = vadd.f32 0.0, %v3867
    %v3869 = vpop.f32.mrf.mxu0
    %v3870 = vadd.f32 0.0, %v3869
    %v3871 = vpop.f32.mrf.mxu0
    %v3872 = vadd.f32 0.0, %v3871
    %v3873 = vpop.f32.mrf.mxu0
    %v3874 = vadd.f32 0.0, %v3873
    %3875 = vdwg.mxu0
    %v3876 = vadd.f32 %v3646, %v3858
    %v3877 = vadd.f32 %v3647, %v3860
    %v3878 = vadd.f32 %v3648, %v3862
    %v3879 = vadd.f32 %v3649, %v3864
    %v3880 = vadd.f32 %v3650, %v3868
    %v3881 = vadd.f32 %v3651, %v3870
    %v3882 = vadd.f32 %v3652, %v3872
    %v3883 = vadd.f32 %v3653, %v3874
    %s3884 = scalar_lea.vmem [#allocation13], 64
    %v3885 = vld [vmem:[%s3884] sm:$0xf]
    %v3886 = vld [vmem:[%s3884 + $0x4] sm:$0xf]
    %v3887 = vld [vmem:[%s3884 + $0x8] sm:$0xf]
    %v3888 = vld [vmem:[%s3884 + $0xc] sm:$0xf]
    %v3893 = vunpack.c.l.b16 %v3885
    %v3894 = vunpack.c.l.b16 %v3886
    %v3895 = vunpack.c.l.b16 %v3887
    %v3896 = vunpack.c.l.b16 %v3888
    %v3897 = vpack.c.b16 %v3894, %v3893
    %v3898 = vpack.c.b16 %v3896, %v3895
    %v3900 = vsel %vm2995, %v3897, 0
    %v3903 = vsel %vm2995, %v3898, 0
    %3905 = vmatprep.subr.bf16.mxu0 0
    %3906 = vmatpush1.bf16.msra.mxu0 0
    %3907 = vmatprep.subr.bf16.mxu0 0
    %3908 = vmatpush1.bf16.msra.mxu0 0
    %3909 = vmatprep.subr.bf16.mxu0 0
    %3910 = vmatpush1.bf16.msra.mxu0 0
    %3911 = vmatprep.subr.bf16.mxu0 0
    %3912 = vmatpush1.bf16.msra.mxu0 0
    %3913 = vmatprep.subr.bf16.mxu0 0
    %3914 = vmatpush1.bf16.msra.mxu0 0
    %3915 = vmatprep.subr.bf16.mxu0 0
    %3916 = vmatpush1.bf16.msra.mxu0 0
    %3917 = vmatprep.subr.bf16.mxu0 0
    %3918 = vmatpush1.bf16.msra.mxu0 %v2980
    %3919 = vmatprep.subr.bf16.mxu0 0
    %3920 = vmatpush1.bf16.msra.mxu0 %v2979
    %3921 = vmatprep.subr.bf16.mxu0 0
    %3922 = vmatpush2.bf16.msra.mxu0 0
    %3923 = vmatprep.subr.bf16.mxu0 0
    %3924 = vmatpush2.bf16.msra.mxu0 0
    %3925 = vmatprep.subr.bf16.mxu0 0
    %3926 = vmatpush2.bf16.msra.mxu0 0
    %3927 = vmatprep.subr.bf16.mxu0 0
    %3928 = vmatpush2.bf16.msra.mxu0 0
    %3929 = vmatprep.subr.bf16.mxu0 0
    %3930 = vmatpush2.bf16.msra.mxu0 0
    %3931 = vmatprep.subr.bf16.mxu0 0
    %3932 = vmatpush2.bf16.msra.mxu0 0
    %3933 = vmatprep.subr.bf16.mxu0 0
    %3934 = vmatpush2.bf16.msra.mxu0 0
    %3935 = vmatprep.subr.bf16.mxu0 0
    %3936 = vmatpush2.bf16.msra.mxu0 0
    %3937 = vmatprep.mubr.bf16.mxu0 0
    %3938 = vmatmul.mubr.bf16.gmra.mxu0 %v3900
    %v3939 = vpop.f32.mrf.mxu0
    %v3940 = vadd.f32 0.0, %v3939
    %v3941 = vpop.f32.mrf.mxu0
    %v3942 = vpop.f32.mrf.mxu0
    %v3943 = vadd.f32 0.0, %v3942
    %v3944 = vpop.f32.mrf.mxu0
    %3945 = vmatprep.mubr.bf16.mxu0 0
    %3946 = vmatmul.mubr.bf16.gmra.mxu0 %v3903
    %v3947 = vpop.f32.mrf.mxu0
    %v3948 = vadd.f32 0.0, %v3947
    %v3949 = vpop.f32.mrf.mxu0
    %v3950 = vpop.f32.mrf.mxu0
    %v3951 = vadd.f32 0.0, %v3950
    %v3952 = vpop.f32.mrf.mxu0
    %3953 = vdwg.mxu0
    %v3954 = vpack.c.bf16 %v3943, %v3940
    %v3955 = vpack.c.bf16 %v3951, %v3948
    %s3956 = scalar_lea.vmem %s25, 512
    %v3957 = vld [vmem:[%s3956] sm:$0xff]
    %v3958 = vld [vmem:[%s3956 + $0x8] sm:$0xff]
    %v3959 = vld [vmem:[%s3956 + $0x10] sm:$0xff]
    %v3960 = vld [vmem:[%s3956 + $0x18] sm:$0xff]
    %v3961 = vld [vmem:[%s3956 + $0x20] sm:$0xff]
    %v3962 = vld [vmem:[%s3956 + $0x28] sm:$0xff]
    %v3963 = vld [vmem:[%s3956 + $0x30] sm:$0xff]
    %v3964 = vld [vmem:[%s3956 + $0x38] sm:$0xff]
    %v3965 = vld [vmem:[%s3956 + $0x40] sm:$0xff]
    %v3966 = vld [vmem:[%s3956 + $0x48] sm:$0xff]
    %v3967 = vld [vmem:[%s3956 + $0x50] sm:$0xff]
    %v3968 = vld [vmem:[%s3956 + $0x58] sm:$0xff]
    %v3969 = vld [vmem:[%s3956 + $0x60] sm:$0xff]
    %v3970 = vld [vmem:[%s3956 + $0x68] sm:$0xff]
    %v3971 = vld [vmem:[%s3956 + $0x70] sm:$0xff]
    %v3972 = vld [vmem:[%s3956 + $0x78] sm:$0xff]
    %v3989 = vunpack.c.l.b16 %v3957
    %v3990 = vunpack.c.h.b16 %v3957
    %v3991 = vunpack.c.l.b16 %v3958
    %v3992 = vunpack.c.h.b16 %v3958
    %v3993 = vunpack.c.l.b16 %v3959
    %v3994 = vunpack.c.h.b16 %v3959
    %v3995 = vunpack.c.l.b16 %v3960
    %v3996 = vunpack.c.h.b16 %v3960
    %v3997 = vunpack.c.l.b16 %v3961
    %v3998 = vunpack.c.h.b16 %v3961
    %v3999 = vunpack.c.l.b16 %v3962
    %v4000 = vunpack.c.h.b16 %v3962
    %v4001 = vunpack.c.l.b16 %v3963
    %v4002 = vunpack.c.h.b16 %v3963
    %v4003 = vunpack.c.l.b16 %v3964
    %v4004 = vunpack.c.h.b16 %v3964
    %v4005 = vunpack.c.l.b16 %v3965
    %v4006 = vunpack.c.h.b16 %v3965
    %v4007 = vunpack.c.l.b16 %v3966
    %v4008 = vunpack.c.h.b16 %v3966
    %v4009 = vunpack.c.l.b16 %v3967
    %v4010 = vunpack.c.h.b16 %v3967
    %v4011 = vunpack.c.l.b16 %v3968
    %v4012 = vunpack.c.h.b16 %v3968
    %v4013 = vunpack.c.l.b16 %v3969
    %v4014 = vunpack.c.h.b16 %v3969
    %v4015 = vunpack.c.l.b16 %v3970
    %v4016 = vunpack.c.h.b16 %v3970
    %v4017 = vunpack.c.l.b16 %v3971
    %v4018 = vunpack.c.h.b16 %v3971
    %v4019 = vunpack.c.l.b16 %v3972
    %v4020 = vunpack.c.h.b16 %v3972
    %v4021 = vpack.c.b16 %v3991, %v3989
    %v4022 = vpack.c.b16 %v3992, %v3990
    %v4023 = vpack.c.b16 %v3995, %v3993
    %v4024 = vpack.c.b16 %v3996, %v3994
    %v4025 = vpack.c.b16 %v3999, %v3997
    %v4026 = vpack.c.b16 %v4000, %v3998
    %v4027 = vpack.c.b16 %v4003, %v4001
    %v4028 = vpack.c.b16 %v4004, %v4002
    %v4029 = vpack.c.b16 %v4007, %v4005
    %v4030 = vpack.c.b16 %v4008, %v4006
    %v4031 = vpack.c.b16 %v4011, %v4009
    %v4032 = vpack.c.b16 %v4012, %v4010
    %v4033 = vpack.c.b16 %v4015, %v4013
    %v4034 = vpack.c.b16 %v4016, %v4014
    %v4035 = vpack.c.b16 %v4019, %v4017
    %v4036 = vpack.c.b16 %v4020, %v4018
    %4053 = vmatprep.subr.bf16.mxu0 %v4036
    %4054 = vmatpush1.bf16.msra.mxu0 %v4035
    %4055 = vmatprep.subr.bf16.mxu0 %v4034
    %4056 = vmatpush1.bf16.msra.mxu0 %v4033
    %4057 = vmatprep.subr.bf16.mxu0 %v4032
    %4058 = vmatpush1.bf16.msra.mxu0 %v4031
    %4059 = vmatprep.subr.bf16.mxu0 %v4030
    %4060 = vmatpush1.bf16.msra.mxu0 %v4029
    %4061 = vmatprep.subr.bf16.mxu0 %v4028
    %4062 = vmatpush1.bf16.msra.mxu0 %v4027
    %4063 = vmatprep.subr.bf16.mxu0 %v4026
    %4064 = vmatpush1.bf16.msra.mxu0 %v4025
    %4065 = vmatprep.subr.bf16.mxu0 %v4024
    %4066 = vmatpush1.bf16.msra.mxu0 %v4023
    %4067 = vmatprep.subr.bf16.mxu0 %v4022
    %4068 = vmatpush1.bf16.msra.mxu0 %v4021
    %4069 = vmatprep.subr.bf16.mxu0 0
    %4070 = vmatpush2.bf16.msra.mxu0 0
    %4071 = vmatprep.subr.bf16.mxu0 0
    %4072 = vmatpush2.bf16.msra.mxu0 0
    %4073 = vmatprep.subr.bf16.mxu0 0
    %4074 = vmatpush2.bf16.msra.mxu0 0
    %4075 = vmatprep.subr.bf16.mxu0 0
    %4076 = vmatpush2.bf16.msra.mxu0 0
    %4077 = vmatprep.subr.bf16.mxu0 0
    %4078 = vmatpush2.bf16.msra.mxu0 0
    %4079 = vmatprep.subr.bf16.mxu0 0
    %4080 = vmatpush2.bf16.msra.mxu0 0
    %4081 = vmatprep.subr.bf16.mxu0 0
    %4082 = vmatpush2.bf16.msra.mxu0 0
    %4083 = vmatprep.subr.bf16.mxu0 0
    %4084 = vmatpush2.bf16.msra.mxu0 0
    %4085 = vmatprep.mubr.bf16.mxu0 0
    %4086 = vmatmul.mubr.bf16.gmra.mxu0 %v3954
    %v4087 = vpop.f32.mrf.mxu0
    %v4088 = vadd.f32 0.0, %v4087
    %v4089 = vpop.f32.mrf.mxu0
    %v4090 = vadd.f32 0.0, %v4089
    %v4091 = vpop.f32.mrf.mxu0
    %v4092 = vadd.f32 0.0, %v4091
    %v4093 = vpop.f32.mrf.mxu0
    %v4094 = vadd.f32 0.0, %v4093
    %4095 = vmatprep.mubr.bf16.mxu0 0
    %4096 = vmatmul.mubr.bf16.gmra.mxu0 %v3955
    %v4097 = vpop.f32.mrf.mxu0
    %v4098 = vadd.f32 0.0, %v4097
    %v4099 = vpop.f32.mrf.mxu0
    %v4100 = vadd.f32 0.0, %v4099
    %v4101 = vpop.f32.mrf.mxu0
    %v4102 = vadd.f32 0.0, %v4101
    %v4103 = vpop.f32.mrf.mxu0
    %v4104 = vadd.f32 0.0, %v4103
    %4105 = vdwg.mxu0
    %v4106 = vadd.f32 %v3876, %v4088
    %v4107 = vadd.f32 %v3877, %v4090
    %v4108 = vadd.f32 %v3878, %v4092
    %v4109 = vadd.f32 %v3879, %v4094
    %v4110 = vadd.f32 %v3880, %v4098
    %v4111 = vadd.f32 %v3881, %v4100
    %v4112 = vadd.f32 %v3882, %v4102
    %v4113 = vadd.f32 %v3883, %v4104
    %v4114 = vadd.f32 %v4106, %v4108
    %v4115 = vadd.f32 %v4114, %v4110
    %v4116 = vadd.f32 %v4115, %v4112
    %v4117 = vrot.slane %v4116, 4
    %v4118 = vadd.f32 %v4116, %v4117
    %v4119 = vrot.slane %v4118, 2
    %v4120 = vadd.f32 %v4118, %v4119
    %v4121 = vrot.slane %v4120, 1
    %v4122 = vadd.f32 %v4120, %v4121
    %v4123 = vadd.f32 %v4107, %v4109
    %v4124 = vadd.f32 %v4123, %v4111
    %v4125 = vadd.f32 %v4124, %v4113
    %v4126 = vrot.slane %v4125, 4
    %v4127 = vadd.f32 %v4125, %v4126
    %v4128 = vrot.slane %v4127, 2
    %v4129 = vadd.f32 %v4127, %v4128
    %v4130 = vrot.slane %v4129, 1
    %v4131 = vadd.f32 %v4129, %v4130
    %v4132 = vmul.f32 %v4106, %v4106
    %v4133 = vmul.f32 %v4107, %v4107
    %v4134 = vmul.f32 %v4108, %v4108
    %v4135 = vmul.f32 %v4109, %v4109
    %v4136 = vmul.f32 %v4110, %v4110
    %v4137 = vmul.f32 %v4111, %v4111
    %v4138 = vmul.f32 %v4112, %v4112
    %v4139 = vmul.f32 %v4113, %v4113
    %v4140 = vadd.f32 %v4132, %v4134
    %v4141 = vadd.f32 %v4140, %v4136
    %v4142 = vadd.f32 %v4141, %v4138
    %v4143 = vrot.slane %v4142, 4
    %v4144 = vadd.f32 %v4142, %v4143
    %v4145 = vrot.slane %v4144, 2
    %v4146 = vadd.f32 %v4144, %v4145
    %v4147 = vrot.slane %v4146, 1
    %v4148 = vadd.f32 %v4146, %v4147
    %v4149 = vadd.f32 %v4133, %v4135
    %v4150 = vadd.f32 %v4149, %v4137
    %v4151 = vadd.f32 %v4150, %v4139
    %v4152 = vrot.slane %v4151, 4
    %v4153 = vadd.f32 %v4151, %v4152
    %v4154 = vrot.slane %v4153, 2
    %v4155 = vadd.f32 %v4153, %v4154
    %v4156 = vrot.slane %v4155, 1
    %v4157 = vadd.f32 %v4155, %v4156
    %v4158 = vld [vmem:[%s27] sm:$0xff]
    %v4159 = vld [vmem:[%s27 + $0x8] sm:$0xff]
    %v4160 = vld [vmem:[%s27 + $0x10] sm:$0xff]
    %v4161 = vld [vmem:[%s27 + $0x18] sm:$0xff]
    %v4162 = vld [vmem:[%s27 + $0x20] sm:$0xff]
    %v4163 = vld [vmem:[%s27 + $0x28] sm:$0xff]
    %v4164 = vld [vmem:[%s27 + $0x30] sm:$0xff]
    %v4165 = vld [vmem:[%s27 + $0x38] sm:$0xff]
    %v4166 = vld [vmem:[%s27 + $0x40] sm:$0xff]
    %v4167 = vld [vmem:[%s27 + $0x48] sm:$0xff]
    %v4168 = vld [vmem:[%s27 + $0x50] sm:$0xff]
    %v4169 = vld [vmem:[%s27 + $0x58] sm:$0xff]
    %v4170 = vld [vmem:[%s27 + $0x60] sm:$0xff]
    %v4171 = vld [vmem:[%s27 + $0x68] sm:$0xff]
    %v4172 = vld [vmem:[%s27 + $0x70] sm:$0xff]
    %v4173 = vld [vmem:[%s27 + $0x78] sm:$0xff]
    %v4174 = vld [vmem:[%s27 + $0x80] sm:$0xff]
    %v4175 = vld [vmem:[%s27 + $0x88] sm:$0xff]
    %v4176 = vld [vmem:[%s27 + $0x90] sm:$0xff]
    %v4177 = vld [vmem:[%s27 + $0x98] sm:$0xff]
    %v4178 = vld [vmem:[%s27 + $0xa0] sm:$0xff]
    %v4179 = vld [vmem:[%s27 + $0xa8] sm:$0xff]
    %v4180 = vld [vmem:[%s27 + $0xb0] sm:$0xff]
    %v4181 = vld [vmem:[%s27 + $0xb8] sm:$0xff]
    %v4182 = vld [vmem:[%s27 + $0xc0] sm:$0xff]
    %v4183 = vld [vmem:[%s27 + $0xc8] sm:$0xff]
    %v4184 = vld [vmem:[%s27 + $0xd0] sm:$0xff]
    %v4185 = vld [vmem:[%s27 + $0xd8] sm:$0xff]
    %v4186 = vld [vmem:[%s27 + $0xe0] sm:$0xff]
    %v4187 = vld [vmem:[%s27 + $0xe8] sm:$0xff]
    %v4188 = vld [vmem:[%s27 + $0xf0] sm:$0xff]
    %v4189 = vld [vmem:[%s27 + $0xf8] sm:$0xff]
    %4190 = vmatprep.subr.mxu0 0.0
    %4191 = vmatpush1.msra.mxu0 %v4173
    %4192 = vmatprep.subr.mxu0 0.0
    %4193 = vmatpush1.msra.mxu0 %v4172
    %4194 = vmatprep.subr.mxu0 0.0
    %4195 = vmatpush1.msra.mxu0 %v4171
    %4196 = vmatprep.subr.mxu0 0.0
    %4197 = vmatpush1.msra.mxu0 %v4170
    %4198 = vmatprep.subr.mxu0 0.0
    %4199 = vmatpush1.msra.mxu0 %v4169
    %4200 = vmatprep.subr.mxu0 0.0
    %4201 = vmatpush1.msra.mxu0 %v4168
    %4202 = vmatprep.subr.mxu0 0.0
    %4203 = vmatpush1.msra.mxu0 %v4167
    %4204 = vmatprep.subr.mxu0 0.0
    %4205 = vmatpush1.msra.mxu0 %v4166
    %4206 = vmatprep.subr.mxu0 0.0
    %4207 = vmatpush1.msra.mxu0 %v4165
    %4208 = vmatprep.subr.mxu0 0.0
    %4209 = vmatpush1.msra.mxu0 %v4164
    %4210 = vmatprep.subr.mxu0 0.0
    %4211 = vmatpush1.msra.mxu0 %v4163
    %4212 = vmatprep.subr.mxu0 0.0
    %4213 = vmatpush1.msra.mxu0 %v4162
    %4214 = vmatprep.subr.mxu0 0.0
    %4215 = vmatpush1.msra.mxu0 %v4161
    %4216 = vmatprep.subr.mxu0 0.0
    %4217 = vmatpush1.msra.mxu0 %v4160
    %4218 = vmatprep.subr.mxu0 0.0
    %4219 = vmatpush1.msra.mxu0 %v4159
    %4220 = vmatprep.subr.mxu0 0.0
    %4221 = vmatpush1.msra.mxu0 %v4158
    %4222 = vmatprep.subr.mxu0 0.0
    %4223 = vmatpush2.msra.mxu0 %v4189
    %4224 = vmatprep.subr.mxu0 0.0
    %4225 = vmatpush2.msra.mxu0 %v4188
    %4226 = vmatprep.subr.mxu0 0.0
    %4227 = vmatpush2.msra.mxu0 %v4187
    %4228 = vmatprep.subr.mxu0 0.0
    %4229 = vmatpush2.msra.mxu0 %v4186
    %4230 = vmatprep.subr.mxu0 0.0
    %4231 = vmatpush2.msra.mxu0 %v4185
    %4232 = vmatprep.subr.mxu0 0.0
    %4233 = vmatpush2.msra.mxu0 %v4184
    %4234 = vmatprep.subr.mxu0 0.0
    %4235 = vmatpush2.msra.mxu0 %v4183
    %4236 = vmatprep.subr.mxu0 0.0
    %4237 = vmatpush2.msra.mxu0 %v4182
    %4238 = vmatprep.subr.mxu0 0.0
    %4239 = vmatpush2.msra.mxu0 %v4181
    %4240 = vmatprep.subr.mxu0 0.0
    %4241 = vmatpush2.msra.mxu0 %v4180
    %4242 = vmatprep.subr.mxu0 0.0
    %4243 = vmatpush2.msra.mxu0 %v4179
    %4244 = vmatprep.subr.mxu0 0.0
    %4245 = vmatpush2.msra.mxu0 %v4178
    %4246 = vmatprep.subr.mxu0 0.0
    %4247 = vmatpush2.msra.mxu0 %v4177
    %4248 = vmatprep.subr.mxu0 0.0
    %4249 = vmatpush2.msra.mxu0 %v4176
    %4250 = vmatprep.subr.mxu0 0.0
    %4251 = vmatpush2.msra.mxu0 %v4175
    %4252 = vmatprep.subr.mxu0 0.0
    %4253 = vmatpush2.msra.mxu0 %v4174
    %4254 = vmatprep.mubr.f32.mxu0 %v4131
    %4255 = vmatmul.mubr.f32.gmra.mxu0 %v4122
    %v4256 = vpop.f32.mrf.mxu0
    %v4257 = vadd.f32 0.0, %v4256
    %v4258 = vpop.f32.mrf.mxu0
    %4259 = vdwg.mxu0
    %4260 = vmatprep.subr.mxu0 0.0
    %4261 = vmatpush1.msra.mxu0 %v4173
    %4262 = vmatprep.subr.mxu0 0.0
    %4263 = vmatpush1.msra.mxu0 %v4172
    %4264 = vmatprep.subr.mxu0 0.0
    %4265 = vmatpush1.msra.mxu0 %v4171
    %4266 = vmatprep.subr.mxu0 0.0
    %4267 = vmatpush1.msra.mxu0 %v4170
    %4268 = vmatprep.subr.mxu0 0.0
    %4269 = vmatpush1.msra.mxu0 %v4169
    %4270 = vmatprep.subr.mxu0 0.0
    %4271 = vmatpush1.msra.mxu0 %v4168
    %4272 = vmatprep.subr.mxu0 0.0
    %4273 = vmatpush1.msra.mxu0 %v4167
    %4274 = vmatprep.subr.mxu0 0.0
    %4275 = vmatpush1.msra.mxu0 %v4166
    %4276 = vmatprep.subr.mxu0 0.0
    %4277 = vmatpush1.msra.mxu0 %v4165
    %4278 = vmatprep.subr.mxu0 0.0
    %4279 = vmatpush1.msra.mxu0 %v4164
    %4280 = vmatprep.subr.mxu0 0.0
    %4281 = vmatpush1.msra.mxu0 %v4163
    %4282 = vmatprep.subr.mxu0 0.0
    %4283 = vmatpush1.msra.mxu0 %v4162
    %4284 = vmatprep.subr.mxu0 0.0
    %4285 = vmatpush1.msra.mxu0 %v4161
    %4286 = vmatprep.subr.mxu0 0.0
    %4287 = vmatpush1.msra.mxu0 %v4160
    %4288 = vmatprep.subr.mxu0 0.0
    %4289 = vmatpush1.msra.mxu0 %v4159
    %4290 = vmatprep.subr.mxu0 0.0
    %4291 = vmatpush1.msra.mxu0 %v4158
    %4292 = vmatprep.subr.mxu0 0.0
    %4293 = vmatpush2.msra.mxu0 %v4189
    %4294 = vmatprep.subr.mxu0 0.0
    %4295 = vmatpush2.msra.mxu0 %v4188
    %4296 = vmatprep.subr.mxu0 0.0
    %4297 = vmatpush2.msra.mxu0 %v4187
    %4298 = vmatprep.subr.mxu0 0.0
    %4299 = vmatpush2.msra.mxu0 %v4186
    %4300 = vmatprep.subr.mxu0 0.0
    %4301 = vmatpush2.msra.mxu0 %v4185
    %4302 = vmatprep.subr.mxu0 0.0
    %4303 = vmatpush2.msra.mxu0 %v4184
    %4304 = vmatprep.subr.mxu0 0.0
    %4305 = vmatpush2.msra.mxu0 %v4183
    %4306 = vmatprep.subr.mxu0 0.0
    %4307 = vmatpush2.msra.mxu0 %v4182
    %4308 = vmatprep.subr.mxu0 0.0
    %4309 = vmatpush2.msra.mxu0 %v4181
    %4310 = vmatprep.subr.mxu0 0.0
    %4311 = vmatpush2.msra.mxu0 %v4180
    %4312 = vmatprep.subr.mxu0 0.0
    %4313 = vmatpush2.msra.mxu0 %v4179
    %4314 = vmatprep.subr.mxu0 0.0
    %4315 = vmatpush2.msra.mxu0 %v4178
    %4316 = vmatprep.subr.mxu0 0.0
    %4317 = vmatpush2.msra.mxu0 %v4177
    %4318 = vmatprep.subr.mxu0 0.0
    %4319 = vmatpush2.msra.mxu0 %v4176
    %4320 = vmatprep.subr.mxu0 0.0
    %4321 = vmatpush2.msra.mxu0 %v4175
    %4322 = vmatprep.subr.mxu0 0.0
    %4323 = vmatpush2.msra.mxu0 %v4174
    %4324 = vmatprep.mubr.f32.mxu0 %v4157
    %4325 = vmatmul.mubr.f32.gmra.mxu0 %v4148
    %v4326 = vpop.f32.mrf.mxu0
    %v4327 = vadd.f32 0.0, %v4326
    %v4328 = vpop.f32.mrf.mxu0
    %4329 = vdwg.mxu0
    %v4330 = vmul.f32 %v4257, 0.001953125
    %v4331 = vmul.f32 %v4327, 0.001953125
    %v4332 = vmul.f32 %v4330, %v4330
    %v4333 = vsub.f32 %v4331, %v4332
    %v4334 = vmax.f32 %v4333, 0.0
    %v4335 = vadd.f32 %v4334, 1e-05
    %v4336 = vrsqrt.pop %v4335
    %v4337 = vld [vmem:[#allocation14] sm:$0xff]
    %v4338 = vld [vmem:[#allocation14 + $0x8] sm:$0xff]
    %v4339 = vld [vmem:[#allocation14 + $0x10] sm:$0xff]
    %v4340 = vld [vmem:[#allocation14 + $0x18] sm:$0xff]
    %vm4341 = vcmask 130048
    %v4343 = vsel %vm4341, %v4330, 0
    %4345 = vmatprep.subr.mxu0 0.0
    %4346 = vmatpush1.msra.mxu0 0.0
    %4347 = vmatprep.subr.mxu0 0.0
    %4348 = vmatpush1.msra.mxu0 0.0
    %4349 = vmatprep.subr.mxu0 0.0
    %4350 = vmatpush1.msra.mxu0 0.0
    %4351 = vmatprep.subr.mxu0 0.0
    %4352 = vmatpush1.msra.mxu0 0.0
    %4353 = vmatprep.subr.mxu0 0.0
    %4354 = vmatpush1.msra.mxu0 0.0
    %4355 = vmatprep.subr.mxu0 0.0
    %4356 = vmatpush1.msra.mxu0 0.0
    %4357 = vmatprep.subr.mxu0 0.0
    %4358 = vmatpush1.msra.mxu0 0.0
    %4359 = vmatprep.subr.mxu0 0.0
    %4360 = vmatpush1.msra.mxu0 0.0
    %4361 = vmatprep.subr.mxu0 0.0
    %4362 = vmatpush1.msra.mxu0 0.0
    %4363 = vmatprep.subr.mxu0 0.0
    %4364 = vmatpush1.msra.mxu0 0.0
    %4365 = vmatprep.subr.mxu0 0.0
    %4366 = vmatpush1.msra.mxu0 0.0
    %4367 = vmatprep.subr.mxu0 0.0
    %4368 = vmatpush1.msra.mxu0 0.0
    %4369 = vmatprep.subr.mxu0 0.0
    %4370 = vmatpush1.msra.mxu0 0.0
    %4371 = vmatprep.subr.mxu0 0.0
    %4372 = vmatpush1.msra.mxu0 0.0
    %4373 = vmatprep.subr.mxu0 %v4340
    %4374 = vmatpush1.msra.mxu0 %v4339
    %4375 = vmatprep.subr.mxu0 %v4338
    %4376 = vmatpush1.msra.mxu0 %v4337
    %4377 = vmatprep.subr.mxu0 0.0
    %4378 = vmatpush2.msra.mxu0 0.0
    %4379 = vmatprep.subr.mxu0 0.0
    %4380 = vmatpush2.msra.mxu0 0.0
    %4381 = vmatprep.subr.mxu0 0.0
    %4382 = vmatpush2.msra.mxu0 0.0
    %4383 = vmatprep.subr.mxu0 0.0
    %4384 = vmatpush2.msra.mxu0 0.0
    %4385 = vmatprep.subr.mxu0 0.0
    %4386 = vmatpush2.msra.mxu0 0.0
    %4387 = vmatprep.subr.mxu0 0.0
    %4388 = vmatpush2.msra.mxu0 0.0
    %4389 = vmatprep.subr.mxu0 0.0
    %4390 = vmatpush2.msra.mxu0 0.0
    %4391 = vmatprep.subr.mxu0 0.0
    %4392 = vmatpush2.msra.mxu0 0.0
    %4393 = vmatprep.subr.mxu0 0.0
    %4394 = vmatpush2.msra.mxu0 0.0
    %4395 = vmatprep.subr.mxu0 0.0
    %4396 = vmatpush2.msra.mxu0 0.0
    %4397 = vmatprep.subr.mxu0 0.0
    %4398 = vmatpush2.msra.mxu0 0.0
    %4399 = vmatprep.subr.mxu0 0.0
    %4400 = vmatpush2.msra.mxu0 0.0
    %4401 = vmatprep.subr.mxu0 0.0
    %4402 = vmatpush2.msra.mxu0 0.0
    %4403 = vmatprep.subr.mxu0 0.0
    %4404 = vmatpush2.msra.mxu0 0.0
    %4405 = vmatprep.subr.mxu0 0.0
    %4406 = vmatpush2.msra.mxu0 0.0
    %4407 = vmatprep.subr.mxu0 0.0
    %4408 = vmatpush2.msra.mxu0 0.0
    %4409 = vmatprep.mubr.f32.mxu0 0.0
    %4410 = vmatmul.mubr.f32.gmra.mxu0 %v4343
    %v4411 = vpop.f32.mrf.mxu0
    %v4412 = vadd.f32 0.0, %v4411
    %v4413 = vpop.f32.mrf.mxu0
    %v4414 = vadd.f32 0.0, %v4413
    %4415 = vdwg.mxu0
    %v4417 = vsel %vm4341, %v4336, 0
    %4419 = vmatprep.subr.mxu0 0.0
    %4420 = vmatpush1.msra.mxu0 0.0
    %4421 = vmatprep.subr.mxu0 0.0
    %4422 = vmatpush1.msra.mxu0 0.0
    %4423 = vmatprep.subr.mxu0 0.0
    %4424 = vmatpush1.msra.mxu0 0.0
    %4425 = vmatprep.subr.mxu0 0.0
    %4426 = vmatpush1.msra.mxu0 0.0
    %4427 = vmatprep.subr.mxu0 0.0
    %4428 = vmatpush1.msra.mxu0 0.0
    %4429 = vmatprep.subr.mxu0 0.0
    %4430 = vmatpush1.msra.mxu0 0.0
    %4431 = vmatprep.subr.mxu0 0.0
    %4432 = vmatpush1.msra.mxu0 0.0
    %4433 = vmatprep.subr.mxu0 0.0
    %4434 = vmatpush1.msra.mxu0 0.0
    %4435 = vmatprep.subr.mxu0 0.0
    %4436 = vmatpush1.msra.mxu0 0.0
    %4437 = vmatprep.subr.mxu0 0.0
    %4438 = vmatpush1.msra.mxu0 0.0
    %4439 = vmatprep.subr.mxu0 0.0
    %4440 = vmatpush1.msra.mxu0 0.0
    %4441 = vmatprep.subr.mxu0 0.0
    %4442 = vmatpush1.msra.mxu0 0.0
    %4443 = vmatprep.subr.mxu0 0.0
    %4444 = vmatpush1.msra.mxu0 0.0
    %4445 = vmatprep.subr.mxu0 0.0
    %4446 = vmatpush1.msra.mxu0 0.0
    %4447 = vmatprep.subr.mxu0 %v4340
    %4448 = vmatpush1.msra.mxu0 %v4339
    %4449 = vmatprep.subr.mxu0 %v4338
    %4450 = vmatpush1.msra.mxu0 %v4337
    %4451 = vmatprep.subr.mxu0 0.0
    %4452 = vmatpush2.msra.mxu0 0.0
    %4453 = vmatprep.subr.mxu0 0.0
    %4454 = vmatpush2.msra.mxu0 0.0
    %4455 = vmatprep.subr.mxu0 0.0
    %4456 = vmatpush2.msra.mxu0 0.0
    %4457 = vmatprep.subr.mxu0 0.0
    %4458 = vmatpush2.msra.mxu0 0.0
    %4459 = vmatprep.subr.mxu0 0.0
    %4460 = vmatpush2.msra.mxu0 0.0
    %4461 = vmatprep.subr.mxu0 0.0
    %4462 = vmatpush2.msra.mxu0 0.0
    %4463 = vmatprep.subr.mxu0 0.0
    %4464 = vmatpush2.msra.mxu0 0.0
    %4465 = vmatprep.subr.mxu0 0.0
    %4466 = vmatpush2.msra.mxu0 0.0
    %4467 = vmatprep.subr.mxu0 0.0
    %4468 = vmatpush2.msra.mxu0 0.0
    %4469 = vmatprep.subr.mxu0 0.0
    %4470 = vmatpush2.msra.mxu0 0.0
    %4471 = vmatprep.subr.mxu0 0.0
    %4472 = vmatpush2.msra.mxu0 0.0
    %4473 = vmatprep.subr.mxu0 0.0
    %4474 = vmatpush2.msra.mxu0 0.0
    %4475 = vmatprep.subr.mxu0 0.0
    %4476 = vmatpush2.msra.mxu0 0.0
    %4477 = vmatprep.subr.mxu0 0.0
    %4478 = vmatpush2.msra.mxu0 0.0
    %4479 = vmatprep.subr.mxu0 0.0
    %4480 = vmatpush2.msra.mxu0 0.0
    %4481 = vmatprep.subr.mxu0 0.0
    %4482 = vmatpush2.msra.mxu0 0.0
    %4483 = vmatprep.mubr.f32.mxu0 0.0
    %4484 = vmatmul.mubr.f32.gmra.mxu0 %v4417
    %v4485 = vpop.f32.mrf.mxu0
    %v4486 = vadd.f32 0.0, %v4485
    %v4487 = vpop.f32.mrf.mxu0
    %v4488 = vadd.f32 0.0, %v4487
    %4489 = vdwg.mxu0
    %v4490 = vld [vmem:[#allocation16] sm:$0x3]
    %v4493 = vcombine.low %v4486, %v4488
    %v4495 = vunpack.c.l.s4 1966171168
    %v4496 = vunpack.c.0.s8 %v4495
    %v4497 = vlaneseq
    %v4498 = vshrl.u32 %v4497, 7
    %v4499 = vsub.s32 %v4496, %v4498
    %v4500 = vrot.slane %v4493, %v4499
    %v4502 = vunpack.c.l.s4 1966171168
    %v4503 = vunpack.c.0.s8 %v4502
    %v4504 = vlaneseq
    %v4505 = vshrl.u32 %v4504, 7
    %v4506 = vsub.s32 %v4503, %v4505
    %v4507 = vrot.slane %v4500, %v4506
    %v4509 = vmul.f32 %v4490, %v4507
    %v4510 = vld [vmem:[#allocation17] sm:$0x3]
    %v4512 = vlaneseq
    %v4513 = vshrl.u32 %v4512, 7
    %v4514 = vsub.s32 0, %v4513
    %v4515 = vrot.slane %v4509, %v4514
    %v4516 = vlaneseq
    %v4517 = vshrl.u32 %v4516, 7
    %v4518 = vsub.s32 1, %v4517
    %v4519 = vrot.slane %v4509, %v4518
    %v4522 = vmul.f32 %v4412, %v4515
    %v4523 = vmul.f32 %v4414, %v4519
    %v4526 = vcombine.low %v4522, %v4523
    %v4528 = vunpack.c.l.s4 1966171168
    %v4529 = vunpack.c.0.s8 %v4528
    %v4530 = vlaneseq
    %v4531 = vshrl.u32 %v4530, 7
    %v4532 = vsub.s32 %v4529, %v4531
    %v4533 = vrot.slane %v4526, %v4532
    %v4535 = vunpack.c.l.s4 1966171168
    %v4536 = vunpack.c.0.s8 %v4535
    %v4537 = vlaneseq
    %v4538 = vshrl.u32 %v4537, 7
    %v4539 = vsub.s32 %v4536, %v4538
    %v4540 = vrot.slane %v4533, %v4539
    %v4542 = vsub.f32 %v4510, %v4540
    %v4543 = vmul.f32 %v4106, %v4515
    %v4544 = vmul.f32 %v4107, %v4519
    %v4545 = vmul.f32 %v4108, %v4515
    %v4546 = vmul.f32 %v4109, %v4519
    %v4547 = vmul.f32 %v4110, %v4515
    %v4548 = vmul.f32 %v4111, %v4519
    %v4549 = vmul.f32 %v4112, %v4515
    %v4550 = vmul.f32 %v4113, %v4519
    %v4552 = vlaneseq
    %v4553 = vshrl.u32 %v4552, 7
    %v4554 = vsub.s32 0, %v4553
    %v4555 = vrot.slane %v4542, %v4554
    %v4556 = vlaneseq
    %v4557 = vshrl.u32 %v4556, 7
    %v4558 = vsub.s32 1, %v4557
    %v4559 = vrot.slane %v4542, %v4558
    %v4562 = vadd.f32 %v4543, %v4555
    %v4563 = vadd.f32 %v4544, %v4559
    %v4564 = vadd.f32 %v4545, %v4555
    %v4565 = vadd.f32 %v4546, %v4559
    %v4566 = vadd.f32 %v4547, %v4555
    %v4567 = vadd.f32 %v4548, %v4559
    %v4568 = vadd.f32 %v4549, %v4555
    %v4569 = vadd.f32 %v4550, %v4559
    %v4570 = vmax.f32 %v4562, 0.0
    %v4571 = vmax.f32 %v4563, 0.0
    %v4572 = vmax.f32 %v4564, 0.0
    %v4573 = vmax.f32 %v4565, 0.0
    %v4574 = vmax.f32 %v4566, 0.0
    %v4575 = vmax.f32 %v4567, 0.0
    %v4576 = vmax.f32 %v4568, 0.0
    %v4577 = vmax.f32 %v4569, 0.0
    %v4578 = vpack.c.bf16 %v4572, %v4570
    %v4579 = vpack.c.bf16 %v4573, %v4571
    %v4580 = vpack.c.bf16 %v4576, %v4574
    %v4581 = vpack.c.bf16 %v4577, %v4575
    %v4582 = vld [vmem:[#allocation19] sm:$0xf]
    %v4583 = vld [vmem:[#allocation19 + $0x4] sm:$0xf]
    %v4584 = vld [vmem:[#allocation19 + $0x8] sm:$0xf]
    %v4585 = vld [vmem:[#allocation19 + $0xc] sm:$0xf]
    %v4586 = vld [vmem:[#allocation19 + $0x10] sm:$0xf]
    %v4587 = vld [vmem:[#allocation19 + $0x14] sm:$0xf]
    %v4588 = vld [vmem:[#allocation19 + $0x18] sm:$0xf]
    %v4589 = vld [vmem:[#allocation19 + $0x1c] sm:$0xf]
    %v4590 = vld [vmem:[#allocation19 + $0x20] sm:$0xf]
    %v4591 = vld [vmem:[#allocation19 + $0x24] sm:$0xf]
    %v4592 = vld [vmem:[#allocation19 + $0x28] sm:$0xf]
    %v4593 = vld [vmem:[#allocation19 + $0x2c] sm:$0xf]
    %v4594 = vld [vmem:[#allocation19 + $0x30] sm:$0xf]
    %v4595 = vld [vmem:[#allocation19 + $0x34] sm:$0xf]
    %v4596 = vld [vmem:[#allocation19 + $0x38] sm:$0xf]
    %v4597 = vld [vmem:[#allocation19 + $0x3c] sm:$0xf]
    %v4598 = vld [vmem:[#allocation19 + $0x40] sm:$0xf]
    %v4599 = vld [vmem:[#allocation19 + $0x44] sm:$0xf]
    %v4600 = vld [vmem:[#allocation19 + $0x48] sm:$0xf]
    %v4601 = vld [vmem:[#allocation19 + $0x4c] sm:$0xf]
    %v4602 = vld [vmem:[#allocation19 + $0x50] sm:$0xf]
    %v4603 = vld [vmem:[#allocation19 + $0x54] sm:$0xf]
    %v4604 = vld [vmem:[#allocation19 + $0x58] sm:$0xf]
    %v4605 = vld [vmem:[#allocation19 + $0x5c] sm:$0xf]
    %v4606 = vld [vmem:[#allocation19 + $0x60] sm:$0xf]
    %v4607 = vld [vmem:[#allocation19 + $0x64] sm:$0xf]
    %v4608 = vld [vmem:[#allocation19 + $0x68] sm:$0xf]
    %v4609 = vld [vmem:[#allocation19 + $0x6c] sm:$0xf]
    %v4610 = vld [vmem:[#allocation19 + $0x70] sm:$0xf]
    %v4611 = vld [vmem:[#allocation19 + $0x74] sm:$0xf]
    %v4612 = vld [vmem:[#allocation19 + $0x78] sm:$0xf]
    %v4613 = vld [vmem:[#allocation19 + $0x7c] sm:$0xf]
    %v4646 = vunpack.c.l.b16 %v4582
    %v4647 = vunpack.c.l.b16 %v4583
    %v4648 = vunpack.c.l.b16 %v4584
    %v4649 = vunpack.c.l.b16 %v4585
    %v4650 = vunpack.c.l.b16 %v4586
    %v4651 = vunpack.c.l.b16 %v4587
    %v4652 = vunpack.c.l.b16 %v4588
    %v4653 = vunpack.c.l.b16 %v4589
    %v4654 = vunpack.c.l.b16 %v4590
    %v4655 = vunpack.c.l.b16 %v4591
    %v4656 = vunpack.c.l.b16 %v4592
    %v4657 = vunpack.c.l.b16 %v4593
    %v4658 = vunpack.c.l.b16 %v4594
    %v4659 = vunpack.c.l.b16 %v4595
    %v4660 = vunpack.c.l.b16 %v4596
    %v4661 = vunpack.c.l.b16 %v4597
    %v4662 = vunpack.c.l.b16 %v4598
    %v4663 = vunpack.c.l.b16 %v4599
    %v4664 = vunpack.c.l.b16 %v4600
    %v4665 = vunpack.c.l.b16 %v4601
    %v4666 = vunpack.c.l.b16 %v4602
    %v4667 = vunpack.c.l.b16 %v4603
    %v4668 = vunpack.c.l.b16 %v4604
    %v4669 = vunpack.c.l.b16 %v4605
    %v4670 = vunpack.c.l.b16 %v4606
    %v4671 = vunpack.c.l.b16 %v4607
    %v4672 = vunpack.c.l.b16 %v4608
    %v4673 = vunpack.c.l.b16 %v4609
    %v4674 = vunpack.c.l.b16 %v4610
    %v4675 = vunpack.c.l.b16 %v4611
    %v4676 = vunpack.c.l.b16 %v4612
    %v4677 = vunpack.c.l.b16 %v4613
    %v4678 = vpack.c.b16 %v4647, %v4646
    %v4679 = vpack.c.b16 %v4649, %v4648
    %v4680 = vpack.c.b16 %v4651, %v4650
    %v4681 = vpack.c.b16 %v4653, %v4652
    %v4682 = vpack.c.b16 %v4655, %v4654
    %v4683 = vpack.c.b16 %v4657, %v4656
    %v4684 = vpack.c.b16 %v4659, %v4658
    %v4685 = vpack.c.b16 %v4661, %v4660
    %v4686 = vpack.c.b16 %v4663, %v4662
    %v4687 = vpack.c.b16 %v4665, %v4664
    %v4688 = vpack.c.b16 %v4667, %v4666
    %v4689 = vpack.c.b16 %v4669, %v4668
    %v4690 = vpack.c.b16 %v4671, %v4670
    %v4691 = vpack.c.b16 %v4673, %v4672
    %v4692 = vpack.c.b16 %v4675, %v4674
    %v4693 = vpack.c.b16 %v4677, %v4676
    %4710 = vmatprep.subr.bf16.mxu0 0
    %4711 = vmatpush1.bf16.msra.mxu0 %v4685
    %4712 = vmatprep.subr.bf16.mxu0 0
    %4713 = vmatpush1.bf16.msra.mxu0 %v4684
    %4714 = vmatprep.subr.bf16.mxu0 0
    %4715 = vmatpush1.bf16.msra.mxu0 %v4683
    %4716 = vmatprep.subr.bf16.mxu0 0
    %4717 = vmatpush1.bf16.msra.mxu0 %v4682
    %4718 = vmatprep.subr.bf16.mxu0 0
    %4719 = vmatpush1.bf16.msra.mxu0 %v4681
    %4720 = vmatprep.subr.bf16.mxu0 0
    %4721 = vmatpush1.bf16.msra.mxu0 %v4680
    %4722 = vmatprep.subr.bf16.mxu0 0
    %4723 = vmatpush1.bf16.msra.mxu0 %v4679
    %4724 = vmatprep.subr.bf16.mxu0 0
    %4725 = vmatpush1.bf16.msra.mxu0 %v4678
    %4726 = vmatprep.subr.bf16.mxu0 0
    %4727 = vmatpush2.bf16.msra.mxu0 %v4693
    %4728 = vmatprep.subr.bf16.mxu0 0
    %4729 = vmatpush2.bf16.msra.mxu0 %v4692
    %4730 = vmatprep.subr.bf16.mxu0 0
    %4731 = vmatpush2.bf16.msra.mxu0 %v4691
    %4732 = vmatprep.subr.bf16.mxu0 0
    %4733 = vmatpush2.bf16.msra.mxu0 %v4690
    %4734 = vmatprep.subr.bf16.mxu0 0
    %4735 = vmatpush2.bf16.msra.mxu0 %v4689
    %4736 = vmatprep.subr.bf16.mxu0 0
    %4737 = vmatpush2.bf16.msra.mxu0 %v4688
    %4738 = vmatprep.subr.bf16.mxu0 0
    %4739 = vmatpush2.bf16.msra.mxu0 %v4687
    %4740 = vmatprep.subr.bf16.mxu0 0
    %4741 = vmatpush2.bf16.msra.mxu0 %v4686
    %4742 = vmatprep.mubr.bf16.mxu0 %v4579
    %4743 = vmatmul.mubr.bf16.gmra.mxu0 %v4578
    %v4744 = vpop.f32.mrf.mxu0
    %v4745 = vadd.f32 0.0, %v4744
    %v4746 = vpop.f32.mrf.mxu0
    %v4747 = vpop.f32.mrf.mxu0
    %v4748 = vadd.f32 0.0, %v4747
    %v4749 = vpop.f32.mrf.mxu0
    %4750 = vmatprep.mubr.bf16.mxu0 %v4581
    %4751 = vmatmul.mubr.bf16.gmra.mxu0 %v4580
    %v4752 = vpop.f32.mrf.mxu0
    %v4753 = vadd.f32 0.0, %v4752
    %v4754 = vpop.f32.mrf.mxu0
    %v4755 = vpop.f32.mrf.mxu0
    %v4756 = vadd.f32 0.0, %v4755
    %v4757 = vpop.f32.mrf.mxu0
    %4758 = vdwg.mxu0
    %v4759 = vld [vmem:[#allocation20] sm:$0xf]
    %v4760 = vld [vmem:[#allocation20 + $0x4] sm:$0xf]
    %v4761 = vld [vmem:[#allocation20 + $0x8] sm:$0xf]
    %v4762 = vld [vmem:[#allocation20 + $0xc] sm:$0xf]
    %v4763 = vld [vmem:[#allocation20 + $0x10] sm:$0xf]
    %v4764 = vld [vmem:[#allocation20 + $0x14] sm:$0xf]
    %v4765 = vld [vmem:[#allocation20 + $0x18] sm:$0xf]
    %v4766 = vld [vmem:[#allocation20 + $0x1c] sm:$0xf]
    %v4767 = vld [vmem:[#allocation20 + $0x20] sm:$0xf]
    %v4768 = vld [vmem:[#allocation20 + $0x24] sm:$0xf]
    %v4769 = vld [vmem:[#allocation20 + $0x28] sm:$0xf]
    %v4770 = vld [vmem:[#allocation20 + $0x2c] sm:$0xf]
    %v4771 = vld [vmem:[#allocation20 + $0x30] sm:$0xf]
    %v4772 = vld [vmem:[#allocation20 + $0x34] sm:$0xf]
    %v4773 = vld [vmem:[#allocation20 + $0x38] sm:$0xf]
    %v4774 = vld [vmem:[#allocation20 + $0x3c] sm:$0xf]
    %v4775 = vld [vmem:[#allocation20 + $0x40] sm:$0xf]
    %v4776 = vld [vmem:[#allocation20 + $0x44] sm:$0xf]
    %v4777 = vld [vmem:[#allocation20 + $0x48] sm:$0xf]
    %v4778 = vld [vmem:[#allocation20 + $0x4c] sm:$0xf]
    %v4779 = vld [vmem:[#allocation20 + $0x50] sm:$0xf]
    %v4780 = vld [vmem:[#allocation20 + $0x54] sm:$0xf]
    %v4781 = vld [vmem:[#allocation20 + $0x58] sm:$0xf]
    %v4782 = vld [vmem:[#allocation20 + $0x5c] sm:$0xf]
    %v4783 = vld [vmem:[#allocation20 + $0x60] sm:$0xf]
    %v4784 = vld [vmem:[#allocation20 + $0x64] sm:$0xf]
    %v4785 = vld [vmem:[#allocation20 + $0x68] sm:$0xf]
    %v4786 = vld [vmem:[#allocation20 + $0x6c] sm:$0xf]
    %v4787 = vld [vmem:[#allocation20 + $0x70] sm:$0xf]
    %v4788 = vld [vmem:[#allocation20 + $0x74] sm:$0xf]
    %v4789 = vld [vmem:[#allocation20 + $0x78] sm:$0xf]
    %v4790 = vld [vmem:[#allocation20 + $0x7c] sm:$0xf]
    %v4823 = vunpack.c.l.b16 %v4759
    %v4824 = vunpack.c.l.b16 %v4760
    %v4825 = vunpack.c.l.b16 %v4761
    %v4826 = vunpack.c.l.b16 %v4762
    %v4827 = vunpack.c.l.b16 %v4763
    %v4828 = vunpack.c.l.b16 %v4764
    %v4829 = vunpack.c.l.b16 %v4765
    %v4830 = vunpack.c.l.b16 %v4766
    %v4831 = vunpack.c.l.b16 %v4767
    %v4832 = vunpack.c.l.b16 %v4768
    %v4833 = vunpack.c.l.b16 %v4769
    %v4834 = vunpack.c.l.b16 %v4770
    %v4835 = vunpack.c.l.b16 %v4771
    %v4836 = vunpack.c.l.b16 %v4772
    %v4837 = vunpack.c.l.b16 %v4773
    %v4838 = vunpack.c.l.b16 %v4774
    %v4839 = vunpack.c.l.b16 %v4775
    %v4840 = vunpack.c.l.b16 %v4776
    %v4841 = vunpack.c.l.b16 %v4777
    %v4842 = vunpack.c.l.b16 %v4778
    %v4843 = vunpack.c.l.b16 %v4779
    %v4844 = vunpack.c.l.b16 %v4780
    %v4845 = vunpack.c.l.b16 %v4781
    %v4846 = vunpack.c.l.b16 %v4782
    %v4847 = vunpack.c.l.b16 %v4783
    %v4848 = vunpack.c.l.b16 %v4784
    %v4849 = vunpack.c.l.b16 %v4785
    %v4850 = vunpack.c.l.b16 %v4786
    %v4851 = vunpack.c.l.b16 %v4787
    %v4852 = vunpack.c.l.b16 %v4788
    %v4853 = vunpack.c.l.b16 %v4789
    %v4854 = vunpack.c.l.b16 %v4790
    %v4855 = vpack.c.b16 %v4824, %v4823
    %v4856 = vpack.c.b16 %v4826, %v4825
    %v4857 = vpack.c.b16 %v4828, %v4827
    %v4858 = vpack.c.b16 %v4830, %v4829
    %v4859 = vpack.c.b16 %v4832, %v4831
    %v4860 = vpack.c.b16 %v4834, %v4833
    %v4861 = vpack.c.b16 %v4836, %v4835
    %v4862 = vpack.c.b16 %v4838, %v4837
    %v4863 = vpack.c.b16 %v4840, %v4839
    %v4864 = vpack.c.b16 %v4842, %v4841
    %v4865 = vpack.c.b16 %v4844, %v4843
    %v4866 = vpack.c.b16 %v4846, %v4845
    %v4867 = vpack.c.b16 %v4848, %v4847
    %v4868 = vpack.c.b16 %v4850, %v4849
    %v4869 = vpack.c.b16 %v4852, %v4851
    %v4870 = vpack.c.b16 %v4854, %v4853
    %4887 = vmatprep.subr.bf16.mxu0 0
    %4888 = vmatpush1.bf16.msra.mxu0 %v4862
    %4889 = vmatprep.subr.bf16.mxu0 0
    %4890 = vmatpush1.bf16.msra.mxu0 %v4861
    %4891 = vmatprep.subr.bf16.mxu0 0
    %4892 = vmatpush1.bf16.msra.mxu0 %v4860
    %4893 = vmatprep.subr.bf16.mxu0 0
    %4894 = vmatpush1.bf16.msra.mxu0 %v4859
    %4895 = vmatprep.subr.bf16.mxu0 0
    %4896 = vmatpush1.bf16.msra.mxu0 %v4858
    %4897 = vmatprep.subr.bf16.mxu0 0
    %4898 = vmatpush1.bf16.msra.mxu0 %v4857
    %4899 = vmatprep.subr.bf16.mxu0 0
    %4900 = vmatpush1.bf16.msra.mxu0 %v4856
    %4901 = vmatprep.subr.bf16.mxu0 0
    %4902 = vmatpush1.bf16.msra.mxu0 %v4855
    %4903 = vmatprep.subr.bf16.mxu0 0
    %4904 = vmatpush2.bf16.msra.mxu0 %v4870
    %4905 = vmatprep.subr.bf16.mxu0 0
    %4906 = vmatpush2.bf16.msra.mxu0 %v4869
    %4907 = vmatprep.subr.bf16.mxu0 0
    %4908 = vmatpush2.bf16.msra.mxu0 %v4868
    %4909 = vmatprep.subr.bf16.mxu0 0
    %4910 = vmatpush2.bf16.msra.mxu0 %v4867
    %4911 = vmatprep.subr.bf16.mxu0 0
    %4912 = vmatpush2.bf16.msra.mxu0 %v4866
    %4913 = vmatprep.subr.bf16.mxu0 0
    %4914 = vmatpush2.bf16.msra.mxu0 %v4865
    %4915 = vmatprep.subr.bf16.mxu0 0
    %4916 = vmatpush2.bf16.msra.mxu0 %v4864
    %4917 = vmatprep.subr.bf16.mxu0 0
    %4918 = vmatpush2.bf16.msra.mxu0 %v4863
    %4919 = vmatprep.mubr.bf16.mxu0 %v4579
    %4920 = vmatmul.mubr.bf16.gmra.mxu0 %v4578
    %v4921 = vpop.f32.mrf.mxu0
    %v4922 = vadd.f32 0.0, %v4921
    %v4923 = vpop.f32.mrf.mxu0
    %v4924 = vpop.f32.mrf.mxu0
    %v4925 = vadd.f32 0.0, %v4924
    %v4926 = vpop.f32.mrf.mxu0
    %4927 = vmatprep.mubr.bf16.mxu0 %v4581
    %4928 = vmatmul.mubr.bf16.gmra.mxu0 %v4580
    %v4929 = vpop.f32.mrf.mxu0
    %v4930 = vadd.f32 0.0, %v4929
    %v4931 = vpop.f32.mrf.mxu0
    %v4932 = vpop.f32.mrf.mxu0
    %v4933 = vadd.f32 0.0, %v4932
    %v4934 = vpop.f32.mrf.mxu0
    %4935 = vdwg.mxu0
    %v4936 = vmax.f32 %v4745, %v4922
    %v4937 = vmax.f32 %v4748, %v4925
    %v4938 = vmax.f32 %v4753, %v4930
    %v4939 = vmax.f32 %v4756, %v4933
    %v4940 = vpack.c.bf16 %v4937, %v4936
    %v4941 = vpack.c.bf16 %v4939, %v4938
    %v4942 = vld [vmem:[#allocation22] sm:$0xf]
    %v4943 = vld [vmem:[#allocation22 + $0x4] sm:$0xf]
    %v4946 = vunpack.c.l.b16 %v4942
    %v4947 = vunpack.c.l.b16 %v4943
    %v4948 = vpack.c.b16 %v4947, %v4946
    %v4950 = vsel %vm2995, %v4948, 0
    %4952 = vmatprep.subr.bf16.mxu0 0
    %4953 = vmatpush1.bf16.msra.mxu0 0
    %4954 = vmatprep.subr.bf16.mxu0 0
    %4955 = vmatpush1.bf16.msra.mxu0 0
    %4956 = vmatprep.subr.bf16.mxu0 0
    %4957 = vmatpush1.bf16.msra.mxu0 0
    %4958 = vmatprep.subr.bf16.mxu0 0
    %4959 = vmatpush1.bf16.msra.mxu0 0
    %4960 = vmatprep.subr.bf16.mxu0 0
    %4961 = vmatpush1.bf16.msra.mxu0 0
    %4962 = vmatprep.subr.bf16.mxu0 0
    %4963 = vmatpush1.bf16.msra.mxu0 0
    %4964 = vmatprep.subr.bf16.mxu0 0
    %4965 = vmatpush1.bf16.msra.mxu0 %v4941
    %4966 = vmatprep.subr.bf16.mxu0 0
    %4967 = vmatpush1.bf16.msra.mxu0 %v4940
    %4968 = vmatprep.subr.bf16.mxu0 0
    %4969 = vmatpush2.bf16.msra.mxu0 0
    %4970 = vmatprep.subr.bf16.mxu0 0
    %4971 = vmatpush2.bf16.msra.mxu0 0
    %4972 = vmatprep.subr.bf16.mxu0 0
    %4973 = vmatpush2.bf16.msra.mxu0 0
    %4974 = vmatprep.subr.bf16.mxu0 0
    %4975 = vmatpush2.bf16.msra.mxu0 0
    %4976 = vmatprep.subr.bf16.mxu0 0
    %4977 = vmatpush2.bf16.msra.mxu0 0
    %4978 = vmatprep.subr.bf16.mxu0 0
    %4979 = vmatpush2.bf16.msra.mxu0 0
    %4980 = vmatprep.subr.bf16.mxu0 0
    %4981 = vmatpush2.bf16.msra.mxu0 0
    %4982 = vmatprep.subr.bf16.mxu0 0
    %4983 = vmatpush2.bf16.msra.mxu0 0
    %4984 = vmatprep.mubr.bf16.mxu0 0
    %4985 = vmatmul.mubr.bf16.gmra.mxu0 %v4950
    %v4986 = vpop.f32.mrf.mxu0
    %v4987 = vadd.f32 0.0, %v4986
    %v4988 = vpop.f32.mrf.mxu0
    %v4989 = vpop.f32.mrf.mxu0
    %v4990 = vadd.f32 0.0, %v4989
    %v4991 = vpop.f32.mrf.mxu0
    %4992 = vdwg.mxu0
    %v4993 = vld [vmem:[#allocation23] sm:$0xf]
    %v4994 = vld [vmem:[#allocation23 + $0x4] sm:$0xf]
    %v4997 = vunpack.c.l.b16 %v4993
    %v4998 = vunpack.c.l.b16 %v4994
    %v4999 = vpack.c.b16 %v4998, %v4997
    %v5001 = vsel %vm2995, %v4999, 0
    %5003 = vmatprep.subr.bf16.mxu0 0
    %5004 = vmatpush1.bf16.msra.mxu0 0
    %5005 = vmatprep.subr.bf16.mxu0 0
    %5006 = vmatpush1.bf16.msra.mxu0 0
    %5007 = vmatprep.subr.bf16.mxu0 0
    %5008 = vmatpush1.bf16.msra.mxu0 0
    %5009 = vmatprep.subr.bf16.mxu0 0
    %5010 = vmatpush1.bf16.msra.mxu0 0
    %5011 = vmatprep.subr.bf16.mxu0 0
    %5012 = vmatpush1.bf16.msra.mxu0 0
    %5013 = vmatprep.subr.bf16.mxu0 0
    %5014 = vmatpush1.bf16.msra.mxu0 0
    %5015 = vmatprep.subr.bf16.mxu0 0
    %5016 = vmatpush1.bf16.msra.mxu0 %v4941
    %5017 = vmatprep.subr.bf16.mxu0 0
    %5018 = vmatpush1.bf16.msra.mxu0 %v4940
    %5019 = vmatprep.subr.bf16.mxu0 0
    %5020 = vmatpush2.bf16.msra.mxu0 0
    %5021 = vmatprep.subr.bf16.mxu0 0
    %5022 = vmatpush2.bf16.msra.mxu0 0
    %5023 = vmatprep.subr.bf16.mxu0 0
    %5024 = vmatpush2.bf16.msra.mxu0 0
    %5025 = vmatprep.subr.bf16.mxu0 0
    %5026 = vmatpush2.bf16.msra.mxu0 0
    %5027 = vmatprep.subr.bf16.mxu0 0
    %5028 = vmatpush2.bf16.msra.mxu0 0
    %5029 = vmatprep.subr.bf16.mxu0 0
    %5030 = vmatpush2.bf16.msra.mxu0 0
    %5031 = vmatprep.subr.bf16.mxu0 0
    %5032 = vmatpush2.bf16.msra.mxu0 0
    %5033 = vmatprep.subr.bf16.mxu0 0
    %5034 = vmatpush2.bf16.msra.mxu0 0
    %5035 = vmatprep.mubr.bf16.mxu0 0
    %5036 = vmatmul.mubr.bf16.gmra.mxu0 %v5001
    %v5037 = vpop.f32.mrf.mxu0
    %v5038 = vadd.f32 0.0, %v5037
    %v5039 = vpop.f32.mrf.mxu0
    %v5040 = vpop.f32.mrf.mxu0
    %v5041 = vadd.f32 0.0, %v5040
    %v5042 = vpop.f32.mrf.mxu0
    %5043 = vdwg.mxu0
    %v5044 = vmax.f32 %v4987, %v5038
    %v5045 = vmax.f32 %v4990, %v5041
    %v5046 = vpack.c.bf16 %v5045, %v5044
    %v5047 = vld [vmem:[#allocation25] sm:$0xf]
    %v5048 = vld [vmem:[#allocation25 + $0x4] sm:$0xf]
    %v5051 = vunpack.c.l.b16 %v5047
    %v5052 = vunpack.c.l.b16 %v5048
    %v5053 = vpack.c.b16 %v5052, %v5051
    %v5055 = vsel %vm4341, %v5053, 0
    %5057 = vmatprep.subr.bf16.mxu0 0
    %5058 = vmatpush1.bf16.msra.mxu0 0
    %5059 = vmatprep.subr.bf16.mxu0 0
    %5060 = vmatpush1.bf16.msra.mxu0 0
    %5061 = vmatprep.subr.bf16.mxu0 0
    %5062 = vmatpush1.bf16.msra.mxu0 0
    %5063 = vmatprep.subr.bf16.mxu0 0
    %5064 = vmatpush1.bf16.msra.mxu0 0
    %5065 = vmatprep.subr.bf16.mxu0 0
    %5066 = vmatpush1.bf16.msra.mxu0 0
    %5067 = vmatprep.subr.bf16.mxu0 0
    %5068 = vmatpush1.bf16.msra.mxu0 0
    %5069 = vmatprep.subr.bf16.mxu0 0
    %5070 = vmatpush1.bf16.msra.mxu0 0
    %5071 = vmatprep.subr.bf16.mxu0 0
    %5072 = vmatpush1.bf16.msra.mxu0 %v5046
    %5073 = vmatprep.subr.bf16.mxu0 0
    %5074 = vmatpush2.bf16.msra.mxu0 0
    %5075 = vmatprep.subr.bf16.mxu0 0
    %5076 = vmatpush2.bf16.msra.mxu0 0
    %5077 = vmatprep.subr.bf16.mxu0 0
    %5078 = vmatpush2.bf16.msra.mxu0 0
    %5079 = vmatprep.subr.bf16.mxu0 0
    %5080 = vmatpush2.bf16.msra.mxu0 0
    %5081 = vmatprep.subr.bf16.mxu0 0
    %5082 = vmatpush2.bf16.msra.mxu0 0
    %5083 = vmatprep.subr.bf16.mxu0 0
    %5084 = vmatpush2.bf16.msra.mxu0 0
    %5085 = vmatprep.subr.bf16.mxu0 0
    %5086 = vmatpush2.bf16.msra.mxu0 0
    %5087 = vmatprep.subr.bf16.mxu0 0
    %5088 = vmatpush2.bf16.msra.mxu0 0
    %5089 = vmatprep.mubr.bf16.mxu0 0
    %5090 = vmatmul.mubr.bf16.gmra.mxu0 %v5055
    %v5091 = vpop.f32.mrf.mxu0
    %v5092 = vadd.f32 0.0, %v5091
    %v5093 = vpop.f32.mrf.mxu0
    %v5094 = vpop.f32.mrf.mxu0
    %v5095 = vadd.f32 0.0, %v5094
    %v5096 = vpop.f32.mrf.mxu0
    %5097 = vdwg.mxu0
    %v5098 = vpack.c.bf16 %v5095, %v5092
    %v5099 = vld [vmem:[%s45] sm:$0xf]
    %v5100 = vld [vmem:[%s45 + $0x4] sm:$0xf]
    %v5101 = vld [vmem:[%s45 + $0x8] sm:$0xf]
    %v5102 = vld [vmem:[%s45 + $0xc] sm:$0xf]
    %v5103 = vld [vmem:[%s45 + $0x10] sm:$0xf]
    %v5104 = vld [vmem:[%s45 + $0x14] sm:$0xf]
    %v5105 = vld [vmem:[%s45 + $0x18] sm:$0xf]
    %v5106 = vld [vmem:[%s45 + $0x1c] sm:$0xf]
    %v5107 = vld [vmem:[%s45 + $0x20] sm:$0xf]
    %v5108 = vld [vmem:[%s45 + $0x24] sm:$0xf]
    %v5109 = vld [vmem:[%s45 + $0x28] sm:$0xf]
    %v5110 = vld [vmem:[%s45 + $0x2c] sm:$0xf]
    %v5111 = vld [vmem:[%s45 + $0x30] sm:$0xf]
    %v5112 = vld [vmem:[%s45 + $0x34] sm:$0xf]
    %v5113 = vld [vmem:[%s45 + $0x38] sm:$0xf]
    %v5114 = vld [vmem:[%s45 + $0x3c] sm:$0xf]
    %s5115 = scalar_lea.vmem [#allocation25], 8
    %v5116 = vld [vmem:[%s5115] sm:$0xf]
    %v5117 = vld [vmem:[%s5115 + $0x4] sm:$0xf]
    %v5120 = vunpack.c.l.b16 %v5116
    %v5121 = vunpack.c.l.b16 %v5117
    %v5122 = vpack.c.b16 %v5121, %v5120
    %v5124 = vsel %vm4341, %v5122, 0
    %5126 = vmatprep.subr.bf16.mxu0 0
    %5127 = vmatpush1.bf16.msra.mxu0 0
    %5128 = vmatprep.subr.bf16.mxu0 0
    %5129 = vmatpush1.bf16.msra.mxu0 0
    %5130 = vmatprep.subr.bf16.mxu0 0
    %5131 = vmatpush1.bf16.msra.mxu0 0
    %5132 = vmatprep.subr.bf16.mxu0 0
    %5133 = vmatpush1.bf16.msra.mxu0 0
    %5134 = vmatprep.subr.bf16.mxu0 0
    %5135 = vmatpush1.bf16.msra.mxu0 0
    %5136 = vmatprep.subr.bf16.mxu0 0
    %5137 = vmatpush1.bf16.msra.mxu0 0
    %5138 = vmatprep.subr.bf16.mxu0 0
    %5139 = vmatpush1.bf16.msra.mxu0 0
    %5140 = vmatprep.subr.bf16.mxu0 0
    %5141 = vmatpush1.bf16.msra.mxu0 %v5046
    %5142 = vmatprep.subr.bf16.mxu0 0
    %5143 = vmatpush2.bf16.msra.mxu0 0
    %5144 = vmatprep.subr.bf16.mxu0 0
    %5145 = vmatpush2.bf16.msra.mxu0 0
    %5146 = vmatprep.subr.bf16.mxu0 0
    %5147 = vmatpush2.bf16.msra.mxu0 0
    %5148 = vmatprep.subr.bf16.mxu0 0
    %5149 = vmatpush2.bf16.msra.mxu0 0
    %5150 = vmatprep.subr.bf16.mxu0 0
    %5151 = vmatpush2.bf16.msra.mxu0 0
    %5152 = vmatprep.subr.bf16.mxu0 0
    %5153 = vmatpush2.bf16.msra.mxu0 0
    %5154 = vmatprep.subr.bf16.mxu0 0
    %5155 = vmatpush2.bf16.msra.mxu0 0
    %5156 = vmatprep.subr.bf16.mxu0 0
    %5157 = vmatpush2.bf16.msra.mxu0 0
    %5158 = vmatprep.mubr.bf16.mxu0 0
    %5159 = vmatmul.mubr.bf16.gmra.mxu0 %v5124
    %v5160 = vpop.f32.mrf.mxu0
    %v5161 = vadd.f32 0.0, %v5160
    %v5162 = vpop.f32.mrf.mxu0
    %v5163 = vpop.f32.mrf.mxu0
    %v5164 = vadd.f32 0.0, %v5163
    %v5165 = vpop.f32.mrf.mxu0
    %5166 = vdwg.mxu0
    %v5167 = vpack.c.bf16 %v5164, %v5161
    %s5168 = scalar_lea.vmem %s45, 64
    %v5169 = vld [vmem:[%s5168] sm:$0xf]
    %v5170 = vld [vmem:[%s5168 + $0x4] sm:$0xf]
    %v5171 = vld [vmem:[%s5168 + $0x8] sm:$0xf]
    %v5172 = vld [vmem:[%s5168 + $0xc] sm:$0xf]
    %v5173 = vld [vmem:[%s5168 + $0x10] sm:$0xf]
    %v5174 = vld [vmem:[%s5168 + $0x14] sm:$0xf]
    %v5175 = vld [vmem:[%s5168 + $0x18] sm:$0xf]
    %v5176 = vld [vmem:[%s5168 + $0x1c] sm:$0xf]
    %v5177 = vld [vmem:[%s5168 + $0x20] sm:$0xf]
    %v5178 = vld [vmem:[%s5168 + $0x24] sm:$0xf]
    %v5179 = vld [vmem:[%s5168 + $0x28] sm:$0xf]
    %v5180 = vld [vmem:[%s5168 + $0x2c] sm:$0xf]
    %v5181 = vld [vmem:[%s5168 + $0x30] sm:$0xf]
    %v5182 = vld [vmem:[%s5168 + $0x34] sm:$0xf]
    %v5183 = vld [vmem:[%s5168 + $0x38] sm:$0xf]
    %v5184 = vld [vmem:[%s5168 + $0x3c] sm:$0xf]
    %v5201 = vunpack.c.l.b16 %v5169
    %v5202 = vunpack.c.l.b16 %v5170
    %v5203 = vunpack.c.l.b16 %v5171
    %v5204 = vunpack.c.l.b16 %v5172
    %v5205 = vunpack.c.l.b16 %v5173
    %v5206 = vunpack.c.l.b16 %v5174
    %v5207 = vunpack.c.l.b16 %v5175
    %v5208 = vunpack.c.l.b16 %v5176
    %v5209 = vunpack.c.l.b16 %v5177
    %v5210 = vunpack.c.l.b16 %v5178
    %v5211 = vunpack.c.l.b16 %v5179
    %v5212 = vunpack.c.l.b16 %v5180
    %v5213 = vunpack.c.l.b16 %v5181
    %v5214 = vunpack.c.l.b16 %v5182
    %v5215 = vunpack.c.l.b16 %v5183
    %v5216 = vunpack.c.l.b16 %v5184
    %v5217 = vpack.c.b16 %v5202, %v5201
    %v5218 = vpack.c.b16 %v5204, %v5203
    %v5219 = vpack.c.b16 %v5206, %v5205
    %v5220 = vpack.c.b16 %v5208, %v5207
    %v5221 = vpack.c.b16 %v5210, %v5209
    %v5222 = vpack.c.b16 %v5212, %v5211
    %v5223 = vpack.c.b16 %v5214, %v5213
    %v5224 = vpack.c.b16 %v5216, %v5215
    %5233 = vmatprep.subr.bf16.mxu0 0
    %5234 = vmatpush1.bf16.msra.mxu0 %v5224
    %5235 = vmatprep.subr.bf16.mxu0 0
    %5236 = vmatpush1.bf16.msra.mxu0 %v5223
    %5237 = vmatprep.subr.bf16.mxu0 0
    %5238 = vmatpush1.bf16.msra.mxu0 %v5222
    %5239 = vmatprep.subr.bf16.mxu0 0
    %5240 = vmatpush1.bf16.msra.mxu0 %v5221
    %5241 = vmatprep.subr.bf16.mxu0 0
    %5242 = vmatpush1.bf16.msra.mxu0 %v5220
    %5243 = vmatprep.subr.bf16.mxu0 0
    %5244 = vmatpush1.bf16.msra.mxu0 %v5219
    %5245 = vmatprep.subr.bf16.mxu0 0
    %5246 = vmatpush1.bf16.msra.mxu0 %v5218
    %5247 = vmatprep.subr.bf16.mxu0 0
    %5248 = vmatpush1.bf16.msra.mxu0 %v5217
    %5249 = vmatprep.subr.bf16.mxu0 0
    %5250 = vmatpush2.bf16.msra.mxu0 0
    %5251 = vmatprep.subr.bf16.mxu0 0
    %5252 = vmatpush2.bf16.msra.mxu0 0
    %5253 = vmatprep.subr.bf16.mxu0 0
    %5254 = vmatpush2.bf16.msra.mxu0 0
    %5255 = vmatprep.subr.bf16.mxu0 0
    %5256 = vmatpush2.bf16.msra.mxu0 0
    %5257 = vmatprep.subr.bf16.mxu0 0
    %5258 = vmatpush2.bf16.msra.mxu0 0
    %5259 = vmatprep.subr.bf16.mxu0 0
    %5260 = vmatpush2.bf16.msra.mxu0 0
    %5261 = vmatprep.subr.bf16.mxu0 0
    %5262 = vmatpush2.bf16.msra.mxu0 0
    %5263 = vmatprep.subr.bf16.mxu0 0
    %5264 = vmatpush2.bf16.msra.mxu0 0
    %5265 = vmatprep.mubr.bf16.mxu0 0
    %5266 = vmatmul.mubr.bf16.gmra.mxu0 %v5167
    %v5267 = vpop.f32.mrf.mxu0
    %v5268 = vadd.f32 0.0, %v5267
    %v5269 = vpop.f32.mrf.mxu0
    %v5270 = vpop.f32.mrf.mxu0
    %v5271 = vadd.f32 0.0, %v5270
    %v5272 = vpop.f32.mrf.mxu0
    %5273 = vdwg.mxu0
    %v5290 = vunpack.c.l.b16 %v5099
    %v5291 = vunpack.c.l.b16 %v5100
    %v5292 = vunpack.c.l.b16 %v5101
    %v5293 = vunpack.c.l.b16 %v5102
    %v5294 = vunpack.c.l.b16 %v5103
    %v5295 = vunpack.c.l.b16 %v5104
    %v5296 = vunpack.c.l.b16 %v5105
    %v5297 = vunpack.c.l.b16 %v5106
    %v5298 = vunpack.c.l.b16 %v5107
    %v5299 = vunpack.c.l.b16 %v5108
    %v5300 = vunpack.c.l.b16 %v5109
    %v5301 = vunpack.c.l.b16 %v5110
    %v5302 = vunpack.c.l.b16 %v5111
    %v5303 = vunpack.c.l.b16 %v5112
    %v5304 = vunpack.c.l.b16 %v5113
    %v5305 = vunpack.c.l.b16 %v5114
    %v5306 = vpack.c.b16 %v5291, %v5290
    %v5307 = vpack.c.b16 %v5293, %v5292
    %v5308 = vpack.c.b16 %v5295, %v5294
    %v5309 = vpack.c.b16 %v5297, %v5296
    %v5310 = vpack.c.b16 %v5299, %v5298
    %v5311 = vpack.c.b16 %v5301, %v5300
    %v5312 = vpack.c.b16 %v5303, %v5302
    %v5313 = vpack.c.b16 %v5305, %v5304
    %5322 = vmatprep.subr.bf16.mxu0 0
    %5323 = vmatpush1.bf16.msra.mxu0 %v5313
    %5324 = vmatprep.subr.bf16.mxu0 0
    %5325 = vmatpush1.bf16.msra.mxu0 %v5312
    %5326 = vmatprep.subr.bf16.mxu0 0
    %5327 = vmatpush1.bf16.msra.mxu0 %v5311
    %5328 = vmatprep.subr.bf16.mxu0 0
    %5329 = vmatpush1.bf16.msra.mxu0 %v5310
    %5330 = vmatprep.subr.bf16.mxu0 0
    %5331 = vmatpush1.bf16.msra.mxu0 %v5309
    %5332 = vmatprep.subr.bf16.mxu0 0
    %5333 = vmatpush1.bf16.msra.mxu0 %v5308
    %5334 = vmatprep.subr.bf16.mxu0 0
    %5335 = vmatpush1.bf16.msra.mxu0 %v5307
    %5336 = vmatprep.subr.bf16.mxu0 0
    %5337 = vmatpush1.bf16.msra.mxu0 %v5306
    %5338 = vmatprep.subr.bf16.mxu0 0
    %5339 = vmatpush2.bf16.msra.mxu0 0
    %5340 = vmatprep.subr.bf16.mxu0 0
    %5341 = vmatpush2.bf16.msra.mxu0 0
    %5342 = vmatprep.subr.bf16.mxu0 0
    %5343 = vmatpush2.bf16.msra.mxu0 0
    %5344 = vmatprep.subr.bf16.mxu0 0
    %5345 = vmatpush2.bf16.msra.mxu0 0
    %5346 = vmatprep.subr.bf16.mxu0 0
    %5347 = vmatpush2.bf16.msra.mxu0 0
    %5348 = vmatprep.subr.bf16.mxu0 0
    %5349 = vmatpush2.bf16.msra.mxu0 0
    %5350 = vmatprep.subr.bf16.mxu0 0
    %5351 = vmatpush2.bf16.msra.mxu0 0
    %5352 = vmatprep.subr.bf16.mxu0 0
    %5353 = vmatpush2.bf16.msra.mxu0 0
    %5354 = vmatprep.mubr.bf16.mxu0 0
    %5355 = vmatmul.mubr.bf16.gmra.mxu0 %v5098
    %v5356 = vpop.f32.mrf.mxu0
    %v5357 = vadd.f32 %v5268, %v5356
    %v5358 = vpop.f32.mrf.mxu0
    %v5359 = vpop.f32.mrf.mxu0
    %v5360 = vadd.f32 %v5271, %v5359
    %v5361 = vpop.f32.mrf.mxu0
    %5362 = vdwg.mxu0
    %s5363 = scalar_lea.vmem [#allocation25], 16
    %v5364 = vld [vmem:[%s5363] sm:$0xf]
    %v5365 = vld [vmem:[%s5363 + $0x4] sm:$0xf]
    %v5368 = vunpack.c.l.b16 %v5364
    %v5369 = vunpack.c.l.b16 %v5365
    %v5370 = vpack.c.b16 %v5369, %v5368
    %v5372 = vsel %vm4341, %v5370, 0
    %5374 = vmatprep.subr.bf16.mxu0 0
    %5375 = vmatpush1.bf16.msra.mxu0 0
    %5376 = vmatprep.subr.bf16.mxu0 0
    %5377 = vmatpush1.bf16.msra.mxu0 0
    %5378 = vmatprep.subr.bf16.mxu0 0
    %5379 = vmatpush1.bf16.msra.mxu0 0
    %5380 = vmatprep.subr.bf16.mxu0 0
    %5381 = vmatpush1.bf16.msra.mxu0 0
    %5382 = vmatprep.subr.bf16.mxu0 0
    %5383 = vmatpush1.bf16.msra.mxu0 0
    %5384 = vmatprep.subr.bf16.mxu0 0
    %5385 = vmatpush1.bf16.msra.mxu0 0
    %5386 = vmatprep.subr.bf16.mxu0 0
    %5387 = vmatpush1.bf16.msra.mxu0 0
    %5388 = vmatprep.subr.bf16.mxu0 0
    %5389 = vmatpush1.bf16.msra.mxu0 %v5046
    %5390 = vmatprep.subr.bf16.mxu0 0
    %5391 = vmatpush2.bf16.msra.mxu0 0
    %5392 = vmatprep.subr.bf16.mxu0 0
    %5393 = vmatpush2.bf16.msra.mxu0 0
    %5394 = vmatprep.subr.bf16.mxu0 0
    %5395 = vmatpush2.bf16.msra.mxu0 0
    %5396 = vmatprep.subr.bf16.mxu0 0
    %5397 = vmatpush2.bf16.msra.mxu0 0
    %5398 = vmatprep.subr.bf16.mxu0 0
    %5399 = vmatpush2.bf16.msra.mxu0 0
    %5400 = vmatprep.subr.bf16.mxu0 0
    %5401 = vmatpush2.bf16.msra.mxu0 0
    %5402 = vmatprep.subr.bf16.mxu0 0
    %5403 = vmatpush2.bf16.msra.mxu0 0
    %5404 = vmatprep.subr.bf16.mxu0 0
    %5405 = vmatpush2.bf16.msra.mxu0 0
    %5406 = vmatprep.mubr.bf16.mxu0 0
    %5407 = vmatmul.mubr.bf16.gmra.mxu0 %v5372
    %v5408 = vpop.f32.mrf.mxu0
    %v5409 = vadd.f32 0.0, %v5408
    %v5410 = vpop.f32.mrf.mxu0
    %v5411 = vpop.f32.mrf.mxu0
    %v5412 = vadd.f32 0.0, %v5411
    %v5413 = vpop.f32.mrf.mxu0
    %5414 = vdwg.mxu0
    %v5415 = vpack.c.bf16 %v5412, %v5409
    %s5416 = scalar_lea.vmem %s45, 128
    %v5417 = vld [vmem:[%s5416] sm:$0xf]
    %v5418 = vld [vmem:[%s5416 + $0x4] sm:$0xf]
    %v5419 = vld [vmem:[%s5416 + $0x8] sm:$0xf]
    %v5420 = vld [vmem:[%s5416 + $0xc] sm:$0xf]
    %v5421 = vld [vmem:[%s5416 + $0x10] sm:$0xf]
    %v5422 = vld [vmem:[%s5416 + $0x14] sm:$0xf]
    %v5423 = vld [vmem:[%s5416 + $0x18] sm:$0xf]
    %v5424 = vld [vmem:[%s5416 + $0x1c] sm:$0xf]
    %v5425 = vld [vmem:[%s5416 + $0x20] sm:$0xf]
    %v5426 = vld [vmem:[%s5416 + $0x24] sm:$0xf]
    %v5427 = vld [vmem:[%s5416 + $0x28] sm:$0xf]
    %v5428 = vld [vmem:[%s5416 + $0x2c] sm:$0xf]
    %v5429 = vld [vmem:[%s5416 + $0x30] sm:$0xf]
    %v5430 = vld [vmem:[%s5416 + $0x34] sm:$0xf]
    %v5431 = vld [vmem:[%s5416 + $0x38] sm:$0xf]
    %v5432 = vld [vmem:[%s5416 + $0x3c] sm:$0xf]
    %v5449 = vunpack.c.l.b16 %v5417
    %v5450 = vunpack.c.l.b16 %v5418
    %v5451 = vunpack.c.l.b16 %v5419
    %v5452 = vunpack.c.l.b16 %v5420
    %v5453 = vunpack.c.l.b16 %v5421
    %v5454 = vunpack.c.l.b16 %v5422
    %v5455 = vunpack.c.l.b16 %v5423
    %v5456 = vunpack.c.l.b16 %v5424
    %v5457 = vunpack.c.l.b16 %v5425
    %v5458 = vunpack.c.l.b16 %v5426
    %v5459 = vunpack.c.l.b16 %v5427
    %v5460 = vunpack.c.l.b16 %v5428
    %v5461 = vunpack.c.l.b16 %v5429
    %v5462 = vunpack.c.l.b16 %v5430
    %v5463 = vunpack.c.l.b16 %v5431
    %v5464 = vunpack.c.l.b16 %v5432
    %v5465 = vpack.c.b16 %v5450, %v5449
    %v5466 = vpack.c.b16 %v5452, %v5451
    %v5467 = vpack.c.b16 %v5454, %v5453
    %v5468 = vpack.c.b16 %v5456, %v5455
    %v5469 = vpack.c.b16 %v5458, %v5457
    %v5470 = vpack.c.b16 %v5460, %v5459
    %v5471 = vpack.c.b16 %v5462, %v5461
    %v5472 = vpack.c.b16 %v5464, %v5463
    %5481 = vmatprep.subr.bf16.mxu0 0
    %5482 = vmatpush1.bf16.msra.mxu0 %v5472
    %5483 = vmatprep.subr.bf16.mxu0 0
    %5484 = vmatpush1.bf16.msra.mxu0 %v5471
    %5485 = vmatprep.subr.bf16.mxu0 0
    %5486 = vmatpush1.bf16.msra.mxu0 %v5470
    %5487 = vmatprep.subr.bf16.mxu0 0
    %5488 = vmatpush1.bf16.msra.mxu0 %v5469
    %5489 = vmatprep.subr.bf16.mxu0 0
    %5490 = vmatpush1.bf16.msra.mxu0 %v5468
    %5491 = vmatprep.subr.bf16.mxu0 0
    %5492 = vmatpush1.bf16.msra.mxu0 %v5467
    %5493 = vmatprep.subr.bf16.mxu0 0
    %5494 = vmatpush1.bf16.msra.mxu0 %v5466
    %5495 = vmatprep.subr.bf16.mxu0 0
    %5496 = vmatpush1.bf16.msra.mxu0 %v5465
    %5497 = vmatprep.subr.bf16.mxu0 0
    %5498 = vmatpush2.bf16.msra.mxu0 0
    %5499 = vmatprep.subr.bf16.mxu0 0
    %5500 = vmatpush2.bf16.msra.mxu0 0
    %5501 = vmatprep.subr.bf16.mxu0 0
    %5502 = vmatpush2.bf16.msra.mxu0 0
    %5503 = vmatprep.subr.bf16.mxu0 0
    %5504 = vmatpush2.bf16.msra.mxu0 0
    %5505 = vmatprep.subr.bf16.mxu0 0
    %5506 = vmatpush2.bf16.msra.mxu0 0
    %5507 = vmatprep.subr.bf16.mxu0 0
    %5508 = vmatpush2.bf16.msra.mxu0 0
    %5509 = vmatprep.subr.bf16.mxu0 0
    %5510 = vmatpush2.bf16.msra.mxu0 0
    %5511 = vmatprep.subr.bf16.mxu0 0
    %5512 = vmatpush2.bf16.msra.mxu0 0
    %5513 = vmatprep.mubr.bf16.mxu0 0
    %5514 = vmatmul.mubr.bf16.gmra.mxu0 %v5415
    %v5515 = vpop.f32.mrf.mxu0
    %v5516 = vadd.f32 0.0, %v5515
    %v5517 = vpop.f32.mrf.mxu0
    %v5518 = vpop.f32.mrf.mxu0
    %v5519 = vadd.f32 0.0, %v5518
    %v5520 = vpop.f32.mrf.mxu0
    %5521 = vdwg.mxu0
    %v5522 = vadd.f32 %v5357, %v5516
    %v5523 = vadd.f32 %v5360, %v5519
    %s5524 = scalar_lea.vmem [#allocation25], 24
    %v5525 = vld [vmem:[%s5524] sm:$0xf]
    %v5526 = vld [vmem:[%s5524 + $0x4] sm:$0xf]
    %v5529 = vunpack.c.l.b16 %v5525
    %v5530 = vunpack.c.l.b16 %v5526
    %v5531 = vpack.c.b16 %v5530, %v5529
    %v5533 = vsel %vm4341, %v5531, 0
    %5535 = vmatprep.subr.bf16.mxu0 0
    %5536 = vmatpush1.bf16.msra.mxu0 0
    %5537 = vmatprep.subr.bf16.mxu0 0
    %5538 = vmatpush1.bf16.msra.mxu0 0
    %5539 = vmatprep.subr.bf16.mxu0 0
    %5540 = vmatpush1.bf16.msra.mxu0 0
    %5541 = vmatprep.subr.bf16.mxu0 0
    %5542 = vmatpush1.bf16.msra.mxu0 0
    %5543 = vmatprep.subr.bf16.mxu0 0
    %5544 = vmatpush1.bf16.msra.mxu0 0
    %5545 = vmatprep.subr.bf16.mxu0 0
    %5546 = vmatpush1.bf16.msra.mxu0 0
    %5547 = vmatprep.subr.bf16.mxu0 0
    %5548 = vmatpush1.bf16.msra.mxu0 0
    %5549 = vmatprep.subr.bf16.mxu0 0
    %5550 = vmatpush1.bf16.msra.mxu0 %v5046
    %5551 = vmatprep.subr.bf16.mxu0 0
    %5552 = vmatpush2.bf16.msra.mxu0 0
    %5553 = vmatprep.subr.bf16.mxu0 0
    %5554 = vmatpush2.bf16.msra.mxu0 0
    %5555 = vmatprep.subr.bf16.mxu0 0
    %5556 = vmatpush2.bf16.msra.mxu0 0
    %5557 = vmatprep.subr.bf16.mxu0 0
    %5558 = vmatpush2.bf16.msra.mxu0 0
    %5559 = vmatprep.subr.bf16.mxu0 0
    %5560 = vmatpush2.bf16.msra.mxu0 0
    %5561 = vmatprep.subr.bf16.mxu0 0
    %5562 = vmatpush2.bf16.msra.mxu0 0
    %5563 = vmatprep.subr.bf16.mxu0 0
    %5564 = vmatpush2.bf16.msra.mxu0 0
    %5565 = vmatprep.subr.bf16.mxu0 0
    %5566 = vmatpush2.bf16.msra.mxu0 0
    %5567 = vmatprep.mubr.bf16.mxu0 0
    %5568 = vmatmul.mubr.bf16.gmra.mxu0 %v5533
    %v5569 = vpop.f32.mrf.mxu0
    %v5570 = vadd.f32 0.0, %v5569
    %v5571 = vpop.f32.mrf.mxu0
    %v5572 = vpop.f32.mrf.mxu0
    %v5573 = vadd.f32 0.0, %v5572
    %v5574 = vpop.f32.mrf.mxu0
    %5575 = vdwg.mxu0
    %v5576 = vpack.c.bf16 %v5573, %v5570
    %s5577 = scalar_lea.vmem %s45, 192
    %v5578 = vld [vmem:[%s5577] sm:$0xf]
    %v5579 = vld [vmem:[%s5577 + $0x4] sm:$0xf]
    %v5580 = vld [vmem:[%s5577 + $0x8] sm:$0xf]
    %v5581 = vld [vmem:[%s5577 + $0xc] sm:$0xf]
    %v5582 = vld [vmem:[%s5577 + $0x10] sm:$0xf]
    %v5583 = vld [vmem:[%s5577 + $0x14] sm:$0xf]
    %v5584 = vld [vmem:[%s5577 + $0x18] sm:$0xf]
    %v5585 = vld [vmem:[%s5577 + $0x1c] sm:$0xf]
    %v5586 = vld [vmem:[%s5577 + $0x20] sm:$0xf]
    %v5587 = vld [vmem:[%s5577 + $0x24] sm:$0xf]
    %v5588 = vld [vmem:[%s5577 + $0x28] sm:$0xf]
    %v5589 = vld [vmem:[%s5577 + $0x2c] sm:$0xf]
    %v5590 = vld [vmem:[%s5577 + $0x30] sm:$0xf]
    %v5591 = vld [vmem:[%s5577 + $0x34] sm:$0xf]
    %v5592 = vld [vmem:[%s5577 + $0x38] sm:$0xf]
    %v5593 = vld [vmem:[%s5577 + $0x3c] sm:$0xf]
    %v5610 = vunpack.c.l.b16 %v5578
    %v5611 = vunpack.c.l.b16 %v5579
    %v5612 = vunpack.c.l.b16 %v5580
    %v5613 = vunpack.c.l.b16 %v5581
    %v5614 = vunpack.c.l.b16 %v5582
    %v5615 = vunpack.c.l.b16 %v5583
    %v5616 = vunpack.c.l.b16 %v5584
    %v5617 = vunpack.c.l.b16 %v5585
    %v5618 = vunpack.c.l.b16 %v5586
    %v5619 = vunpack.c.l.b16 %v5587
    %v5620 = vunpack.c.l.b16 %v5588
    %v5621 = vunpack.c.l.b16 %v5589
    %v5622 = vunpack.c.l.b16 %v5590
    %v5623 = vunpack.c.l.b16 %v5591
    %v5624 = vunpack.c.l.b16 %v5592
    %v5625 = vunpack.c.l.b16 %v5593
    %v5626 = vpack.c.b16 %v5611, %v5610
    %v5627 = vpack.c.b16 %v5613, %v5612
    %v5628 = vpack.c.b16 %v5615, %v5614
    %v5629 = vpack.c.b16 %v5617, %v5616
    %v5630 = vpack.c.b16 %v5619, %v5618
    %v5631 = vpack.c.b16 %v5621, %v5620
    %v5632 = vpack.c.b16 %v5623, %v5622
    %v5633 = vpack.c.b16 %v5625, %v5624
    %5642 = vmatprep.subr.bf16.mxu0 0
    %5643 = vmatpush1.bf16.msra.mxu0 %v5633
    %5644 = vmatprep.subr.bf16.mxu0 0
    %5645 = vmatpush1.bf16.msra.mxu0 %v5632
    %5646 = vmatprep.subr.bf16.mxu0 0
    %5647 = vmatpush1.bf16.msra.mxu0 %v5631
    %5648 = vmatprep.subr.bf16.mxu0 0
    %5649 = vmatpush1.bf16.msra.mxu0 %v5630
    %5650 = vmatprep.subr.bf16.mxu0 0
    %5651 = vmatpush1.bf16.msra.mxu0 %v5629
    %5652 = vmatprep.subr.bf16.mxu0 0
    %5653 = vmatpush1.bf16.msra.mxu0 %v5628
    %5654 = vmatprep.subr.bf16.mxu0 0
    %5655 = vmatpush1.bf16.msra.mxu0 %v5627
    %5656 = vmatprep.subr.bf16.mxu0 0
    %5657 = vmatpush1.bf16.msra.mxu0 %v5626
    %5658 = vmatprep.subr.bf16.mxu0 0
    %5659 = vmatpush2.bf16.msra.mxu0 0
    %5660 = vmatprep.subr.bf16.mxu0 0
    %5661 = vmatpush2.bf16.msra.mxu0 0
    %5662 = vmatprep.subr.bf16.mxu0 0
    %5663 = vmatpush2.bf16.msra.mxu0 0
    %5664 = vmatprep.subr.bf16.mxu0 0
    %5665 = vmatpush2.bf16.msra.mxu0 0
    %5666 = vmatprep.subr.bf16.mxu0 0
    %5667 = vmatpush2.bf16.msra.mxu0 0
    %5668 = vmatprep.subr.bf16.mxu0 0
    %5669 = vmatpush2.bf16.msra.mxu0 0
    %5670 = vmatprep.subr.bf16.mxu0 0
    %5671 = vmatpush2.bf16.msra.mxu0 0
    %5672 = vmatprep.subr.bf16.mxu0 0
    %5673 = vmatpush2.bf16.msra.mxu0 0
    %5674 = vmatprep.mubr.bf16.mxu0 0
    %5675 = vmatmul.mubr.bf16.gmra.mxu0 %v5576
    %v5676 = vpop.f32.mrf.mxu0
    %v5677 = vadd.f32 0.0, %v5676
    %v5678 = vpop.f32.mrf.mxu0
    %v5679 = vpop.f32.mrf.mxu0
    %v5680 = vadd.f32 0.0, %v5679
    %v5681 = vpop.f32.mrf.mxu0
    %5682 = vdwg.mxu0
    %v5683 = vadd.f32 %v5522, %v5677
    %v5684 = vadd.f32 %v5523, %v5680
    %s5685 = scalar_lea.vmem [#allocation25], 32
    %v5686 = vld [vmem:[%s5685] sm:$0xf]
    %v5687 = vld [vmem:[%s5685 + $0x4] sm:$0xf]
    %v5690 = vunpack.c.l.b16 %v5686
    %v5691 = vunpack.c.l.b16 %v5687
    %v5692 = vpack.c.b16 %v5691, %v5690
    %v5694 = vsel %vm4341, %v5692, 0
    %5696 = vmatprep.subr.bf16.mxu0 0
    %5697 = vmatpush1.bf16.msra.mxu0 0
    %5698 = vmatprep.subr.bf16.mxu0 0
    %5699 = vmatpush1.bf16.msra.mxu0 0
    %5700 = vmatprep.subr.bf16.mxu0 0
    %5701 = vmatpush1.bf16.msra.mxu0 0
    %5702 = vmatprep.subr.bf16.mxu0 0
    %5703 = vmatpush1.bf16.msra.mxu0 0
    %5704 = vmatprep.subr.bf16.mxu0 0
    %5705 = vmatpush1.bf16.msra.mxu0 0
    %5706 = vmatprep.subr.bf16.mxu0 0
    %5707 = vmatpush1.bf16.msra.mxu0 0
    %5708 = vmatprep.subr.bf16.mxu0 0
    %5709 = vmatpush1.bf16.msra.mxu0 0
    %5710 = vmatprep.subr.bf16.mxu0 0
    %5711 = vmatpush1.bf16.msra.mxu0 %v5046
    %5712 = vmatprep.subr.bf16.mxu0 0
    %5713 = vmatpush2.bf16.msra.mxu0 0
    %5714 = vmatprep.subr.bf16.mxu0 0
    %5715 = vmatpush2.bf16.msra.mxu0 0
    %5716 = vmatprep.subr.bf16.mxu0 0
    %5717 = vmatpush2.bf16.msra.mxu0 0
    %5718 = vmatprep.subr.bf16.mxu0 0
    %5719 = vmatpush2.bf16.msra.mxu0 0
    %5720 = vmatprep.subr.bf16.mxu0 0
    %5721 = vmatpush2.bf16.msra.mxu0 0
    %5722 = vmatprep.subr.bf16.mxu0 0
    %5723 = vmatpush2.bf16.msra.mxu0 0
    %5724 = vmatprep.subr.bf16.mxu0 0
    %5725 = vmatpush2.bf16.msra.mxu0 0
    %5726 = vmatprep.subr.bf16.mxu0 0
    %5727 = vmatpush2.bf16.msra.mxu0 0
    %5728 = vmatprep.mubr.bf16.mxu0 0
    %5729 = vmatmul.mubr.bf16.gmra.mxu0 %v5694
    %v5730 = vpop.f32.mrf.mxu0
    %v5731 = vadd.f32 0.0, %v5730
    %v5732 = vpop.f32.mrf.mxu0
    %v5733 = vpop.f32.mrf.mxu0
    %v5734 = vadd.f32 0.0, %v5733
    %v5735 = vpop.f32.mrf.mxu0
    %5736 = vdwg.mxu0
    %v5737 = vpack.c.bf16 %v5734, %v5731
    %s5738 = scalar_lea.vmem %s45, 256
    %v5739 = vld [vmem:[%s5738] sm:$0xf]
    %v5740 = vld [vmem:[%s5738 + $0x4] sm:$0xf]
    %v5741 = vld [vmem:[%s5738 + $0x8] sm:$0xf]
    %v5742 = vld [vmem:[%s5738 + $0xc] sm:$0xf]
    %v5743 = vld [vmem:[%s5738 + $0x10] sm:$0xf]
    %v5744 = vld [vmem:[%s5738 + $0x14] sm:$0xf]
    %v5745 = vld [vmem:[%s5738 + $0x18] sm:$0xf]
    %v5746 = vld [vmem:[%s5738 + $0x1c] sm:$0xf]
    %v5747 = vld [vmem:[%s5738 + $0x20] sm:$0xf]
    %v5748 = vld [vmem:[%s5738 + $0x24] sm:$0xf]
    %v5749 = vld [vmem:[%s5738 + $0x28] sm:$0xf]
    %v5750 = vld [vmem:[%s5738 + $0x2c] sm:$0xf]
    %v5751 = vld [vmem:[%s5738 + $0x30] sm:$0xf]
    %v5752 = vld [vmem:[%s5738 + $0x34] sm:$0xf]
    %v5753 = vld [vmem:[%s5738 + $0x38] sm:$0xf]
    %v5754 = vld [vmem:[%s5738 + $0x3c] sm:$0xf]
    %v5771 = vunpack.c.l.b16 %v5739
    %v5772 = vunpack.c.l.b16 %v5740
    %v5773 = vunpack.c.l.b16 %v5741
    %v5774 = vunpack.c.l.b16 %v5742
    %v5775 = vunpack.c.l.b16 %v5743
    %v5776 = vunpack.c.l.b16 %v5744
    %v5777 = vunpack.c.l.b16 %v5745
    %v5778 = vunpack.c.l.b16 %v5746
    %v5779 = vunpack.c.l.b16 %v5747
    %v5780 = vunpack.c.l.b16 %v5748
    %v5781 = vunpack.c.l.b16 %v5749
    %v5782 = vunpack.c.l.b16 %v5750
    %v5783 = vunpack.c.l.b16 %v5751
    %v5784 = vunpack.c.l.b16 %v5752
    %v5785 = vunpack.c.l.b16 %v5753
    %v5786 = vunpack.c.l.b16 %v5754
    %v5787 = vpack.c.b16 %v5772, %v5771
    %v5788 = vpack.c.b16 %v5774, %v5773
    %v5789 = vpack.c.b16 %v5776, %v5775
    %v5790 = vpack.c.b16 %v5778, %v5777
    %v5791 = vpack.c.b16 %v5780, %v5779
    %v5792 = vpack.c.b16 %v5782, %v5781
    %v5793 = vpack.c.b16 %v5784, %v5783
    %v5794 = vpack.c.b16 %v5786, %v5785
    %5803 = vmatprep.subr.bf16.mxu0 0
    %5804 = vmatpush1.bf16.msra.mxu0 %v5794
    %5805 = vmatprep.subr.bf16.mxu0 0
    %5806 = vmatpush1.bf16.msra.mxu0 %v5793
    %5807 = vmatprep.subr.bf16.mxu0 0
    %5808 = vmatpush1.bf16.msra.mxu0 %v5792
    %5809 = vmatprep.subr.bf16.mxu0 0
    %5810 = vmatpush1.bf16.msra.mxu0 %v5791
    %5811 = vmatprep.subr.bf16.mxu0 0
    %5812 = vmatpush1.bf16.msra.mxu0 %v5790
    %5813 = vmatprep.subr.bf16.mxu0 0
    %5814 = vmatpush1.bf16.msra.mxu0 %v5789
    %5815 = vmatprep.subr.bf16.mxu0 0
    %5816 = vmatpush1.bf16.msra.mxu0 %v5788
    %5817 = vmatprep.subr.bf16.mxu0 0
    %5818 = vmatpush1.bf16.msra.mxu0 %v5787
    %5819 = vmatprep.subr.bf16.mxu0 0
    %5820 = vmatpush2.bf16.msra.mxu0 0
    %5821 = vmatprep.subr.bf16.mxu0 0
    %5822 = vmatpush2.bf16.msra.mxu0 0
    %5823 = vmatprep.subr.bf16.mxu0 0
    %5824 = vmatpush2.bf16.msra.mxu0 0
    %5825 = vmatprep.subr.bf16.mxu0 0
    %5826 = vmatpush2.bf16.msra.mxu0 0
    %5827 = vmatprep.subr.bf16.mxu0 0
    %5828 = vmatpush2.bf16.msra.mxu0 0
    %5829 = vmatprep.subr.bf16.mxu0 0
    %5830 = vmatpush2.bf16.msra.mxu0 0
    %5831 = vmatprep.subr.bf16.mxu0 0
    %5832 = vmatpush2.bf16.msra.mxu0 0
    %5833 = vmatprep.subr.bf16.mxu0 0
    %5834 = vmatpush2.bf16.msra.mxu0 0
    %5835 = vmatprep.mubr.bf16.mxu0 0
    %5836 = vmatmul.mubr.bf16.gmra.mxu0 %v5737
    %v5837 = vpop.f32.mrf.mxu0
    %v5838 = vadd.f32 0.0, %v5837
    %v5839 = vpop.f32.mrf.mxu0
    %v5840 = vpop.f32.mrf.mxu0
    %v5841 = vadd.f32 0.0, %v5840
    %v5842 = vpop.f32.mrf.mxu0
    %5843 = vdwg.mxu0
    %v5844 = vadd.f32 %v5683, %v5838
    %v5845 = vadd.f32 %v5684, %v5841
    %v5846 = vadd.f32 %v5844, %v5845
    %v5847 = vrot.slane %v5846, 4
    %v5848 = vadd.f32 %v5846, %v5847
    %v5849 = vrot.slane %v5848, 2
    %v5850 = vadd.f32 %v5848, %v5849
    %v5851 = vrot.slane %v5850, 1
    %v5852 = vadd.f32 %v5850, %v5851
    %v5853 = vmul.f32 %v5844, %v5844
    %v5854 = vmul.f32 %v5845, %v5845
    %v5855 = vadd.f32 %v5853, %v5854
    %v5856 = vrot.slane %v5855, 4
    %v5857 = vadd.f32 %v5855, %v5856
    %v5858 = vrot.slane %v5857, 2
    %v5859 = vadd.f32 %v5857, %v5858
    %v5860 = vrot.slane %v5859, 1
    %v5861 = vadd.f32 %v5859, %v5860
    %v5862 = vld [vmem:[%s47] sm:$0xff]
    %v5863 = vld [vmem:[%s47 + $0x8] sm:$0xff]
    %v5864 = vld [vmem:[%s47 + $0x10] sm:$0xff]
    %v5865 = vld [vmem:[%s47 + $0x18] sm:$0xff]
    %v5866 = vld [vmem:[%s47 + $0x20] sm:$0xff]
    %v5867 = vld [vmem:[%s47 + $0x28] sm:$0xff]
    %v5868 = vld [vmem:[%s47 + $0x30] sm:$0xff]
    %v5869 = vld [vmem:[%s47 + $0x38] sm:$0xff]
    %v5870 = vld [vmem:[%s47 + $0x40] sm:$0xff]
    %v5871 = vld [vmem:[%s47 + $0x48] sm:$0xff]
    %v5872 = vld [vmem:[%s47 + $0x50] sm:$0xff]
    %v5873 = vld [vmem:[%s47 + $0x58] sm:$0xff]
    %v5874 = vld [vmem:[%s47 + $0x60] sm:$0xff]
    %v5875 = vld [vmem:[%s47 + $0x68] sm:$0xff]
    %v5876 = vld [vmem:[%s47 + $0x70] sm:$0xff]
    %v5877 = vld [vmem:[%s47 + $0x78] sm:$0xff]
    %5878 = vmatprep.subr.mxu0 0.0
    %5879 = vmatpush1.msra.mxu0 %v5877
    %5880 = vmatprep.subr.mxu0 0.0
    %5881 = vmatpush1.msra.mxu0 %v5876
    %5882 = vmatprep.subr.mxu0 0.0
    %5883 = vmatpush1.msra.mxu0 %v5875
    %5884 = vmatprep.subr.mxu0 0.0
    %5885 = vmatpush1.msra.mxu0 %v5874
    %5886 = vmatprep.subr.mxu0 0.0
    %5887 = vmatpush1.msra.mxu0 %v5873
    %5888 = vmatprep.subr.mxu0 0.0
    %5889 = vmatpush1.msra.mxu0 %v5872
    %5890 = vmatprep.subr.mxu0 0.0
    %5891 = vmatpush1.msra.mxu0 %v5871
    %5892 = vmatprep.subr.mxu0 0.0
    %5893 = vmatpush1.msra.mxu0 %v5870
    %5894 = vmatprep.subr.mxu0 0.0
    %5895 = vmatpush1.msra.mxu0 %v5869
    %5896 = vmatprep.subr.mxu0 0.0
    %5897 = vmatpush1.msra.mxu0 %v5868
    %5898 = vmatprep.subr.mxu0 0.0
    %5899 = vmatpush1.msra.mxu0 %v5867
    %5900 = vmatprep.subr.mxu0 0.0
    %5901 = vmatpush1.msra.mxu0 %v5866
    %5902 = vmatprep.subr.mxu0 0.0
    %5903 = vmatpush1.msra.mxu0 %v5865
    %5904 = vmatprep.subr.mxu0 0.0
    %5905 = vmatpush1.msra.mxu0 %v5864
    %5906 = vmatprep.subr.mxu0 0.0
    %5907 = vmatpush1.msra.mxu0 %v5863
    %5908 = vmatprep.subr.mxu0 0.0
    %5909 = vmatpush1.msra.mxu0 %v5862
    %5910 = vmatprep.subr.mxu0 0.0
    %5911 = vmatpush2.msra.mxu0 0.0
    %5912 = vmatprep.subr.mxu0 0.0
    %5913 = vmatpush2.msra.mxu0 0.0
    %5914 = vmatprep.subr.mxu0 0.0
    %5915 = vmatpush2.msra.mxu0 0.0
    %5916 = vmatprep.subr.mxu0 0.0
    %5917 = vmatpush2.msra.mxu0 0.0
    %5918 = vmatprep.subr.mxu0 0.0
    %5919 = vmatpush2.msra.mxu0 0.0
    %5920 = vmatprep.subr.mxu0 0.0
    %5921 = vmatpush2.msra.mxu0 0.0
    %5922 = vmatprep.subr.mxu0 0.0
    %5923 = vmatpush2.msra.mxu0 0.0
    %5924 = vmatprep.subr.mxu0 0.0
    %5925 = vmatpush2.msra.mxu0 0.0
    %5926 = vmatprep.subr.mxu0 0.0
    %5927 = vmatpush2.msra.mxu0 0.0
    %5928 = vmatprep.subr.mxu0 0.0
    %5929 = vmatpush2.msra.mxu0 0.0
    %5930 = vmatprep.subr.mxu0 0.0
    %5931 = vmatpush2.msra.mxu0 0.0
    %5932 = vmatprep.subr.mxu0 0.0
    %5933 = vmatpush2.msra.mxu0 0.0
    %5934 = vmatprep.subr.mxu0 0.0
    %5935 = vmatpush2.msra.mxu0 0.0
    %5936 = vmatprep.subr.mxu0 0.0
    %5937 = vmatpush2.msra.mxu0 0.0
    %5938 = vmatprep.subr.mxu0 0.0
    %5939 = vmatpush2.msra.mxu0 0.0
    %5940 = vmatprep.subr.mxu0 0.0
    %5941 = vmatpush2.msra.mxu0 0.0
    %5942 = vmatprep.mubr.f32.mxu0 0.0
    %5943 = vmatmul.mubr.f32.gmra.mxu0 %v5852
    %v5944 = vpop.f32.mrf.mxu0
    %v5945 = vadd.f32 0.0, %v5944
    %v5946 = vpop.f32.mrf.mxu0
    %5947 = vdwg.mxu0
    %5948 = vmatprep.subr.mxu0 0.0
    %5949 = vmatpush1.msra.mxu0 %v5877
    %5950 = vmatprep.subr.mxu0 0.0
    %5951 = vmatpush1.msra.mxu0 %v5876
    %5952 = vmatprep.subr.mxu0 0.0
    %5953 = vmatpush1.msra.mxu0 %v5875
    %5954 = vmatprep.subr.mxu0 0.0
    %5955 = vmatpush1.msra.mxu0 %v5874
    %5956 = vmatprep.subr.mxu0 0.0
    %5957 = vmatpush1.msra.mxu0 %v5873
    %5958 = vmatprep.subr.mxu0 0.0
    %5959 = vmatpush1.msra.mxu0 %v5872
    %5960 = vmatprep.subr.mxu0 0.0
    %5961 = vmatpush1.msra.mxu0 %v5871
    %5962 = vmatprep.subr.mxu0 0.0
    %5963 = vmatpush1.msra.mxu0 %v5870
    %5964 = vmatprep.subr.mxu0 0.0
    %5965 = vmatpush1.msra.mxu0 %v5869
    %5966 = vmatprep.subr.mxu0 0.0
    %5967 = vmatpush1.msra.mxu0 %v5868
    %5968 = vmatprep.subr.mxu0 0.0
    %5969 = vmatpush1.msra.mxu0 %v5867
    %5970 = vmatprep.subr.mxu0 0.0
    %5971 = vmatpush1.msra.mxu0 %v5866
    %5972 = vmatprep.subr.mxu0 0.0
    %5973 = vmatpush1.msra.mxu0 %v5865
    %5974 = vmatprep.subr.mxu0 0.0
    %5975 = vmatpush1.msra.mxu0 %v5864
    %5976 = vmatprep.subr.mxu0 0.0
    %5977 = vmatpush1.msra.mxu0 %v5863
    %5978 = vmatprep.subr.mxu0 0.0
    %5979 = vmatpush1.msra.mxu0 %v5862
    %5980 = vmatprep.subr.mxu0 0.0
    %5981 = vmatpush2.msra.mxu0 0.0
    %5982 = vmatprep.subr.mxu0 0.0
    %5983 = vmatpush2.msra.mxu0 0.0
    %5984 = vmatprep.subr.mxu0 0.0
    %5985 = vmatpush2.msra.mxu0 0.0
    %5986 = vmatprep.subr.mxu0 0.0
    %5987 = vmatpush2.msra.mxu0 0.0
    %5988 = vmatprep.subr.mxu0 0.0
    %5989 = vmatpush2.msra.mxu0 0.0
    %5990 = vmatprep.subr.mxu0 0.0
    %5991 = vmatpush2.msra.mxu0 0.0
    %5992 = vmatprep.subr.mxu0 0.0
    %5993 = vmatpush2.msra.mxu0 0.0
    %5994 = vmatprep.subr.mxu0 0.0
    %5995 = vmatpush2.msra.mxu0 0.0
    %5996 = vmatprep.subr.mxu0 0.0
    %5997 = vmatpush2.msra.mxu0 0.0
    %5998 = vmatprep.subr.mxu0 0.0
    %5999 = vmatpush2.msra.mxu0 0.0
    %6000 = vmatprep.subr.mxu0 0.0
    %6001 = vmatpush2.msra.mxu0 0.0
    %6002 = vmatprep.subr.mxu0 0.0
    %6003 = vmatpush2.msra.mxu0 0.0
    %6004 = vmatprep.subr.mxu0 0.0
    %6005 = vmatpush2.msra.mxu0 0.0
    %6006 = vmatprep.subr.mxu0 0.0
    %6007 = vmatpush2.msra.mxu0 0.0
    %6008 = vmatprep.subr.mxu0 0.0
    %6009 = vmatpush2.msra.mxu0 0.0
    %6010 = vmatprep.subr.mxu0 0.0
    %6011 = vmatpush2.msra.mxu0 0.0
    %6012 = vmatprep.mubr.f32.mxu0 0.0
    %6013 = vmatmul.mubr.f32.gmra.mxu0 %v5861
    %v6014 = vpop.f32.mrf.mxu0
    %v6015 = vadd.f32 0.0, %v6014
    %v6016 = vpop.f32.mrf.mxu0
    %6017 = vdwg.mxu0
    %v6018 = vmul.f32 %v5945, 0.0078125
    %v6019 = vmul.f32 %v6015, 0.0078125
    %v6020 = vmul.f32 %v6018, %v6018
    %v6021 = vsub.f32 %v6019, %v6020
    %v6022 = vmax.f32 %v6021, 0.0
    %v6023 = vadd.f32 %v6022, 1e-05
    %v6024 = vrsqrt.pop %v6023
    %v6025 = vld [vmem:[#allocation26] sm:$0xff]
    %v6026 = vld [vmem:[#allocation26 + $0x8] sm:$0xff]
    %v6028 = vsel %vm4341, %v6018, 0
    %6030 = vmatprep.subr.mxu0 0.0
    %6031 = vmatpush1.msra.mxu0 0.0
    %6032 = vmatprep.subr.mxu0 0.0
    %6033 = vmatpush1.msra.mxu0 0.0
    %6034 = vmatprep.subr.mxu0 0.0
    %6035 = vmatpush1.msra.mxu0 0.0
    %6036 = vmatprep.subr.mxu0 0.0
    %6037 = vmatpush1.msra.mxu0 0.0
    %6038 = vmatprep.subr.mxu0 0.0
    %6039 = vmatpush1.msra.mxu0 0.0
    %6040 = vmatprep.subr.mxu0 0.0
    %6041 = vmatpush1.msra.mxu0 0.0
    %6042 = vmatprep.subr.mxu0 0.0
    %6043 = vmatpush1.msra.mxu0 0.0
    %6044 = vmatprep.subr.mxu0 0.0
    %6045 = vmatpush1.msra.mxu0 0.0
    %6046 = vmatprep.subr.mxu0 0.0
    %6047 = vmatpush1.msra.mxu0 0.0
    %6048 = vmatprep.subr.mxu0 0.0
    %6049 = vmatpush1.msra.mxu0 0.0
    %6050 = vmatprep.subr.mxu0 0.0
    %6051 = vmatpush1.msra.mxu0 0.0
    %6052 = vmatprep.subr.mxu0 0.0
    %6053 = vmatpush1.msra.mxu0 0.0
    %6054 = vmatprep.subr.mxu0 0.0
    %6055 = vmatpush1.msra.mxu0 0.0
    %6056 = vmatprep.subr.mxu0 0.0
    %6057 = vmatpush1.msra.mxu0 0.0
    %6058 = vmatprep.subr.mxu0 0.0
    %6059 = vmatpush1.msra.mxu0 %v6026
    %6060 = vmatprep.subr.mxu0 0.0
    %6061 = vmatpush1.msra.mxu0 %v6025
    %6062 = vmatprep.subr.mxu0 0.0
    %6063 = vmatpush2.msra.mxu0 0.0
    %6064 = vmatprep.subr.mxu0 0.0
    %6065 = vmatpush2.msra.mxu0 0.0
    %6066 = vmatprep.subr.mxu0 0.0
    %6067 = vmatpush2.msra.mxu0 0.0
    %6068 = vmatprep.subr.mxu0 0.0
    %6069 = vmatpush2.msra.mxu0 0.0
    %6070 = vmatprep.subr.mxu0 0.0
    %6071 = vmatpush2.msra.mxu0 0.0
    %6072 = vmatprep.subr.mxu0 0.0
    %6073 = vmatpush2.msra.mxu0 0.0
    %6074 = vmatprep.subr.mxu0 0.0
    %6075 = vmatpush2.msra.mxu0 0.0
    %6076 = vmatprep.subr.mxu0 0.0
    %6077 = vmatpush2.msra.mxu0 0.0
    %6078 = vmatprep.subr.mxu0 0.0
    %6079 = vmatpush2.msra.mxu0 0.0
    %6080 = vmatprep.subr.mxu0 0.0
    %6081 = vmatpush2.msra.mxu0 0.0
    %6082 = vmatprep.subr.mxu0 0.0
    %6083 = vmatpush2.msra.mxu0 0.0
    %6084 = vmatprep.subr.mxu0 0.0
    %6085 = vmatpush2.msra.mxu0 0.0
    %6086 = vmatprep.subr.mxu0 0.0
    %6087 = vmatpush2.msra.mxu0 0.0
    %6088 = vmatprep.subr.mxu0 0.0
    %6089 = vmatpush2.msra.mxu0 0.0
    %6090 = vmatprep.subr.mxu0 0.0
    %6091 = vmatpush2.msra.mxu0 0.0
    %6092 = vmatprep.subr.mxu0 0.0
    %6093 = vmatpush2.msra.mxu0 0.0
    %6094 = vmatprep.mubr.f32.mxu0 0.0
    %6095 = vmatmul.mubr.f32.gmra.mxu0 %v6028
    %v6096 = vpop.f32.mrf.mxu0
    %v6097 = vadd.f32 0.0, %v6096
    %v6098 = vpop.f32.mrf.mxu0
    %6099 = vdwg.mxu0
    %v6101 = vsel %vm4341, %v6024, 0
    %6103 = vmatprep.subr.mxu0 0.0
    %6104 = vmatpush1.msra.mxu0 0.0
    %6105 = vmatprep.subr.mxu0 0.0
    %6106 = vmatpush1.msra.mxu0 0.0
    %6107 = vmatprep.subr.mxu0 0.0
    %6108 = vmatpush1.msra.mxu0 0.0
    %6109 = vmatprep.subr.mxu0 0.0
    %6110 = vmatpush1.msra.mxu0 0.0
    %6111 = vmatprep.subr.mxu0 0.0
    %6112 = vmatpush1.msra.mxu0 0.0
    %6113 = vmatprep.subr.mxu0 0.0
    %6114 = vmatpush1.msra.mxu0 0.0
    %6115 = vmatprep.subr.mxu0 0.0
    %6116 = vmatpush1.msra.mxu0 0.0
    %6117 = vmatprep.subr.mxu0 0.0
    %6118 = vmatpush1.msra.mxu0 0.0
    %6119 = vmatprep.subr.mxu0 0.0
    %6120 = vmatpush1.msra.mxu0 0.0
    %6121 = vmatprep.subr.mxu0 0.0
    %6122 = vmatpush1.msra.mxu0 0.0
    %6123 = vmatprep.subr.mxu0 0.0
    %6124 = vmatpush1.msra.mxu0 0.0
    %6125 = vmatprep.subr.mxu0 0.0
    %6126 = vmatpush1.msra.mxu0 0.0
    %6127 = vmatprep.subr.mxu0 0.0
    %6128 = vmatpush1.msra.mxu0 0.0
    %6129 = vmatprep.subr.mxu0 0.0
    %6130 = vmatpush1.msra.mxu0 0.0
    %6131 = vmatprep.subr.mxu0 0.0
    %6132 = vmatpush1.msra.mxu0 %v6026
    %6133 = vmatprep.subr.mxu0 0.0
    %6134 = vmatpush1.msra.mxu0 %v6025
    %6135 = vmatprep.subr.mxu0 0.0
    %6136 = vmatpush2.msra.mxu0 0.0
    %6137 = vmatprep.subr.mxu0 0.0
    %6138 = vmatpush2.msra.mxu0 0.0
    %6139 = vmatprep.subr.mxu0 0.0
    %6140 = vmatpush2.msra.mxu0 0.0
    %6141 = vmatprep.subr.mxu0 0.0
    %6142 = vmatpush2.msra.mxu0 0.0
    %6143 = vmatprep.subr.mxu0 0.0
    %6144 = vmatpush2.msra.mxu0 0.0
    %6145 = vmatprep.subr.mxu0 0.0
    %6146 = vmatpush2.msra.mxu0 0.0
    %6147 = vmatprep.subr.mxu0 0.0
    %6148 = vmatpush2.msra.mxu0 0.0
    %6149 = vmatprep.subr.mxu0 0.0
    %6150 = vmatpush2.msra.mxu0 0.0
    %6151 = vmatprep.subr.mxu0 0.0
    %6152 = vmatpush2.msra.mxu0 0.0
    %6153 = vmatprep.subr.mxu0 0.0
    %6154 = vmatpush2.msra.mxu0 0.0
    %6155 = vmatprep.subr.mxu0 0.0
    %6156 = vmatpush2.msra.mxu0 0.0
    %6157 = vmatprep.subr.mxu0 0.0
    %6158 = vmatpush2.msra.mxu0 0.0
    %6159 = vmatprep.subr.mxu0 0.0
    %6160 = vmatpush2.msra.mxu0 0.0
    %6161 = vmatprep.subr.mxu0 0.0
    %6162 = vmatpush2.msra.mxu0 0.0
    %6163 = vmatprep.subr.mxu0 0.0
    %6164 = vmatpush2.msra.mxu0 0.0
    %6165 = vmatprep.subr.mxu0 0.0
    %6166 = vmatpush2.msra.mxu0 0.0
    %6167 = vmatprep.mubr.f32.mxu0 0.0
    %6168 = vmatmul.mubr.f32.gmra.mxu0 %v6101
    %v6169 = vpop.f32.mrf.mxu0
    %v6170 = vadd.f32 0.0, %v6169
    %v6171 = vpop.f32.mrf.mxu0
    %6172 = vdwg.mxu0
    %v6173 = vld [vmem:[#allocation28] sm:$0x1]
    %v6174 = vmul.f32 %v6173, %v6170
    %v6175 = vld [vmem:[#allocation29] sm:$0x1]
    %v6176 = vmul.f32 %v6097, %v6174
    %v6177 = vsub.f32 %v6175, %v6176
    %v6179 = vlaneseq
    %v6180 = vshrl.u32 %v6179, 7
    %v6181 = vsub.s32 0, %v6180
    %v6182 = vrot.slane %v6174, %v6181
    %v6184 = vmul.f32 %v5844, %v6182
    %v6185 = vmul.f32 %v5845, %v6182
    %v6187 = vlaneseq
    %v6188 = vshrl.u32 %v6187, 7
    %v6189 = vsub.s32 0, %v6188
    %v6190 = vrot.slane %v6177, %v6189
    %v6192 = vadd.f32 %v6184, %v6190
    %v6193 = vadd.f32 %v6185, %v6190
    %v6194 = vmax.f32 %v6192, 0.0
    %v6195 = vmax.f32 %v6193, 0.0
    %v6196 = vpack.c.bf16 %v6195, %v6194
    %v6197 = vld [vmem:[%s55] sm:$0xf]
    %v6198 = vld [vmem:[%s55 + $0x4] sm:$0xf]
    %v6199 = vld [vmem:[%s55 + $0x8] sm:$0xf]
    %v6200 = vld [vmem:[%s55 + $0xc] sm:$0xf]
    %v6201 = vld [vmem:[%s55 + $0x10] sm:$0xf]
    %v6202 = vld [vmem:[%s55 + $0x14] sm:$0xf]
    %v6203 = vld [vmem:[%s55 + $0x18] sm:$0xf]
    %v6204 = vld [vmem:[%s55 + $0x1c] sm:$0xf]
    %v6205 = vld [vmem:[%s55 + $0x20] sm:$0xf]
    %v6206 = vld [vmem:[%s55 + $0x24] sm:$0xf]
    %v6207 = vld [vmem:[%s55 + $0x28] sm:$0xf]
    %v6208 = vld [vmem:[%s55 + $0x2c] sm:$0xf]
    %v6209 = vld [vmem:[%s55 + $0x30] sm:$0xf]
    %v6210 = vld [vmem:[%s55 + $0x34] sm:$0xf]
    %v6211 = vld [vmem:[%s55 + $0x38] sm:$0xf]
    %v6212 = vld [vmem:[%s55 + $0x3c] sm:$0xf]
    %v6229 = vunpack.c.l.b16 %v6197
    %v6230 = vunpack.c.l.b16 %v6198
    %v6231 = vunpack.c.l.b16 %v6199
    %v6232 = vunpack.c.l.b16 %v6200
    %v6233 = vunpack.c.l.b16 %v6201
    %v6234 = vunpack.c.l.b16 %v6202
    %v6235 = vunpack.c.l.b16 %v6203
    %v6236 = vunpack.c.l.b16 %v6204
    %v6237 = vunpack.c.l.b16 %v6205
    %v6238 = vunpack.c.l.b16 %v6206
    %v6239 = vunpack.c.l.b16 %v6207
    %v6240 = vunpack.c.l.b16 %v6208
    %v6241 = vunpack.c.l.b16 %v6209
    %v6242 = vunpack.c.l.b16 %v6210
    %v6243 = vunpack.c.l.b16 %v6211
    %v6244 = vunpack.c.l.b16 %v6212
    %v6245 = vpack.c.b16 %v6230, %v6229
    %v6246 = vpack.c.b16 %v6232, %v6231
    %v6247 = vpack.c.b16 %v6234, %v6233
    %v6248 = vpack.c.b16 %v6236, %v6235
    %v6249 = vpack.c.b16 %v6238, %v6237
    %v6250 = vpack.c.b16 %v6240, %v6239
    %v6251 = vpack.c.b16 %v6242, %v6241
    %v6252 = vpack.c.b16 %v6244, %v6243
    %6261 = vmatprep.subr.bf16.mxu0 0
    %6262 = vmatpush1.bf16.msra.mxu0 %v6252
    %6263 = vmatprep.subr.bf16.mxu0 0
    %6264 = vmatpush1.bf16.msra.mxu0 %v6251
    %6265 = vmatprep.subr.bf16.mxu0 0
    %6266 = vmatpush1.bf16.msra.mxu0 %v6250
    %6267 = vmatprep.subr.bf16.mxu0 0
    %6268 = vmatpush1.bf16.msra.mxu0 %v6249
    %6269 = vmatprep.subr.bf16.mxu0 0
    %6270 = vmatpush1.bf16.msra.mxu0 %v6248
    %6271 = vmatprep.subr.bf16.mxu0 0
    %6272 = vmatpush1.bf16.msra.mxu0 %v6247
    %6273 = vmatprep.subr.bf16.mxu0 0
    %6274 = vmatpush1.bf16.msra.mxu0 %v6246
    %6275 = vmatprep.subr.bf16.mxu0 0
    %6276 = vmatpush1.bf16.msra.mxu0 %v6245
    %6277 = vmatprep.subr.bf16.mxu0 0
    %6278 = vmatpush2.bf16.msra.mxu0 0
    %6279 = vmatprep.subr.bf16.mxu0 0
    %6280 = vmatpush2.bf16.msra.mxu0 0
    %6281 = vmatprep.subr.bf16.mxu0 0
    %6282 = vmatpush2.bf16.msra.mxu0 0
    %6283 = vmatprep.subr.bf16.mxu0 0
    %6284 = vmatpush2.bf16.msra.mxu0 0
    %6285 = vmatprep.subr.bf16.mxu0 0
    %6286 = vmatpush2.bf16.msra.mxu0 0
    %6287 = vmatprep.subr.bf16.mxu0 0
    %6288 = vmatpush2.bf16.msra.mxu0 0
    %6289 = vmatprep.subr.bf16.mxu0 0
    %6290 = vmatpush2.bf16.msra.mxu0 0
    %6291 = vmatprep.subr.bf16.mxu0 0
    %6292 = vmatpush2.bf16.msra.mxu0 0
    %6293 = vmatprep.mubr.bf16.mxu0 0
    %6294 = vmatmul.mubr.bf16.gmra.mxu0 %v6196
    %v6295 = vpop.f32.mrf.mxu0
    %v6296 = vadd.f32 0.0, %v6295
    %v6297 = vpop.f32.mrf.mxu0
    %v6298 = vpop.f32.mrf.mxu0
    %v6299 = vadd.f32 0.0, %v6298
    %v6300 = vpop.f32.mrf.mxu0
    %6301 = vdwg.mxu0
    %v6302 = vld [vmem:[%s57] sm:$0xf]
    %v6303 = vld [vmem:[%s57 + $0x4] sm:$0xf]
    %v6304 = vld [vmem:[%s57 + $0x8] sm:$0xf]
    %v6305 = vld [vmem:[%s57 + $0xc] sm:$0xf]
    %v6306 = vld [vmem:[%s57 + $0x10] sm:$0xf]
    %v6307 = vld [vmem:[%s57 + $0x14] sm:$0xf]
    %v6308 = vld [vmem:[%s57 + $0x18] sm:$0xf]
    %v6309 = vld [vmem:[%s57 + $0x1c] sm:$0xf]
    %v6310 = vld [vmem:[%s57 + $0x20] sm:$0xf]
    %v6311 = vld [vmem:[%s57 + $0x24] sm:$0xf]
    %v6312 = vld [vmem:[%s57 + $0x28] sm:$0xf]
    %v6313 = vld [vmem:[%s57 + $0x2c] sm:$0xf]
    %v6314 = vld [vmem:[%s57 + $0x30] sm:$0xf]
    %v6315 = vld [vmem:[%s57 + $0x34] sm:$0xf]
    %v6316 = vld [vmem:[%s57 + $0x38] sm:$0xf]
    %v6317 = vld [vmem:[%s57 + $0x3c] sm:$0xf]
    %v6334 = vunpack.c.l.b16 %v6302
    %v6335 = vunpack.c.l.b16 %v6303
    %v6336 = vunpack.c.l.b16 %v6304
    %v6337 = vunpack.c.l.b16 %v6305
    %v6338 = vunpack.c.l.b16 %v6306
    %v6339 = vunpack.c.l.b16 %v6307
    %v6340 = vunpack.c.l.b16 %v6308
    %v6341 = vunpack.c.l.b16 %v6309
    %v6342 = vunpack.c.l.b16 %v6310
    %v6343 = vunpack.c.l.b16 %v6311
    %v6344 = vunpack.c.l.b16 %v6312
    %v6345 = vunpack.c.l.b16 %v6313
    %v6346 = vunpack.c.l.b16 %v6314
    %v6347 = vunpack.c.l.b16 %v6315
    %v6348 = vunpack.c.l.b16 %v6316
    %v6349 = vunpack.c.l.b16 %v6317
    %v6350 = vpack.c.b16 %v6335, %v6334
    %v6351 = vpack.c.b16 %v6337, %v6336
    %v6352 = vpack.c.b16 %v6339, %v6338
    %v6353 = vpack.c.b16 %v6341, %v6340
    %v6354 = vpack.c.b16 %v6343, %v6342
    %v6355 = vpack.c.b16 %v6345, %v6344
    %v6356 = vpack.c.b16 %v6347, %v6346
    %v6357 = vpack.c.b16 %v6349, %v6348
    %6366 = vmatprep.subr.bf16.mxu0 0
    %6367 = vmatpush1.bf16.msra.mxu0 %v6357
    %6368 = vmatprep.subr.bf16.mxu0 0
    %6369 = vmatpush1.bf16.msra.mxu0 %v6356
    %6370 = vmatprep.subr.bf16.mxu0 0
    %6371 = vmatpush1.bf16.msra.mxu0 %v6355
    %6372 = vmatprep.subr.bf16.mxu0 0
    %6373 = vmatpush1.bf16.msra.mxu0 %v6354
    %6374 = vmatprep.subr.bf16.mxu0 0
    %6375 = vmatpush1.bf16.msra.mxu0 %v6353
    %6376 = vmatprep.subr.bf16.mxu0 0
    %6377 = vmatpush1.bf16.msra.mxu0 %v6352
    %6378 = vmatprep.subr.bf16.mxu0 0
    %6379 = vmatpush1.bf16.msra.mxu0 %v6351
    %6380 = vmatprep.subr.bf16.mxu0 0
    %6381 = vmatpush1.bf16.msra.mxu0 %v6350
    %6382 = vmatprep.subr.bf16.mxu0 0
    %6383 = vmatpush2.bf16.msra.mxu0 0
    %6384 = vmatprep.subr.bf16.mxu0 0
    %6385 = vmatpush2.bf16.msra.mxu0 0
    %6386 = vmatprep.subr.bf16.mxu0 0
    %6387 = vmatpush2.bf16.msra.mxu0 0
    %6388 = vmatprep.subr.bf16.mxu0 0
    %6389 = vmatpush2.bf16.msra.mxu0 0
    %6390 = vmatprep.subr.bf16.mxu0 0
    %6391 = vmatpush2.bf16.msra.mxu0 0
    %6392 = vmatprep.subr.bf16.mxu0 0
    %6393 = vmatpush2.bf16.msra.mxu0 0
    %6394 = vmatprep.subr.bf16.mxu0 0
    %6395 = vmatpush2.bf16.msra.mxu0 0
    %6396 = vmatprep.subr.bf16.mxu0 0
    %6397 = vmatpush2.bf16.msra.mxu0 0
    %6398 = vmatprep.mubr.bf16.mxu0 0
    %6399 = vmatmul.mubr.bf16.gmra.mxu0 %v6196
    %v6400 = vpop.f32.mrf.mxu0
    %v6401 = vadd.f32 0.0, %v6400
    %v6402 = vpop.f32.mrf.mxu0
    %v6403 = vpop.f32.mrf.mxu0
    %v6404 = vadd.f32 0.0, %v6403
    %v6405 = vpop.f32.mrf.mxu0
    %6406 = vdwg.mxu0
    %v6407 = vmax.f32 %v6296, %v6401
    %v6408 = vmax.f32 %v6299, %v6404
    %v6409 = vpack.c.bf16 %v6408, %v6407
    %v6410 = vld [vmem:[#allocation31] sm:$0xf]
    %v6412 = vsel %vm4341, %v6410, 0
    %6414 = vmatprep.subr.bf16.mxu0 0
    %6415 = vmatpush1.bf16.msra.mxu0 0
    %6416 = vmatprep.subr.bf16.mxu0 0
    %6417 = vmatpush1.bf16.msra.mxu0 0
    %6418 = vmatprep.subr.bf16.mxu0 0
    %6419 = vmatpush1.bf16.msra.mxu0 0
    %6420 = vmatprep.subr.bf16.mxu0 0
    %6421 = vmatpush1.bf16.msra.mxu0 0
    %6422 = vmatprep.subr.bf16.mxu0 0
    %6423 = vmatpush1.bf16.msra.mxu0 0
    %6424 = vmatprep.subr.bf16.mxu0 0
    %6425 = vmatpush1.bf16.msra.mxu0 0
    %6426 = vmatprep.subr.bf16.mxu0 0
    %6427 = vmatpush1.bf16.msra.mxu0 0
    %6428 = vmatprep.subr.bf16.mxu0 0
    %6429 = vmatpush1.bf16.msra.mxu0 %v6409
    %6430 = vmatprep.subr.bf16.mxu0 0
    %6431 = vmatpush2.bf16.msra.mxu0 0
    %6432 = vmatprep.subr.bf16.mxu0 0
    %6433 = vmatpush2.bf16.msra.mxu0 0
    %6434 = vmatprep.subr.bf16.mxu0 0
    %6435 = vmatpush2.bf16.msra.mxu0 0
    %6436 = vmatprep.subr.bf16.mxu0 0
    %6437 = vmatpush2.bf16.msra.mxu0 0
    %6438 = vmatprep.subr.bf16.mxu0 0
    %6439 = vmatpush2.bf16.msra.mxu0 0
    %6440 = vmatprep.subr.bf16.mxu0 0
    %6441 = vmatpush2.bf16.msra.mxu0 0
    %6442 = vmatprep.subr.bf16.mxu0 0
    %6443 = vmatpush2.bf16.msra.mxu0 0
    %6444 = vmatprep.subr.bf16.mxu0 0
    %6445 = vmatpush2.bf16.msra.mxu0 0
    %6446 = vmatprep.mubr.bf16.mxu0 0
    %6447 = vmatmul.mubr.bf16.gmra.mxu0 %v6412
    %v6448 = vpop.f32.mrf.mxu0
    %v6449 = vadd.f32 0.0, %v6448
    %v6450 = vpop.f32.mrf.mxu0
    %v6451 = vpop.f32.mrf.mxu0
    %v6452 = vpop.f32.mrf.mxu0
    %6453 = vdwg.mxu0
    %v6454 = vld [vmem:[#allocation32] sm:$0xf]
    %v6456 = vsel %vm4341, %v6454, 0
    %6458 = vmatprep.subr.bf16.mxu0 0
    %6459 = vmatpush1.bf16.msra.mxu0 0
    %6460 = vmatprep.subr.bf16.mxu0 0
    %6461 = vmatpush1.bf16.msra.mxu0 0
    %6462 = vmatprep.subr.bf16.mxu0 0
    %6463 = vmatpush1.bf16.msra.mxu0 0
    %6464 = vmatprep.subr.bf16.mxu0 0
    %6465 = vmatpush1.bf16.msra.mxu0 0
    %6466 = vmatprep.subr.bf16.mxu0 0
    %6467 = vmatpush1.bf16.msra.mxu0 0
    %6468 = vmatprep.subr.bf16.mxu0 0
    %6469 = vmatpush1.bf16.msra.mxu0 0
    %6470 = vmatprep.subr.bf16.mxu0 0
    %6471 = vmatpush1.bf16.msra.mxu0 0
    %6472 = vmatprep.subr.bf16.mxu0 0
    %6473 = vmatpush1.bf16.msra.mxu0 %v6409
    %6474 = vmatprep.subr.bf16.mxu0 0
    %6475 = vmatpush2.bf16.msra.mxu0 0
    %6476 = vmatprep.subr.bf16.mxu0 0
    %6477 = vmatpush2.bf16.msra.mxu0 0
    %6478 = vmatprep.subr.bf16.mxu0 0
    %6479 = vmatpush2.bf16.msra.mxu0 0
    %6480 = vmatprep.subr.bf16.mxu0 0
    %6481 = vmatpush2.bf16.msra.mxu0 0
    %6482 = vmatprep.subr.bf16.mxu0 0
    %6483 = vmatpush2.bf16.msra.mxu0 0
    %6484 = vmatprep.subr.bf16.mxu0 0
    %6485 = vmatpush2.bf16.msra.mxu0 0
    %6486 = vmatprep.subr.bf16.mxu0 0
    %6487 = vmatpush2.bf16.msra.mxu0 0
    %6488 = vmatprep.subr.bf16.mxu0 0
    %6489 = vmatpush2.bf16.msra.mxu0 0
    %6490 = vmatprep.mubr.bf16.mxu0 0
    %6491 = vmatmul.mubr.bf16.gmra.mxu0 %v6456
    %v6492 = vpop.f32.mrf.mxu0
    %v6493 = vadd.f32 0.0, %v6492
    %v6494 = vpop.f32.mrf.mxu0
    %v6495 = vpop.f32.mrf.mxu0
    %v6496 = vpop.f32.mrf.mxu0
    %6497 = vdwg.mxu0
    %v6498 = vmax.f32 %v6449, %v6493
    %v6499 = vpack.c.bf16 %v6498, %v6498
    %v6500 = vld [vmem:[#allocation34] sm:$0xf]
    %v6502 = vsel %vm2170, %v6500, 0
    %vm6504 = vcmask 1043456
    %v6506 = vsel %vm6504, %v6499, 0
    %6508 = vmatprep.subr.bf16.mxu0 0
    %6509 = vmatpush1.bf16.msra.mxu0 0
    %6510 = vmatprep.subr.bf16.mxu0 0
    %6511 = vmatpush1.bf16.msra.mxu0 0
    %6512 = vmatprep.subr.bf16.mxu0 0
    %6513 = vmatpush1.bf16.msra.mxu0 0
    %6514 = vmatprep.subr.bf16.mxu0 0
    %6515 = vmatpush1.bf16.msra.mxu0 0
    %6516 = vmatprep.subr.bf16.mxu0 0
    %6517 = vmatpush1.bf16.msra.mxu0 0
    %6518 = vmatprep.subr.bf16.mxu0 0
    %6519 = vmatpush1.bf16.msra.mxu0 0
    %6520 = vmatprep.subr.bf16.mxu0 0
    %6521 = vmatpush1.bf16.msra.mxu0 0
    %6522 = vmatprep.subr.bf16.mxu0 0
    %6523 = vmatpush1.bf16.msra.mxu0 %v6506
    %6524 = vmatprep.subr.bf16.mxu0 0
    %6525 = vmatpush2.bf16.msra.mxu0 0
    %6526 = vmatprep.subr.bf16.mxu0 0
    %6527 = vmatpush2.bf16.msra.mxu0 0
    %6528 = vmatprep.subr.bf16.mxu0 0
    %6529 = vmatpush2.bf16.msra.mxu0 0
    %6530 = vmatprep.subr.bf16.mxu0 0
    %6531 = vmatpush2.bf16.msra.mxu0 0
    %6532 = vmatprep.subr.bf16.mxu0 0
    %6533 = vmatpush2.bf16.msra.mxu0 0
    %6534 = vmatprep.subr.bf16.mxu0 0
    %6535 = vmatpush2.bf16.msra.mxu0 0
    %6536 = vmatprep.subr.bf16.mxu0 0
    %6537 = vmatpush2.bf16.msra.mxu0 0
    %6538 = vmatprep.subr.bf16.mxu0 0
    %6539 = vmatpush2.bf16.msra.mxu0 0
    %6540 = vmatprep.mubr.bf16.mxu0 0
    %6541 = vmatmul.mubr.bf16.gmra.mxu0 %v6502
    %v6542 = vpop.f32.mrf.mxu0
    %v6543 = vadd.f32 0.0, %v6542
    %v6544 = vpop.f32.mrf.mxu0
    %v6545 = vpop.f32.mrf.mxu0
    %v6546 = vpop.f32.mrf.mxu0
    %6547 = vdwg.mxu0
    %v6548 = vpack.c.bf16 %v6543, %v6543
    %v6549 = vld [vmem:[%s65] sm:$0xf]
    %v6550 = vld [vmem:[%s65 + $0x4] sm:$0xf]
    %v6551 = vld [vmem:[%s65 + $0x8] sm:$0xf]
    %v6552 = vld [vmem:[%s65 + $0xc] sm:$0xf]
    %v6553 = vld [vmem:[%s65 + $0x10] sm:$0xf]
    %v6554 = vld [vmem:[%s65 + $0x14] sm:$0xf]
    %v6555 = vld [vmem:[%s65 + $0x18] sm:$0xf]
    %v6556 = vld [vmem:[%s65 + $0x1c] sm:$0xf]
    %s6557 = scalar_lea.vmem [#allocation34], 4
    %v6558 = vld [vmem:[%s6557] sm:$0xf]
    %v6560 = vsel %vm2170, %v6558, 0
    %6562 = vmatprep.subr.bf16.mxu0 0
    %6563 = vmatpush1.bf16.msra.mxu0 0
    %6564 = vmatprep.subr.bf16.mxu0 0
    %6565 = vmatpush1.bf16.msra.mxu0 0
    %6566 = vmatprep.subr.bf16.mxu0 0
    %6567 = vmatpush1.bf16.msra.mxu0 0
    %6568 = vmatprep.subr.bf16.mxu0 0
    %6569 = vmatpush1.bf16.msra.mxu0 0
    %6570 = vmatprep.subr.bf16.mxu0 0
    %6571 = vmatpush1.bf16.msra.mxu0 0
    %6572 = vmatprep.subr.bf16.mxu0 0
    %6573 = vmatpush1.bf16.msra.mxu0 0
    %6574 = vmatprep.subr.bf16.mxu0 0
    %6575 = vmatpush1.bf16.msra.mxu0 0
    %6576 = vmatprep.subr.bf16.mxu0 0
    %6577 = vmatpush1.bf16.msra.mxu0 %v6506
    %6578 = vmatprep.subr.bf16.mxu0 0
    %6579 = vmatpush2.bf16.msra.mxu0 0
    %6580 = vmatprep.subr.bf16.mxu0 0
    %6581 = vmatpush2.bf16.msra.mxu0 0
    %6582 = vmatprep.subr.bf16.mxu0 0
    %6583 = vmatpush2.bf16.msra.mxu0 0
    %6584 = vmatprep.subr.bf16.mxu0 0
    %6585 = vmatpush2.bf16.msra.mxu0 0
    %6586 = vmatprep.subr.bf16.mxu0 0
    %6587 = vmatpush2.bf16.msra.mxu0 0
    %6588 = vmatprep.subr.bf16.mxu0 0
    %6589 = vmatpush2.bf16.msra.mxu0 0
    %6590 = vmatprep.subr.bf16.mxu0 0
    %6591 = vmatpush2.bf16.msra.mxu0 0
    %6592 = vmatprep.subr.bf16.mxu0 0
    %6593 = vmatpush2.bf16.msra.mxu0 0
    %6594 = vmatprep.mubr.bf16.mxu0 0
    %6595 = vmatmul.mubr.bf16.gmra.mxu0 %v6560
    %v6596 = vpop.f32.mrf.mxu0
    %v6597 = vadd.f32 0.0, %v6596
    %v6598 = vpop.f32.mrf.mxu0
    %v6599 = vpop.f32.mrf.mxu0
    %v6600 = vpop.f32.mrf.mxu0
    %6601 = vdwg.mxu0
    %v6602 = vpack.c.bf16 %v6597, %v6597
    %s6603 = scalar_lea.vmem %s65, 32
    %v6604 = vld [vmem:[%s6603] sm:$0xf]
    %v6605 = vld [vmem:[%s6603 + $0x4] sm:$0xf]
    %v6606 = vld [vmem:[%s6603 + $0x8] sm:$0xf]
    %v6607 = vld [vmem:[%s6603 + $0xc] sm:$0xf]
    %v6608 = vld [vmem:[%s6603 + $0x10] sm:$0xf]
    %v6609 = vld [vmem:[%s6603 + $0x14] sm:$0xf]
    %v6610 = vld [vmem:[%s6603 + $0x18] sm:$0xf]
    %v6611 = vld [vmem:[%s6603 + $0x1c] sm:$0xf]
    %v6620 = vunpack.c.l.b16 %v6604
    %v6621 = vunpack.c.l.b16 %v6605
    %v6622 = vunpack.c.l.b16 %v6606
    %v6623 = vunpack.c.l.b16 %v6607
    %v6624 = vunpack.c.l.b16 %v6608
    %v6625 = vunpack.c.l.b16 %v6609
    %v6626 = vunpack.c.l.b16 %v6610
    %v6627 = vunpack.c.l.b16 %v6611
    %v6628 = vpack.c.b16 %v6621, %v6620
    %v6629 = vpack.c.b16 %v6623, %v6622
    %v6630 = vpack.c.b16 %v6625, %v6624
    %v6631 = vpack.c.b16 %v6627, %v6626
    %v6637 = vsel %vm561, %v6602, 0
    %6639 = vmatprep.subr.bf16.mxu0 0
    %6640 = vmatpush1.bf16.msra.mxu0 0
    %6641 = vmatprep.subr.bf16.mxu0 0
    %6642 = vmatpush1.bf16.msra.mxu0 0
    %6643 = vmatprep.subr.bf16.mxu0 0
    %6644 = vmatpush1.bf16.msra.mxu0 0
    %6645 = vmatprep.subr.bf16.mxu0 0
    %6646 = vmatpush1.bf16.msra.mxu0 0
    %6647 = vmatprep.subr.bf16.mxu0 0
    %6648 = vmatpush1.bf16.msra.mxu0 %v6631
    %6649 = vmatprep.subr.bf16.mxu0 0
    %6650 = vmatpush1.bf16.msra.mxu0 %v6630
    %6651 = vmatprep.subr.bf16.mxu0 0
    %6652 = vmatpush1.bf16.msra.mxu0 %v6629
    %6653 = vmatprep.subr.bf16.mxu0 0
    %6654 = vmatpush1.bf16.msra.mxu0 %v6628
    %6655 = vmatprep.subr.bf16.mxu0 0
    %6656 = vmatpush2.bf16.msra.mxu0 0
    %6657 = vmatprep.subr.bf16.mxu0 0
    %6658 = vmatpush2.bf16.msra.mxu0 0
    %6659 = vmatprep.subr.bf16.mxu0 0
    %6660 = vmatpush2.bf16.msra.mxu0 0
    %6661 = vmatprep.subr.bf16.mxu0 0
    %6662 = vmatpush2.bf16.msra.mxu0 0
    %6663 = vmatprep.subr.bf16.mxu0 0
    %6664 = vmatpush2.bf16.msra.mxu0 0
    %6665 = vmatprep.subr.bf16.mxu0 0
    %6666 = vmatpush2.bf16.msra.mxu0 0
    %6667 = vmatprep.subr.bf16.mxu0 0
    %6668 = vmatpush2.bf16.msra.mxu0 0
    %6669 = vmatprep.subr.bf16.mxu0 0
    %6670 = vmatpush2.bf16.msra.mxu0 0
    %6671 = vmatprep.mubr.bf16.mxu0 0
    %6672 = vmatmul.mubr.bf16.gmra.mxu0 %v6637
    %v6673 = vpop.f32.mrf.mxu0
    %v6674 = vadd.f32 0.0, %v6673
    %v6675 = vpop.f32.mrf.mxu0
    %v6676 = vpop.f32.mrf.mxu0
    %v6677 = vpop.f32.mrf.mxu0
    %6678 = vdwg.mxu0
    %v6687 = vunpack.c.l.b16 %v6549
    %v6688 = vunpack.c.l.b16 %v6550
    %v6689 = vunpack.c.l.b16 %v6551
    %v6690 = vunpack.c.l.b16 %v6552
    %v6691 = vunpack.c.l.b16 %v6553
    %v6692 = vunpack.c.l.b16 %v6554
    %v6693 = vunpack.c.l.b16 %v6555
    %v6694 = vunpack.c.l.b16 %v6556
    %v6695 = vpack.c.b16 %v6688, %v6687
    %v6696 = vpack.c.b16 %v6690, %v6689
    %v6697 = vpack.c.b16 %v6692, %v6691
    %v6698 = vpack.c.b16 %v6694, %v6693
    %v6704 = vsel %vm561, %v6548, 0
    %6706 = vmatprep.subr.bf16.mxu0 0
    %6707 = vmatpush1.bf16.msra.mxu0 0
    %6708 = vmatprep.subr.bf16.mxu0 0
    %6709 = vmatpush1.bf16.msra.mxu0 0
    %6710 = vmatprep.subr.bf16.mxu0 0
    %6711 = vmatpush1.bf16.msra.mxu0 0
    %6712 = vmatprep.subr.bf16.mxu0 0
    %6713 = vmatpush1.bf16.msra.mxu0 0
    %6714 = vmatprep.subr.bf16.mxu0 0
    %6715 = vmatpush1.bf16.msra.mxu0 %v6698
    %6716 = vmatprep.subr.bf16.mxu0 0
    %6717 = vmatpush1.bf16.msra.mxu0 %v6697
    %6718 = vmatprep.subr.bf16.mxu0 0
    %6719 = vmatpush1.bf16.msra.mxu0 %v6696
    %6720 = vmatprep.subr.bf16.mxu0 0
    %6721 = vmatpush1.bf16.msra.mxu0 %v6695
    %6722 = vmatprep.subr.bf16.mxu0 0
    %6723 = vmatpush2.bf16.msra.mxu0 0
    %6724 = vmatprep.subr.bf16.mxu0 0
    %6725 = vmatpush2.bf16.msra.mxu0 0
    %6726 = vmatprep.subr.bf16.mxu0 0
    %6727 = vmatpush2.bf16.msra.mxu0 0
    %6728 = vmatprep.subr.bf16.mxu0 0
    %6729 = vmatpush2.bf16.msra.mxu0 0
    %6730 = vmatprep.subr.bf16.mxu0 0
    %6731 = vmatpush2.bf16.msra.mxu0 0
    %6732 = vmatprep.subr.bf16.mxu0 0
    %6733 = vmatpush2.bf16.msra.mxu0 0
    %6734 = vmatprep.subr.bf16.mxu0 0
    %6735 = vmatpush2.bf16.msra.mxu0 0
    %6736 = vmatprep.subr.bf16.mxu0 0
    %6737 = vmatpush2.bf16.msra.mxu0 0
    %6738 = vmatprep.mubr.bf16.mxu0 0
    %6739 = vmatmul.mubr.bf16.gmra.mxu0 %v6704
    %v6740 = vpop.f32.mrf.mxu0
    %v6741 = vadd.f32 %v6674, %v6740
    %v6742 = vpop.f32.mrf.mxu0
    %v6743 = vpop.f32.mrf.mxu0
    %v6744 = vpop.f32.mrf.mxu0
    %6745 = vdwg.mxu0
    %s6746 = scalar_lea.vmem [#allocation34], 8
    %v6747 = vld [vmem:[%s6746] sm:$0xf]
    %v6749 = vsel %vm2170, %v6747, 0
    %6751 = vmatprep.subr.bf16.mxu0 0
    %6752 = vmatpush1.bf16.msra.mxu0 0
    %6753 = vmatprep.subr.bf16.mxu0 0
    %6754 = vmatpush1.bf16.msra.mxu0 0
    %6755 = vmatprep.subr.bf16.mxu0 0
    %6756 = vmatpush1.bf16.msra.mxu0 0
    %6757 = vmatprep.subr.bf16.mxu0 0
    %6758 = vmatpush1.bf16.msra.mxu0 0
    %6759 = vmatprep.subr.bf16.mxu0 0
    %6760 = vmatpush1.bf16.msra.mxu0 0
    %6761 = vmatprep.subr.bf16.mxu0 0
    %6762 = vmatpush1.bf16.msra.mxu0 0
    %6763 = vmatprep.subr.bf16.mxu0 0
    %6764 = vmatpush1.bf16.msra.mxu0 0
    %6765 = vmatprep.subr.bf16.mxu0 0
    %6766 = vmatpush1.bf16.msra.mxu0 %v6506
    %6767 = vmatprep.subr.bf16.mxu0 0
    %6768 = vmatpush2.bf16.msra.mxu0 0
    %6769 = vmatprep.subr.bf16.mxu0 0
    %6770 = vmatpush2.bf16.msra.mxu0 0
    %6771 = vmatprep.subr.bf16.mxu0 0
    %6772 = vmatpush2.bf16.msra.mxu0 0
    %6773 = vmatprep.subr.bf16.mxu0 0
    %6774 = vmatpush2.bf16.msra.mxu0 0
    %6775 = vmatprep.subr.bf16.mxu0 0
    %6776 = vmatpush2.bf16.msra.mxu0 0
    %6777 = vmatprep.subr.bf16.mxu0 0
    %6778 = vmatpush2.bf16.msra.mxu0 0
    %6779 = vmatprep.subr.bf16.mxu0 0
    %6780 = vmatpush2.bf16.msra.mxu0 0
    %6781 = vmatprep.subr.bf16.mxu0 0
    %6782 = vmatpush2.bf16.msra.mxu0 0
    %6783 = vmatprep.mubr.bf16.mxu0 0
    %6784 = vmatmul.mubr.bf16.gmra.mxu0 %v6749
    %v6785 = vpop.f32.mrf.mxu0
    %v6786 = vadd.f32 0.0, %v6785
    %v6787 = vpop.f32.mrf.mxu0
    %v6788 = vpop.f32.mrf.mxu0
    %v6789 = vpop.f32.mrf.mxu0
    %6790 = vdwg.mxu0
    %v6791 = vpack.c.bf16 %v6786, %v6786
    %s6792 = scalar_lea.vmem %s65, 64
    %v6793 = vld [vmem:[%s6792] sm:$0xf]
    %v6794 = vld [vmem:[%s6792 + $0x4] sm:$0xf]
    %v6795 = vld [vmem:[%s6792 + $0x8] sm:$0xf]
    %v6796 = vld [vmem:[%s6792 + $0xc] sm:$0xf]
    %v6797 = vld [vmem:[%s6792 + $0x10] sm:$0xf]
    %v6798 = vld [vmem:[%s6792 + $0x14] sm:$0xf]
    %v6799 = vld [vmem:[%s6792 + $0x18] sm:$0xf]
    %v6800 = vld [vmem:[%s6792 + $0x1c] sm:$0xf]
    %v6809 = vunpack.c.l.b16 %v6793
    %v6810 = vunpack.c.l.b16 %v6794
    %v6811 = vunpack.c.l.b16 %v6795
    %v6812 = vunpack.c.l.b16 %v6796
    %v6813 = vunpack.c.l.b16 %v6797
    %v6814 = vunpack.c.l.b16 %v6798
    %v6815 = vunpack.c.l.b16 %v6799
    %v6816 = vunpack.c.l.b16 %v6800
    %v6817 = vpack.c.b16 %v6810, %v6809
    %v6818 = vpack.c.b16 %v6812, %v6811
    %v6819 = vpack.c.b16 %v6814, %v6813
    %v6820 = vpack.c.b16 %v6816, %v6815
    %v6826 = vsel %vm561, %v6791, 0
    %6828 = vmatprep.subr.bf16.mxu0 0
    %6829 = vmatpush1.bf16.msra.mxu0 0
    %6830 = vmatprep.subr.bf16.mxu0 0
    %6831 = vmatpush1.bf16.msra.mxu0 0
    %6832 = vmatprep.subr.bf16.mxu0 0
    %6833 = vmatpush1.bf16.msra.mxu0 0
    %6834 = vmatprep.subr.bf16.mxu0 0
    %6835 = vmatpush1.bf16.msra.mxu0 0
    %6836 = vmatprep.subr.bf16.mxu0 0
    %6837 = vmatpush1.bf16.msra.mxu0 %v6820
    %6838 = vmatprep.subr.bf16.mxu0 0
    %6839 = vmatpush1.bf16.msra.mxu0 %v6819
    %6840 = vmatprep.subr.bf16.mxu0 0
    %6841 = vmatpush1.bf16.msra.mxu0 %v6818
    %6842 = vmatprep.subr.bf16.mxu0 0
    %6843 = vmatpush1.bf16.msra.mxu0 %v6817
    %6844 = vmatprep.subr.bf16.mxu0 0
    %6845 = vmatpush2.bf16.msra.mxu0 0
    %6846 = vmatprep.subr.bf16.mxu0 0
    %6847 = vmatpush2.bf16.msra.mxu0 0
    %6848 = vmatprep.subr.bf16.mxu0 0
    %6849 = vmatpush2.bf16.msra.mxu0 0
    %6850 = vmatprep.subr.bf16.mxu0 0
    %6851 = vmatpush2.bf16.msra.mxu0 0
    %6852 = vmatprep.subr.bf16.mxu0 0
    %6853 = vmatpush2.bf16.msra.mxu0 0
    %6854 = vmatprep.subr.bf16.mxu0 0
    %6855 = vmatpush2.bf16.msra.mxu0 0
    %6856 = vmatprep.subr.bf16.mxu0 0
    %6857 = vmatpush2.bf16.msra.mxu0 0
    %6858 = vmatprep.subr.bf16.mxu0 0
    %6859 = vmatpush2.bf16.msra.mxu0 0
    %6860 = vmatprep.mubr.bf16.mxu0 0
    %6861 = vmatmul.mubr.bf16.gmra.mxu0 %v6826
    %v6862 = vpop.f32.mrf.mxu0
    %v6863 = vadd.f32 0.0, %v6862
    %v6864 = vpop.f32.mrf.mxu0
    %v6865 = vpop.f32.mrf.mxu0
    %v6866 = vpop.f32.mrf.mxu0
    %6867 = vdwg.mxu0
    %v6868 = vadd.f32 %v6741, %v6863
    %s6869 = scalar_lea.vmem [#allocation34], 12
    %v6870 = vld [vmem:[%s6869] sm:$0xf]
    %v6872 = vsel %vm2170, %v6870, 0
    %6874 = vmatprep.subr.bf16.mxu0 0
    %6875 = vmatpush1.bf16.msra.mxu0 0
    %6876 = vmatprep.subr.bf16.mxu0 0
    %6877 = vmatpush1.bf16.msra.mxu0 0
    %6878 = vmatprep.subr.bf16.mxu0 0
    %6879 = vmatpush1.bf16.msra.mxu0 0
    %6880 = vmatprep.subr.bf16.mxu0 0
    %6881 = vmatpush1.bf16.msra.mxu0 0
    %6882 = vmatprep.subr.bf16.mxu0 0
    %6883 = vmatpush1.bf16.msra.mxu0 0
    %6884 = vmatprep.subr.bf16.mxu0 0
    %6885 = vmatpush1.bf16.msra.mxu0 0
    %6886 = vmatprep.subr.bf16.mxu0 0
    %6887 = vmatpush1.bf16.msra.mxu0 0
    %6888 = vmatprep.subr.bf16.mxu0 0
    %6889 = vmatpush1.bf16.msra.mxu0 %v6506
    %6890 = vmatprep.subr.bf16.mxu0 0
    %6891 = vmatpush2.bf16.msra.mxu0 0
    %6892 = vmatprep.subr.bf16.mxu0 0
    %6893 = vmatpush2.bf16.msra.mxu0 0
    %6894 = vmatprep.subr.bf16.mxu0 0
    %6895 = vmatpush2.bf16.msra.mxu0 0
    %6896 = vmatprep.subr.bf16.mxu0 0
    %6897 = vmatpush2.bf16.msra.mxu0 0
    %6898 = vmatprep.subr.bf16.mxu0 0
    %6899 = vmatpush2.bf16.msra.mxu0 0
    %6900 = vmatprep.subr.bf16.mxu0 0
    %6901 = vmatpush2.bf16.msra.mxu0 0
    %6902 = vmatprep.subr.bf16.mxu0 0
    %6903 = vmatpush2.bf16.msra.mxu0 0
    %6904 = vmatprep.subr.bf16.mxu0 0
    %6905 = vmatpush2.bf16.msra.mxu0 0
    %6906 = vmatprep.mubr.bf16.mxu0 0
    %6907 = vmatmul.mubr.bf16.gmra.mxu0 %v6872
    %v6908 = vpop.f32.mrf.mxu0
    %v6909 = vadd.f32 0.0, %v6908
    %v6910 = vpop.f32.mrf.mxu0
    %v6911 = vpop.f32.mrf.mxu0
    %v6912 = vpop.f32.mrf.mxu0
    %6913 = vdwg.mxu0
    %v6914 = vpack.c.bf16 %v6909, %v6909
    %s6915 = scalar_lea.vmem %s65, 96
    %v6916 = vld [vmem:[%s6915] sm:$0xf]
    %v6917 = vld [vmem:[%s6915 + $0x4] sm:$0xf]
    %v6918 = vld [vmem:[%s6915 + $0x8] sm:$0xf]
    %v6919 = vld [vmem:[%s6915 + $0xc] sm:$0xf]
    %v6920 = vld [vmem:[%s6915 + $0x10] sm:$0xf]
    %v6921 = vld [vmem:[%s6915 + $0x14] sm:$0xf]
    %v6922 = vld [vmem:[%s6915 + $0x18] sm:$0xf]
    %v6923 = vld [vmem:[%s6915 + $0x1c] sm:$0xf]
    %v6932 = vunpack.c.l.b16 %v6916
    %v6933 = vunpack.c.l.b16 %v6917
    %v6934 = vunpack.c.l.b16 %v6918
    %v6935 = vunpack.c.l.b16 %v6919
    %v6936 = vunpack.c.l.b16 %v6920
    %v6937 = vunpack.c.l.b16 %v6921
    %v6938 = vunpack.c.l.b16 %v6922
    %v6939 = vunpack.c.l.b16 %v6923
    %v6940 = vpack.c.b16 %v6933, %v6932
    %v6941 = vpack.c.b16 %v6935, %v6934
    %v6942 = vpack.c.b16 %v6937, %v6936
    %v6943 = vpack.c.b16 %v6939, %v6938
    %v6949 = vsel %vm561, %v6914, 0
    %6951 = vmatprep.subr.bf16.mxu0 0
    %6952 = vmatpush1.bf16.msra.mxu0 0
    %6953 = vmatprep.subr.bf16.mxu0 0
    %6954 = vmatpush1.bf16.msra.mxu0 0
    %6955 = vmatprep.subr.bf16.mxu0 0
    %6956 = vmatpush1.bf16.msra.mxu0 0
    %6957 = vmatprep.subr.bf16.mxu0 0
    %6958 = vmatpush1.bf16.msra.mxu0 0
    %6959 = vmatprep.subr.bf16.mxu0 0
    %6960 = vmatpush1.bf16.msra.mxu0 %v6943
    %6961 = vmatprep.subr.bf16.mxu0 0
    %6962 = vmatpush1.bf16.msra.mxu0 %v6942
    %6963 = vmatprep.subr.bf16.mxu0 0
    %6964 = vmatpush1.bf16.msra.mxu0 %v6941
    %6965 = vmatprep.subr.bf16.mxu0 0
    %6966 = vmatpush1.bf16.msra.mxu0 %v6940
    %6967 = vmatprep.subr.bf16.mxu0 0
    %6968 = vmatpush2.bf16.msra.mxu0 0
    %6969 = vmatprep.subr.bf16.mxu0 0
    %6970 = vmatpush2.bf16.msra.mxu0 0
    %6971 = vmatprep.subr.bf16.mxu0 0
    %6972 = vmatpush2.bf16.msra.mxu0 0
    %6973 = vmatprep.subr.bf16.mxu0 0
    %6974 = vmatpush2.bf16.msra.mxu0 0
    %6975 = vmatprep.subr.bf16.mxu0 0
    %6976 = vmatpush2.bf16.msra.mxu0 0
    %6977 = vmatprep.subr.bf16.mxu0 0
    %6978 = vmatpush2.bf16.msra.mxu0 0
    %6979 = vmatprep.subr.bf16.mxu0 0
    %6980 = vmatpush2.bf16.msra.mxu0 0
    %6981 = vmatprep.subr.bf16.mxu0 0
    %6982 = vmatpush2.bf16.msra.mxu0 0
    %6983 = vmatprep.mubr.bf16.mxu0 0
    %6984 = vmatmul.mubr.bf16.gmra.mxu0 %v6949
    %v6985 = vpop.f32.mrf.mxu0
    %v6986 = vadd.f32 0.0, %v6985
    %v6987 = vpop.f32.mrf.mxu0
    %v6988 = vpop.f32.mrf.mxu0
    %v6989 = vpop.f32.mrf.mxu0
    %6990 = vdwg.mxu0
    %v6991 = vadd.f32 %v6868, %v6986
    %s6992 = scalar_lea.vmem [#allocation34], 16
    %v6993 = vld [vmem:[%s6992] sm:$0xf]
    %v6995 = vsel %vm2170, %v6993, 0
    %6997 = vmatprep.subr.bf16.mxu0 0
    %6998 = vmatpush1.bf16.msra.mxu0 0
    %6999 = vmatprep.subr.bf16.mxu0 0
    %7000 = vmatpush1.bf16.msra.mxu0 0
    %7001 = vmatprep.subr.bf16.mxu0 0
    %7002 = vmatpush1.bf16.msra.mxu0 0
    %7003 = vmatprep.subr.bf16.mxu0 0
    %7004 = vmatpush1.bf16.msra.mxu0 0
    %7005 = vmatprep.subr.bf16.mxu0 0
    %7006 = vmatpush1.bf16.msra.mxu0 0
    %7007 = vmatprep.subr.bf16.mxu0 0
    %7008 = vmatpush1.bf16.msra.mxu0 0
    %7009 = vmatprep.subr.bf16.mxu0 0
    %7010 = vmatpush1.bf16.msra.mxu0 0
    %7011 = vmatprep.subr.bf16.mxu0 0
    %7012 = vmatpush1.bf16.msra.mxu0 %v6506
    %7013 = vmatprep.subr.bf16.mxu0 0
    %7014 = vmatpush2.bf16.msra.mxu0 0
    %7015 = vmatprep.subr.bf16.mxu0 0
    %7016 = vmatpush2.bf16.msra.mxu0 0
    %7017 = vmatprep.subr.bf16.mxu0 0
    %7018 = vmatpush2.bf16.msra.mxu0 0
    %7019 = vmatprep.subr.bf16.mxu0 0
    %7020 = vmatpush2.bf16.msra.mxu0 0
    %7021 = vmatprep.subr.bf16.mxu0 0
    %7022 = vmatpush2.bf16.msra.mxu0 0
    %7023 = vmatprep.subr.bf16.mxu0 0
    %7024 = vmatpush2.bf16.msra.mxu0 0
    %7025 = vmatprep.subr.bf16.mxu0 0
    %7026 = vmatpush2.bf16.msra.mxu0 0
    %7027 = vmatprep.subr.bf16.mxu0 0
    %7028 = vmatpush2.bf16.msra.mxu0 0
    %7029 = vmatprep.mubr.bf16.mxu0 0
    %7030 = vmatmul.mubr.bf16.gmra.mxu0 %v6995
    %v7031 = vpop.f32.mrf.mxu0
    %v7032 = vadd.f32 0.0, %v7031
    %v7033 = vpop.f32.mrf.mxu0
    %v7034 = vpop.f32.mrf.mxu0
    %v7035 = vpop.f32.mrf.mxu0
    %7036 = vdwg.mxu0
    %v7037 = vpack.c.bf16 %v7032, %v7032
    %s7038 = scalar_lea.vmem %s65, 128
    %v7039 = vld [vmem:[%s7038] sm:$0xf]
    %v7040 = vld [vmem:[%s7038 + $0x4] sm:$0xf]
    %v7041 = vld [vmem:[%s7038 + $0x8] sm:$0xf]
    %v7042 = vld [vmem:[%s7038 + $0xc] sm:$0xf]
    %v7043 = vld [vmem:[%s7038 + $0x10] sm:$0xf]
    %v7044 = vld [vmem:[%s7038 + $0x14] sm:$0xf]
    %v7045 = vld [vmem:[%s7038 + $0x18] sm:$0xf]
    %v7046 = vld [vmem:[%s7038 + $0x1c] sm:$0xf]
    %v7055 = vunpack.c.l.b16 %v7039
    %v7056 = vunpack.c.l.b16 %v7040
    %v7057 = vunpack.c.l.b16 %v7041
    %v7058 = vunpack.c.l.b16 %v7042
    %v7059 = vunpack.c.l.b16 %v7043
    %v7060 = vunpack.c.l.b16 %v7044
    %v7061 = vunpack.c.l.b16 %v7045
    %v7062 = vunpack.c.l.b16 %v7046
    %v7063 = vpack.c.b16 %v7056, %v7055
    %v7064 = vpack.c.b16 %v7058, %v7057
    %v7065 = vpack.c.b16 %v7060, %v7059
    %v7066 = vpack.c.b16 %v7062, %v7061
    %v7072 = vsel %vm561, %v7037, 0
    %7074 = vmatprep.subr.bf16.mxu0 0
    %7075 = vmatpush1.bf16.msra.mxu0 0
    %7076 = vmatprep.subr.bf16.mxu0 0
    %7077 = vmatpush1.bf16.msra.mxu0 0
    %7078 = vmatprep.subr.bf16.mxu0 0
    %7079 = vmatpush1.bf16.msra.mxu0 0
    %7080 = vmatprep.subr.bf16.mxu0 0
    %7081 = vmatpush1.bf16.msra.mxu0 0
    %7082 = vmatprep.subr.bf16.mxu0 0
    %7083 = vmatpush1.bf16.msra.mxu0 %v7066
    %7084 = vmatprep.subr.bf16.mxu0 0
    %7085 = vmatpush1.bf16.msra.mxu0 %v7065
    %7086 = vmatprep.subr.bf16.mxu0 0
    %7087 = vmatpush1.bf16.msra.mxu0 %v7064
    %7088 = vmatprep.subr.bf16.mxu0 0
    %7089 = vmatpush1.bf16.msra.mxu0 %v7063
    %7090 = vmatprep.subr.bf16.mxu0 0
    %7091 = vmatpush2.bf16.msra.mxu0 0
    %7092 = vmatprep.subr.bf16.mxu0 0
    %7093 = vmatpush2.bf16.msra.mxu0 0
    %7094 = vmatprep.subr.bf16.mxu0 0
    %7095 = vmatpush2.bf16.msra.mxu0 0
    %7096 = vmatprep.subr.bf16.mxu0 0
    %7097 = vmatpush2.bf16.msra.mxu0 0
    %7098 = vmatprep.subr.bf16.mxu0 0
    %7099 = vmatpush2.bf16.msra.mxu0 0
    %7100 = vmatprep.subr.bf16.mxu0 0
    %7101 = vmatpush2.bf16.msra.mxu0 0
    %7102 = vmatprep.subr.bf16.mxu0 0
    %7103 = vmatpush2.bf16.msra.mxu0 0
    %7104 = vmatprep.subr.bf16.mxu0 0
    %7105 = vmatpush2.bf16.msra.mxu0 0
    %7106 = vmatprep.mubr.bf16.mxu0 0
    %7107 = vmatmul.mubr.bf16.gmra.mxu0 %v7072
    %v7108 = vpop.f32.mrf.mxu0
    %v7109 = vadd.f32 0.0, %v7108
    %v7110 = vpop.f32.mrf.mxu0
    %v7111 = vpop.f32.mrf.mxu0
    %v7112 = vpop.f32.mrf.mxu0
    %7113 = vdwg.mxu0
    %v7114 = vadd.f32 %v6991, %v7109
    %v7115 = vsel %vm2995, %v7114, 0.0
    %v7116 = vrot.slane %v7115, 4
    %v7117 = vadd.f32 %v7115, %v7116
    %v7118 = vrot.slane %v7117, 2
    %v7119 = vadd.f32 %v7117, %v7118
    %v7120 = vrot.slane %v7119, 1
    %v7121 = vadd.f32 %v7119, %v7120
    %v7122 = vmul.f32 %v7114, %v7114
    %v7123 = vsel %vm2995, %v7122, 0.0
    %v7124 = vrot.slane %v7123, 4
    %v7125 = vadd.f32 %v7123, %v7124
    %v7126 = vrot.slane %v7125, 2
    %v7127 = vadd.f32 %v7125, %v7126
    %v7128 = vrot.slane %v7127, 1
    %v7129 = vadd.f32 %v7127, %v7128
    %v7130 = vld [vmem:[%s67] sm:$0xff]
    %v7131 = vld [vmem:[%s67 + $0x8] sm:$0xff]
    %v7132 = vld [vmem:[%s67 + $0x10] sm:$0xff]
    %v7133 = vld [vmem:[%s67 + $0x18] sm:$0xff]
    %v7135 = vsel %vm2995, %v7121, 0
    %7137 = vmatprep.subr.mxu0 0.0
    %7138 = vmatpush1.msra.mxu0 0.0
    %7139 = vmatprep.subr.mxu0 0.0
    %7140 = vmatpush1.msra.mxu0 0.0
    %7141 = vmatprep.subr.mxu0 0.0
    %7142 = vmatpush1.msra.mxu0 0.0
    %7143 = vmatprep.subr.mxu0 0.0
    %7144 = vmatpush1.msra.mxu0 0.0
    %7145 = vmatprep.subr.mxu0 0.0
    %7146 = vmatpush1.msra.mxu0 0.0
    %7147 = vmatprep.subr.mxu0 0.0
    %7148 = vmatpush1.msra.mxu0 0.0
    %7149 = vmatprep.subr.mxu0 0.0
    %7150 = vmatpush1.msra.mxu0 0.0
    %7151 = vmatprep.subr.mxu0 0.0
    %7152 = vmatpush1.msra.mxu0 0.0
    %7153 = vmatprep.subr.mxu0 0.0
    %7154 = vmatpush1.msra.mxu0 0.0
    %7155 = vmatprep.subr.mxu0 0.0
    %7156 = vmatpush1.msra.mxu0 0.0
    %7157 = vmatprep.subr.mxu0 0.0
    %7158 = vmatpush1.msra.mxu0 0.0
    %7159 = vmatprep.subr.mxu0 0.0
    %7160 = vmatpush1.msra.mxu0 0.0
    %7161 = vmatprep.subr.mxu0 0.0
    %7162 = vmatpush1.msra.mxu0 %v7133
    %7163 = vmatprep.subr.mxu0 0.0
    %7164 = vmatpush1.msra.mxu0 %v7132
    %7165 = vmatprep.subr.mxu0 0.0
    %7166 = vmatpush1.msra.mxu0 %v7131
    %7167 = vmatprep.subr.mxu0 0.0
    %7168 = vmatpush1.msra.mxu0 %v7130
    %7169 = vmatprep.subr.mxu0 0.0
    %7170 = vmatpush2.msra.mxu0 0.0
    %7171 = vmatprep.subr.mxu0 0.0
    %7172 = vmatpush2.msra.mxu0 0.0
    %7173 = vmatprep.subr.mxu0 0.0
    %7174 = vmatpush2.msra.mxu0 0.0
    %7175 = vmatprep.subr.mxu0 0.0
    %7176 = vmatpush2.msra.mxu0 0.0
    %7177 = vmatprep.subr.mxu0 0.0
    %7178 = vmatpush2.msra.mxu0 0.0
    %7179 = vmatprep.subr.mxu0 0.0
    %7180 = vmatpush2.msra.mxu0 0.0
    %7181 = vmatprep.subr.mxu0 0.0
    %7182 = vmatpush2.msra.mxu0 0.0
    %7183 = vmatprep.subr.mxu0 0.0
    %7184 = vmatpush2.msra.mxu0 0.0
    %7185 = vmatprep.subr.mxu0 0.0
    %7186 = vmatpush2.msra.mxu0 0.0
    %7187 = vmatprep.subr.mxu0 0.0
    %7188 = vmatpush2.msra.mxu0 0.0
    %7189 = vmatprep.subr.mxu0 0.0
    %7190 = vmatpush2.msra.mxu0 0.0
    %7191 = vmatprep.subr.mxu0 0.0
    %7192 = vmatpush2.msra.mxu0 0.0
    %7193 = vmatprep.subr.mxu0 0.0
    %7194 = vmatpush2.msra.mxu0 0.0
    %7195 = vmatprep.subr.mxu0 0.0
    %7196 = vmatpush2.msra.mxu0 0.0
    %7197 = vmatprep.subr.mxu0 0.0
    %7198 = vmatpush2.msra.mxu0 0.0
    %7199 = vmatprep.subr.mxu0 0.0
    %7200 = vmatpush2.msra.mxu0 0.0
    %7201 = vmatprep.mubr.f32.mxu0 0.0
    %7202 = vmatmul.mubr.f32.gmra.mxu0 %v7135
    %v7203 = vpop.f32.mrf.mxu0
    %v7204 = vadd.f32 0.0, %v7203
    %v7205 = vpop.f32.mrf.mxu0
    %7206 = vdwg.mxu0
    %v7208 = vsel %vm2995, %v7129, 0
    %7210 = vmatprep.subr.mxu0 0.0
    %7211 = vmatpush1.msra.mxu0 0.0
    %7212 = vmatprep.subr.mxu0 0.0
    %7213 = vmatpush1.msra.mxu0 0.0
    %7214 = vmatprep.subr.mxu0 0.0
    %7215 = vmatpush1.msra.mxu0 0.0
    %7216 = vmatprep.subr.mxu0 0.0
    %7217 = vmatpush1.msra.mxu0 0.0
    %7218 = vmatprep.subr.mxu0 0.0
    %7219 = vmatpush1.msra.mxu0 0.0
    %7220 = vmatprep.subr.mxu0 0.0
    %7221 = vmatpush1.msra.mxu0 0.0
    %7222 = vmatprep.subr.mxu0 0.0
    %7223 = vmatpush1.msra.mxu0 0.0
    %7224 = vmatprep.subr.mxu0 0.0
    %7225 = vmatpush1.msra.mxu0 0.0
    %7226 = vmatprep.subr.mxu0 0.0
    %7227 = vmatpush1.msra.mxu0 0.0
    %7228 = vmatprep.subr.mxu0 0.0
    %7229 = vmatpush1.msra.mxu0 0.0
    %7230 = vmatprep.subr.mxu0 0.0
    %7231 = vmatpush1.msra.mxu0 0.0
    %7232 = vmatprep.subr.mxu0 0.0
    %7233 = vmatpush1.msra.mxu0 0.0
    %7234 = vmatprep.subr.mxu0 0.0
    %7235 = vmatpush1.msra.mxu0 %v7133
    %7236 = vmatprep.subr.mxu0 0.0
    %7237 = vmatpush1.msra.mxu0 %v7132
    %7238 = vmatprep.subr.mxu0 0.0
    %7239 = vmatpush1.msra.mxu0 %v7131
    %7240 = vmatprep.subr.mxu0 0.0
    %7241 = vmatpush1.msra.mxu0 %v7130
    %7242 = vmatprep.subr.mxu0 0.0
    %7243 = vmatpush2.msra.mxu0 0.0
    %7244 = vmatprep.subr.mxu0 0.0
    %7245 = vmatpush2.msra.mxu0 0.0
    %7246 = vmatprep.subr.mxu0 0.0
    %7247 = vmatpush2.msra.mxu0 0.0
    %7248 = vmatprep.subr.mxu0 0.0
    %7249 = vmatpush2.msra.mxu0 0.0
    %7250 = vmatprep.subr.mxu0 0.0
    %7251 = vmatpush2.msra.mxu0 0.0
    %7252 = vmatprep.subr.mxu0 0.0
    %7253 = vmatpush2.msra.mxu0 0.0
    %7254 = vmatprep.subr.mxu0 0.0
    %7255 = vmatpush2.msra.mxu0 0.0
    %7256 = vmatprep.subr.mxu0 0.0
    %7257 = vmatpush2.msra.mxu0 0.0
    %7258 = vmatprep.subr.mxu0 0.0
    %7259 = vmatpush2.msra.mxu0 0.0
    %7260 = vmatprep.subr.mxu0 0.0
    %7261 = vmatpush2.msra.mxu0 0.0
    %7262 = vmatprep.subr.mxu0 0.0
    %7263 = vmatpush2.msra.mxu0 0.0
    %7264 = vmatprep.subr.mxu0 0.0
    %7265 = vmatpush2.msra.mxu0 0.0
    %7266 = vmatprep.subr.mxu0 0.0
    %7267 = vmatpush2.msra.mxu0 0.0
    %7268 = vmatprep.subr.mxu0 0.0
    %7269 = vmatpush2.msra.mxu0 0.0
    %7270 = vmatprep.subr.mxu0 0.0
    %7271 = vmatpush2.msra.mxu0 0.0
    %7272 = vmatprep.subr.mxu0 0.0
    %7273 = vmatpush2.msra.mxu0 0.0
    %7274 = vmatprep.mubr.f32.mxu0 0.0
    %7275 = vmatmul.mubr.f32.gmra.mxu0 %v7208
    %v7276 = vpop.f32.mrf.mxu0
    %v7277 = vadd.f32 0.0, %v7276
    %v7278 = vpop.f32.mrf.mxu0
    %7279 = vdwg.mxu0
    %v7280 = vmul.f32 %v7204, 0.03125
    %v7281 = vmul.f32 %v7277, 0.03125
    %v7282 = vmul.f32 %v7280, %v7280
    %v7283 = vsub.f32 %v7281, %v7282
    %v7284 = vmax.f32 %v7283, 0.0
    %v7285 = vadd.f32 %v7284, 1e-05
    %v7286 = vrsqrt.pop %v7285
    %v7287 = vld [vmem:[#allocation35] sm:$0xff]
    %v7289 = vsel %vm2170, %v7280, 0
    %7291 = vmatprep.subr.mxu0 0.0
    %7292 = vmatpush1.msra.mxu0 0.0
    %7293 = vmatprep.subr.mxu0 0.0
    %7294 = vmatpush1.msra.mxu0 0.0
    %7295 = vmatprep.subr.mxu0 0.0
    %7296 = vmatpush1.msra.mxu0 0.0
    %7297 = vmatprep.subr.mxu0 0.0
    %7298 = vmatpush1.msra.mxu0 0.0
    %7299 = vmatprep.subr.mxu0 0.0
    %7300 = vmatpush1.msra.mxu0 0.0
    %7301 = vmatprep.subr.mxu0 0.0
    %7302 = vmatpush1.msra.mxu0 0.0
    %7303 = vmatprep.subr.mxu0 0.0
    %7304 = vmatpush1.msra.mxu0 0.0
    %7305 = vmatprep.subr.mxu0 0.0
    %7306 = vmatpush1.msra.mxu0 0.0
    %7307 = vmatprep.subr.mxu0 0.0
    %7308 = vmatpush1.msra.mxu0 0.0
    %7309 = vmatprep.subr.mxu0 0.0
    %7310 = vmatpush1.msra.mxu0 0.0
    %7311 = vmatprep.subr.mxu0 0.0
    %7312 = vmatpush1.msra.mxu0 0.0
    %7313 = vmatprep.subr.mxu0 0.0
    %7314 = vmatpush1.msra.mxu0 0.0
    %7315 = vmatprep.subr.mxu0 0.0
    %7316 = vmatpush1.msra.mxu0 0.0
    %7317 = vmatprep.subr.mxu0 0.0
    %7318 = vmatpush1.msra.mxu0 0.0
    %7319 = vmatprep.subr.mxu0 0.0
    %7320 = vmatpush1.msra.mxu0 0.0
    %7321 = vmatprep.subr.mxu0 0.0
    %7322 = vmatpush1.msra.mxu0 %v7287
    %7323 = vmatprep.subr.mxu0 0.0
    %7324 = vmatpush2.msra.mxu0 0.0
    %7325 = vmatprep.subr.mxu0 0.0
    %7326 = vmatpush2.msra.mxu0 0.0
    %7327 = vmatprep.subr.mxu0 0.0
    %7328 = vmatpush2.msra.mxu0 0.0
    %7329 = vmatprep.subr.mxu0 0.0
    %7330 = vmatpush2.msra.mxu0 0.0
    %7331 = vmatprep.subr.mxu0 0.0
    %7332 = vmatpush2.msra.mxu0 0.0
    %7333 = vmatprep.subr.mxu0 0.0
    %7334 = vmatpush2.msra.mxu0 0.0
    %7335 = vmatprep.subr.mxu0 0.0
    %7336 = vmatpush2.msra.mxu0 0.0
    %7337 = vmatprep.subr.mxu0 0.0
    %7338 = vmatpush2.msra.mxu0 0.0
    %7339 = vmatprep.subr.mxu0 0.0
    %7340 = vmatpush2.msra.mxu0 0.0
    %7341 = vmatprep.subr.mxu0 0.0
    %7342 = vmatpush2.msra.mxu0 0.0
    %7343 = vmatprep.subr.mxu0 0.0
    %7344 = vmatpush2.msra.mxu0 0.0
    %7345 = vmatprep.subr.mxu0 0.0
    %7346 = vmatpush2.msra.mxu0 0.0
    %7347 = vmatprep.subr.mxu0 0.0
    %7348 = vmatpush2.msra.mxu0 0.0
    %7349 = vmatprep.subr.mxu0 0.0
    %7350 = vmatpush2.msra.mxu0 0.0
    %7351 = vmatprep.subr.mxu0 0.0
    %7352 = vmatpush2.msra.mxu0 0.0
    %7353 = vmatprep.subr.mxu0 0.0
    %7354 = vmatpush2.msra.mxu0 0.0
    %7355 = vmatprep.mubr.f32.mxu0 0.0
    %7356 = vmatmul.mubr.f32.gmra.mxu0 %v7289
    %v7357 = vpop.f32.mrf.mxu0
    %v7358 = vadd.f32 0.0, %v7357
    %v7359 = vpop.f32.mrf.mxu0
    %7360 = vdwg.mxu0
    %v7362 = vsel %vm2170, %v7286, 0
    %7364 = vmatprep.subr.mxu0 0.0
    %7365 = vmatpush1.msra.mxu0 0.0
    %7366 = vmatprep.subr.mxu0 0.0
    %7367 = vmatpush1.msra.mxu0 0.0
    %7368 = vmatprep.subr.mxu0 0.0
    %7369 = vmatpush1.msra.mxu0 0.0
    %7370 = vmatprep.subr.mxu0 0.0
    %7371 = vmatpush1.msra.mxu0 0.0
    %7372 = vmatprep.subr.mxu0 0.0
    %7373 = vmatpush1.msra.mxu0 0.0
    %7374 = vmatprep.subr.mxu0 0.0
    %7375 = vmatpush1.msra.mxu0 0.0
    %7376 = vmatprep.subr.mxu0 0.0
    %7377 = vmatpush1.msra.mxu0 0.0
    %7378 = vmatprep.subr.mxu0 0.0
    %7379 = vmatpush1.msra.mxu0 0.0
    %7380 = vmatprep.subr.mxu0 0.0
    %7381 = vmatpush1.msra.mxu0 0.0
    %7382 = vmatprep.subr.mxu0 0.0
    %7383 = vmatpush1.msra.mxu0 0.0
    %7384 = vmatprep.subr.mxu0 0.0
    %7385 = vmatpush1.msra.mxu0 0.0
    %7386 = vmatprep.subr.mxu0 0.0
    %7387 = vmatpush1.msra.mxu0 0.0
    %7388 = vmatprep.subr.mxu0 0.0
    %7389 = vmatpush1.msra.mxu0 0.0
    %7390 = vmatprep.subr.mxu0 0.0
    %7391 = vmatpush1.msra.mxu0 0.0
    %7392 = vmatprep.subr.mxu0 0.0
    %7393 = vmatpush1.msra.mxu0 0.0
    %7394 = vmatprep.subr.mxu0 0.0
    %7395 = vmatpush1.msra.mxu0 %v7287
    %7396 = vmatprep.subr.mxu0 0.0
    %7397 = vmatpush2.msra.mxu0 0.0
    %7398 = vmatprep.subr.mxu0 0.0
    %7399 = vmatpush2.msra.mxu0 0.0
    %7400 = vmatprep.subr.mxu0 0.0
    %7401 = vmatpush2.msra.mxu0 0.0
    %7402 = vmatprep.subr.mxu0 0.0
    %7403 = vmatpush2.msra.mxu0 0.0
    %7404 = vmatprep.subr.mxu0 0.0
    %7405 = vmatpush2.msra.mxu0 0.0
    %7406 = vmatprep.subr.mxu0 0.0
    %7407 = vmatpush2.msra.mxu0 0.0
    %7408 = vmatprep.subr.mxu0 0.0
    %7409 = vmatpush2.msra.mxu0 0.0
    %7410 = vmatprep.subr.mxu0 0.0
    %7411 = vmatpush2.msra.mxu0 0.0
    %7412 = vmatprep.subr.mxu0 0.0
    %7413 = vmatpush2.msra.mxu0 0.0
    %7414 = vmatprep.subr.mxu0 0.0
    %7415 = vmatpush2.msra.mxu0 0.0
    %7416 = vmatprep.subr.mxu0 0.0
    %7417 = vmatpush2.msra.mxu0 0.0
    %7418 = vmatprep.subr.mxu0 0.0
    %7419 = vmatpush2.msra.mxu0 0.0
    %7420 = vmatprep.subr.mxu0 0.0
    %7421 = vmatpush2.msra.mxu0 0.0
    %7422 = vmatprep.subr.mxu0 0.0
    %7423 = vmatpush2.msra.mxu0 0.0
    %7424 = vmatprep.subr.mxu0 0.0
    %7425 = vmatpush2.msra.mxu0 0.0
    %7426 = vmatprep.subr.mxu0 0.0
    %7427 = vmatpush2.msra.mxu0 0.0
    %7428 = vmatprep.mubr.f32.mxu0 0.0
    %7429 = vmatmul.mubr.f32.gmra.mxu0 %v7362
    %v7430 = vpop.f32.mrf.mxu0
    %v7431 = vadd.f32 0.0, %v7430
    %v7432 = vpop.f32.mrf.mxu0
    %7433 = vdwg.mxu0
    %v7434 = vld [vmem:[%s71] sm:$0x1]
    %v7435 = vmul.f32 %v7434, %v7431
    %v7436 = vld [vmem:[#allocation37] sm:$0x1]
    %v7437 = vmul.f32 %v7358, %v7435
    %v7438 = vsub.f32 %v7436, %v7437
    %v7440 = vlaneseq
    %v7441 = vshrl.u32 %v7440, 7
    %v7442 = vsub.s32 0, %v7441
    %v7443 = vrot.slane %v7435, %v7442
    %v7445 = vmul.f32 %v7114, %v7443
    %v7447 = vlaneseq
    %v7448 = vshrl.u32 %v7447, 7
    %v7449 = vsub.s32 0, %v7448
    %v7450 = vrot.slane %v7438, %v7449
    %v7452 = vadd.f32 %v7445, %v7450
    %v7453 = vmax.f32 %v7452, 0.0
    %v7454 = vpack.c.bf16 %v7453, %v7453
    %v7455 = vld [vmem:[%s75] sm:$0xf]
    %v7456 = vld [vmem:[%s75 + $0x4] sm:$0xf]
    %v7457 = vld [vmem:[%s75 + $0x8] sm:$0xf]
    %v7458 = vld [vmem:[%s75 + $0xc] sm:$0xf]
    %v7463 = vunpack.c.l.b16 %v7455
    %v7464 = vunpack.c.l.b16 %v7456
    %v7465 = vunpack.c.l.b16 %v7457
    %v7466 = vunpack.c.l.b16 %v7458
    %v7467 = vpack.c.b16 %v7464, %v7463
    %v7468 = vpack.c.b16 %v7466, %v7465
    %v7472 = vsel %vm2995, %v7454, 0
    %7474 = vmatprep.subr.bf16.mxu0 0
    %7475 = vmatpush1.bf16.msra.mxu0 0
    %7476 = vmatprep.subr.bf16.mxu0 0
    %7477 = vmatpush1.bf16.msra.mxu0 0
    %7478 = vmatprep.subr.bf16.mxu0 0
    %7479 = vmatpush1.bf16.msra.mxu0 0
    %7480 = vmatprep.subr.bf16.mxu0 0
    %7481 = vmatpush1.bf16.msra.mxu0 0
    %7482 = vmatprep.subr.bf16.mxu0 0
    %7483 = vmatpush1.bf16.msra.mxu0 0
    %7484 = vmatprep.subr.bf16.mxu0 0
    %7485 = vmatpush1.bf16.msra.mxu0 0
    %7486 = vmatprep.subr.bf16.mxu0 0
    %7487 = vmatpush1.bf16.msra.mxu0 %v7468
    %7488 = vmatprep.subr.bf16.mxu0 0
    %7489 = vmatpush1.bf16.msra.mxu0 %v7467
    %7490 = vmatprep.subr.bf16.mxu0 0
    %7491 = vmatpush2.bf16.msra.mxu0 0
    %7492 = vmatprep.subr.bf16.mxu0 0
    %7493 = vmatpush2.bf16.msra.mxu0 0
    %7494 = vmatprep.subr.bf16.mxu0 0
    %7495 = vmatpush2.bf16.msra.mxu0 0
    %7496 = vmatprep.subr.bf16.mxu0 0
    %7497 = vmatpush2.bf16.msra.mxu0 0
    %7498 = vmatprep.subr.bf16.mxu0 0
    %7499 = vmatpush2.bf16.msra.mxu0 0
    %7500 = vmatprep.subr.bf16.mxu0 0
    %7501 = vmatpush2.bf16.msra.mxu0 0
    %7502 = vmatprep.subr.bf16.mxu0 0
    %7503 = vmatpush2.bf16.msra.mxu0 0
    %7504 = vmatprep.subr.bf16.mxu0 0
    %7505 = vmatpush2.bf16.msra.mxu0 0
    %7506 = vmatprep.mubr.bf16.mxu0 0
    %7507 = vmatmul.mubr.bf16.gmra.mxu0 %v7472
    %v7508 = vpop.f32.mrf.mxu0
    %v7509 = vadd.f32 0.0, %v7508
    %v7510 = vpop.f32.mrf.mxu0
    %v7511 = vpop.f32.mrf.mxu0
    %v7512 = vpop.f32.mrf.mxu0
    %7513 = vdwg.mxu0
    %v7514 = vld [vmem:[%s77] sm:$0xf]
    %v7515 = vld [vmem:[%s77 + $0x4] sm:$0xf]
    %v7516 = vld [vmem:[%s77 + $0x8] sm:$0xf]
    %v7517 = vld [vmem:[%s77 + $0xc] sm:$0xf]
    %v7522 = vunpack.c.l.b16 %v7514
    %v7523 = vunpack.c.l.b16 %v7515
    %v7524 = vunpack.c.l.b16 %v7516
    %v7525 = vunpack.c.l.b16 %v7517
    %v7526 = vpack.c.b16 %v7523, %v7522
    %v7527 = vpack.c.b16 %v7525, %v7524
    %7530 = vmatprep.subr.bf16.mxu0 0
    %7531 = vmatpush1.bf16.msra.mxu0 0
    %7532 = vmatprep.subr.bf16.mxu0 0
    %7533 = vmatpush1.bf16.msra.mxu0 0
    %7534 = vmatprep.subr.bf16.mxu0 0
    %7535 = vmatpush1.bf16.msra.mxu0 0
    %7536 = vmatprep.subr.bf16.mxu0 0
    %7537 = vmatpush1.bf16.msra.mxu0 0
    %7538 = vmatprep.subr.bf16.mxu0 0
    %7539 = vmatpush1.bf16.msra.mxu0 0
    %7540 = vmatprep.subr.bf16.mxu0 0
    %7541 = vmatpush1.bf16.msra.mxu0 0
    %7542 = vmatprep.subr.bf16.mxu0 0
    %7543 = vmatpush1.bf16.msra.mxu0 %v7527
    %7544 = vmatprep.subr.bf16.mxu0 0
    %7545 = vmatpush1.bf16.msra.mxu0 %v7526
    %7546 = vmatprep.subr.bf16.mxu0 0
    %7547 = vmatpush2.bf16.msra.mxu0 0
    %7548 = vmatprep.subr.bf16.mxu0 0
    %7549 = vmatpush2.bf16.msra.mxu0 0
    %7550 = vmatprep.subr.bf16.mxu0 0
    %7551 = vmatpush2.bf16.msra.mxu0 0
    %7552 = vmatprep.subr.bf16.mxu0 0
    %7553 = vmatpush2.bf16.msra.mxu0 0
    %7554 = vmatprep.subr.bf16.mxu0 0
    %7555 = vmatpush2.bf16.msra.mxu0 0
    %7556 = vmatprep.subr.bf16.mxu0 0
    %7557 = vmatpush2.bf16.msra.mxu0 0
    %7558 = vmatprep.subr.bf16.mxu0 0
    %7559 = vmatpush2.bf16.msra.mxu0 0
    %7560 = vmatprep.subr.bf16.mxu0 0
    %7561 = vmatpush2.bf16.msra.mxu0 0
    %7562 = vmatprep.mubr.bf16.mxu0 0
    %7563 = vmatmul.mubr.bf16.gmra.mxu0 %v7472
    %v7564 = vpop.f32.mrf.mxu0
    %v7565 = vadd.f32 0.0, %v7564
    %v7566 = vpop.f32.mrf.mxu0
    %v7567 = vpop.f32.mrf.mxu0
    %v7568 = vpop.f32.mrf.mxu0
    %7569 = vdwg.mxu0
    %v7570 = vmax.f32 %v7509, %v7565
    %v7571 = vpack.c.bf16 %v7570, %v7570
    %v7572 = vld [vmem:[#allocation38] sm:$0x3]
    %v7574 = vsel %vm2170, %v7572, 0
    %v7577 = vsel %vm6504, %v7571, 0
    %7579 = vmatprep.subr.bf16.mxu0 0
    %7580 = vmatpush1.bf16.msra.mxu0 0
    %7581 = vmatprep.subr.bf16.mxu0 0
    %7582 = vmatpush1.bf16.msra.mxu0 0
    %7583 = vmatprep.subr.bf16.mxu0 0
    %7584 = vmatpush1.bf16.msra.mxu0 0
    %7585 = vmatprep.subr.bf16.mxu0 0
    %7586 = vmatpush1.bf16.msra.mxu0 0
    %7587 = vmatprep.subr.bf16.mxu0 0
    %7588 = vmatpush1.bf16.msra.mxu0 0
    %7589 = vmatprep.subr.bf16.mxu0 0
    %7590 = vmatpush1.bf16.msra.mxu0 0
    %7591 = vmatprep.subr.bf16.mxu0 0
    %7592 = vmatpush1.bf16.msra.mxu0 0
    %7593 = vmatprep.subr.bf16.mxu0 0
    %7594 = vmatpush1.bf16.msra.mxu0 %v7577
    %7595 = vmatprep.subr.bf16.mxu0 0
    %7596 = vmatpush2.bf16.msra.mxu0 0
    %7597 = vmatprep.subr.bf16.mxu0 0
    %7598 = vmatpush2.bf16.msra.mxu0 0
    %7599 = vmatprep.subr.bf16.mxu0 0
    %7600 = vmatpush2.bf16.msra.mxu0 0
    %7601 = vmatprep.subr.bf16.mxu0 0
    %7602 = vmatpush2.bf16.msra.mxu0 0
    %7603 = vmatprep.subr.bf16.mxu0 0
    %7604 = vmatpush2.bf16.msra.mxu0 0
    %7605 = vmatprep.subr.bf16.mxu0 0
    %7606 = vmatpush2.bf16.msra.mxu0 0
    %7607 = vmatprep.subr.bf16.mxu0 0
    %7608 = vmatpush2.bf16.msra.mxu0 0
    %7609 = vmatprep.subr.bf16.mxu0 0
    %7610 = vmatpush2.bf16.msra.mxu0 0
    %7611 = vmatprep.mubr.bf16.mxu0 0
    %7612 = vmatmul.mubr.bf16.gmra.mxu0 %v7574
    %v7613 = vpop.f32.mrf.mxu0
    %v7614 = vadd.f32 0.0, %v7613
    %v7615 = vpop.f32.mrf.mxu0
    %v7616 = vpop.f32.mrf.mxu0
    %v7617 = vpop.f32.mrf.mxu0
    %7618 = vdwg.mxu0
    %v7619 = vld [vmem:[#allocation40] sm:$0x3]
    %v7621 = vsel %vm2170, %v7619, 0
    %7623 = vmatprep.subr.bf16.mxu0 0
    %7624 = vmatpush1.bf16.msra.mxu0 0
    %7625 = vmatprep.subr.bf16.mxu0 0
    %7626 = vmatpush1.bf16.msra.mxu0 0
    %7627 = vmatprep.subr.bf16.mxu0 0
    %7628 = vmatpush1.bf16.msra.mxu0 0
    %7629 = vmatprep.subr.bf16.mxu0 0
    %7630 = vmatpush1.bf16.msra.mxu0 0
    %7631 = vmatprep.subr.bf16.mxu0 0
    %7632 = vmatpush1.bf16.msra.mxu0 0
    %7633 = vmatprep.subr.bf16.mxu0 0
    %7634 = vmatpush1.bf16.msra.mxu0 0
    %7635 = vmatprep.subr.bf16.mxu0 0
    %7636 = vmatpush1.bf16.msra.mxu0 0
    %7637 = vmatprep.subr.bf16.mxu0 0
    %7638 = vmatpush1.bf16.msra.mxu0 %v7577
    %7639 = vmatprep.subr.bf16.mxu0 0
    %7640 = vmatpush2.bf16.msra.mxu0 0
    %7641 = vmatprep.subr.bf16.mxu0 0
    %7642 = vmatpush2.bf16.msra.mxu0 0
    %7643 = vmatprep.subr.bf16.mxu0 0
    %7644 = vmatpush2.bf16.msra.mxu0 0
    %7645 = vmatprep.subr.bf16.mxu0 0
    %7646 = vmatpush2.bf16.msra.mxu0 0
    %7647 = vmatprep.subr.bf16.mxu0 0
    %7648 = vmatpush2.bf16.msra.mxu0 0
    %7649 = vmatprep.subr.bf16.mxu0 0
    %7650 = vmatpush2.bf16.msra.mxu0 0
    %7651 = vmatprep.subr.bf16.mxu0 0
    %7652 = vmatpush2.bf16.msra.mxu0 0
    %7653 = vmatprep.subr.bf16.mxu0 0
    %7654 = vmatpush2.bf16.msra.mxu0 0
    %7655 = vmatprep.mubr.bf16.mxu0 0
    %7656 = vmatmul.mubr.bf16.gmra.mxu0 %v7621
    %v7657 = vpop.f32.mrf.mxu0
    %v7658 = vadd.f32 0.0, %v7657
    %v7659 = vpop.f32.mrf.mxu0
    %v7660 = vpop.f32.mrf.mxu0
    %v7661 = vpop.f32.mrf.mxu0
    %7662 = vdwg.mxu0
    %v7663 = vmax.f32 %v7614, %v7658
    %v7664 = vpack.c.bf16 %v7663, %v7663
    %v7665 = vld [vmem:[#allocation41] sm:$0x1]
    %vm7666 = vcmask 31744
    %v7668 = vsel %vm7666, %v7665, 0
    %vm7670 = vcmask 1041408
    %v7672 = vsel %vm7670, %v7664, 0
    %7674 = vmatprep.subr.bf16.mxu0 0
    %7675 = vmatpush1.bf16.msra.mxu0 0
    %7676 = vmatprep.subr.bf16.mxu0 0
    %7677 = vmatpush1.bf16.msra.mxu0 0
    %7678 = vmatprep.subr.bf16.mxu0 0
    %7679 = vmatpush1.bf16.msra.mxu0 0
    %7680 = vmatprep.subr.bf16.mxu0 0
    %7681 = vmatpush1.bf16.msra.mxu0 0
    %7682 = vmatprep.subr.bf16.mxu0 0
    %7683 = vmatpush1.bf16.msra.mxu0 0
    %7684 = vmatprep.subr.bf16.mxu0 0
    %7685 = vmatpush1.bf16.msra.mxu0 0
    %7686 = vmatprep.subr.bf16.mxu0 0
    %7687 = vmatpush1.bf16.msra.mxu0 0
    %7688 = vmatprep.subr.bf16.mxu0 0
    %7689 = vmatpush1.bf16.msra.mxu0 %v7672
    %7690 = vmatprep.subr.bf16.mxu0 0
    %7691 = vmatpush2.bf16.msra.mxu0 0
    %7692 = vmatprep.subr.bf16.mxu0 0
    %7693 = vmatpush2.bf16.msra.mxu0 0
    %7694 = vmatprep.subr.bf16.mxu0 0
    %7695 = vmatpush2.bf16.msra.mxu0 0
    %7696 = vmatprep.subr.bf16.mxu0 0
    %7697 = vmatpush2.bf16.msra.mxu0 0
    %7698 = vmatprep.subr.bf16.mxu0 0
    %7699 = vmatpush2.bf16.msra.mxu0 0
    %7700 = vmatprep.subr.bf16.mxu0 0
    %7701 = vmatpush2.bf16.msra.mxu0 0
    %7702 = vmatprep.subr.bf16.mxu0 0
    %7703 = vmatpush2.bf16.msra.mxu0 0
    %7704 = vmatprep.subr.bf16.mxu0 0
    %7705 = vmatpush2.bf16.msra.mxu0 0
    %7706 = vmatprep.mubr.bf16.mxu0 0
    %7707 = vmatmul.mubr.bf16.gmra.mxu0 %v7668
    %v7708 = vpop.f32.mrf.mxu0
    %v7709 = vadd.f32 0.0, %v7708
    %v7710 = vpop.f32.mrf.mxu0
    %v7711 = vpop.f32.mrf.mxu0
    %v7712 = vpop.f32.mrf.mxu0
    %7713 = vdwg.mxu0
    %v7714 = vpack.c.bf16 %v7709, %v7709
    %v7715 = vld [vmem:[%s83] sm:$0xf]
    %v7716 = vld [vmem:[%s83 + $0x4] sm:$0xf]
    %s7717 = scalar_lea.vmem [#allocation41], 1
    %v7718 = vld [vmem:[%s7717] sm:$0x1]
    %v7720 = vsel %vm7666, %v7718, 0
    %7722 = vmatprep.subr.bf16.mxu0 0
    %7723 = vmatpush1.bf16.msra.mxu0 0
    %7724 = vmatprep.subr.bf16.mxu0 0
    %7725 = vmatpush1.bf16.msra.mxu0 0
    %7726 = vmatprep.subr.bf16.mxu0 0
    %7727 = vmatpush1.bf16.msra.mxu0 0
    %7728 = vmatprep.subr.bf16.mxu0 0
    %7729 = vmatpush1.bf16.msra.mxu0 0
    %7730 = vmatprep.subr.bf16.mxu0 0
    %7731 = vmatpush1.bf16.msra.mxu0 0
    %7732 = vmatprep.subr.bf16.mxu0 0
    %7733 = vmatpush1.bf16.msra.mxu0 0
    %7734 = vmatprep.subr.bf16.mxu0 0
    %7735 = vmatpush1.bf16.msra.mxu0 0
    %7736 = vmatprep.subr.bf16.mxu0 0
    %7737 = vmatpush1.bf16.msra.mxu0 %v7672
    %7738 = vmatprep.subr.bf16.mxu0 0
    %7739 = vmatpush2.bf16.msra.mxu0 0
    %7740 = vmatprep.subr.bf16.mxu0 0
    %7741 = vmatpush2.bf16.msra.mxu0 0
    %7742 = vmatprep.subr.bf16.mxu0 0
    %7743 = vmatpush2.bf16.msra.mxu0 0
    %7744 = vmatprep.subr.bf16.mxu0 0
    %7745 = vmatpush2.bf16.msra.mxu0 0
    %7746 = vmatprep.subr.bf16.mxu0 0
    %7747 = vmatpush2.bf16.msra.mxu0 0
    %7748 = vmatprep.subr.bf16.mxu0 0
    %7749 = vmatpush2.bf16.msra.mxu0 0
    %7750 = vmatprep.subr.bf16.mxu0 0
    %7751 = vmatpush2.bf16.msra.mxu0 0
    %7752 = vmatprep.subr.bf16.mxu0 0
    %7753 = vmatpush2.bf16.msra.mxu0 0
    %7754 = vmatprep.mubr.bf16.mxu0 0
    %7755 = vmatmul.mubr.bf16.gmra.mxu0 %v7720
    %v7756 = vpop.f32.mrf.mxu0
    %v7757 = vadd.f32 0.0, %v7756
    %v7758 = vpop.f32.mrf.mxu0
    %v7759 = vpop.f32.mrf.mxu0
    %v7760 = vpop.f32.mrf.mxu0
    %7761 = vdwg.mxu0
    %v7762 = vpack.c.bf16 %v7757, %v7757
    %s7763 = scalar_lea.vmem %s83, 8
    %v7764 = vld [vmem:[%s7763] sm:$0xf]
    %v7765 = vld [vmem:[%s7763 + $0x4] sm:$0xf]
    %v7768 = vunpack.c.l.b16 %v7764
    %v7769 = vunpack.c.l.b16 %v7765
    %v7770 = vpack.c.b16 %v7769, %v7768
    %v7773 = vsel %vm4341, %v7762, 0
    %7775 = vmatprep.subr.bf16.mxu0 0
    %7776 = vmatpush1.bf16.msra.mxu0 0
    %7777 = vmatprep.subr.bf16.mxu0 0
    %7778 = vmatpush1.bf16.msra.mxu0 0
    %7779 = vmatprep.subr.bf16.mxu0 0
    %7780 = vmatpush1.bf16.msra.mxu0 0
    %7781 = vmatprep.subr.bf16.mxu0 0
    %7782 = vmatpush1.bf16.msra.mxu0 0
    %7783 = vmatprep.subr.bf16.mxu0 0
    %7784 = vmatpush1.bf16.msra.mxu0 0
    %7785 = vmatprep.subr.bf16.mxu0 0
    %7786 = vmatpush1.bf16.msra.mxu0 0
    %7787 = vmatprep.subr.bf16.mxu0 0
    %7788 = vmatpush1.bf16.msra.mxu0 0
    %7789 = vmatprep.subr.bf16.mxu0 0
    %7790 = vmatpush1.bf16.msra.mxu0 %v7770
    %7791 = vmatprep.subr.bf16.mxu0 0
    %7792 = vmatpush2.bf16.msra.mxu0 0
    %7793 = vmatprep.subr.bf16.mxu0 0
    %7794 = vmatpush2.bf16.msra.mxu0 0
    %7795 = vmatprep.subr.bf16.mxu0 0
    %7796 = vmatpush2.bf16.msra.mxu0 0
    %7797 = vmatprep.subr.bf16.mxu0 0
    %7798 = vmatpush2.bf16.msra.mxu0 0
    %7799 = vmatprep.subr.bf16.mxu0 0
    %7800 = vmatpush2.bf16.msra.mxu0 0
    %7801 = vmatprep.subr.bf16.mxu0 0
    %7802 = vmatpush2.bf16.msra.mxu0 0
    %7803 = vmatprep.subr.bf16.mxu0 0
    %7804 = vmatpush2.bf16.msra.mxu0 0
    %7805 = vmatprep.subr.bf16.mxu0 0
    %7806 = vmatpush2.bf16.msra.mxu0 0
    %7807 = vmatprep.mubr.bf16.mxu0 0
    %7808 = vmatmul.mubr.bf16.gmra.mxu0 %v7773
    %v7809 = vpop.f32.mrf.mxu0
    %v7810 = vadd.f32 0.0, %v7809
    %v7811 = vpop.f32.mrf.mxu0
    %v7812 = vpop.f32.mrf.mxu0
    %v7813 = vpop.f32.mrf.mxu0
    %7814 = vdwg.mxu0
    %v7817 = vunpack.c.l.b16 %v7715
    %v7818 = vunpack.c.l.b16 %v7716
    %v7819 = vpack.c.b16 %v7818, %v7817
    %v7822 = vsel %vm4341, %v7714, 0
    %7824 = vmatprep.subr.bf16.mxu0 0
    %7825 = vmatpush1.bf16.msra.mxu0 0
    %7826 = vmatprep.subr.bf16.mxu0 0
    %7827 = vmatpush1.bf16.msra.mxu0 0
    %7828 = vmatprep.subr.bf16.mxu0 0
    %7829 = vmatpush1.bf16.msra.mxu0 0
    %7830 = vmatprep.subr.bf16.mxu0 0
    %7831 = vmatpush1.bf16.msra.mxu0 0
    %7832 = vmatprep.subr.bf16.mxu0 0
    %7833 = vmatpush1.bf16.msra.mxu0 0
    %7834 = vmatprep.subr.bf16.mxu0 0
    %7835 = vmatpush1.bf16.msra.mxu0 0
    %7836 = vmatprep.subr.bf16.mxu0 0
    %7837 = vmatpush1.bf16.msra.mxu0 0
    %7838 = vmatprep.subr.bf16.mxu0 0
    %7839 = vmatpush1.bf16.msra.mxu0 %v7819
    %7840 = vmatprep.subr.bf16.mxu0 0
    %7841 = vmatpush2.bf16.msra.mxu0 0
    %7842 = vmatprep.subr.bf16.mxu0 0
    %7843 = vmatpush2.bf16.msra.mxu0 0
    %7844 = vmatprep.subr.bf16.mxu0 0
    %7845 = vmatpush2.bf16.msra.mxu0 0
    %7846 = vmatprep.subr.bf16.mxu0 0
    %7847 = vmatpush2.bf16.msra.mxu0 0
    %7848 = vmatprep.subr.bf16.mxu0 0
    %7849 = vmatpush2.bf16.msra.mxu0 0
    %7850 = vmatprep.subr.bf16.mxu0 0
    %7851 = vmatpush2.bf16.msra.mxu0 0
    %7852 = vmatprep.subr.bf16.mxu0 0
    %7853 = vmatpush2.bf16.msra.mxu0 0
    %7854 = vmatprep.subr.bf16.mxu0 0
    %7855 = vmatpush2.bf16.msra.mxu0 0
    %7856 = vmatprep.mubr.bf16.mxu0 0
    %7857 = vmatmul.mubr.bf16.gmra.mxu0 %v7822
    %v7858 = vpop.f32.mrf.mxu0
    %v7859 = vadd.f32 %v7810, %v7858
    %v7860 = vpop.f32.mrf.mxu0
    %v7861 = vpop.f32.mrf.mxu0
    %v7862 = vpop.f32.mrf.mxu0
    %7863 = vdwg.mxu0
    %v7864 = vld [vmem:[#allocation43] sm:$0x1]
    %v7866 = vlaneseq
    %v7867 = vshrl.u32 %v7866, 7
    %v7868 = vsub.s32 0, %v7867
    %v7869 = vrot.slane %v7864, %v7868
    %v7871 = vadd.f32 %v7859, %v7869
    %vm7872 = vcmask 41984
    %v7873 = vsel %vm7872, %v7871, -inf
    %7874 = vmax.xlane.f32.xlu0 %v7873
    %v7875 = vpop.xlane.xlu0 %7874
    %v7876 = vsub.f32 %v7871, %v7875
    %v7877 = vmul.f32 %v7876, 1.442695
    %v7878 = vpow.pop %v7877
    %v7879 = vsel %vm7872, %v7878, 0.0
    %7880 = vadd.xlane.f32.xlu0 %v7879
    %v7881 = vpop.xlane.xlu0 %7880
    %v7882 = vlog2.pop %v7881
    %v7883 = vmul.f32 %v7882, 0.6931472
    %v7884 = vsub.f32 %v7876, %v7883
    %7885 = vst.msk [vmem:[#allocation44] sm:$0x3] %vm7872, %v7884
    // Predicated region
    $region286: #{forward.1} parent=1 // pred_check
      _
    $region287: #{forward.1} parent=1 // pred_check_branch
      %7887 = sbr.rel (0) target = $region289
    $region288: #{forward.1} parent=1 // pred_region
      %s7889 = ssub.s32 32, 32
      %7890 = vsyncadd [#allocation4], %s7889
      %s7892 = sshll.u32 [#allocation44], 4
      %s7893 = int_to_ptr.vmem [resolvable:$true] %s7892
      %7895 = dma.vmem_to_hbm [thread:$0]  %s7893, 32, %s89, [#allocation4]
    $region289: #{forward.1} parent=1 // pred_fallthru
      _
    // Predicated region
    $region290: #{forward.1} parent=1 // pred_check
      _
    $region291: #{forward.1} parent=1 // pred_check_branch
      %7897 = sbr.rel (0) target = $region293
    $region292: #{forward.1} parent=1 // pred_region
      %7898 = dma.done [#allocation4], 32
    $region293: #{forward.1} parent=1 // pred_fallthru
      _
    %7899 = vsyncpa [#allocation3], 1
    %7900 = vsyncpa [#allocation6], 1
    %7901 = vsyncpa [#allocation9], 1
    %7902 = vsyncpa [#allocation12], 1
    %7903 = vsyncpa [#allocation15], 1
    %7904 = vsyncpa [#allocation18], 1
    %7905 = vsyncpa [#allocation21], 1
    %7906 = vsyncpa [#allocation24], 1
    %7907 = vsyncpa [#allocation27], 1
    %7908 = vsyncpa [#allocation30], 1
    %7909 = vsyncpa [#allocation33], 1
    %7910 = vsyncpa [#allocation36], 1
    %7911 = vsyncpa [#allocation39], 1
    %7912 = vsyncpa [#allocation42], 1
    %7913 = vsyncpa [#allocation4], 1

</llo_original>
